<compile_context>
chip_gen: v7x
topology: tpu7x:2x2x1
jax: 0.10.0
libtpu: 0.0.40
codegen_flags: <defaults>
</compile_context>

<pallas_src>
import jax
import jax.numpy as jnp
from jax import lax
from jax.experimental import pallas as pl
from jax.experimental.pallas import tpu as pltpu


# ----------------------------- Pallas kernel ------------------------------- #

def _reflect_pad_into(dst_ref, x):
    """Write ReflectionPad2d(1) of x (H, W, C) into VMEM scratch dst_ref (H+2, W+2, C)."""
    H, W, _ = x.shape
    dst_ref[1:H + 1, 1:W + 1, :] = x
    # top / bottom reflected rows
    dst_ref[0:1, 1:W + 1, :] = x[1:2]
    dst_ref[H + 1:H + 2, 1:W + 1, :] = x[H - 2:H - 1]
    # left / right reflected columns (corners come for free: rows already set)
    dst_ref[:, 0:1, :] = dst_ref[:, 2:3, :]
    dst_ref[:, W + 1:W + 2, :] = dst_ref[:, W - 1:W, :]


def _conv3x3(xp_ref, w_bf, b, H, W):
    """3x3 valid conv on an already reflection-padded (H+2, W+2, C) VMEM scratch.

    xp_ref: f32 VMEM scratch holding the padded activation.
    w_bf  : (3, 3, C, Cout) bf16 weights (value).
    b     : (1, Cout) f32 bias (value).
    Returns (H*W, Cout) f32.
    """
    C = xp_ref.shape[-1]
    Cout = w_bf.shape[-1]
    acc = jnp.zeros((H * W, Cout), jnp.float32)
    # 9 shifted MXU matmuls over the lane-aligned channel axis (K = C = 128*k).
    for dy in range(3):
        for dx in range(3):
            patch = xp_ref[dy:dy + H, dx:dx + W, :]
            patch = patch.astype(jnp.bfloat16).reshape(H * W, C)
            acc = acc + jnp.dot(patch, w_bf[dy, dx],
                                preferred_element_type=jnp.float32)
    return acc + b                    # (H*W, Cout) + (1, Cout)


def _residual_block_kernel(x_ref, w1_ref, b1_ref, w2_ref, b2_ref, o_ref,
                           xp_sc, hp_sc):
    _, H, W, Cp = o_ref.shape

    # --- conv1 + ReLU (padded input lives only in VMEM scratch) -------------
    _reflect_pad_into(xp_sc, x_ref[0])
    h = _conv3x3(xp_sc, w1_ref[...], b1_ref[...], H, W)
    h = jnp.maximum(h, 0.0)

    # --- conv2 + residual (intermediate h stays on-chip) --------------------
    _reflect_pad_into(hp_sc, h.reshape(H, W, Cp))
    out = _conv3x3(hp_sc, w2_ref[...], b2_ref[...], H, W)
    o_ref[0] = (out.reshape(H, W, Cp) + x_ref[0]).astype(o_ref.dtype)


# ------------------------------- Wrapper ------------------------------------ #

def _round_up(x, m):
    return ((x + m - 1) // m) * m


@jax.jit
def residual_block_forward(x_nchw, w1, b1, w2, b2):
    """Pallas implementation of ResidualBlock.forward (input/output are NCHW)."""
    N, C, H, W = x_nchw.shape
    Cp = _round_up(C, 128)            # lane-align channels (MXU K, dense stores)
    pc = Cp - C

    x = jnp.transpose(x_nchw, (0, 2, 3, 1))                        # NCHW -> NHWC
    x = jnp.pad(x, ((0, 0), (0, 0), (0, 0), (0, pc)))
    w1p = jnp.pad(w1, ((0, 0), (0, 0), (0, pc), (0, pc))).astype(jnp.bfloat16)
    w2p = jnp.pad(w2, ((0, 0), (0, 0), (0, pc), (0, pc))).astype(jnp.bfloat16)
    b1p = jnp.pad(b1, ((0, 0), (0, pc)))
    b2p = jnp.pad(b2, ((0, 0), (0, pc)))

    # Grid over batch; each step handles one whole (H, W) image.  For large
    # spatial sizes one would additionally tile H with a 1-row reflect halo.
    out = pl.pallas_call(
        _residual_block_kernel,
        out_shape=jax.ShapeDtypeStruct((N, H, W, Cp), x.dtype),
        grid_spec=pltpu.PrefetchScalarGridSpec(
            num_scalar_prefetch=0,
            grid=(N,),
            in_specs=[
                pl.BlockSpec((1, H, W, Cp), lambda n: (n, 0, 0, 0)),   # x
                pl.BlockSpec((3, 3, Cp, Cp), lambda n: (0, 0, 0, 0)),  # w1
                pl.BlockSpec((1, Cp), lambda n: (0, 0)),               # b1
                pl.BlockSpec((3, 3, Cp, Cp), lambda n: (0, 0, 0, 0)),  # w2
                pl.BlockSpec((1, Cp), lambda n: (0, 0)),               # b2
            ],
            out_specs=pl.BlockSpec((1, H, W, Cp), lambda n: (n, 0, 0, 0)),
            scratch_shapes=[
                pltpu.VMEM((H + 2, W + 2, Cp), jnp.float32),   # padded x
                pltpu.VMEM((H + 2, W + 2, Cp), jnp.float32),   # padded h
            ],
        ),
        compiler_params=pltpu.CompilerParams(
            dimension_semantics=("parallel",),
            vmem_limit_bytes=32 * 1024 * 1024,
        ),
    )(x, w1p, b1p, w2p, b2p)

    out = out[:, :, :, :C]
    return jnp.transpose(out, (0, 3, 1, 2))                        # NHWC -> NCHW


# --------------------------- Parameter init -------------------------------- #

def init_residual_block_params(key, channels):
    """Deterministic params mimicking torch.nn.Conv2d default init.

    Weights are HWIO: (3, 3, C_in, C_out); biases are (1, C_out).
    """
    fan_in = channels * 3 * 3
    bound = 1.0 / jnp.sqrt(jnp.float32(fan_in))
    k1, k2, k3, k4 = jax.random.split(key, 4)
    w1 = jax.random.uniform(k1, (3, 3, channels, channels), jnp.float32,
                            -bound, bound)
    b1 = jax.random.uniform(k2, (1, channels), jnp.float32, -bound, bound)
    w2 = jax.random.uniform(k3, (3, 3, channels, channels), jnp.float32,
                            -bound, bound)
    b2 = jax.random.uniform(k4, (1, channels), jnp.float32, -bound, bound)
    return w1, b1, w2, b2


# ----------------------------- Reference (JAX) ------------------------------ #

def _ref_conv_layer(x_nhwc, w, b):
    xp = jnp.pad(x_nhwc, ((0, 0), (1, 1), (1, 1), (0, 0)), mode="reflect")
    y = lax.conv_general_dilated(
        xp, w, window_strides=(1, 1), padding="VALID",
        dimension_numbers=("NHWC", "HWIO", "NHWC"),
        precision=lax.Precision.HIGHEST)
    return y + b.reshape(1, 1, 1, -1)


def residual_block_reference(x_nchw, w1, b1, w2, b2):
    x = jnp.transpose(x_nchw, (0, 2, 3, 1))
    h = jnp.maximum(_ref_conv_layer(x, w1, b1), 0.0)
    out = _ref_conv_layer(h, w2, b2) + x
    return jnp.transpose(out, (0, 3, 1, 2))


# --------------------------------- Main ------------------------------------ #

if __name__ == "__main__":
    key = jax.random.PRNGKey(0)
    k_x, k_p = jax.random.split(key)

    N, C, H, W = 2, 4, 16, 16                      # x: (2, 4, 16, 16) NCHW
    x = jax.random.normal(k_x, (N, C, H, W), jnp.float32)
    w1, b1, w2, b2 = init_residual_block_params(k_p, C)

    out = residual_block_forward(x, w1, b1, w2, b2)
    out = jax.block_until_ready(out)

    ref = residual_block_reference(x, w1, b1, w2, b2)
    assert out.shape == (N, C, H, W)
    # Tolerance loosened for bf16-fed MXU (f32 accumulation).
    assert jnp.allclose(out, ref, rtol=5e-2, atol=5e-2), (
        f"max abs err = {jnp.max(jnp.abs(out - ref))}")

    print("KERNEL_OK")
</pallas_src>

<mosaic_0001>
module attributes {stable_mosaic.version = 11 : i64} {
  func.func @_residual_block_kernel(%arg0: i32, %arg1: memref<1x16x16x128xf32, #tpu.memory_space<vmem>>, %arg2: memref<3x3x128x128xbf16, #tpu.memory_space<vmem>>, %arg3: memref<1x128xf32, #tpu.memory_space<vmem>>, %arg4: memref<3x3x128x128xbf16, #tpu.memory_space<vmem>>, %arg5: memref<1x128xf32, #tpu.memory_space<vmem>>, %arg6: memref<1x16x16x128xf32, #tpu.memory_space<vmem>>, %arg7: memref<18x18x128xf32, #tpu.memory_space<vmem>>, %arg8: memref<18x18x128xf32, #tpu.memory_space<vmem>>) attributes {dimension_semantics = [#tpu.dimension_semantics<parallel>], iteration_bounds = array<i64: 2>, scalar_prefetch = 0 : i64, scratch_operands = 2 : i64, tpu.core_type = #tpu.core_type<tc>, window_params = [{transform_indices = @transform_0, window_bounds = array<i64: 1, 16, 16, 128>}, {pipeline_mode = #tpu.pipeline_mode<synchronous>, transform_indices = @transform_1, window_bounds = array<i64: 3, 3, 128, 128>}, {pipeline_mode = #tpu.pipeline_mode<synchronous>, transform_indices = @transform_2, window_bounds = array<i64: 1, 128>}, {pipeline_mode = #tpu.pipeline_mode<synchronous>, transform_indices = @transform_3, window_bounds = array<i64: 3, 3, 128, 128>}, {pipeline_mode = #tpu.pipeline_mode<synchronous>, transform_indices = @transform_4, window_bounds = array<i64: 1, 128>}, {transform_indices = @transform_5, window_bounds = array<i64: 1, 16, 16, 128>}]} {
    %c0 = arith.constant 0 : index
    %c0_0 = arith.constant 0 : index
    %c0_1 = arith.constant 0 : index
    %c0_2 = arith.constant 0 : index
    %0 = vector.load %arg1[%c0, %c0_0, %c0_1, %c0_2] : memref<1x16x16x128xf32, #tpu.memory_space<vmem>>, vector<1x16x16x128xf32>
    %1 = vector.shape_cast %0 : vector<1x16x16x128xf32> to vector<16x16x128xf32>
    %c1 = arith.constant 1 : index
    %c1_3 = arith.constant 1 : index
    %c0_4 = arith.constant 0 : index
    %2 = vector.load %arg7[%c1, %c1_3, %c0_4] : memref<18x18x128xf32, #tpu.memory_space<vmem>>, vector<16x16x128xf32>
    tpu.vector_store %arg7[%c1, %c1_3, %c0_4], %1 {strides = array<i32>} : memref<18x18x128xf32, #tpu.memory_space<vmem>>, vector<16x16x128xf32>,
    %3 = vector.extract_strided_slice %1 {offsets = [1, 0, 0], sizes = [1, 16, 128], strides = [1, 1, 1]} : vector<16x16x128xf32> to vector<1x16x128xf32>
    %c0_5 = arith.constant 0 : index
    %c1_6 = arith.constant 1 : index
    %c0_7 = arith.constant 0 : index
    %4 = vector.load %arg7[%c0_5, %c1_6, %c0_7] : memref<18x18x128xf32, #tpu.memory_space<vmem>>, vector<1x16x128xf32>
    tpu.vector_store %arg7[%c0_5, %c1_6, %c0_7], %3 {strides = array<i32>} : memref<18x18x128xf32, #tpu.memory_space<vmem>>, vector<1x16x128xf32>,
    %5 = vector.extract_strided_slice %1 {offsets = [14, 0, 0], sizes = [1, 16, 128], strides = [1, 1, 1]} : vector<16x16x128xf32> to vector<1x16x128xf32>
    %c17 = arith.constant 17 : index
    %c1_8 = arith.constant 1 : index
    %c0_9 = arith.constant 0 : index
    %6 = vector.load %arg7[%c17, %c1_8, %c0_9] : memref<18x18x128xf32, #tpu.memory_space<vmem>>, vector<1x16x128xf32>
    tpu.vector_store %arg7[%c17, %c1_8, %c0_9], %5 {strides = array<i32>} : memref<18x18x128xf32, #tpu.memory_space<vmem>>, vector<1x16x128xf32>,
    %c0_10 = arith.constant 0 : index
    %c2 = arith.constant 2 : index
    %c0_11 = arith.constant 0 : index
    %7 = vector.load %arg7[%c0_10, %c2, %c0_11] : memref<18x18x128xf32, #tpu.memory_space<vmem>>, vector<18x1x128xf32>
    %c0_12 = arith.constant 0 : index
    %c0_13 = arith.constant 0 : index
    %c0_14 = arith.constant 0 : index
    %8 = vector.load %arg7[%c0_12, %c0_13, %c0_14] : memref<18x18x128xf32, #tpu.memory_space<vmem>>, vector<18x1x128xf32>
    tpu.vector_store %arg7[%c0_12, %c0_13, %c0_14], %7 {strides = array<i32>} : memref<18x18x128xf32, #tpu.memory_space<vmem>>, vector<18x1x128xf32>,
    %c0_15 = arith.constant 0 : index
    %c15 = arith.constant 15 : index
    %c0_16 = arith.constant 0 : index
    %9 = vector.load %arg7[%c0_15, %c15, %c0_16] : memref<18x18x128xf32, #tpu.memory_space<vmem>>, vector<18x1x128xf32>
    %c0_17 = arith.constant 0 : index
    %c17_18 = arith.constant 17 : index
    %c0_19 = arith.constant 0 : index
    %10 = vector.load %arg7[%c0_17, %c17_18, %c0_19] : memref<18x18x128xf32, #tpu.memory_space<vmem>>, vector<18x1x128xf32>
    tpu.vector_store %arg7[%c0_17, %c17_18, %c0_19], %9 {strides = array<i32>} : memref<18x18x128xf32, #tpu.memory_space<vmem>>, vector<18x1x128xf32>,
    %c0_20 = arith.constant 0 : index
    %c0_21 = arith.constant 0 : index
    %c0_22 = arith.constant 0 : index
    %c0_23 = arith.constant 0 : index
    %11 = vector.load %arg2[%c0_20, %c0_21, %c0_22, %c0_23] : memref<3x3x128x128xbf16, #tpu.memory_space<vmem>>, vector<3x3x128x128xbf16>
    %c0_24 = arith.constant 0 : index
    %c0_25 = arith.constant 0 : index
    %12 = vector.load %arg3[%c0_24, %c0_25] : memref<1x128xf32, #tpu.memory_space<vmem>>, vector<1x128xf32>
    %cst = arith.constant 0.000000e+00 : f32
    %13 = vector.broadcast %cst : f32 to vector<256x128xf32>
    %c0_26 = arith.constant 0 : index
    %c0_27 = arith.constant 0 : index
    %c0_28 = arith.constant 0 : index
    %14 = vector.load %arg7[%c0_26, %c0_27, %c0_28] : memref<18x18x128xf32, #tpu.memory_space<vmem>>, vector<16x16x128xf32>
    %15 = arith.truncf %14 : vector<16x16x128xf32> to vector<16x16x128xbf16>
    %16 = vector.shape_cast %15 : vector<16x16x128xbf16> to vector<256x128xbf16>
    %17 = vector.extract_strided_slice %11 {offsets = [0, 0, 0, 0], sizes = [1, 1, 128, 128], strides = [1, 1, 1, 1]} : vector<3x3x128x128xbf16> to vector<1x1x128x128xbf16>
    %18 = vector.shape_cast %17 : vector<1x1x128x128xbf16> to vector<128x128xbf16>
    %cst_29 = arith.constant dense<0.000000e+00> : vector<256x128xf32>
    %19 = tpu.matmul %16, %18, %cst_29 {dimension_numbers = #tpu.dot_dimension_numbers<[1], [0], [0], [1], [0, 0, 1, 1], [], []>} : vector<256x128xbf16>, vector<128x128xbf16>, vector<256x128xf32> -> vector<256x128xf32>
    %20 = arith.addf %13, %19 : vector<256x128xf32>
    %c0_30 = arith.constant 0 : index
    %c1_31 = arith.constant 1 : index
    %c0_32 = arith.constant 0 : index
    %21 = vector.load %arg7[%c0_30, %c1_31, %c0_32] : memref<18x18x128xf32, #tpu.memory_space<vmem>>, vector<16x16x128xf32>
    %22 = arith.truncf %21 : vector<16x16x128xf32> to vector<16x16x128xbf16>
    %23 = vector.shape_cast %22 : vector<16x16x128xbf16> to vector<256x128xbf16>
    %24 = vector.extract_strided_slice %11 {offsets = [0, 1, 0, 0], sizes = [1, 1, 128, 128], strides = [1, 1, 1, 1]} : vector<3x3x128x128xbf16> to vector<1x1x128x128xbf16>
    %25 = vector.shape_cast %24 : vector<1x1x128x128xbf16> to vector<128x128xbf16>
    %cst_33 = arith.constant dense<0.000000e+00> : vector<256x128xf32>
    %26 = tpu.matmul %23, %25, %cst_33 {dimension_numbers = #tpu.dot_dimension_numbers<[1], [0], [0], [1], [0, 0, 1, 1], [], []>} : vector<256x128xbf16>, vector<128x128xbf16>, vector<256x128xf32> -> vector<256x128xf32>
    %27 = arith.addf %20, %26 : vector<256x128xf32>
    %c0_34 = arith.constant 0 : index
    %c2_35 = arith.constant 2 : index
    %c0_36 = arith.constant 0 : index
    %28 = vector.load %arg7[%c0_34, %c2_35, %c0_36] : memref<18x18x128xf32, #tpu.memory_space<vmem>>, vector<16x16x128xf32>
    %29 = arith.truncf %28 : vector<16x16x128xf32> to vector<16x16x128xbf16>
    %30 = vector.shape_cast %29 : vector<16x16x128xbf16> to vector<256x128xbf16>
    %31 = vector.extract_strided_slice %11 {offsets = [0, 2, 0, 0], sizes = [1, 1, 128, 128], strides = [1, 1, 1, 1]} : vector<3x3x128x128xbf16> to vector<1x1x128x128xbf16>
    %32 = vector.shape_cast %31 : vector<1x1x128x128xbf16> to vector<128x128xbf16>
    %cst_37 = arith.constant dense<0.000000e+00> : vector<256x128xf32>
    %33 = tpu.matmul %30, %32, %cst_37 {dimension_numbers = #tpu.dot_dimension_numbers<[1], [0], [0], [1], [0, 0, 1, 1], [], []>} : vector<256x128xbf16>, vector<128x128xbf16>, vector<256x128xf32> -> vector<256x128xf32>
    %34 = arith.addf %27, %33 : vector<256x128xf32>
    %c1_38 = arith.constant 1 : index
    %c0_39 = arith.constant 0 : index
    %c0_40 = arith.constant 0 : index
    %35 = vector.load %arg7[%c1_38, %c0_39, %c0_40] : memref<18x18x128xf32, #tpu.memory_space<vmem>>, vector<16x16x128xf32>
    %36 = arith.truncf %35 : vector<16x16x128xf32> to vector<16x16x128xbf16>
    %37 = vector.shape_cast %36 : vector<16x16x128xbf16> to vector<256x128xbf16>
    %38 = vector.extract_strided_slice %11 {offsets = [1, 0, 0, 0], sizes = [1, 1, 128, 128], strides = [1, 1, 1, 1]} : vector<3x3x128x128xbf16> to vector<1x1x128x128xbf16>
    %39 = vector.shape_cast %38 : vector<1x1x128x128xbf16> to vector<128x128xbf16>
    %cst_41 = arith.constant dense<0.000000e+00> : vector<256x128xf32>
    %40 = tpu.matmul %37, %39, %cst_41 {dimension_numbers = #tpu.dot_dimension_numbers<[1], [0], [0], [1], [0, 0, 1, 1], [], []>} : vector<256x128xbf16>, vector<128x128xbf16>, vector<256x128xf32> -> vector<256x128xf32>
    %41 = arith.addf %34, %40 : vector<256x128xf32>
    %c1_42 = arith.constant 1 : index
    %c1_43 = arith.constant 1 : index
    %c0_44 = arith.constant 0 : index
    %42 = vector.load %arg7[%c1_42, %c1_43, %c0_44] : memref<18x18x128xf32, #tpu.memory_space<vmem>>, vector<16x16x128xf32>
    %43 = arith.truncf %42 : vector<16x16x128xf32> to vector<16x16x128xbf16>
    %44 = vector.shape_cast %43 : vector<16x16x128xbf16> to vector<256x128xbf16>
    %45 = vector.extract_strided_slice %11 {offsets = [1, 1, 0, 0], sizes = [1, 1, 128, 128], strides = [1, 1, 1, 1]} : vector<3x3x128x128xbf16> to vector<1x1x128x128xbf16>
    %46 = vector.shape_cast %45 : vector<1x1x128x128xbf16> to vector<128x128xbf16>
    %cst_45 = arith.constant dense<0.000000e+00> : vector<256x128xf32>
    %47 = tpu.matmul %44, %46, %cst_45 {dimension_numbers = #tpu.dot_dimension_numbers<[1], [0], [0], [1], [0, 0, 1, 1], [], []>} : vector<256x128xbf16>, vector<128x128xbf16>, vector<256x128xf32> -> vector<256x128xf32>
    %48 = arith.addf %41, %47 : vector<256x128xf32>
    %c1_46 = arith.constant 1 : index
    %c2_47 = arith.constant 2 : index
    %c0_48 = arith.constant 0 : index
    %49 = vector.load %arg7[%c1_46, %c2_47, %c0_48] : memref<18x18x128xf32, #tpu.memory_space<vmem>>, vector<16x16x128xf32>
    %50 = arith.truncf %49 : vector<16x16x128xf32> to vector<16x16x128xbf16>
    %51 = vector.shape_cast %50 : vector<16x16x128xbf16> to vector<256x128xbf16>
    %52 = vector.extract_strided_slice %11 {offsets = [1, 2, 0, 0], sizes = [1, 1, 128, 128], strides = [1, 1, 1, 1]} : vector<3x3x128x128xbf16> to vector<1x1x128x128xbf16>
    %53 = vector.shape_cast %52 : vector<1x1x128x128xbf16> to vector<128x128xbf16>
    %cst_49 = arith.constant dense<0.000000e+00> : vector<256x128xf32>
    %54 = tpu.matmul %51, %53, %cst_49 {dimension_numbers = #tpu.dot_dimension_numbers<[1], [0], [0], [1], [0, 0, 1, 1], [], []>} : vector<256x128xbf16>, vector<128x128xbf16>, vector<256x128xf32> -> vector<256x128xf32>
    %55 = arith.addf %48, %54 : vector<256x128xf32>
    %c2_50 = arith.constant 2 : index
    %c0_51 = arith.constant 0 : index
    %c0_52 = arith.constant 0 : index
    %56 = vector.load %arg7[%c2_50, %c0_51, %c0_52] : memref<18x18x128xf32, #tpu.memory_space<vmem>>, vector<16x16x128xf32>
    %57 = arith.truncf %56 : vector<16x16x128xf32> to vector<16x16x128xbf16>
    %58 = vector.shape_cast %57 : vector<16x16x128xbf16> to vector<256x128xbf16>
    %59 = vector.extract_strided_slice %11 {offsets = [2, 0, 0, 0], sizes = [1, 1, 128, 128], strides = [1, 1, 1, 1]} : vector<3x3x128x128xbf16> to vector<1x1x128x128xbf16>
    %60 = vector.shape_cast %59 : vector<1x1x128x128xbf16> to vector<128x128xbf16>
    %cst_53 = arith.constant dense<0.000000e+00> : vector<256x128xf32>
    %61 = tpu.matmul %58, %60, %cst_53 {dimension_numbers = #tpu.dot_dimension_numbers<[1], [0], [0], [1], [0, 0, 1, 1], [], []>} : vector<256x128xbf16>, vector<128x128xbf16>, vector<256x128xf32> -> vector<256x128xf32>
    %62 = arith.addf %55, %61 : vector<256x128xf32>
    %c2_54 = arith.constant 2 : index
    %c1_55 = arith.constant 1 : index
    %c0_56 = arith.constant 0 : index
    %63 = vector.load %arg7[%c2_54, %c1_55, %c0_56] : memref<18x18x128xf32, #tpu.memory_space<vmem>>, vector<16x16x128xf32>
    %64 = arith.truncf %63 : vector<16x16x128xf32> to vector<16x16x128xbf16>
    %65 = vector.shape_cast %64 : vector<16x16x128xbf16> to vector<256x128xbf16>
    %66 = vector.extract_strided_slice %11 {offsets = [2, 1, 0, 0], sizes = [1, 1, 128, 128], strides = [1, 1, 1, 1]} : vector<3x3x128x128xbf16> to vector<1x1x128x128xbf16>
    %67 = vector.shape_cast %66 : vector<1x1x128x128xbf16> to vector<128x128xbf16>
    %cst_57 = arith.constant dense<0.000000e+00> : vector<256x128xf32>
    %68 = tpu.matmul %65, %67, %cst_57 {dimension_numbers = #tpu.dot_dimension_numbers<[1], [0], [0], [1], [0, 0, 1, 1], [], []>} : vector<256x128xbf16>, vector<128x128xbf16>, vector<256x128xf32> -> vector<256x128xf32>
    %69 = arith.addf %62, %68 : vector<256x128xf32>
    %c2_58 = arith.constant 2 : index
    %c2_59 = arith.constant 2 : index
    %c0_60 = arith.constant 0 : index
    %70 = vector.load %arg7[%c2_58, %c2_59, %c0_60] : memref<18x18x128xf32, #tpu.memory_space<vmem>>, vector<16x16x128xf32>
    %71 = arith.truncf %70 : vector<16x16x128xf32> to vector<16x16x128xbf16>
    %72 = vector.shape_cast %71 : vector<16x16x128xbf16> to vector<256x128xbf16>
    %73 = vector.extract_strided_slice %11 {offsets = [2, 2, 0, 0], sizes = [1, 1, 128, 128], strides = [1, 1, 1, 1]} : vector<3x3x128x128xbf16> to vector<1x1x128x128xbf16>
    %74 = vector.shape_cast %73 : vector<1x1x128x128xbf16> to vector<128x128xbf16>
    %cst_61 = arith.constant dense<0.000000e+00> : vector<256x128xf32>
    %75 = tpu.matmul %72, %74, %cst_61 {dimension_numbers = #tpu.dot_dimension_numbers<[1], [0], [0], [1], [0, 0, 1, 1], [], []>} : vector<256x128xbf16>, vector<128x128xbf16>, vector<256x128xf32> -> vector<256x128xf32>
    %76 = arith.addf %69, %75 : vector<256x128xf32>
    %77 = vector.broadcast %12 : vector<1x128xf32> to vector<256x128xf32>
    %78 = arith.addf %76, %77 : vector<256x128xf32>
    %cst_62 = arith.constant 0.000000e+00 : f32
    %79 = vector.broadcast %cst_62 : f32 to vector<256x128xf32>
    %80 = arith.maximumf %78, %79 : vector<256x128xf32>
    %81 = vector.shape_cast %80 : vector<256x128xf32> to vector<16x16x128xf32>
    %c1_63 = arith.constant 1 : index
    %c1_64 = arith.constant 1 : index
    %c0_65 = arith.constant 0 : index
    %82 = vector.load %arg8[%c1_63, %c1_64, %c0_65] : memref<18x18x128xf32, #tpu.memory_space<vmem>>, vector<16x16x128xf32>
    tpu.vector_store %arg8[%c1_63, %c1_64, %c0_65], %81 {strides = array<i32>} : memref<18x18x128xf32, #tpu.memory_space<vmem>>, vector<16x16x128xf32>,
    %83 = vector.extract_strided_slice %81 {offsets = [1, 0, 0], sizes = [1, 16, 128], strides = [1, 1, 1]} : vector<16x16x128xf32> to vector<1x16x128xf32>
    %c0_66 = arith.constant 0 : index
    %c1_67 = arith.constant 1 : index
    %c0_68 = arith.constant 0 : index
    %84 = vector.load %arg8[%c0_66, %c1_67, %c0_68] : memref<18x18x128xf32, #tpu.memory_space<vmem>>, vector<1x16x128xf32>
    tpu.vector_store %arg8[%c0_66, %c1_67, %c0_68], %83 {strides = array<i32>} : memref<18x18x128xf32, #tpu.memory_space<vmem>>, vector<1x16x128xf32>,
    %85 = vector.extract_strided_slice %81 {offsets = [14, 0, 0], sizes = [1, 16, 128], strides = [1, 1, 1]} : vector<16x16x128xf32> to vector<1x16x128xf32>
    %c17_69 = arith.constant 17 : index
    %c1_70 = arith.constant 1 : index
    %c0_71 = arith.constant 0 : index
    %86 = vector.load %arg8[%c17_69, %c1_70, %c0_71] : memref<18x18x128xf32, #tpu.memory_space<vmem>>, vector<1x16x128xf32>
    tpu.vector_store %arg8[%c17_69, %c1_70, %c0_71], %85 {strides = array<i32>} : memref<18x18x128xf32, #tpu.memory_space<vmem>>, vector<1x16x128xf32>,
    %c0_72 = arith.constant 0 : index
    %c2_73 = arith.constant 2 : index
    %c0_74 = arith.constant 0 : index
    %87 = vector.load %arg8[%c0_72, %c2_73, %c0_74] : memref<18x18x128xf32, #tpu.memory_space<vmem>>, vector<18x1x128xf32>
    %c0_75 = arith.constant 0 : index
    %c0_76 = arith.constant 0 : index
    %c0_77 = arith.constant 0 : index
    %88 = vector.load %arg8[%c0_75, %c0_76, %c0_77] : memref<18x18x128xf32, #tpu.memory_space<vmem>>, vector<18x1x128xf32>
    tpu.vector_store %arg8[%c0_75, %c0_76, %c0_77], %87 {strides = array<i32>} : memref<18x18x128xf32, #tpu.memory_space<vmem>>, vector<18x1x128xf32>,
    %c0_78 = arith.constant 0 : index
    %c15_79 = arith.constant 15 : index
    %c0_80 = arith.constant 0 : index
    %89 = vector.load %arg8[%c0_78, %c15_79, %c0_80] : memref<18x18x128xf32, #tpu.memory_space<vmem>>, vector<18x1x128xf32>
    %c0_81 = arith.constant 0 : index
    %c17_82 = arith.constant 17 : index
    %c0_83 = arith.constant 0 : index
    %90 = vector.load %arg8[%c0_81, %c17_82, %c0_83] : memref<18x18x128xf32, #tpu.memory_space<vmem>>, vector<18x1x128xf32>
    tpu.vector_store %arg8[%c0_81, %c17_82, %c0_83], %89 {strides = array<i32>} : memref<18x18x128xf32, #tpu.memory_space<vmem>>, vector<18x1x128xf32>,
    %c0_84 = arith.constant 0 : index
    %c0_85 = arith.constant 0 : index
    %c0_86 = arith.constant 0 : index
    %c0_87 = arith.constant 0 : index
    %91 = vector.load %arg4[%c0_84, %c0_85, %c0_86, %c0_87] : memref<3x3x128x128xbf16, #tpu.memory_space<vmem>>, vector<3x3x128x128xbf16>
    %c0_88 = arith.constant 0 : index
    %c0_89 = arith.constant 0 : index
    %92 = vector.load %arg5[%c0_88, %c0_89] : memref<1x128xf32, #tpu.memory_space<vmem>>, vector<1x128xf32>
    %cst_90 = arith.constant 0.000000e+00 : f32
    %93 = vector.broadcast %cst_90 : f32 to vector<256x128xf32>
    %c0_91 = arith.constant 0 : index
    %c0_92 = arith.constant 0 : index
    %c0_93 = arith.constant 0 : index
    %94 = vector.load %arg8[%c0_91, %c0_92, %c0_93] : memref<18x18x128xf32, #tpu.memory_space<vmem>>, vector<16x16x128xf32>
    %95 = arith.truncf %94 : vector<16x16x128xf32> to vector<16x16x128xbf16>
    %96 = vector.shape_cast %95 : vector<16x16x128xbf16> to vector<256x128xbf16>
    %97 = vector.extract_strided_slice %91 {offsets = [0, 0, 0, 0], sizes = [1, 1, 128, 128], strides = [1, 1, 1, 1]} : vector<3x3x128x128xbf16> to vector<1x1x128x128xbf16>
    %98 = vector.shape_cast %97 : vector<1x1x128x128xbf16> to vector<128x128xbf16>
    %cst_94 = arith.constant dense<0.000000e+00> : vector<256x128xf32>
    %99 = tpu.matmul %96, %98, %cst_94 {dimension_numbers = #tpu.dot_dimension_numbers<[1], [0], [0], [1], [0, 0, 1, 1], [], []>} : vector<256x128xbf16>, vector<128x128xbf16>, vector<256x128xf32> -> vector<256x128xf32>
    %100 = arith.addf %93, %99 : vector<256x128xf32>
    %c0_95 = arith.constant 0 : index
    %c1_96 = arith.constant 1 : index
    %c0_97 = arith.constant 0 : index
    %101 = vector.load %arg8[%c0_95, %c1_96, %c0_97] : memref<18x18x128xf32, #tpu.memory_space<vmem>>, vector<16x16x128xf32>
    %102 = arith.truncf %101 : vector<16x16x128xf32> to vector<16x16x128xbf16>
    %103 = vector.shape_cast %102 : vector<16x16x128xbf16> to vector<256x128xbf16>
    %104 = vector.extract_strided_slice %91 {offsets = [0, 1, 0, 0], sizes = [1, 1, 128, 128], strides = [1, 1, 1, 1]} : vector<3x3x128x128xbf16> to vector<1x1x128x128xbf16>
    %105 = vector.shape_cast %104 : vector<1x1x128x128xbf16> to vector<128x128xbf16>
    %cst_98 = arith.constant dense<0.000000e+00> : vector<256x128xf32>
    %106 = tpu.matmul %103, %105, %cst_98 {dimension_numbers = #tpu.dot_dimension_numbers<[1], [0], [0], [1], [0, 0, 1, 1], [], []>} : vector<256x128xbf16>, vector<128x128xbf16>, vector<256x128xf32> -> vector<256x128xf32>
    %107 = arith.addf %100, %106 : vector<256x128xf32>
    %c0_99 = arith.constant 0 : index
    %c2_100 = arith.constant 2 : index
    %c0_101 = arith.constant 0 : index
    %108 = vector.load %arg8[%c0_99, %c2_100, %c0_101] : memref<18x18x128xf32, #tpu.memory_space<vmem>>, vector<16x16x128xf32>
    %109 = arith.truncf %108 : vector<16x16x128xf32> to vector<16x16x128xbf16>
    %110 = vector.shape_cast %109 : vector<16x16x128xbf16> to vector<256x128xbf16>
    %111 = vector.extract_strided_slice %91 {offsets = [0, 2, 0, 0], sizes = [1, 1, 128, 128], strides = [1, 1, 1, 1]} : vector<3x3x128x128xbf16> to vector<1x1x128x128xbf16>
    %112 = vector.shape_cast %111 : vector<1x1x128x128xbf16> to vector<128x128xbf16>
    %cst_102 = arith.constant dense<0.000000e+00> : vector<256x128xf32>
    %113 = tpu.matmul %110, %112, %cst_102 {dimension_numbers = #tpu.dot_dimension_numbers<[1], [0], [0], [1], [0, 0, 1, 1], [], []>} : vector<256x128xbf16>, vector<128x128xbf16>, vector<256x128xf32> -> vector<256x128xf32>
    %114 = arith.addf %107, %113 : vector<256x128xf32>
    %c1_103 = arith.constant 1 : index
    %c0_104 = arith.constant 0 : index
    %c0_105 = arith.constant 0 : index
    %115 = vector.load %arg8[%c1_103, %c0_104, %c0_105] : memref<18x18x128xf32, #tpu.memory_space<vmem>>, vector<16x16x128xf32>
    %116 = arith.truncf %115 : vector<16x16x128xf32> to vector<16x16x128xbf16>
    %117 = vector.shape_cast %116 : vector<16x16x128xbf16> to vector<256x128xbf16>
    %118 = vector.extract_strided_slice %91 {offsets = [1, 0, 0, 0], sizes = [1, 1, 128, 128], strides = [1, 1, 1, 1]} : vector<3x3x128x128xbf16> to vector<1x1x128x128xbf16>
    %119 = vector.shape_cast %118 : vector<1x1x128x128xbf16> to vector<128x128xbf16>
    %cst_106 = arith.constant dense<0.000000e+00> : vector<256x128xf32>
    %120 = tpu.matmul %117, %119, %cst_106 {dimension_numbers = #tpu.dot_dimension_numbers<[1], [0], [0], [1], [0, 0, 1, 1], [], []>} : vector<256x128xbf16>, vector<128x128xbf16>, vector<256x128xf32> -> vector<256x128xf32>
    %121 = arith.addf %114, %120 : vector<256x128xf32>
    %c1_107 = arith.constant 1 : index
    %c1_108 = arith.constant 1 : index
    %c0_109 = arith.constant 0 : index
    %122 = vector.load %arg8[%c1_107, %c1_108, %c0_109] : memref<18x18x128xf32, #tpu.memory_space<vmem>>, vector<16x16x128xf32>
    %123 = arith.truncf %122 : vector<16x16x128xf32> to vector<16x16x128xbf16>
    %124 = vector.shape_cast %123 : vector<16x16x128xbf16> to vector<256x128xbf16>
    %125 = vector.extract_strided_slice %91 {offsets = [1, 1, 0, 0], sizes = [1, 1, 128, 128], strides = [1, 1, 1, 1]} : vector<3x3x128x128xbf16> to vector<1x1x128x128xbf16>
    %126 = vector.shape_cast %125 : vector<1x1x128x128xbf16> to vector<128x128xbf16>
    %cst_110 = arith.constant dense<0.000000e+00> : vector<256x128xf32>
    %127 = tpu.matmul %124, %126, %cst_110 {dimension_numbers = #tpu.dot_dimension_numbers<[1], [0], [0], [1], [0, 0, 1, 1], [], []>} : vector<256x128xbf16>, vector<128x128xbf16>, vector<256x128xf32> -> vector<256x128xf32>
    %128 = arith.addf %121, %127 : vector<256x128xf32>
    %c1_111 = arith.constant 1 : index
    %c2_112 = arith.constant 2 : index
    %c0_113 = arith.constant 0 : index
    %129 = vector.load %arg8[%c1_111, %c2_112, %c0_113] : memref<18x18x128xf32, #tpu.memory_space<vmem>>, vector<16x16x128xf32>
    %130 = arith.truncf %129 : vector<16x16x128xf32> to vector<16x16x128xbf16>
    %131 = vector.shape_cast %130 : vector<16x16x128xbf16> to vector<256x128xbf16>
    %132 = vector.extract_strided_slice %91 {offsets = [1, 2, 0, 0], sizes = [1, 1, 128, 128], strides = [1, 1, 1, 1]} : vector<3x3x128x128xbf16> to vector<1x1x128x128xbf16>
    %133 = vector.shape_cast %132 : vector<1x1x128x128xbf16> to vector<128x128xbf16>
    %cst_114 = arith.constant dense<0.000000e+00> : vector<256x128xf32>
    %134 = tpu.matmul %131, %133, %cst_114 {dimension_numbers = #tpu.dot_dimension_numbers<[1], [0], [0], [1], [0, 0, 1, 1], [], []>} : vector<256x128xbf16>, vector<128x128xbf16>, vector<256x128xf32> -> vector<256x128xf32>
    %135 = arith.addf %128, %134 : vector<256x128xf32>
    %c2_115 = arith.constant 2 : index
    %c0_116 = arith.constant 0 : index
    %c0_117 = arith.constant 0 : index
    %136 = vector.load %arg8[%c2_115, %c0_116, %c0_117] : memref<18x18x128xf32, #tpu.memory_space<vmem>>, vector<16x16x128xf32>
    %137 = arith.truncf %136 : vector<16x16x128xf32> to vector<16x16x128xbf16>
    %138 = vector.shape_cast %137 : vector<16x16x128xbf16> to vector<256x128xbf16>
    %139 = vector.extract_strided_slice %91 {offsets = [2, 0, 0, 0], sizes = [1, 1, 128, 128], strides = [1, 1, 1, 1]} : vector<3x3x128x128xbf16> to vector<1x1x128x128xbf16>
    %140 = vector.shape_cast %139 : vector<1x1x128x128xbf16> to vector<128x128xbf16>
    %cst_118 = arith.constant dense<0.000000e+00> : vector<256x128xf32>
    %141 = tpu.matmul %138, %140, %cst_118 {dimension_numbers = #tpu.dot_dimension_numbers<[1], [0], [0], [1], [0, 0, 1, 1], [], []>} : vector<256x128xbf16>, vector<128x128xbf16>, vector<256x128xf32> -> vector<256x128xf32>
    %142 = arith.addf %135, %141 : vector<256x128xf32>
    %c2_119 = arith.constant 2 : index
    %c1_120 = arith.constant 1 : index
    %c0_121 = arith.constant 0 : index
    %143 = vector.load %arg8[%c2_119, %c1_120, %c0_121] : memref<18x18x128xf32, #tpu.memory_space<vmem>>, vector<16x16x128xf32>
    %144 = arith.truncf %143 : vector<16x16x128xf32> to vector<16x16x128xbf16>
    %145 = vector.shape_cast %144 : vector<16x16x128xbf16> to vector<256x128xbf16>
    %146 = vector.extract_strided_slice %91 {offsets = [2, 1, 0, 0], sizes = [1, 1, 128, 128], strides = [1, 1, 1, 1]} : vector<3x3x128x128xbf16> to vector<1x1x128x128xbf16>
    %147 = vector.shape_cast %146 : vector<1x1x128x128xbf16> to vector<128x128xbf16>
    %cst_122 = arith.constant dense<0.000000e+00> : vector<256x128xf32>
    %148 = tpu.matmul %145, %147, %cst_122 {dimension_numbers = #tpu.dot_dimension_numbers<[1], [0], [0], [1], [0, 0, 1, 1], [], []>} : vector<256x128xbf16>, vector<128x128xbf16>, vector<256x128xf32> -> vector<256x128xf32>
    %149 = arith.addf %142, %148 : vector<256x128xf32>
    %c2_123 = arith.constant 2 : index
    %c2_124 = arith.constant 2 : index
    %c0_125 = arith.constant 0 : index
    %150 = vector.load %arg8[%c2_123, %c2_124, %c0_125] : memref<18x18x128xf32, #tpu.memory_space<vmem>>, vector<16x16x128xf32>
    %151 = arith.truncf %150 : vector<16x16x128xf32> to vector<16x16x128xbf16>
    %152 = vector.shape_cast %151 : vector<16x16x128xbf16> to vector<256x128xbf16>
    %153 = vector.extract_strided_slice %91 {offsets = [2, 2, 0, 0], sizes = [1, 1, 128, 128], strides = [1, 1, 1, 1]} : vector<3x3x128x128xbf16> to vector<1x1x128x128xbf16>
    %154 = vector.shape_cast %153 : vector<1x1x128x128xbf16> to vector<128x128xbf16>
    %cst_126 = arith.constant dense<0.000000e+00> : vector<256x128xf32>
    %155 = tpu.matmul %152, %154, %cst_126 {dimension_numbers = #tpu.dot_dimension_numbers<[1], [0], [0], [1], [0, 0, 1, 1], [], []>} : vector<256x128xbf16>, vector<128x128xbf16>, vector<256x128xf32> -> vector<256x128xf32>
    %156 = arith.addf %149, %155 : vector<256x128xf32>
    %157 = vector.broadcast %92 : vector<1x128xf32> to vector<256x128xf32>
    %158 = arith.addf %156, %157 : vector<256x128xf32>
    %159 = vector.shape_cast %158 : vector<256x128xf32> to vector<16x16x128xf32>
    %c0_127 = arith.constant 0 : index
    %c0_128 = arith.constant 0 : index
    %c0_129 = arith.constant 0 : index
    %c0_130 = arith.constant 0 : index
    %160 = vector.load %arg1[%c0_127, %c0_128, %c0_129, %c0_130] : memref<1x16x16x128xf32, #tpu.memory_space<vmem>>, vector<1x16x16x128xf32>
    %161 = vector.shape_cast %160 : vector<1x16x16x128xf32> to vector<16x16x128xf32>
    %162 = arith.addf %159, %161 : vector<16x16x128xf32>
    %c0_131 = arith.constant 0 : index
    %c0_132 = arith.constant 0 : index
    %c0_133 = arith.constant 0 : index
    %c0_134 = arith.constant 0 : index
    %163 = vector.load %arg6[%c0_131, %c0_132, %c0_133, %c0_134] : memref<1x16x16x128xf32, #tpu.memory_space<vmem>>, vector<1x16x16x128xf32>
    %164 = vector.shape_cast %163 : vector<1x16x16x128xf32> to vector<16x16x128xf32>
    %165 = vector.shape_cast %162 : vector<16x16x128xf32> to vector<1x16x16x128xf32>
    tpu.vector_store %arg6[%c0_131, %c0_132, %c0_133, %c0_134], %165 {strides = array<i32>} : memref<1x16x16x128xf32, #tpu.memory_space<vmem>>, vector<1x16x16x128xf32>,
    return
  }
  func.func @transform_0(%arg0: i32) -> (i32, i32, i32, i32) {
    %c0_i32 = arith.constant 0 : i32
    %c0_i32_0 = arith.constant 0 : i32
    %c0_i32_1 = arith.constant 0 : i32
    %c0_i32_2 = arith.constant 0 : i32
    return %arg0, %c0_i32, %c0_i32_0, %c0_i32_1 : i32, i32, i32, i32
  }
  func.func @transform_1(%arg0: i32) -> (i32, i32, i32, i32) {
    %c0_i32 = arith.constant 0 : i32
    %c0_i32_0 = arith.constant 0 : i32
    %c0_i32_1 = arith.constant 0 : i32
    %c0_i32_2 = arith.constant 0 : i32
    %c0_i32_3 = arith.constant 0 : i32
    return %c0_i32, %c0_i32_0, %c0_i32_1, %c0_i32_2 : i32, i32, i32, i32
  }
  func.func @transform_2(%arg0: i32) -> (i32, i32) {
    %c0_i32 = arith.constant 0 : i32
    %c0_i32_0 = arith.constant 0 : i32
    %c0_i32_1 = arith.constant 0 : i32
    return %c0_i32, %c0_i32_0 : i32, i32
  }
  func.func @transform_3(%arg0: i32) -> (i32, i32, i32, i32) {
    %c0_i32 = arith.constant 0 : i32
    %c0_i32_0 = arith.constant 0 : i32
    %c0_i32_1 = arith.constant 0 : i32
    %c0_i32_2 = arith.constant 0 : i32
    %c0_i32_3 = arith.constant 0 : i32
    return %c0_i32, %c0_i32_0, %c0_i32_1, %c0_i32_2 : i32, i32, i32, i32
  }
  func.func @transform_4(%arg0: i32) -> (i32, i32) {
    %c0_i32 = arith.constant 0 : i32
    %c0_i32_0 = arith.constant 0 : i32
    %c0_i32_1 = arith.constant 0 : i32
    return %c0_i32, %c0_i32_0 : i32, i32
  }
  func.func @transform_5(%arg0: i32) -> (i32, i32, i32, i32) {
    %c0_i32 = arith.constant 0 : i32
    %c0_i32_0 = arith.constant 0 : i32
    %c0_i32_1 = arith.constant 0 : i32
    %c0_i32_2 = arith.constant 0 : i32
    return %arg0, %c0_i32, %c0_i32_0, %c0_i32_1 : i32, i32, i32, i32
  }
}

</mosaic_0001>

<llo_original>
// kernel: residual_block_forward.1
$region0: #{residual_block_forward.1}
  #allocation0 [shape = 'u32[]', space=smem, size = 0x4, offset = 0x4, fixed_abs, tag = 'smem constant byte address 0x4 - core index']
  #allocation1 [shape = 'u32[144,128]{1,0:T(1,128)}', space=vmem, size = 0x12000, scoped, tag = 'internal scratch']
  #allocation2 [shape = 'f32[18,18,128]{2,1,0:T(8,128)}', space=vmem, size = 0x36000, scoped, tag = 'scratch operand']
  #allocation3 [shape = 'f32[18,18,128]{2,1,0:T(8,128)}', space=vmem, size = 0x36000, scoped, tag = 'scratch operand']
  %s0 = inlined_call_operand.vmem [shape: f32[2,16,16,128], index: 0, kind: input, shape index: {}]
  %s1 = inlined_call_operand.vmem [shape: bf16[3,3,128,128], index: 1, kind: input, shape index: {}]
  %s2 = inlined_call_operand.vmem [shape: f32[1,128], index: 2, kind: input, shape index: {}]
  %s3 = inlined_call_operand.vmem [shape: bf16[3,3,128,128], index: 3, kind: input, shape index: {}]
  %s4 = inlined_call_operand.vmem [shape: f32[1,128], index: 4, kind: input, shape index: {}]
  %s5 = inlined_call_operand.vmem [shape: f32[2,16,16,128], index: 5, kind: output, shape index: {}]
  %s6 = sld [smem:[#allocation0]]
  $region53: #{residual_block_forward.1} parent=0
    _
  %s8 = ssub.s32 1, %s6
  %s9 = scalar_select 0, %s8, %s6
  loop: start=0, step=1, limit=4
  $region2: #{residual_block_forward.1} parent=0 // loop_pre_header
    _
  $region3: #{residual_block_forward.1} parent=0 // loop_header
    %s11 = sphi 0, %s15
    %p12 = scmp.ge.s32.totalorder %s11, 4
    %s21 = sphi 0, %s23
    %s24 = sphi 0, %s21
    %s25 = sphi 0, %s24
    %s41 = sphi 0, %s25
    %s45 = sphi 0, %s45
    %s47 = sphi 0, %s45
    %s48 = sphi 0, %s47
    %s62 = sphi 0, %s48
    %s66 = sphi 0, %s66
    %s68 = sphi 0, %s66
    %s69 = sphi 0, %s68
    %s83 = sphi 0, %s69
    %s87 = sphi 0, %s87
    %s89 = sphi 0, %s87
    %s90 = sphi 0, %s89
    %s104 = sphi 0, %s90
    %s108 = sphi 0, %s108
    %s110 = sphi 0, %s108
    %s111 = sphi 0, %s110
    %s125 = sphi 0, %s111
    %s131 = sphi 0, %s133
    %s134 = sphi 0, %s131
    %s135 = sphi 0, %s134
    %s151 = sphi 0, %s135
  $region4: #{residual_block_forward.1} parent=0 // loop_header_branch
    %14 = sbr.rel (%p12) target = $region8
  $region5: #{residual_block_forward.1} parent=0 // loop_body
    %s16 = ssub.s32 %s11, 1
    %s17 = ssub.s32 %s11, 2
    %s18 = sadd.s32 %s11, 1
    %s19 = ssub.s32 %s11, %s18
    %p20 = scmp.eq.s32.totalorder %s19, 0
    %s22 = sadd.s32 %s21, 1
    %s23 = scalar_select %p20, %s21, %s22
    %p26 = pneg %p20
    %p27 = scmp.eq.s32.totalorder %s11, 1
    %p28 = por %p26, %p27
    %p29 = scmp.ne.s32.totalorder %s21, %s24
    %p30 = scmp.eq.s32.totalorder %s11, 0
    %p31 = por %p29, %p30
    %p32 = scmp.ne.s32.totalorder %s21, %s24
    %p33 = scmp.eq.s32.totalorder %s16, 1
    %p34 = por %p32, %p33
    %p35 = scmp.ne.s32.totalorder %s24, %s25
    %p36 = scmp.eq.s32.totalorder %s16, 0
    %p37 = por %p35, %p36
    %p38 = scmp.ne.s32.totalorder %s24, %s25
    %p39 = scmp.eq.s32.totalorder %s17, 1
    %p40 = por %p38, %p39
    %p42 = scmp.ne.s32.totalorder %s25, %s41
    %p43 = scmp.eq.s32.totalorder %s17, 0
    %p44 = por %p42, %p43
    %s46 = sadd.s32 %s45, 1
    %p49 = scmp.eq.s32.totalorder %s11, 1
    %p50 = scmp.ne.s32.totalorder %s45, %s47
    %p51 = scmp.eq.s32.totalorder %s11, 0
    %p52 = por %p50, %p51
    %p53 = scmp.ne.s32.totalorder %s45, %s47
    %p54 = scmp.eq.s32.totalorder %s16, 1
    %p55 = por %p53, %p54
    %p56 = scmp.ne.s32.totalorder %s47, %s48
    %p57 = scmp.eq.s32.totalorder %s16, 0
    %p58 = por %p56, %p57
    %p59 = scmp.ne.s32.totalorder %s47, %s48
    %p60 = scmp.eq.s32.totalorder %s17, 1
    %p61 = por %p59, %p60
    %p63 = scmp.ne.s32.totalorder %s48, %s62
    %p64 = scmp.eq.s32.totalorder %s17, 0
    %p65 = por %p63, %p64
    %s67 = sadd.s32 %s66, 1
    %p70 = scmp.eq.s32.totalorder %s11, 1
    %p71 = scmp.ne.s32.totalorder %s66, %s68
    %p72 = scmp.eq.s32.totalorder %s11, 0
    %p73 = por %p71, %p72
    %p74 = scmp.ne.s32.totalorder %s66, %s68
    %p75 = scmp.eq.s32.totalorder %s16, 1
    %p76 = por %p74, %p75
    %p77 = scmp.ne.s32.totalorder %s68, %s69
    %p78 = scmp.eq.s32.totalorder %s16, 0
    %p79 = por %p77, %p78
    %p80 = scmp.ne.s32.totalorder %s68, %s69
    %p81 = scmp.eq.s32.totalorder %s17, 1
    %p82 = por %p80, %p81
    %p84 = scmp.ne.s32.totalorder %s69, %s83
    %p85 = scmp.eq.s32.totalorder %s17, 0
    %p86 = por %p84, %p85
    %s88 = sadd.s32 %s87, 1
    %p91 = scmp.eq.s32.totalorder %s11, 1
    %p92 = scmp.ne.s32.totalorder %s87, %s89
    %p93 = scmp.eq.s32.totalorder %s11, 0
    %p94 = por %p92, %p93
    %p95 = scmp.ne.s32.totalorder %s87, %s89
    %p96 = scmp.eq.s32.totalorder %s16, 1
    %p97 = por %p95, %p96
    %p98 = scmp.ne.s32.totalorder %s89, %s90
    %p99 = scmp.eq.s32.totalorder %s16, 0
    %p100 = por %p98, %p99
    %p101 = scmp.ne.s32.totalorder %s89, %s90
    %p102 = scmp.eq.s32.totalorder %s17, 1
    %p103 = por %p101, %p102
    %p105 = scmp.ne.s32.totalorder %s90, %s104
    %p106 = scmp.eq.s32.totalorder %s17, 0
    %p107 = por %p105, %p106
    %s109 = sadd.s32 %s108, 1
    %p112 = scmp.eq.s32.totalorder %s11, 1
    %p113 = scmp.ne.s32.totalorder %s108, %s110
    %p114 = scmp.eq.s32.totalorder %s11, 0
    %p115 = por %p113, %p114
    %p116 = scmp.ne.s32.totalorder %s108, %s110
    %p117 = scmp.eq.s32.totalorder %s16, 1
    %p118 = por %p116, %p117
    %p119 = scmp.ne.s32.totalorder %s110, %s111
    %p120 = scmp.eq.s32.totalorder %s16, 0
    %p121 = por %p119, %p120
    %p122 = scmp.ne.s32.totalorder %s110, %s111
    %p123 = scmp.eq.s32.totalorder %s17, 1
    %p124 = por %p122, %p123
    %p126 = scmp.ne.s32.totalorder %s111, %s125
    %p127 = scmp.eq.s32.totalorder %s17, 0
    %p128 = por %p126, %p127
    %s129 = ssub.s32 %s11, %s18
    %p130 = scmp.eq.s32.totalorder %s129, 0
    %s132 = sadd.s32 %s131, 1
    %s133 = scalar_select %p130, %s131, %s132
    %p136 = pneg %p130
    %p137 = scmp.eq.s32.totalorder %s11, 1
    %p138 = por %p136, %p137
    %p139 = scmp.ne.s32.totalorder %s131, %s134
    %p140 = scmp.eq.s32.totalorder %s11, 0
    %p141 = por %p139, %p140
    %p142 = scmp.ne.s32.totalorder %s131, %s134
    %p143 = scmp.eq.s32.totalorder %s16, 1
    %p144 = por %p142, %p143
    %p145 = scmp.ne.s32.totalorder %s134, %s135
    %p146 = scmp.eq.s32.totalorder %s16, 0
    %p147 = por %p145, %p146
    %p148 = scmp.ne.s32.totalorder %s134, %s135
    %p149 = scmp.eq.s32.totalorder %s17, 1
    %p150 = por %p148, %p149
    %p152 = scmp.ne.s32.totalorder %s135, %s151
    %p153 = scmp.eq.s32.totalorder %s17, 0
    %p154 = por %p152, %p153
    %p155 = scmp.le.s32.totalorder 1, %s11
    %p156 = scmp.lt.s32.totalorder %s11, 3
    %p157 = pnand %p155, %p156
    %p158 = pneg %p157
    // Predicated region
    $region9: #{residual_block_forward.1} parent=5 // pred_check
      _
    $region10: #{residual_block_forward.1} parent=5 // pred_check_branch
      %160 = sbr.rel (%p157) target = $region12
    $region11: #{residual_block_forward.1} parent=5 // pred_region
      %s161 = ssub.s32 %s11, 1
      // Predicated region
      $region13: #{residual_block_forward.1} parent=11 // pred_check
        %p162 = pneg %p58
      $region14: #{residual_block_forward.1} parent=11 // pred_check_branch
        %164 = sbr.rel (%p162) target = $region16
      $region15: #{residual_block_forward.1} parent=11 // pred_region
        _
      $region16: #{residual_block_forward.1} parent=11 // pred_fallthru
        _
      // Predicated region
      $region17: #{residual_block_forward.1} parent=11 // pred_check
        %p165 = pneg %p79
      $region18: #{residual_block_forward.1} parent=11 // pred_check_branch
        %167 = sbr.rel (%p165) target = $region20
      $region19: #{residual_block_forward.1} parent=11 // pred_region
        _
      $region20: #{residual_block_forward.1} parent=11 // pred_fallthru
        _
      // Predicated region
      $region21: #{residual_block_forward.1} parent=11 // pred_check
        %p168 = pneg %p100
      $region22: #{residual_block_forward.1} parent=11 // pred_check_branch
        %170 = sbr.rel (%p168) target = $region24
      $region23: #{residual_block_forward.1} parent=11 // pred_region
        _
      $region24: #{residual_block_forward.1} parent=11 // pred_fallthru
        _
      // Predicated region
      $region25: #{residual_block_forward.1} parent=11 // pred_check
        %p171 = pneg %p121
      $region26: #{residual_block_forward.1} parent=11 // pred_check_branch
        %173 = sbr.rel (%p171) target = $region28
      $region27: #{residual_block_forward.1} parent=11 // pred_region
        _
      $region28: #{residual_block_forward.1} parent=11 // pred_fallthru
        _
    $region12: #{residual_block_forward.1} parent=5 // pred_fallthru
      _
    %p174 = scmp.lt.s32.totalorder %s11, 2
    // Predicated region
    $region29: #{residual_block_forward.1} parent=5 // pred_check
      %p175 = pneg %p174
    $region30: #{residual_block_forward.1} parent=5 // pred_check_branch
      %177 = sbr.rel (%p175) target = $region32
    $region31: #{residual_block_forward.1} parent=5 // pred_region
      // Predicated region
      $region33: #{residual_block_forward.1} parent=31 // pred_check
        %p178 = pneg %p31
      $region34: #{residual_block_forward.1} parent=31 // pred_check_branch
        %180 = sbr.rel (%p178) target = $region36
      $region35: #{residual_block_forward.1} parent=31 // pred_region
        %p181 = scmp.lt.s32.totalorder %s11, 1
        %s182 = scalar_select %p181, %s11, 1
        %s183 = smul.addr %s182, 32
        %s184 = smul.addr %s183, 8
        %s185 = scalar_lea.vmem %s0, %s184
      $region36: #{residual_block_forward.1} parent=31 // pred_fallthru
        _
    $region32: #{residual_block_forward.1} parent=5 // pred_fallthru
      _
    %p186 = scmp.le.s32.totalorder 1, %s11
    %p187 = scmp.lt.s32.totalorder %s11, 3
    %p188 = pnand %p186, %p187
    %p189 = pneg %p188
    // Predicated region
    $region37: #{residual_block_forward.1} parent=5 // pred_check
      _
    $region38: #{residual_block_forward.1} parent=5 // pred_check_branch
      %191 = sbr.rel (%p188) target = $region40
    $region39: #{residual_block_forward.1} parent=5 // pred_region
      %s192 = ssub.s32 %s11, 1
      %p193 = scmp.lt.s32.totalorder %s16, 1
      %s194 = scalar_select %p193, %s16, 1
      %s195 = smul.addr %s194, 32
      %s196 = smul.addr %s195, 8
      %s197 = scalar_lea.vmem %s0, %s196
      %p198 = pneg %p37
      %p199 = pneg %p34
      %p200 = pneg %p58
      %p201 = pneg %p55
      %p202 = pneg %p79
      %p203 = pneg %p76
      %p204 = pneg %p100
      %p205 = pneg %p97
      %p206 = pneg %p121
      %p207 = pneg %p118
      %p208 = pneg %p147
      %p209 = pneg %p144
      %p210 = scmp.lt.s32.totalorder %s16, 1
      %s211 = scalar_select %p210, %s16, 1
      %s212 = smul.addr %s211, 32
      %s213 = smul.addr %s212, 8
      %s214 = scalar_lea.vmem %s5, %s213
      %p215 = scmp.lt.s32.totalorder %s16, 1
      %s216 = scalar_select %p215, %s16, 1
      %s217 = smul.addr %s216, 32
      %s218 = smul.addr %s217, 8
      %s219 = scalar_lea.vmem %s0, %s218
      %p220 = scmp.lt.s32.totalorder %s16, 1
      %s221 = scalar_select %p220, %s16, 1
      %s222 = smul.addr %s221, 32
      %s223 = smul.addr %s222, 8
      %s224 = scalar_lea.vmem %s5, %s223
      %v226 = vld [vmem:[%s219] sm:$0xff]
      %v227 = vld [vmem:[%s219 + $0x8] sm:$0xff]
      %v228 = vld [vmem:[%s219 + $0x10] sm:$0xff]
      %v229 = vld [vmem:[%s219 + $0x18] sm:$0xff]
      %v230 = vld [vmem:[%s219 + $0x20] sm:$0xff]
      %v231 = vld [vmem:[%s219 + $0x28] sm:$0xff]
      %v232 = vld [vmem:[%s219 + $0x30] sm:$0xff]
      %v233 = vld [vmem:[%s219 + $0x38] sm:$0xff]
      %v234 = vld [vmem:[%s219 + $0x40] sm:$0xff]
      %v235 = vld [vmem:[%s219 + $0x48] sm:$0xff]
      %v236 = vld [vmem:[%s219 + $0x50] sm:$0xff]
      %v237 = vld [vmem:[%s219 + $0x58] sm:$0xff]
      %v238 = vld [vmem:[%s219 + $0x60] sm:$0xff]
      %v239 = vld [vmem:[%s219 + $0x68] sm:$0xff]
      %v240 = vld [vmem:[%s219 + $0x70] sm:$0xff]
      %v241 = vld [vmem:[%s219 + $0x78] sm:$0xff]
      %v242 = vld [vmem:[%s219 + $0x80] sm:$0xff]
      %v243 = vld [vmem:[%s219 + $0x88] sm:$0xff]
      %v244 = vld [vmem:[%s219 + $0x90] sm:$0xff]
      %v245 = vld [vmem:[%s219 + $0x98] sm:$0xff]
      %v246 = vld [vmem:[%s219 + $0xa0] sm:$0xff]
      %v247 = vld [vmem:[%s219 + $0xa8] sm:$0xff]
      %v248 = vld [vmem:[%s219 + $0xb0] sm:$0xff]
      %v249 = vld [vmem:[%s219 + $0xb8] sm:$0xff]
      %v250 = vld [vmem:[%s219 + $0xc0] sm:$0xff]
      %v251 = vld [vmem:[%s219 + $0xc8] sm:$0xff]
      %v252 = vld [vmem:[%s219 + $0xd0] sm:$0xff]
      %v253 = vld [vmem:[%s219 + $0xd8] sm:$0xff]
      %v254 = vld [vmem:[%s219 + $0xe0] sm:$0xff]
      %v255 = vld [vmem:[%s219 + $0xe8] sm:$0xff]
      %v256 = vld [vmem:[%s219 + $0xf0] sm:$0xff]
      %v257 = vld [vmem:[%s219 + $0xf8] sm:$0xff]
      %s258 = scalar_lea.vmem [#allocation2], 24
      %259 = vst [vmem:[%s258 + $0x1] sm:$0xff] %v226
      %260 = vst [vmem:[%s258 + $0x9] sm:$0xff] %v227
      %261 = vst [vmem:[%s258 + $0x19] sm:$0xff] %v228
      %262 = vst [vmem:[%s258 + $0x21] sm:$0xff] %v229
      %263 = vst [vmem:[%s258 + $0x31] sm:$0xff] %v230
      %264 = vst [vmem:[%s258 + $0x39] sm:$0xff] %v231
      %265 = vst [vmem:[%s258 + $0x49] sm:$0xff] %v232
      %266 = vst [vmem:[%s258 + $0x51] sm:$0xff] %v233
      %267 = vst [vmem:[%s258 + $0x61] sm:$0xff] %v234
      %268 = vst [vmem:[%s258 + $0x69] sm:$0xff] %v235
      %269 = vst [vmem:[%s258 + $0x79] sm:$0xff] %v236
      %270 = vst [vmem:[%s258 + $0x81] sm:$0xff] %v237
      %271 = vst [vmem:[%s258 + $0x91] sm:$0xff] %v238
      %272 = vst [vmem:[%s258 + $0x99] sm:$0xff] %v239
      %273 = vst [vmem:[%s258 + $0xa9] sm:$0xff] %v240
      %274 = vst [vmem:[%s258 + $0xb1] sm:$0xff] %v241
      %275 = vst [vmem:[%s258 + $0xc1] sm:$0xff] %v242
      %276 = vst [vmem:[%s258 + $0xc9] sm:$0xff] %v243
      %277 = vst [vmem:[%s258 + $0xd9] sm:$0xff] %v244
      %278 = vst [vmem:[%s258 + $0xe1] sm:$0xff] %v245
      %279 = vst [vmem:[%s258 + $0xf1] sm:$0xff] %v246
      %280 = vst [vmem:[%s258 + $0xf9] sm:$0xff] %v247
      %281 = vst [vmem:[%s258 + $0x109] sm:$0xff] %v248
      %282 = vst [vmem:[%s258 + $0x111] sm:$0xff] %v249
      %283 = vst [vmem:[%s258 + $0x121] sm:$0xff] %v250
      %284 = vst [vmem:[%s258 + $0x129] sm:$0xff] %v251
      %285 = vst [vmem:[%s258 + $0x139] sm:$0xff] %v252
      %286 = vst [vmem:[%s258 + $0x141] sm:$0xff] %v253
      %287 = vst [vmem:[%s258 + $0x151] sm:$0xff] %v254
      %288 = vst [vmem:[%s258 + $0x159] sm:$0xff] %v255
      %289 = vst [vmem:[%s258 + $0x169] sm:$0xff] %v256
      %290 = vst [vmem:[%s258 + $0x171] sm:$0xff] %v257
      %291 = vst [vmem:[#allocation2 + $0x1] sm:$0xff] %v228
      %292 = vst [vmem:[#allocation2 + $0x9] sm:$0xff] %v229
      %s293 = scalar_lea.vmem [#allocation2], 408
      %294 = vst [vmem:[%s293 + $0x1] sm:$0xff] %v254
      %295 = vst [vmem:[%s293 + $0x9] sm:$0xff] %v255
      %v296 = vld [vmem:[#allocation2 + $0x2] sm:$0x1]
      %v297 = vld [vmem:[#allocation2 + $0x1a] sm:$0x1]
      %v298 = vld [vmem:[#allocation2 + $0x32] sm:$0x1]
      %v299 = vld [vmem:[#allocation2 + $0x4a] sm:$0x1]
      %v300 = vld [vmem:[#allocation2 + $0x62] sm:$0x1]
      %v301 = vld [vmem:[#allocation2 + $0x7a] sm:$0x1]
      %v302 = vld [vmem:[#allocation2 + $0x92] sm:$0x1]
      %v303 = vld [vmem:[#allocation2 + $0xaa] sm:$0x1]
      %v304 = vld [vmem:[#allocation2 + $0xc2] sm:$0x1]
      %v305 = vld [vmem:[#allocation2 + $0xda] sm:$0x1]
      %v306 = vld [vmem:[#allocation2 + $0xf2] sm:$0x1]
      %v307 = vld [vmem:[#allocation2 + $0x10a] sm:$0x1]
      %v308 = vld [vmem:[#allocation2 + $0x122] sm:$0x1]
      %v309 = vld [vmem:[#allocation2 + $0x13a] sm:$0x1]
      %v310 = vld [vmem:[#allocation2 + $0x152] sm:$0x1]
      %v311 = vld [vmem:[#allocation2 + $0x16a] sm:$0x1]
      %v312 = vld [vmem:[#allocation2 + $0x182] sm:$0x1]
      %v313 = vld [vmem:[#allocation2 + $0x19a] sm:$0x1]
      %314 = vst [vmem:[#allocation2] sm:$0x1] %v296
      %315 = vst [vmem:[#allocation2 + $0x18] sm:$0x1] %v297
      %316 = vst [vmem:[#allocation2 + $0x30] sm:$0x1] %v298
      %317 = vst [vmem:[#allocation2 + $0x48] sm:$0x1] %v299
      %318 = vst [vmem:[#allocation2 + $0x60] sm:$0x1] %v300
      %319 = vst [vmem:[#allocation2 + $0x78] sm:$0x1] %v301
      %320 = vst [vmem:[#allocation2 + $0x90] sm:$0x1] %v302
      %321 = vst [vmem:[#allocation2 + $0xa8] sm:$0x1] %v303
      %322 = vst [vmem:[#allocation2 + $0xc0] sm:$0x1] %v304
      %323 = vst [vmem:[#allocation2 + $0xd8] sm:$0x1] %v305
      %324 = vst [vmem:[#allocation2 + $0xf0] sm:$0x1] %v306
      %325 = vst [vmem:[#allocation2 + $0x108] sm:$0x1] %v307
      %326 = vst [vmem:[#allocation2 + $0x120] sm:$0x1] %v308
      %327 = vst [vmem:[#allocation2 + $0x138] sm:$0x1] %v309
      %328 = vst [vmem:[#allocation2 + $0x150] sm:$0x1] %v310
      %329 = vst [vmem:[#allocation2 + $0x168] sm:$0x1] %v311
      %330 = vst [vmem:[#allocation2 + $0x180] sm:$0x1] %v312
      %331 = vst [vmem:[#allocation2 + $0x198] sm:$0x1] %v313
      %v332 = vld [vmem:[#allocation2 + $0xf] sm:$0x1]
      %v333 = vld [vmem:[#allocation2 + $0x27] sm:$0x1]
      %v334 = vld [vmem:[#allocation2 + $0x3f] sm:$0x1]
      %v335 = vld [vmem:[#allocation2 + $0x57] sm:$0x1]
      %v336 = vld [vmem:[#allocation2 + $0x6f] sm:$0x1]
      %v337 = vld [vmem:[#allocation2 + $0x87] sm:$0x1]
      %v338 = vld [vmem:[#allocation2 + $0x9f] sm:$0x1]
      %v339 = vld [vmem:[#allocation2 + $0xb7] sm:$0x1]
      %v340 = vld [vmem:[#allocation2 + $0xcf] sm:$0x1]
      %v341 = vld [vmem:[#allocation2 + $0xe7] sm:$0x1]
      %v342 = vld [vmem:[#allocation2 + $0xff] sm:$0x1]
      %v343 = vld [vmem:[#allocation2 + $0x117] sm:$0x1]
      %v344 = vld [vmem:[#allocation2 + $0x12f] sm:$0x1]
      %v345 = vld [vmem:[#allocation2 + $0x147] sm:$0x1]
      %v346 = vld [vmem:[#allocation2 + $0x15f] sm:$0x1]
      %v347 = vld [vmem:[#allocation2 + $0x177] sm:$0x1]
      %v348 = vld [vmem:[#allocation2 + $0x18f] sm:$0x1]
      %v349 = vld [vmem:[#allocation2 + $0x1a7] sm:$0x1]
      %350 = vst [vmem:[#allocation2 + $0x11] sm:$0x1] %v332
      %351 = vst [vmem:[#allocation2 + $0x29] sm:$0x1] %v333
      %352 = vst [vmem:[#allocation2 + $0x41] sm:$0x1] %v334
      %353 = vst [vmem:[#allocation2 + $0x59] sm:$0x1] %v335
      %354 = vst [vmem:[#allocation2 + $0x71] sm:$0x1] %v336
      %355 = vst [vmem:[#allocation2 + $0x89] sm:$0x1] %v337
      %356 = vst [vmem:[#allocation2 + $0xa1] sm:$0x1] %v338
      %357 = vst [vmem:[#allocation2 + $0xb9] sm:$0x1] %v339
      %358 = vst [vmem:[#allocation2 + $0xd1] sm:$0x1] %v340
      %359 = vst [vmem:[#allocation2 + $0xe9] sm:$0x1] %v341
      %360 = vst [vmem:[#allocation2 + $0x101] sm:$0x1] %v342
      %361 = vst [vmem:[#allocation2 + $0x119] sm:$0x1] %v343
      %362 = vst [vmem:[#allocation2 + $0x131] sm:$0x1] %v344
      %363 = vst [vmem:[#allocation2 + $0x149] sm:$0x1] %v345
      %364 = vst [vmem:[#allocation2 + $0x161] sm:$0x1] %v346
      %365 = vst [vmem:[#allocation2 + $0x179] sm:$0x1] %v347
      %366 = vst [vmem:[#allocation2 + $0x191] sm:$0x1] %v348
      %367 = vst [vmem:[#allocation2 + $0x1a9] sm:$0x1] %v349
      %v368 = vld [vmem:[%s1] sm:$0xf]
      %v369 = vld [vmem:[%s1 + $0x4] sm:$0xf]
      %v370 = vld [vmem:[%s1 + $0x8] sm:$0xf]
      %v371 = vld [vmem:[%s1 + $0xc] sm:$0xf]
      %v372 = vld [vmem:[%s1 + $0x10] sm:$0xf]
      %v373 = vld [vmem:[%s1 + $0x14] sm:$0xf]
      %v374 = vld [vmem:[%s1 + $0x18] sm:$0xf]
      %v375 = vld [vmem:[%s1 + $0x1c] sm:$0xf]
      %v376 = vld [vmem:[%s1 + $0x20] sm:$0xf]
      %v377 = vld [vmem:[%s1 + $0x24] sm:$0xf]
      %v378 = vld [vmem:[%s1 + $0x28] sm:$0xf]
      %v379 = vld [vmem:[%s1 + $0x2c] sm:$0xf]
      %v380 = vld [vmem:[%s1 + $0x30] sm:$0xf]
      %v381 = vld [vmem:[%s1 + $0x34] sm:$0xf]
      %v382 = vld [vmem:[%s1 + $0x38] sm:$0xf]
      %v383 = vld [vmem:[%s1 + $0x3c] sm:$0xf]
      %v384 = vld [vmem:[%s1 + $0x40] sm:$0xf]
      %v385 = vld [vmem:[%s1 + $0x44] sm:$0xf]
      %v386 = vld [vmem:[%s1 + $0x48] sm:$0xf]
      %v387 = vld [vmem:[%s1 + $0x4c] sm:$0xf]
      %v388 = vld [vmem:[%s1 + $0x50] sm:$0xf]
      %v389 = vld [vmem:[%s1 + $0x54] sm:$0xf]
      %v390 = vld [vmem:[%s1 + $0x58] sm:$0xf]
      %v391 = vld [vmem:[%s1 + $0x5c] sm:$0xf]
      %v392 = vld [vmem:[%s1 + $0x60] sm:$0xf]
      %v393 = vld [vmem:[%s1 + $0x64] sm:$0xf]
      %v394 = vld [vmem:[%s1 + $0x68] sm:$0xf]
      %v395 = vld [vmem:[%s1 + $0x6c] sm:$0xf]
      %v396 = vld [vmem:[%s1 + $0x70] sm:$0xf]
      %v397 = vld [vmem:[%s1 + $0x74] sm:$0xf]
      %v398 = vld [vmem:[%s1 + $0x78] sm:$0xf]
      %v399 = vld [vmem:[%s1 + $0x7c] sm:$0xf]
      %v400 = vld [vmem:[%s1 + $0x80] sm:$0xf]
      %v401 = vld [vmem:[%s1 + $0x84] sm:$0xf]
      %v402 = vld [vmem:[%s1 + $0x88] sm:$0xf]
      %v403 = vld [vmem:[%s1 + $0x8c] sm:$0xf]
      %v404 = vld [vmem:[%s1 + $0x90] sm:$0xf]
      %v405 = vld [vmem:[%s1 + $0x94] sm:$0xf]
      %v406 = vld [vmem:[%s1 + $0x98] sm:$0xf]
      %v407 = vld [vmem:[%s1 + $0x9c] sm:$0xf]
      %v408 = vld [vmem:[%s1 + $0xa0] sm:$0xf]
      %v409 = vld [vmem:[%s1 + $0xa4] sm:$0xf]
      %v410 = vld [vmem:[%s1 + $0xa8] sm:$0xf]
      %v411 = vld [vmem:[%s1 + $0xac] sm:$0xf]
      %v412 = vld [vmem:[%s1 + $0xb0] sm:$0xf]
      %v413 = vld [vmem:[%s1 + $0xb4] sm:$0xf]
      %v414 = vld [vmem:[%s1 + $0xb8] sm:$0xf]
      %v415 = vld [vmem:[%s1 + $0xbc] sm:$0xf]
      %v416 = vld [vmem:[%s1 + $0xc0] sm:$0xf]
      %v417 = vld [vmem:[%s1 + $0xc4] sm:$0xf]
      %v418 = vld [vmem:[%s1 + $0xc8] sm:$0xf]
      %v419 = vld [vmem:[%s1 + $0xcc] sm:$0xf]
      %v420 = vld [vmem:[%s1 + $0xd0] sm:$0xf]
      %v421 = vld [vmem:[%s1 + $0xd4] sm:$0xf]
      %v422 = vld [vmem:[%s1 + $0xd8] sm:$0xf]
      %v423 = vld [vmem:[%s1 + $0xdc] sm:$0xf]
      %v424 = vld [vmem:[%s1 + $0xe0] sm:$0xf]
      %v425 = vld [vmem:[%s1 + $0xe4] sm:$0xf]
      %v426 = vld [vmem:[%s1 + $0xe8] sm:$0xf]
      %v427 = vld [vmem:[%s1 + $0xec] sm:$0xf]
      %v428 = vld [vmem:[%s1 + $0xf0] sm:$0xf]
      %v429 = vld [vmem:[%s1 + $0xf4] sm:$0xf]
      %v430 = vld [vmem:[%s1 + $0xf8] sm:$0xf]
      %v431 = vld [vmem:[%s1 + $0xfc] sm:$0xf]
      %v432 = vld [vmem:[%s1 + $0x100] sm:$0xf]
      %v433 = vld [vmem:[%s1 + $0x104] sm:$0xf]
      %v434 = vld [vmem:[%s1 + $0x108] sm:$0xf]
      %v435 = vld [vmem:[%s1 + $0x10c] sm:$0xf]
      %v436 = vld [vmem:[%s1 + $0x110] sm:$0xf]
      %v437 = vld [vmem:[%s1 + $0x114] sm:$0xf]
      %v438 = vld [vmem:[%s1 + $0x118] sm:$0xf]
      %v439 = vld [vmem:[%s1 + $0x11c] sm:$0xf]
      %v440 = vld [vmem:[%s1 + $0x120] sm:$0xf]
      %v441 = vld [vmem:[%s1 + $0x124] sm:$0xf]
      %v442 = vld [vmem:[%s1 + $0x128] sm:$0xf]
      %v443 = vld [vmem:[%s1 + $0x12c] sm:$0xf]
      %v444 = vld [vmem:[%s1 + $0x130] sm:$0xf]
      %v445 = vld [vmem:[%s1 + $0x134] sm:$0xf]
      %v446 = vld [vmem:[%s1 + $0x138] sm:$0xf]
      %v447 = vld [vmem:[%s1 + $0x13c] sm:$0xf]
      %v448 = vld [vmem:[%s1 + $0x140] sm:$0xf]
      %v449 = vld [vmem:[%s1 + $0x144] sm:$0xf]
      %v450 = vld [vmem:[%s1 + $0x148] sm:$0xf]
      %v451 = vld [vmem:[%s1 + $0x14c] sm:$0xf]
      %v452 = vld [vmem:[%s1 + $0x150] sm:$0xf]
      %v453 = vld [vmem:[%s1 + $0x154] sm:$0xf]
      %v454 = vld [vmem:[%s1 + $0x158] sm:$0xf]
      %v455 = vld [vmem:[%s1 + $0x15c] sm:$0xf]
      %v456 = vld [vmem:[%s1 + $0x160] sm:$0xf]
      %v457 = vld [vmem:[%s1 + $0x164] sm:$0xf]
      %v458 = vld [vmem:[%s1 + $0x168] sm:$0xf]
      %v459 = vld [vmem:[%s1 + $0x16c] sm:$0xf]
      %v460 = vld [vmem:[%s1 + $0x170] sm:$0xf]
      %v461 = vld [vmem:[%s1 + $0x174] sm:$0xf]
      %v462 = vld [vmem:[%s1 + $0x178] sm:$0xf]
      %v463 = vld [vmem:[%s1 + $0x17c] sm:$0xf]
      %v464 = vld [vmem:[%s1 + $0x180] sm:$0xf]
      %v465 = vld [vmem:[%s1 + $0x184] sm:$0xf]
      %v466 = vld [vmem:[%s1 + $0x188] sm:$0xf]
      %v467 = vld [vmem:[%s1 + $0x18c] sm:$0xf]
      %v468 = vld [vmem:[%s1 + $0x190] sm:$0xf]
      %v469 = vld [vmem:[%s1 + $0x194] sm:$0xf]
      %v470 = vld [vmem:[%s1 + $0x198] sm:$0xf]
      %v471 = vld [vmem:[%s1 + $0x19c] sm:$0xf]
      %v472 = vld [vmem:[%s1 + $0x1a0] sm:$0xf]
      %v473 = vld [vmem:[%s1 + $0x1a4] sm:$0xf]
      %v474 = vld [vmem:[%s1 + $0x1a8] sm:$0xf]
      %v475 = vld [vmem:[%s1 + $0x1ac] sm:$0xf]
      %v476 = vld [vmem:[%s1 + $0x1b0] sm:$0xf]
      %v477 = vld [vmem:[%s1 + $0x1b4] sm:$0xf]
      %v478 = vld [vmem:[%s1 + $0x1b8] sm:$0xf]
      %v479 = vld [vmem:[%s1 + $0x1bc] sm:$0xf]
      %v480 = vld [vmem:[%s1 + $0x1c0] sm:$0xf]
      %v481 = vld [vmem:[%s1 + $0x1c4] sm:$0xf]
      %v482 = vld [vmem:[%s1 + $0x1c8] sm:$0xf]
      %v483 = vld [vmem:[%s1 + $0x1cc] sm:$0xf]
      %v484 = vld [vmem:[%s1 + $0x1d0] sm:$0xf]
      %v485 = vld [vmem:[%s1 + $0x1d4] sm:$0xf]
      %v486 = vld [vmem:[%s1 + $0x1d8] sm:$0xf]
      %v487 = vld [vmem:[%s1 + $0x1dc] sm:$0xf]
      %v488 = vld [vmem:[%s1 + $0x1e0] sm:$0xf]
      %v489 = vld [vmem:[%s1 + $0x1e4] sm:$0xf]
      %v490 = vld [vmem:[%s1 + $0x1e8] sm:$0xf]
      %v491 = vld [vmem:[%s1 + $0x1ec] sm:$0xf]
      %v492 = vld [vmem:[%s1 + $0x1f0] sm:$0xf]
      %v493 = vld [vmem:[%s1 + $0x1f4] sm:$0xf]
      %v494 = vld [vmem:[%s1 + $0x1f8] sm:$0xf]
      %v495 = vld [vmem:[%s1 + $0x1fc] sm:$0xf]
      %v496 = vld [vmem:[%s1 + $0x200] sm:$0xf]
      %v497 = vld [vmem:[%s1 + $0x204] sm:$0xf]
      %v498 = vld [vmem:[%s1 + $0x208] sm:$0xf]
      %v499 = vld [vmem:[%s1 + $0x20c] sm:$0xf]
      %v500 = vld [vmem:[%s1 + $0x210] sm:$0xf]
      %v501 = vld [vmem:[%s1 + $0x214] sm:$0xf]
      %v502 = vld [vmem:[%s1 + $0x218] sm:$0xf]
      %v503 = vld [vmem:[%s1 + $0x21c] sm:$0xf]
      %v504 = vld [vmem:[%s1 + $0x220] sm:$0xf]
      %v505 = vld [vmem:[%s1 + $0x224] sm:$0xf]
      %v506 = vld [vmem:[%s1 + $0x228] sm:$0xf]
      %v507 = vld [vmem:[%s1 + $0x22c] sm:$0xf]
      %v508 = vld [vmem:[%s1 + $0x230] sm:$0xf]
      %v509 = vld [vmem:[%s1 + $0x234] sm:$0xf]
      %v510 = vld [vmem:[%s1 + $0x238] sm:$0xf]
      %v511 = vld [vmem:[%s1 + $0x23c] sm:$0xf]
      %v512 = vld [vmem:[%s2] sm:$0x1]
      %v513 = vld [vmem:[#allocation2] sm:$0xff]
      %v514 = vld [vmem:[#allocation2 + $0x8] sm:$0xff]
      %v515 = vld [vmem:[#allocation2 + $0x18] sm:$0xff]
      %v516 = vld [vmem:[#allocation2 + $0x20] sm:$0xff]
      %v517 = vld [vmem:[#allocation2 + $0x30] sm:$0xff]
      %v518 = vld [vmem:[#allocation2 + $0x38] sm:$0xff]
      %v519 = vld [vmem:[#allocation2 + $0x48] sm:$0xff]
      %v520 = vld [vmem:[#allocation2 + $0x50] sm:$0xff]
      %v521 = vld [vmem:[#allocation2 + $0x60] sm:$0xff]
      %v522 = vld [vmem:[#allocation2 + $0x68] sm:$0xff]
      %v523 = vld [vmem:[#allocation2 + $0x78] sm:$0xff]
      %v524 = vld [vmem:[#allocation2 + $0x80] sm:$0xff]
      %v525 = vld [vmem:[#allocation2 + $0x90] sm:$0xff]
      %v526 = vld [vmem:[#allocation2 + $0x98] sm:$0xff]
      %v527 = vld [vmem:[#allocation2 + $0xa8] sm:$0xff]
      %v528 = vld [vmem:[#allocation2 + $0xb0] sm:$0xff]
      %v529 = vld [vmem:[#allocation2 + $0xc0] sm:$0xff]
      %v530 = vld [vmem:[#allocation2 + $0xc8] sm:$0xff]
      %v531 = vld [vmem:[#allocation2 + $0xd8] sm:$0xff]
      %v532 = vld [vmem:[#allocation2 + $0xe0] sm:$0xff]
      %v533 = vld [vmem:[#allocation2 + $0xf0] sm:$0xff]
      %v534 = vld [vmem:[#allocation2 + $0xf8] sm:$0xff]
      %v535 = vld [vmem:[#allocation2 + $0x108] sm:$0xff]
      %v536 = vld [vmem:[#allocation2 + $0x110] sm:$0xff]
      %v537 = vld [vmem:[#allocation2 + $0x120] sm:$0xff]
      %v538 = vld [vmem:[#allocation2 + $0x128] sm:$0xff]
      %v539 = vld [vmem:[#allocation2 + $0x138] sm:$0xff]
      %v540 = vld [vmem:[#allocation2 + $0x140] sm:$0xff]
      %v541 = vld [vmem:[#allocation2 + $0x150] sm:$0xff]
      %v542 = vld [vmem:[#allocation2 + $0x158] sm:$0xff]
      %v543 = vld [vmem:[#allocation2 + $0x168] sm:$0xff]
      %v544 = vld [vmem:[#allocation2 + $0x170] sm:$0xff]
      %v545 = vpack.c.bf16 %v514, %v513
      %v546 = vpack.c.bf16 %v516, %v515
      %v547 = vpack.c.bf16 %v518, %v517
      %v548 = vpack.c.bf16 %v520, %v519
      %v549 = vpack.c.bf16 %v522, %v521
      %v550 = vpack.c.bf16 %v524, %v523
      %v551 = vpack.c.bf16 %v526, %v525
      %v552 = vpack.c.bf16 %v528, %v527
      %v553 = vpack.c.bf16 %v530, %v529
      %v554 = vpack.c.bf16 %v532, %v531
      %v555 = vpack.c.bf16 %v534, %v533
      %v556 = vpack.c.bf16 %v536, %v535
      %v557 = vpack.c.bf16 %v538, %v537
      %v558 = vpack.c.bf16 %v540, %v539
      %v559 = vpack.c.bf16 %v542, %v541
      %v560 = vpack.c.bf16 %v544, %v543
      %v561 = vld [vmem:[#allocation2 + $0x1] sm:$0xff]
      %v562 = vld [vmem:[#allocation2 + $0x9] sm:$0xff]
      %v563 = vld [vmem:[#allocation2 + $0x19] sm:$0xff]
      %v564 = vld [vmem:[#allocation2 + $0x21] sm:$0xff]
      %v565 = vld [vmem:[#allocation2 + $0x31] sm:$0xff]
      %v566 = vld [vmem:[#allocation2 + $0x39] sm:$0xff]
      %v567 = vld [vmem:[#allocation2 + $0x49] sm:$0xff]
      %v568 = vld [vmem:[#allocation2 + $0x51] sm:$0xff]
      %v569 = vld [vmem:[#allocation2 + $0x61] sm:$0xff]
      %v570 = vld [vmem:[#allocation2 + $0x69] sm:$0xff]
      %v571 = vld [vmem:[#allocation2 + $0x79] sm:$0xff]
      %v572 = vld [vmem:[#allocation2 + $0x81] sm:$0xff]
      %v573 = vld [vmem:[#allocation2 + $0x91] sm:$0xff]
      %v574 = vld [vmem:[#allocation2 + $0x99] sm:$0xff]
      %v575 = vld [vmem:[#allocation2 + $0xa9] sm:$0xff]
      %v576 = vld [vmem:[#allocation2 + $0xb1] sm:$0xff]
      %v577 = vld [vmem:[#allocation2 + $0xc1] sm:$0xff]
      %v578 = vld [vmem:[#allocation2 + $0xc9] sm:$0xff]
      %v579 = vld [vmem:[#allocation2 + $0xd9] sm:$0xff]
      %v580 = vld [vmem:[#allocation2 + $0xe1] sm:$0xff]
      %v581 = vld [vmem:[#allocation2 + $0xf1] sm:$0xff]
      %v582 = vld [vmem:[#allocation2 + $0xf9] sm:$0xff]
      %v583 = vld [vmem:[#allocation2 + $0x109] sm:$0xff]
      %v584 = vld [vmem:[#allocation2 + $0x111] sm:$0xff]
      %v585 = vld [vmem:[#allocation2 + $0x121] sm:$0xff]
      %v586 = vld [vmem:[#allocation2 + $0x129] sm:$0xff]
      %v587 = vld [vmem:[#allocation2 + $0x139] sm:$0xff]
      %v588 = vld [vmem:[#allocation2 + $0x141] sm:$0xff]
      %v589 = vld [vmem:[#allocation2 + $0x151] sm:$0xff]
      %v590 = vld [vmem:[#allocation2 + $0x159] sm:$0xff]
      %v591 = vld [vmem:[#allocation2 + $0x169] sm:$0xff]
      %v592 = vld [vmem:[#allocation2 + $0x171] sm:$0xff]
      %v593 = vpack.c.bf16 %v562, %v561
      %v594 = vpack.c.bf16 %v564, %v563
      %v595 = vpack.c.bf16 %v566, %v565
      %v596 = vpack.c.bf16 %v568, %v567
      %v597 = vpack.c.bf16 %v570, %v569
      %v598 = vpack.c.bf16 %v572, %v571
      %v599 = vpack.c.bf16 %v574, %v573
      %v600 = vpack.c.bf16 %v576, %v575
      %v601 = vpack.c.bf16 %v578, %v577
      %v602 = vpack.c.bf16 %v580, %v579
      %v603 = vpack.c.bf16 %v582, %v581
      %v604 = vpack.c.bf16 %v584, %v583
      %v605 = vpack.c.bf16 %v586, %v585
      %v606 = vpack.c.bf16 %v588, %v587
      %v607 = vpack.c.bf16 %v590, %v589
      %v608 = vpack.c.bf16 %v592, %v591
      %v625 = vunpack.c.l.b16 %v384
      %v626 = vunpack.c.l.b16 %v385
      %v627 = vunpack.c.l.b16 %v386
      %v628 = vunpack.c.l.b16 %v387
      %v629 = vunpack.c.l.b16 %v388
      %v630 = vunpack.c.l.b16 %v389
      %v631 = vunpack.c.l.b16 %v390
      %v632 = vunpack.c.l.b16 %v391
      %v633 = vunpack.c.l.b16 %v392
      %v634 = vunpack.c.l.b16 %v393
      %v635 = vunpack.c.l.b16 %v394
      %v636 = vunpack.c.l.b16 %v395
      %v637 = vunpack.c.l.b16 %v396
      %v638 = vunpack.c.l.b16 %v397
      %v639 = vunpack.c.l.b16 %v398
      %v640 = vunpack.c.l.b16 %v399
      %v641 = vpack.c.b16 %v626, %v625
      %v642 = vpack.c.b16 %v628, %v627
      %v643 = vpack.c.b16 %v630, %v629
      %v644 = vpack.c.b16 %v632, %v631
      %v645 = vpack.c.b16 %v634, %v633
      %v646 = vpack.c.b16 %v636, %v635
      %v647 = vpack.c.b16 %v638, %v637
      %v648 = vpack.c.b16 %v640, %v639
      %657 = vmatprep.subr.bf16.mxu0 0
      %658 = vmatpush1.bf16.msra.mxu0 %v641
      %659 = vmatprep.subr.bf16.mxu0 0
      %660 = vmatpush1.bf16.msra.mxu0 %v642
      %661 = vmatprep.subr.bf16.mxu0 0
      %662 = vmatpush1.bf16.msra.mxu0 %v643
      %663 = vmatprep.subr.bf16.mxu0 0
      %664 = vmatpush1.bf16.msra.mxu0 %v644
      %665 = vmatprep.subr.bf16.mxu0 0
      %666 = vmatpush1.bf16.msra.mxu0 %v645
      %667 = vmatprep.subr.bf16.mxu0 0
      %668 = vmatpush1.bf16.msra.mxu0 %v646
      %669 = vmatprep.subr.bf16.mxu0 0
      %670 = vmatpush1.bf16.msra.mxu0 %v647
      %671 = vmatprep.subr.bf16.mxu0 0
      %672 = vmatpush1.bf16.msra.mxu0 %v648
      %673 = vmatprep.subr.bf16.mxu0 0
      %674 = vmatpush1.bf16.msra.mxu0 0
      %675 = vmatprep.subr.bf16.mxu0 0
      %676 = vmatpush1.bf16.msra.mxu0 0
      %677 = vmatprep.subr.bf16.mxu0 0
      %678 = vmatpush1.bf16.msra.mxu0 0
      %679 = vmatprep.subr.bf16.mxu0 0
      %680 = vmatpush1.bf16.msra.mxu0 0
      %681 = vmatprep.subr.bf16.mxu0 0
      %682 = vmatpush1.bf16.msra.mxu0 0
      %683 = vmatprep.subr.bf16.mxu0 0
      %684 = vmatpush1.bf16.msra.mxu0 0
      %685 = vmatprep.subr.bf16.mxu0 0
      %686 = vmatpush1.bf16.msra.mxu0 0
      %687 = vmatprep.subr.bf16.mxu0 0
      %688 = vmatpush1.bf16.msra.mxu0 0
      %689 = vmatprep.mubr.bf16.mxu0 0
      %690 = vmatmul.mubr.bf16.gmra.mrb[0].mxu0 %v593
      %v691 = vpop.f32.mrb[0].mxu0
      %v692 = vadd.f32 0.0, %v691
      %v693 = vpop.f32.mrb[0].mxu0
      %v694 = vpop.f32.mrb[0].mxu0
      %v695 = vadd.f32 0.0, %v694
      %v696 = vpop.f32.mrb[0].mxu0
      %697 = vmatprep.mubr.bf16.mxu0 0
      %698 = vmatmul.mubr.bf16.gmra.mrb[0].mxu0 %v594
      %v699 = vpop.f32.mrb[0].mxu0
      %v700 = vadd.f32 0.0, %v699
      %v701 = vpop.f32.mrb[0].mxu0
      %v702 = vpop.f32.mrb[0].mxu0
      %v703 = vadd.f32 0.0, %v702
      %v704 = vpop.f32.mrb[0].mxu0
      %705 = vmatprep.mubr.bf16.mxu0 0
      %706 = vmatmul.mubr.bf16.gmra.mrb[0].mxu0 %v595
      %v707 = vpop.f32.mrb[0].mxu0
      %v708 = vadd.f32 0.0, %v707
      %v709 = vpop.f32.mrb[0].mxu0
      %v710 = vpop.f32.mrb[0].mxu0
      %v711 = vadd.f32 0.0, %v710
      %v712 = vpop.f32.mrb[0].mxu0
      %713 = vmatprep.mubr.bf16.mxu0 0
      %714 = vmatmul.mubr.bf16.gmra.mrb[0].mxu0 %v596
      %v715 = vpop.f32.mrb[0].mxu0
      %v716 = vadd.f32 0.0, %v715
      %v717 = vpop.f32.mrb[0].mxu0
      %v718 = vpop.f32.mrb[0].mxu0
      %v719 = vadd.f32 0.0, %v718
      %v720 = vpop.f32.mrb[0].mxu0
      %721 = vmatprep.mubr.bf16.mxu0 0
      %722 = vmatmul.mubr.bf16.gmra.mrb[0].mxu0 %v597
      %v723 = vpop.f32.mrb[0].mxu0
      %v724 = vadd.f32 0.0, %v723
      %v725 = vpop.f32.mrb[0].mxu0
      %v726 = vpop.f32.mrb[0].mxu0
      %v727 = vadd.f32 0.0, %v726
      %v728 = vpop.f32.mrb[0].mxu0
      %729 = vmatprep.mubr.bf16.mxu0 0
      %730 = vmatmul.mubr.bf16.gmra.mrb[0].mxu0 %v598
      %v731 = vpop.f32.mrb[0].mxu0
      %v732 = vadd.f32 0.0, %v731
      %v733 = vpop.f32.mrb[0].mxu0
      %v734 = vpop.f32.mrb[0].mxu0
      %v735 = vadd.f32 0.0, %v734
      %v736 = vpop.f32.mrb[0].mxu0
      %737 = vmatprep.mubr.bf16.mxu0 0
      %738 = vmatmul.mubr.bf16.gmra.mrb[0].mxu0 %v599
      %v739 = vpop.f32.mrb[0].mxu0
      %v740 = vadd.f32 0.0, %v739
      %v741 = vpop.f32.mrb[0].mxu0
      %v742 = vpop.f32.mrb[0].mxu0
      %v743 = vadd.f32 0.0, %v742
      %v744 = vpop.f32.mrb[0].mxu0
      %745 = vmatprep.mubr.bf16.mxu0 0
      %746 = vmatmul.mubr.bf16.gmra.mrb[0].mxu0 %v600
      %v747 = vpop.f32.mrb[0].mxu0
      %v748 = vadd.f32 0.0, %v747
      %v749 = vpop.f32.mrb[0].mxu0
      %v750 = vpop.f32.mrb[0].mxu0
      %v751 = vadd.f32 0.0, %v750
      %v752 = vpop.f32.mrb[0].mxu0
      %753 = vmatprep.mubr.bf16.mxu0 0
      %754 = vmatmul.mubr.bf16.gmra.mrb[0].mxu0 %v601
      %v755 = vpop.f32.mrb[0].mxu0
      %v756 = vadd.f32 0.0, %v755
      %v757 = vpop.f32.mrb[0].mxu0
      %v758 = vpop.f32.mrb[0].mxu0
      %v759 = vadd.f32 0.0, %v758
      %v760 = vpop.f32.mrb[0].mxu0
      %761 = vmatprep.mubr.bf16.mxu0 0
      %762 = vmatmul.mubr.bf16.gmra.mrb[0].mxu0 %v602
      %v763 = vpop.f32.mrb[0].mxu0
      %v764 = vadd.f32 0.0, %v763
      %v765 = vpop.f32.mrb[0].mxu0
      %v766 = vpop.f32.mrb[0].mxu0
      %v767 = vadd.f32 0.0, %v766
      %v768 = vpop.f32.mrb[0].mxu0
      %769 = vmatprep.mubr.bf16.mxu0 0
      %770 = vmatmul.mubr.bf16.gmra.mrb[0].mxu0 %v603
      %v771 = vpop.f32.mrb[0].mxu0
      %v772 = vadd.f32 0.0, %v771
      %v773 = vpop.f32.mrb[0].mxu0
      %v774 = vpop.f32.mrb[0].mxu0
      %v775 = vadd.f32 0.0, %v774
      %v776 = vpop.f32.mrb[0].mxu0
      %777 = vmatprep.mubr.bf16.mxu0 0
      %778 = vmatmul.mubr.bf16.gmra.mrb[0].mxu0 %v604
      %v779 = vpop.f32.mrb[0].mxu0
      %v780 = vadd.f32 0.0, %v779
      %v781 = vpop.f32.mrb[0].mxu0
      %v782 = vpop.f32.mrb[0].mxu0
      %v783 = vadd.f32 0.0, %v782
      %v784 = vpop.f32.mrb[0].mxu0
      %785 = vmatprep.mubr.bf16.mxu0 0
      %786 = vmatmul.mubr.bf16.gmra.mrb[0].mxu0 %v605
      %v787 = vpop.f32.mrb[0].mxu0
      %v788 = vadd.f32 0.0, %v787
      %v789 = vpop.f32.mrb[0].mxu0
      %v790 = vpop.f32.mrb[0].mxu0
      %v791 = vadd.f32 0.0, %v790
      %v792 = vpop.f32.mrb[0].mxu0
      %793 = vmatprep.mubr.bf16.mxu0 0
      %794 = vmatmul.mubr.bf16.gmra.mrb[0].mxu0 %v606
      %v795 = vpop.f32.mrb[0].mxu0
      %v796 = vadd.f32 0.0, %v795
      %v797 = vpop.f32.mrb[0].mxu0
      %v798 = vpop.f32.mrb[0].mxu0
      %v799 = vadd.f32 0.0, %v798
      %v800 = vpop.f32.mrb[0].mxu0
      %801 = vmatprep.mubr.bf16.mxu0 0
      %802 = vmatmul.mubr.bf16.gmra.mrb[0].mxu0 %v607
      %v803 = vpop.f32.mrb[0].mxu0
      %v804 = vadd.f32 0.0, %v803
      %v805 = vpop.f32.mrb[0].mxu0
      %v806 = vpop.f32.mrb[0].mxu0
      %v807 = vadd.f32 0.0, %v806
      %v808 = vpop.f32.mrb[0].mxu0
      %809 = vmatprep.mubr.bf16.mxu0 0
      %810 = vmatmul.mubr.bf16.gmra.mrb[0].mxu0 %v608
      %v811 = vpop.f32.mrb[0].mxu0
      %v812 = vadd.f32 0.0, %v811
      %v813 = vpop.f32.mrb[0].mxu0
      %v814 = vpop.f32.mrb[0].mxu0
      %v815 = vadd.f32 0.0, %v814
      %v816 = vpop.f32.mrb[0].mxu0
      %817 = vdwg.mxu0
      %v834 = vunpack.c.l.b16 %v368
      %v835 = vunpack.c.l.b16 %v369
      %v836 = vunpack.c.l.b16 %v370
      %v837 = vunpack.c.l.b16 %v371
      %v838 = vunpack.c.l.b16 %v372
      %v839 = vunpack.c.l.b16 %v373
      %v840 = vunpack.c.l.b16 %v374
      %v841 = vunpack.c.l.b16 %v375
      %v842 = vunpack.c.l.b16 %v376
      %v843 = vunpack.c.l.b16 %v377
      %v844 = vunpack.c.l.b16 %v378
      %v845 = vunpack.c.l.b16 %v379
      %v846 = vunpack.c.l.b16 %v380
      %v847 = vunpack.c.l.b16 %v381
      %v848 = vunpack.c.l.b16 %v382
      %v849 = vunpack.c.l.b16 %v383
      %v850 = vpack.c.b16 %v835, %v834
      %v851 = vpack.c.b16 %v837, %v836
      %v852 = vpack.c.b16 %v839, %v838
      %v853 = vpack.c.b16 %v841, %v840
      %v854 = vpack.c.b16 %v843, %v842
      %v855 = vpack.c.b16 %v845, %v844
      %v856 = vpack.c.b16 %v847, %v846
      %v857 = vpack.c.b16 %v849, %v848
      %866 = vmatprep.subr.bf16.mxu0 0
      %867 = vmatpush1.bf16.msra.mxu0 %v850
      %868 = vmatprep.subr.bf16.mxu0 0
      %869 = vmatpush1.bf16.msra.mxu0 %v851
      %870 = vmatprep.subr.bf16.mxu0 0
      %871 = vmatpush1.bf16.msra.mxu0 %v852
      %872 = vmatprep.subr.bf16.mxu0 0
      %873 = vmatpush1.bf16.msra.mxu0 %v853
      %874 = vmatprep.subr.bf16.mxu0 0
      %875 = vmatpush1.bf16.msra.mxu0 %v854
      %876 = vmatprep.subr.bf16.mxu0 0
      %877 = vmatpush1.bf16.msra.mxu0 %v855
      %878 = vmatprep.subr.bf16.mxu0 0
      %879 = vmatpush1.bf16.msra.mxu0 %v856
      %880 = vmatprep.subr.bf16.mxu0 0
      %881 = vmatpush1.bf16.msra.mxu0 %v857
      %882 = vmatprep.subr.bf16.mxu0 0
      %883 = vmatpush1.bf16.msra.mxu0 0
      %884 = vmatprep.subr.bf16.mxu0 0
      %885 = vmatpush1.bf16.msra.mxu0 0
      %886 = vmatprep.subr.bf16.mxu0 0
      %887 = vmatpush1.bf16.msra.mxu0 0
      %888 = vmatprep.subr.bf16.mxu0 0
      %889 = vmatpush1.bf16.msra.mxu0 0
      %890 = vmatprep.subr.bf16.mxu0 0
      %891 = vmatpush1.bf16.msra.mxu0 0
      %892 = vmatprep.subr.bf16.mxu0 0
      %893 = vmatpush1.bf16.msra.mxu0 0
      %894 = vmatprep.subr.bf16.mxu0 0
      %895 = vmatpush1.bf16.msra.mxu0 0
      %896 = vmatprep.subr.bf16.mxu0 0
      %897 = vmatpush1.bf16.msra.mxu0 0
      %898 = vmatprep.mubr.bf16.mxu0 0
      %899 = vmatmul.mubr.bf16.gmra.mrb[0].mxu0 %v545
      %v900 = vpop.f32.mrb[0].mxu0
      %v901 = vadd.f32 %v692, %v900
      %v902 = vpop.f32.mrb[0].mxu0
      %v903 = vpop.f32.mrb[0].mxu0
      %v904 = vadd.f32 %v695, %v903
      %v905 = vpop.f32.mrb[0].mxu0
      %906 = vmatprep.mubr.bf16.mxu0 0
      %907 = vmatmul.mubr.bf16.gmra.mrb[0].mxu0 %v546
      %v908 = vpop.f32.mrb[0].mxu0
      %v909 = vadd.f32 %v700, %v908
      %v910 = vpop.f32.mrb[0].mxu0
      %v911 = vpop.f32.mrb[0].mxu0
      %v912 = vadd.f32 %v703, %v911
      %v913 = vpop.f32.mrb[0].mxu0
      %914 = vmatprep.mubr.bf16.mxu0 0
      %915 = vmatmul.mubr.bf16.gmra.mrb[0].mxu0 %v547
      %v916 = vpop.f32.mrb[0].mxu0
      %v917 = vadd.f32 %v708, %v916
      %v918 = vpop.f32.mrb[0].mxu0
      %v919 = vpop.f32.mrb[0].mxu0
      %v920 = vadd.f32 %v711, %v919
      %v921 = vpop.f32.mrb[0].mxu0
      %922 = vmatprep.mubr.bf16.mxu0 0
      %923 = vmatmul.mubr.bf16.gmra.mrb[0].mxu0 %v548
      %v924 = vpop.f32.mrb[0].mxu0
      %v925 = vadd.f32 %v716, %v924
      %v926 = vpop.f32.mrb[0].mxu0
      %v927 = vpop.f32.mrb[0].mxu0
      %v928 = vadd.f32 %v719, %v927
      %v929 = vpop.f32.mrb[0].mxu0
      %930 = vmatprep.mubr.bf16.mxu0 0
      %931 = vmatmul.mubr.bf16.gmra.mrb[0].mxu0 %v549
      %v932 = vpop.f32.mrb[0].mxu0
      %v933 = vadd.f32 %v724, %v932
      %v934 = vpop.f32.mrb[0].mxu0
      %v935 = vpop.f32.mrb[0].mxu0
      %v936 = vadd.f32 %v727, %v935
      %v937 = vpop.f32.mrb[0].mxu0
      %938 = vmatprep.mubr.bf16.mxu0 0
      %939 = vmatmul.mubr.bf16.gmra.mrb[0].mxu0 %v550
      %v940 = vpop.f32.mrb[0].mxu0
      %v941 = vadd.f32 %v732, %v940
      %v942 = vpop.f32.mrb[0].mxu0
      %v943 = vpop.f32.mrb[0].mxu0
      %v944 = vadd.f32 %v735, %v943
      %v945 = vpop.f32.mrb[0].mxu0
      %946 = vmatprep.mubr.bf16.mxu0 0
      %947 = vmatmul.mubr.bf16.gmra.mrb[0].mxu0 %v551
      %v948 = vpop.f32.mrb[0].mxu0
      %v949 = vadd.f32 %v740, %v948
      %v950 = vpop.f32.mrb[0].mxu0
      %v951 = vpop.f32.mrb[0].mxu0
      %v952 = vadd.f32 %v743, %v951
      %v953 = vpop.f32.mrb[0].mxu0
      %954 = vmatprep.mubr.bf16.mxu0 0
      %955 = vmatmul.mubr.bf16.gmra.mrb[0].mxu0 %v552
      %v956 = vpop.f32.mrb[0].mxu0
      %v957 = vadd.f32 %v748, %v956
      %v958 = vpop.f32.mrb[0].mxu0
      %v959 = vpop.f32.mrb[0].mxu0
      %v960 = vadd.f32 %v751, %v959
      %v961 = vpop.f32.mrb[0].mxu0
      %962 = vmatprep.mubr.bf16.mxu0 0
      %963 = vmatmul.mubr.bf16.gmra.mrb[0].mxu0 %v553
      %v964 = vpop.f32.mrb[0].mxu0
      %v965 = vadd.f32 %v756, %v964
      %v966 = vpop.f32.mrb[0].mxu0
      %v967 = vpop.f32.mrb[0].mxu0
      %v968 = vadd.f32 %v759, %v967
      %v969 = vpop.f32.mrb[0].mxu0
      %970 = vmatprep.mubr.bf16.mxu0 0
      %971 = vmatmul.mubr.bf16.gmra.mrb[0].mxu0 %v554
      %v972 = vpop.f32.mrb[0].mxu0
      %v973 = vadd.f32 %v764, %v972
      %v974 = vpop.f32.mrb[0].mxu0
      %v975 = vpop.f32.mrb[0].mxu0
      %v976 = vadd.f32 %v767, %v975
      %v977 = vpop.f32.mrb[0].mxu0
      %978 = vmatprep.mubr.bf16.mxu0 0
      %979 = vmatmul.mubr.bf16.gmra.mrb[0].mxu0 %v555
      %v980 = vpop.f32.mrb[0].mxu0
      %v981 = vadd.f32 %v772, %v980
      %v982 = vpop.f32.mrb[0].mxu0
      %v983 = vpop.f32.mrb[0].mxu0
      %v984 = vadd.f32 %v775, %v983
      %v985 = vpop.f32.mrb[0].mxu0
      %986 = vmatprep.mubr.bf16.mxu0 0
      %987 = vmatmul.mubr.bf16.gmra.mrb[0].mxu0 %v556
      %v988 = vpop.f32.mrb[0].mxu0
      %v989 = vadd.f32 %v780, %v988
      %v990 = vpop.f32.mrb[0].mxu0
      %v991 = vpop.f32.mrb[0].mxu0
      %v992 = vadd.f32 %v783, %v991
      %v993 = vpop.f32.mrb[0].mxu0
      %994 = vmatprep.mubr.bf16.mxu0 0
      %995 = vmatmul.mubr.bf16.gmra.mrb[0].mxu0 %v557
      %v996 = vpop.f32.mrb[0].mxu0
      %v997 = vadd.f32 %v788, %v996
      %v998 = vpop.f32.mrb[0].mxu0
      %v999 = vpop.f32.mrb[0].mxu0
      %v1000 = vadd.f32 %v791, %v999
      %v1001 = vpop.f32.mrb[0].mxu0
      %1002 = vmatprep.mubr.bf16.mxu0 0
      %1003 = vmatmul.mubr.bf16.gmra.mrb[0].mxu0 %v558
      %v1004 = vpop.f32.mrb[0].mxu0
      %v1005 = vadd.f32 %v796, %v1004
      %v1006 = vpop.f32.mrb[0].mxu0
      %v1007 = vpop.f32.mrb[0].mxu0
      %v1008 = vadd.f32 %v799, %v1007
      %v1009 = vpop.f32.mrb[0].mxu0
      %1010 = vmatprep.mubr.bf16.mxu0 0
      %1011 = vmatmul.mubr.bf16.gmra.mrb[0].mxu0 %v559
      %v1012 = vpop.f32.mrb[0].mxu0
      %v1013 = vadd.f32 %v804, %v1012
      %v1014 = vpop.f32.mrb[0].mxu0
      %v1015 = vpop.f32.mrb[0].mxu0
      %v1016 = vadd.f32 %v807, %v1015
      %v1017 = vpop.f32.mrb[0].mxu0
      %1018 = vmatprep.mubr.bf16.mxu0 0
      %1019 = vmatmul.mubr.bf16.gmra.mrb[0].mxu0 %v560
      %v1020 = vpop.f32.mrb[0].mxu0
      %v1021 = vadd.f32 %v812, %v1020
      %v1022 = vpop.f32.mrb[0].mxu0
      %v1023 = vpop.f32.mrb[0].mxu0
      %v1024 = vadd.f32 %v815, %v1023
      %v1025 = vpop.f32.mrb[0].mxu0
      %1026 = vdwg.mxu0
      %v1027 = vld [vmem:[#allocation2 + $0x2] sm:$0xff]
      %v1028 = vld [vmem:[#allocation2 + $0xa] sm:$0xff]
      %v1029 = vld [vmem:[#allocation2 + $0x1a] sm:$0xff]
      %v1030 = vld [vmem:[#allocation2 + $0x22] sm:$0xff]
      %v1031 = vld [vmem:[#allocation2 + $0x32] sm:$0xff]
      %v1032 = vld [vmem:[#allocation2 + $0x3a] sm:$0xff]
      %v1033 = vld [vmem:[#allocation2 + $0x4a] sm:$0xff]
      %v1034 = vld [vmem:[#allocation2 + $0x52] sm:$0xff]
      %v1035 = vld [vmem:[#allocation2 + $0x62] sm:$0xff]
      %v1036 = vld [vmem:[#allocation2 + $0x6a] sm:$0xff]
      %v1037 = vld [vmem:[#allocation2 + $0x7a] sm:$0xff]
      %v1038 = vld [vmem:[#allocation2 + $0x82] sm:$0xff]
      %v1039 = vld [vmem:[#allocation2 + $0x92] sm:$0xff]
      %v1040 = vld [vmem:[#allocation2 + $0x9a] sm:$0xff]
      %v1041 = vld [vmem:[#allocation2 + $0xaa] sm:$0xff]
      %v1042 = vld [vmem:[#allocation2 + $0xb2] sm:$0xff]
      %v1043 = vld [vmem:[#allocation2 + $0xc2] sm:$0xff]
      %v1044 = vld [vmem:[#allocation2 + $0xca] sm:$0xff]
      %v1045 = vld [vmem:[#allocation2 + $0xda] sm:$0xff]
      %v1046 = vld [vmem:[#allocation2 + $0xe2] sm:$0xff]
      %v1047 = vld [vmem:[#allocation2 + $0xf2] sm:$0xff]
      %v1048 = vld [vmem:[#allocation2 + $0xfa] sm:$0xff]
      %v1049 = vld [vmem:[#allocation2 + $0x10a] sm:$0xff]
      %v1050 = vld [vmem:[#allocation2 + $0x112] sm:$0xff]
      %v1051 = vld [vmem:[#allocation2 + $0x122] sm:$0xff]
      %v1052 = vld [vmem:[#allocation2 + $0x12a] sm:$0xff]
      %v1053 = vld [vmem:[#allocation2 + $0x13a] sm:$0xff]
      %v1054 = vld [vmem:[#allocation2 + $0x142] sm:$0xff]
      %v1055 = vld [vmem:[#allocation2 + $0x152] sm:$0xff]
      %v1056 = vld [vmem:[#allocation2 + $0x15a] sm:$0xff]
      %v1057 = vld [vmem:[#allocation2 + $0x16a] sm:$0xff]
      %v1058 = vld [vmem:[#allocation2 + $0x172] sm:$0xff]
      %v1059 = vpack.c.bf16 %v1028, %v1027
      %v1060 = vpack.c.bf16 %v1030, %v1029
      %v1061 = vpack.c.bf16 %v1032, %v1031
      %v1062 = vpack.c.bf16 %v1034, %v1033
      %v1063 = vpack.c.bf16 %v1036, %v1035
      %v1064 = vpack.c.bf16 %v1038, %v1037
      %v1065 = vpack.c.bf16 %v1040, %v1039
      %v1066 = vpack.c.bf16 %v1042, %v1041
      %v1067 = vpack.c.bf16 %v1044, %v1043
      %v1068 = vpack.c.bf16 %v1046, %v1045
      %v1069 = vpack.c.bf16 %v1048, %v1047
      %v1070 = vpack.c.bf16 %v1050, %v1049
      %v1071 = vpack.c.bf16 %v1052, %v1051
      %v1072 = vpack.c.bf16 %v1054, %v1053
      %v1073 = vpack.c.bf16 %v1056, %v1055
      %v1074 = vpack.c.bf16 %v1058, %v1057
      %v1091 = vunpack.c.l.b16 %v400
      %v1092 = vunpack.c.l.b16 %v401
      %v1093 = vunpack.c.l.b16 %v402
      %v1094 = vunpack.c.l.b16 %v403
      %v1095 = vunpack.c.l.b16 %v404
      %v1096 = vunpack.c.l.b16 %v405
      %v1097 = vunpack.c.l.b16 %v406
      %v1098 = vunpack.c.l.b16 %v407
      %v1099 = vunpack.c.l.b16 %v408
      %v1100 = vunpack.c.l.b16 %v409
      %v1101 = vunpack.c.l.b16 %v410
      %v1102 = vunpack.c.l.b16 %v411
      %v1103 = vunpack.c.l.b16 %v412
      %v1104 = vunpack.c.l.b16 %v413
      %v1105 = vunpack.c.l.b16 %v414
      %v1106 = vunpack.c.l.b16 %v415
      %v1107 = vpack.c.b16 %v1092, %v1091
      %v1108 = vpack.c.b16 %v1094, %v1093
      %v1109 = vpack.c.b16 %v1096, %v1095
      %v1110 = vpack.c.b16 %v1098, %v1097
      %v1111 = vpack.c.b16 %v1100, %v1099
      %v1112 = vpack.c.b16 %v1102, %v1101
      %v1113 = vpack.c.b16 %v1104, %v1103
      %v1114 = vpack.c.b16 %v1106, %v1105
      %1123 = vmatprep.subr.bf16.mxu0 0
      %1124 = vmatpush1.bf16.msra.mxu0 %v1107
      %1125 = vmatprep.subr.bf16.mxu0 0
      %1126 = vmatpush1.bf16.msra.mxu0 %v1108
      %1127 = vmatprep.subr.bf16.mxu0 0
      %1128 = vmatpush1.bf16.msra.mxu0 %v1109
      %1129 = vmatprep.subr.bf16.mxu0 0
      %1130 = vmatpush1.bf16.msra.mxu0 %v1110
      %1131 = vmatprep.subr.bf16.mxu0 0
      %1132 = vmatpush1.bf16.msra.mxu0 %v1111
      %1133 = vmatprep.subr.bf16.mxu0 0
      %1134 = vmatpush1.bf16.msra.mxu0 %v1112
      %1135 = vmatprep.subr.bf16.mxu0 0
      %1136 = vmatpush1.bf16.msra.mxu0 %v1113
      %1137 = vmatprep.subr.bf16.mxu0 0
      %1138 = vmatpush1.bf16.msra.mxu0 %v1114
      %1139 = vmatprep.subr.bf16.mxu0 0
      %1140 = vmatpush1.bf16.msra.mxu0 0
      %1141 = vmatprep.subr.bf16.mxu0 0
      %1142 = vmatpush1.bf16.msra.mxu0 0
      %1143 = vmatprep.subr.bf16.mxu0 0
      %1144 = vmatpush1.bf16.msra.mxu0 0
      %1145 = vmatprep.subr.bf16.mxu0 0
      %1146 = vmatpush1.bf16.msra.mxu0 0
      %1147 = vmatprep.subr.bf16.mxu0 0
      %1148 = vmatpush1.bf16.msra.mxu0 0
      %1149 = vmatprep.subr.bf16.mxu0 0
      %1150 = vmatpush1.bf16.msra.mxu0 0
      %1151 = vmatprep.subr.bf16.mxu0 0
      %1152 = vmatpush1.bf16.msra.mxu0 0
      %1153 = vmatprep.subr.bf16.mxu0 0
      %1154 = vmatpush1.bf16.msra.mxu0 0
      %1155 = vmatprep.mubr.bf16.mxu0 0
      %1156 = vmatmul.mubr.bf16.gmra.mrb[0].mxu0 %v1059
      %v1157 = vpop.f32.mrb[0].mxu0
      %v1158 = vadd.f32 0.0, %v1157
      %v1159 = vpop.f32.mrb[0].mxu0
      %v1160 = vpop.f32.mrb[0].mxu0
      %v1161 = vadd.f32 0.0, %v1160
      %v1162 = vpop.f32.mrb[0].mxu0
      %1163 = vmatprep.mubr.bf16.mxu0 0
      %1164 = vmatmul.mubr.bf16.gmra.mrb[0].mxu0 %v1060
      %v1165 = vpop.f32.mrb[0].mxu0
      %v1166 = vadd.f32 0.0, %v1165
      %v1167 = vpop.f32.mrb[0].mxu0
      %v1168 = vpop.f32.mrb[0].mxu0
      %v1169 = vadd.f32 0.0, %v1168
      %v1170 = vpop.f32.mrb[0].mxu0
      %1171 = vmatprep.mubr.bf16.mxu0 0
      %1172 = vmatmul.mubr.bf16.gmra.mrb[0].mxu0 %v1061
      %v1173 = vpop.f32.mrb[0].mxu0
      %v1174 = vadd.f32 0.0, %v1173
      %v1175 = vpop.f32.mrb[0].mxu0
      %v1176 = vpop.f32.mrb[0].mxu0
      %v1177 = vadd.f32 0.0, %v1176
      %v1178 = vpop.f32.mrb[0].mxu0
      %1179 = vmatprep.mubr.bf16.mxu0 0
      %1180 = vmatmul.mubr.bf16.gmra.mrb[0].mxu0 %v1062
      %v1181 = vpop.f32.mrb[0].mxu0
      %v1182 = vadd.f32 0.0, %v1181
      %v1183 = vpop.f32.mrb[0].mxu0
      %v1184 = vpop.f32.mrb[0].mxu0
      %v1185 = vadd.f32 0.0, %v1184
      %v1186 = vpop.f32.mrb[0].mxu0
      %1187 = vmatprep.mubr.bf16.mxu0 0
      %1188 = vmatmul.mubr.bf16.gmra.mrb[0].mxu0 %v1063
      %v1189 = vpop.f32.mrb[0].mxu0
      %v1190 = vadd.f32 0.0, %v1189
      %v1191 = vpop.f32.mrb[0].mxu0
      %v1192 = vpop.f32.mrb[0].mxu0
      %v1193 = vadd.f32 0.0, %v1192
      %v1194 = vpop.f32.mrb[0].mxu0
      %1195 = vmatprep.mubr.bf16.mxu0 0
      %1196 = vmatmul.mubr.bf16.gmra.mrb[0].mxu0 %v1064
      %v1197 = vpop.f32.mrb[0].mxu0
      %v1198 = vadd.f32 0.0, %v1197
      %v1199 = vpop.f32.mrb[0].mxu0
      %v1200 = vpop.f32.mrb[0].mxu0
      %v1201 = vadd.f32 0.0, %v1200
      %v1202 = vpop.f32.mrb[0].mxu0
      %1203 = vmatprep.mubr.bf16.mxu0 0
      %1204 = vmatmul.mubr.bf16.gmra.mrb[0].mxu0 %v1065
      %v1205 = vpop.f32.mrb[0].mxu0
      %v1206 = vadd.f32 0.0, %v1205
      %v1207 = vpop.f32.mrb[0].mxu0
      %v1208 = vpop.f32.mrb[0].mxu0
      %v1209 = vadd.f32 0.0, %v1208
      %v1210 = vpop.f32.mrb[0].mxu0
      %1211 = vmatprep.mubr.bf16.mxu0 0
      %1212 = vmatmul.mubr.bf16.gmra.mrb[0].mxu0 %v1066
      %v1213 = vpop.f32.mrb[0].mxu0
      %v1214 = vadd.f32 0.0, %v1213
      %v1215 = vpop.f32.mrb[0].mxu0
      %v1216 = vpop.f32.mrb[0].mxu0
      %v1217 = vadd.f32 0.0, %v1216
      %v1218 = vpop.f32.mrb[0].mxu0
      %1219 = vmatprep.mubr.bf16.mxu0 0
      %1220 = vmatmul.mubr.bf16.gmra.mrb[0].mxu0 %v1067
      %v1221 = vpop.f32.mrb[0].mxu0
      %v1222 = vadd.f32 0.0, %v1221
      %v1223 = vpop.f32.mrb[0].mxu0
      %v1224 = vpop.f32.mrb[0].mxu0
      %v1225 = vadd.f32 0.0, %v1224
      %v1226 = vpop.f32.mrb[0].mxu0
      %1227 = vmatprep.mubr.bf16.mxu0 0
      %1228 = vmatmul.mubr.bf16.gmra.mrb[0].mxu0 %v1068
      %v1229 = vpop.f32.mrb[0].mxu0
      %v1230 = vadd.f32 0.0, %v1229
      %v1231 = vpop.f32.mrb[0].mxu0
      %v1232 = vpop.f32.mrb[0].mxu0
      %v1233 = vadd.f32 0.0, %v1232
      %v1234 = vpop.f32.mrb[0].mxu0
      %1235 = vmatprep.mubr.bf16.mxu0 0
      %1236 = vmatmul.mubr.bf16.gmra.mrb[0].mxu0 %v1069
      %v1237 = vpop.f32.mrb[0].mxu0
      %v1238 = vadd.f32 0.0, %v1237
      %v1239 = vpop.f32.mrb[0].mxu0
      %v1240 = vpop.f32.mrb[0].mxu0
      %v1241 = vadd.f32 0.0, %v1240
      %v1242 = vpop.f32.mrb[0].mxu0
      %1243 = vmatprep.mubr.bf16.mxu0 0
      %1244 = vmatmul.mubr.bf16.gmra.mrb[0].mxu0 %v1070
      %v1245 = vpop.f32.mrb[0].mxu0
      %v1246 = vadd.f32 0.0, %v1245
      %v1247 = vpop.f32.mrb[0].mxu0
      %v1248 = vpop.f32.mrb[0].mxu0
      %v1249 = vadd.f32 0.0, %v1248
      %v1250 = vpop.f32.mrb[0].mxu0
      %1251 = vmatprep.mubr.bf16.mxu0 0
      %1252 = vmatmul.mubr.bf16.gmra.mrb[0].mxu0 %v1071
      %v1253 = vpop.f32.mrb[0].mxu0
      %v1254 = vadd.f32 0.0, %v1253
      %v1255 = vpop.f32.mrb[0].mxu0
      %v1256 = vpop.f32.mrb[0].mxu0
      %v1257 = vadd.f32 0.0, %v1256
      %v1258 = vpop.f32.mrb[0].mxu0
      %1259 = vmatprep.mubr.bf16.mxu0 0
      %1260 = vmatmul.mubr.bf16.gmra.mrb[0].mxu0 %v1072
      %v1261 = vpop.f32.mrb[0].mxu0
      %v1262 = vadd.f32 0.0, %v1261
      %v1263 = vpop.f32.mrb[0].mxu0
      %v1264 = vpop.f32.mrb[0].mxu0
      %v1265 = vadd.f32 0.0, %v1264
      %v1266 = vpop.f32.mrb[0].mxu0
      %1267 = vmatprep.mubr.bf16.mxu0 0
      %1268 = vmatmul.mubr.bf16.gmra.mrb[0].mxu0 %v1073
      %v1269 = vpop.f32.mrb[0].mxu0
      %v1270 = vadd.f32 0.0, %v1269
      %v1271 = vpop.f32.mrb[0].mxu0
      %v1272 = vpop.f32.mrb[0].mxu0
      %v1273 = vadd.f32 0.0, %v1272
      %v1274 = vpop.f32.mrb[0].mxu0
      %1275 = vmatprep.mubr.bf16.mxu0 0
      %1276 = vmatmul.mubr.bf16.gmra.mrb[0].mxu0 %v1074
      %v1277 = vpop.f32.mrb[0].mxu0
      %v1278 = vadd.f32 0.0, %v1277
      %v1279 = vpop.f32.mrb[0].mxu0
      %v1280 = vpop.f32.mrb[0].mxu0
      %v1281 = vadd.f32 0.0, %v1280
      %v1282 = vpop.f32.mrb[0].mxu0
      %1283 = vdwg.mxu0
      %v1284 = vadd.f32 %v901, %v1158
      %v1285 = vadd.f32 %v904, %v1161
      %v1286 = vadd.f32 %v909, %v1166
      %v1287 = vadd.f32 %v912, %v1169
      %v1288 = vadd.f32 %v917, %v1174
      %v1289 = vadd.f32 %v920, %v1177
      %v1290 = vadd.f32 %v925, %v1182
      %v1291 = vadd.f32 %v928, %v1185
      %v1292 = vadd.f32 %v933, %v1190
      %v1293 = vadd.f32 %v936, %v1193
      %v1294 = vadd.f32 %v941, %v1198
      %v1295 = vadd.f32 %v944, %v1201
      %v1296 = vadd.f32 %v949, %v1206
      %v1297 = vadd.f32 %v952, %v1209
      %v1298 = vadd.f32 %v957, %v1214
      %v1299 = vadd.f32 %v960, %v1217
      %v1300 = vadd.f32 %v965, %v1222
      %v1301 = vadd.f32 %v968, %v1225
      %v1302 = vadd.f32 %v973, %v1230
      %v1303 = vadd.f32 %v976, %v1233
      %v1304 = vadd.f32 %v981, %v1238
      %v1305 = vadd.f32 %v984, %v1241
      %v1306 = vadd.f32 %v989, %v1246
      %v1307 = vadd.f32 %v992, %v1249
      %v1308 = vadd.f32 %v997, %v1254
      %v1309 = vadd.f32 %v1000, %v1257
      %v1310 = vadd.f32 %v1005, %v1262
      %v1311 = vadd.f32 %v1008, %v1265
      %v1312 = vadd.f32 %v1013, %v1270
      %v1313 = vadd.f32 %v1016, %v1273
      %v1314 = vadd.f32 %v1021, %v1278
      %v1315 = vadd.f32 %v1024, %v1281
      %v1316 = vld [vmem:[%s258] sm:$0xff]
      %v1317 = vld [vmem:[%s258 + $0x8] sm:$0xff]
      %v1318 = vld [vmem:[%s258 + $0x18] sm:$0xff]
      %v1319 = vld [vmem:[%s258 + $0x20] sm:$0xff]
      %v1320 = vld [vmem:[%s258 + $0x30] sm:$0xff]
      %v1321 = vld [vmem:[%s258 + $0x38] sm:$0xff]
      %v1322 = vld [vmem:[%s258 + $0x48] sm:$0xff]
      %v1323 = vld [vmem:[%s258 + $0x50] sm:$0xff]
      %v1324 = vld [vmem:[%s258 + $0x60] sm:$0xff]
      %v1325 = vld [vmem:[%s258 + $0x68] sm:$0xff]
      %v1326 = vld [vmem:[%s258 + $0x78] sm:$0xff]
      %v1327 = vld [vmem:[%s258 + $0x80] sm:$0xff]
      %v1328 = vld [vmem:[%s258 + $0x90] sm:$0xff]
      %v1329 = vld [vmem:[%s258 + $0x98] sm:$0xff]
      %v1330 = vld [vmem:[%s258 + $0xa8] sm:$0xff]
      %v1331 = vld [vmem:[%s258 + $0xb0] sm:$0xff]
      %v1332 = vld [vmem:[%s258 + $0xc0] sm:$0xff]
      %v1333 = vld [vmem:[%s258 + $0xc8] sm:$0xff]
      %v1334 = vld [vmem:[%s258 + $0xd8] sm:$0xff]
      %v1335 = vld [vmem:[%s258 + $0xe0] sm:$0xff]
      %v1336 = vld [vmem:[%s258 + $0xf0] sm:$0xff]
      %v1337 = vld [vmem:[%s258 + $0xf8] sm:$0xff]
      %v1338 = vld [vmem:[%s258 + $0x108] sm:$0xff]
      %v1339 = vld [vmem:[%s258 + $0x110] sm:$0xff]
      %v1340 = vld [vmem:[%s258 + $0x120] sm:$0xff]
      %v1341 = vld [vmem:[%s258 + $0x128] sm:$0xff]
      %v1342 = vld [vmem:[%s258 + $0x138] sm:$0xff]
      %v1343 = vld [vmem:[%s258 + $0x140] sm:$0xff]
      %v1344 = vld [vmem:[%s258 + $0x150] sm:$0xff]
      %v1345 = vld [vmem:[%s258 + $0x158] sm:$0xff]
      %v1346 = vld [vmem:[%s258 + $0x168] sm:$0xff]
      %v1347 = vld [vmem:[%s258 + $0x170] sm:$0xff]
      %v1348 = vpack.c.bf16 %v1317, %v1316
      %v1349 = vpack.c.bf16 %v1319, %v1318
      %v1350 = vpack.c.bf16 %v1321, %v1320
      %v1351 = vpack.c.bf16 %v1323, %v1322
      %v1352 = vpack.c.bf16 %v1325, %v1324
      %v1353 = vpack.c.bf16 %v1327, %v1326
      %v1354 = vpack.c.bf16 %v1329, %v1328
      %v1355 = vpack.c.bf16 %v1331, %v1330
      %v1356 = vpack.c.bf16 %v1333, %v1332
      %v1357 = vpack.c.bf16 %v1335, %v1334
      %v1358 = vpack.c.bf16 %v1337, %v1336
      %v1359 = vpack.c.bf16 %v1339, %v1338
      %v1360 = vpack.c.bf16 %v1341, %v1340
      %v1361 = vpack.c.bf16 %v1343, %v1342
      %v1362 = vpack.c.bf16 %v1345, %v1344
      %v1363 = vpack.c.bf16 %v1347, %v1346
      %v1380 = vunpack.c.l.b16 %v416
      %v1381 = vunpack.c.l.b16 %v417
      %v1382 = vunpack.c.l.b16 %v418
      %v1383 = vunpack.c.l.b16 %v419
      %v1384 = vunpack.c.l.b16 %v420
      %v1385 = vunpack.c.l.b16 %v421
      %v1386 = vunpack.c.l.b16 %v422
      %v1387 = vunpack.c.l.b16 %v423
      %v1388 = vunpack.c.l.b16 %v424
      %v1389 = vunpack.c.l.b16 %v425
      %v1390 = vunpack.c.l.b16 %v426
      %v1391 = vunpack.c.l.b16 %v427
      %v1392 = vunpack.c.l.b16 %v428
      %v1393 = vunpack.c.l.b16 %v429
      %v1394 = vunpack.c.l.b16 %v430
      %v1395 = vunpack.c.l.b16 %v431
      %v1396 = vpack.c.b16 %v1381, %v1380
      %v1397 = vpack.c.b16 %v1383, %v1382
      %v1398 = vpack.c.b16 %v1385, %v1384
      %v1399 = vpack.c.b16 %v1387, %v1386
      %v1400 = vpack.c.b16 %v1389, %v1388
      %v1401 = vpack.c.b16 %v1391, %v1390
      %v1402 = vpack.c.b16 %v1393, %v1392
      %v1403 = vpack.c.b16 %v1395, %v1394
      %1412 = vmatprep.subr.bf16.mxu0 0
      %1413 = vmatpush1.bf16.msra.mxu0 %v1396
      %1414 = vmatprep.subr.bf16.mxu0 0
      %1415 = vmatpush1.bf16.msra.mxu0 %v1397
      %1416 = vmatprep.subr.bf16.mxu0 0
      %1417 = vmatpush1.bf16.msra.mxu0 %v1398
      %1418 = vmatprep.subr.bf16.mxu0 0
      %1419 = vmatpush1.bf16.msra.mxu0 %v1399
      %1420 = vmatprep.subr.bf16.mxu0 0
      %1421 = vmatpush1.bf16.msra.mxu0 %v1400
      %1422 = vmatprep.subr.bf16.mxu0 0
      %1423 = vmatpush1.bf16.msra.mxu0 %v1401
      %1424 = vmatprep.subr.bf16.mxu0 0
      %1425 = vmatpush1.bf16.msra.mxu0 %v1402
      %1426 = vmatprep.subr.bf16.mxu0 0
      %1427 = vmatpush1.bf16.msra.mxu0 %v1403
      %1428 = vmatprep.subr.bf16.mxu0 0
      %1429 = vmatpush1.bf16.msra.mxu0 0
      %1430 = vmatprep.subr.bf16.mxu0 0
      %1431 = vmatpush1.bf16.msra.mxu0 0
      %1432 = vmatprep.subr.bf16.mxu0 0
      %1433 = vmatpush1.bf16.msra.mxu0 0
      %1434 = vmatprep.subr.bf16.mxu0 0
      %1435 = vmatpush1.bf16.msra.mxu0 0
      %1436 = vmatprep.subr.bf16.mxu0 0
      %1437 = vmatpush1.bf16.msra.mxu0 0
      %1438 = vmatprep.subr.bf16.mxu0 0
      %1439 = vmatpush1.bf16.msra.mxu0 0
      %1440 = vmatprep.subr.bf16.mxu0 0
      %1441 = vmatpush1.bf16.msra.mxu0 0
      %1442 = vmatprep.subr.bf16.mxu0 0
      %1443 = vmatpush1.bf16.msra.mxu0 0
      %1444 = vmatprep.mubr.bf16.mxu0 0
      %1445 = vmatmul.mubr.bf16.gmra.mrb[0].mxu0 %v1348
      %v1446 = vpop.f32.mrb[0].mxu0
      %v1447 = vadd.f32 0.0, %v1446
      %v1448 = vpop.f32.mrb[0].mxu0
      %v1449 = vpop.f32.mrb[0].mxu0
      %v1450 = vadd.f32 0.0, %v1449
      %v1451 = vpop.f32.mrb[0].mxu0
      %1452 = vmatprep.mubr.bf16.mxu0 0
      %1453 = vmatmul.mubr.bf16.gmra.mrb[0].mxu0 %v1349
      %v1454 = vpop.f32.mrb[0].mxu0
      %v1455 = vadd.f32 0.0, %v1454
      %v1456 = vpop.f32.mrb[0].mxu0
      %v1457 = vpop.f32.mrb[0].mxu0
      %v1458 = vadd.f32 0.0, %v1457
      %v1459 = vpop.f32.mrb[0].mxu0
      %1460 = vmatprep.mubr.bf16.mxu0 0
      %1461 = vmatmul.mubr.bf16.gmra.mrb[0].mxu0 %v1350
      %v1462 = vpop.f32.mrb[0].mxu0
      %v1463 = vadd.f32 0.0, %v1462
      %v1464 = vpop.f32.mrb[0].mxu0
      %v1465 = vpop.f32.mrb[0].mxu0
      %v1466 = vadd.f32 0.0, %v1465
      %v1467 = vpop.f32.mrb[0].mxu0
      %1468 = vmatprep.mubr.bf16.mxu0 0
      %1469 = vmatmul.mubr.bf16.gmra.mrb[0].mxu0 %v1351
      %v1470 = vpop.f32.mrb[0].mxu0
      %v1471 = vadd.f32 0.0, %v1470
      %v1472 = vpop.f32.mrb[0].mxu0
      %v1473 = vpop.f32.mrb[0].mxu0
      %v1474 = vadd.f32 0.0, %v1473
      %v1475 = vpop.f32.mrb[0].mxu0
      %1476 = vmatprep.mubr.bf16.mxu0 0
      %1477 = vmatmul.mubr.bf16.gmra.mrb[0].mxu0 %v1352
      %v1478 = vpop.f32.mrb[0].mxu0
      %v1479 = vadd.f32 0.0, %v1478
      %v1480 = vpop.f32.mrb[0].mxu0
      %v1481 = vpop.f32.mrb[0].mxu0
      %v1482 = vadd.f32 0.0, %v1481
      %v1483 = vpop.f32.mrb[0].mxu0
      %1484 = vmatprep.mubr.bf16.mxu0 0
      %1485 = vmatmul.mubr.bf16.gmra.mrb[0].mxu0 %v1353
      %v1486 = vpop.f32.mrb[0].mxu0
      %v1487 = vadd.f32 0.0, %v1486
      %v1488 = vpop.f32.mrb[0].mxu0
      %v1489 = vpop.f32.mrb[0].mxu0
      %v1490 = vadd.f32 0.0, %v1489
      %v1491 = vpop.f32.mrb[0].mxu0
      %1492 = vmatprep.mubr.bf16.mxu0 0
      %1493 = vmatmul.mubr.bf16.gmra.mrb[0].mxu0 %v1354
      %v1494 = vpop.f32.mrb[0].mxu0
      %v1495 = vadd.f32 0.0, %v1494
      %v1496 = vpop.f32.mrb[0].mxu0
      %v1497 = vpop.f32.mrb[0].mxu0
      %v1498 = vadd.f32 0.0, %v1497
      %v1499 = vpop.f32.mrb[0].mxu0
      %1500 = vmatprep.mubr.bf16.mxu0 0
      %1501 = vmatmul.mubr.bf16.gmra.mrb[0].mxu0 %v1355
      %v1502 = vpop.f32.mrb[0].mxu0
      %v1503 = vadd.f32 0.0, %v1502
      %v1504 = vpop.f32.mrb[0].mxu0
      %v1505 = vpop.f32.mrb[0].mxu0
      %v1506 = vadd.f32 0.0, %v1505
      %v1507 = vpop.f32.mrb[0].mxu0
      %1508 = vmatprep.mubr.bf16.mxu0 0
      %1509 = vmatmul.mubr.bf16.gmra.mrb[0].mxu0 %v1356
      %v1510 = vpop.f32.mrb[0].mxu0
      %v1511 = vadd.f32 0.0, %v1510
      %v1512 = vpop.f32.mrb[0].mxu0
      %v1513 = vpop.f32.mrb[0].mxu0
      %v1514 = vadd.f32 0.0, %v1513
      %v1515 = vpop.f32.mrb[0].mxu0
      %1516 = vmatprep.mubr.bf16.mxu0 0
      %1517 = vmatmul.mubr.bf16.gmra.mrb[0].mxu0 %v1357
      %v1518 = vpop.f32.mrb[0].mxu0
      %v1519 = vadd.f32 0.0, %v1518
      %v1520 = vpop.f32.mrb[0].mxu0
      %v1521 = vpop.f32.mrb[0].mxu0
      %v1522 = vadd.f32 0.0, %v1521
      %v1523 = vpop.f32.mrb[0].mxu0
      %1524 = vmatprep.mubr.bf16.mxu0 0
      %1525 = vmatmul.mubr.bf16.gmra.mrb[0].mxu0 %v1358
      %v1526 = vpop.f32.mrb[0].mxu0
      %v1527 = vadd.f32 0.0, %v1526
      %v1528 = vpop.f32.mrb[0].mxu0
      %v1529 = vpop.f32.mrb[0].mxu0
      %v1530 = vadd.f32 0.0, %v1529
      %v1531 = vpop.f32.mrb[0].mxu0
      %1532 = vmatprep.mubr.bf16.mxu0 0
      %1533 = vmatmul.mubr.bf16.gmra.mrb[0].mxu0 %v1359
      %v1534 = vpop.f32.mrb[0].mxu0
      %v1535 = vadd.f32 0.0, %v1534
      %v1536 = vpop.f32.mrb[0].mxu0
      %v1537 = vpop.f32.mrb[0].mxu0
      %v1538 = vadd.f32 0.0, %v1537
      %v1539 = vpop.f32.mrb[0].mxu0
      %1540 = vmatprep.mubr.bf16.mxu0 0
      %1541 = vmatmul.mubr.bf16.gmra.mrb[0].mxu0 %v1360
      %v1542 = vpop.f32.mrb[0].mxu0
      %v1543 = vadd.f32 0.0, %v1542
      %v1544 = vpop.f32.mrb[0].mxu0
      %v1545 = vpop.f32.mrb[0].mxu0
      %v1546 = vadd.f32 0.0, %v1545
      %v1547 = vpop.f32.mrb[0].mxu0
      %1548 = vmatprep.mubr.bf16.mxu0 0
      %1549 = vmatmul.mubr.bf16.gmra.mrb[0].mxu0 %v1361
      %v1550 = vpop.f32.mrb[0].mxu0
      %v1551 = vadd.f32 0.0, %v1550
      %v1552 = vpop.f32.mrb[0].mxu0
      %v1553 = vpop.f32.mrb[0].mxu0
      %v1554 = vadd.f32 0.0, %v1553
      %v1555 = vpop.f32.mrb[0].mxu0
      %1556 = vmatprep.mubr.bf16.mxu0 0
      %1557 = vmatmul.mubr.bf16.gmra.mrb[0].mxu0 %v1362
      %v1558 = vpop.f32.mrb[0].mxu0
      %v1559 = vadd.f32 0.0, %v1558
      %v1560 = vpop.f32.mrb[0].mxu0
      %v1561 = vpop.f32.mrb[0].mxu0
      %v1562 = vadd.f32 0.0, %v1561
      %v1563 = vpop.f32.mrb[0].mxu0
      %1564 = vmatprep.mubr.bf16.mxu0 0
      %1565 = vmatmul.mubr.bf16.gmra.mrb[0].mxu0 %v1363
      %v1566 = vpop.f32.mrb[0].mxu0
      %v1567 = vadd.f32 0.0, %v1566
      %v1568 = vpop.f32.mrb[0].mxu0
      %v1569 = vpop.f32.mrb[0].mxu0
      %v1570 = vadd.f32 0.0, %v1569
      %v1571 = vpop.f32.mrb[0].mxu0
      %1572 = vdwg.mxu0
      %v1573 = vadd.f32 %v1284, %v1447
      %v1574 = vadd.f32 %v1285, %v1450
      %v1575 = vadd.f32 %v1286, %v1455
      %v1576 = vadd.f32 %v1287, %v1458
      %v1577 = vadd.f32 %v1288, %v1463
      %v1578 = vadd.f32 %v1289, %v1466
      %v1579 = vadd.f32 %v1290, %v1471
      %v1580 = vadd.f32 %v1291, %v1474
      %v1581 = vadd.f32 %v1292, %v1479
      %v1582 = vadd.f32 %v1293, %v1482
      %v1583 = vadd.f32 %v1294, %v1487
      %v1584 = vadd.f32 %v1295, %v1490
      %v1585 = vadd.f32 %v1296, %v1495
      %v1586 = vadd.f32 %v1297, %v1498
      %v1587 = vadd.f32 %v1298, %v1503
      %v1588 = vadd.f32 %v1299, %v1506
      %v1589 = vadd.f32 %v1300, %v1511
      %v1590 = vadd.f32 %v1301, %v1514
      %v1591 = vadd.f32 %v1302, %v1519
      %v1592 = vadd.f32 %v1303, %v1522
      %v1593 = vadd.f32 %v1304, %v1527
      %v1594 = vadd.f32 %v1305, %v1530
      %v1595 = vadd.f32 %v1306, %v1535
      %v1596 = vadd.f32 %v1307, %v1538
      %v1597 = vadd.f32 %v1308, %v1543
      %v1598 = vadd.f32 %v1309, %v1546
      %v1599 = vadd.f32 %v1310, %v1551
      %v1600 = vadd.f32 %v1311, %v1554
      %v1601 = vadd.f32 %v1312, %v1559
      %v1602 = vadd.f32 %v1313, %v1562
      %v1603 = vadd.f32 %v1314, %v1567
      %v1604 = vadd.f32 %v1315, %v1570
      %v1605 = vld [vmem:[%s258 + $0x1] sm:$0xff]
      %v1606 = vld [vmem:[%s258 + $0x9] sm:$0xff]
      %v1607 = vld [vmem:[%s258 + $0x19] sm:$0xff]
      %v1608 = vld [vmem:[%s258 + $0x21] sm:$0xff]
      %v1609 = vld [vmem:[%s258 + $0x31] sm:$0xff]
      %v1610 = vld [vmem:[%s258 + $0x39] sm:$0xff]
      %v1611 = vld [vmem:[%s258 + $0x49] sm:$0xff]
      %v1612 = vld [vmem:[%s258 + $0x51] sm:$0xff]
      %v1613 = vld [vmem:[%s258 + $0x61] sm:$0xff]
      %v1614 = vld [vmem:[%s258 + $0x69] sm:$0xff]
      %v1615 = vld [vmem:[%s258 + $0x79] sm:$0xff]
      %v1616 = vld [vmem:[%s258 + $0x81] sm:$0xff]
      %v1617 = vld [vmem:[%s258 + $0x91] sm:$0xff]
      %v1618 = vld [vmem:[%s258 + $0x99] sm:$0xff]
      %v1619 = vld [vmem:[%s258 + $0xa9] sm:$0xff]
      %v1620 = vld [vmem:[%s258 + $0xb1] sm:$0xff]
      %v1621 = vld [vmem:[%s258 + $0xc1] sm:$0xff]
      %v1622 = vld [vmem:[%s258 + $0xc9] sm:$0xff]
      %v1623 = vld [vmem:[%s258 + $0xd9] sm:$0xff]
      %v1624 = vld [vmem:[%s258 + $0xe1] sm:$0xff]
      %v1625 = vld [vmem:[%s258 + $0xf1] sm:$0xff]
      %v1626 = vld [vmem:[%s258 + $0xf9] sm:$0xff]
      %v1627 = vld [vmem:[%s258 + $0x109] sm:$0xff]
      %v1628 = vld [vmem:[%s258 + $0x111] sm:$0xff]
      %v1629 = vld [vmem:[%s258 + $0x121] sm:$0xff]
      %v1630 = vld [vmem:[%s258 + $0x129] sm:$0xff]
      %v1631 = vld [vmem:[%s258 + $0x139] sm:$0xff]
      %v1632 = vld [vmem:[%s258 + $0x141] sm:$0xff]
      %v1633 = vld [vmem:[%s258 + $0x151] sm:$0xff]
      %v1634 = vld [vmem:[%s258 + $0x159] sm:$0xff]
      %v1635 = vld [vmem:[%s258 + $0x169] sm:$0xff]
      %v1636 = vld [vmem:[%s258 + $0x171] sm:$0xff]
      %v1637 = vpack.c.bf16 %v1606, %v1605
      %v1638 = vpack.c.bf16 %v1608, %v1607
      %v1639 = vpack.c.bf16 %v1610, %v1609
      %v1640 = vpack.c.bf16 %v1612, %v1611
      %v1641 = vpack.c.bf16 %v1614, %v1613
      %v1642 = vpack.c.bf16 %v1616, %v1615
      %v1643 = vpack.c.bf16 %v1618, %v1617
      %v1644 = vpack.c.bf16 %v1620, %v1619
      %v1645 = vpack.c.bf16 %v1622, %v1621
      %v1646 = vpack.c.bf16 %v1624, %v1623
      %v1647 = vpack.c.bf16 %v1626, %v1625
      %v1648 = vpack.c.bf16 %v1628, %v1627
      %v1649 = vpack.c.bf16 %v1630, %v1629
      %v1650 = vpack.c.bf16 %v1632, %v1631
      %v1651 = vpack.c.bf16 %v1634, %v1633
      %v1652 = vpack.c.bf16 %v1636, %v1635
      %v1669 = vunpack.c.l.b16 %v432
      %v1670 = vunpack.c.l.b16 %v433
      %v1671 = vunpack.c.l.b16 %v434
      %v1672 = vunpack.c.l.b16 %v435
      %v1673 = vunpack.c.l.b16 %v436
      %v1674 = vunpack.c.l.b16 %v437
      %v1675 = vunpack.c.l.b16 %v438
      %v1676 = vunpack.c.l.b16 %v439
      %v1677 = vunpack.c.l.b16 %v440
      %v1678 = vunpack.c.l.b16 %v441
      %v1679 = vunpack.c.l.b16 %v442
      %v1680 = vunpack.c.l.b16 %v443
      %v1681 = vunpack.c.l.b16 %v444
      %v1682 = vunpack.c.l.b16 %v445
      %v1683 = vunpack.c.l.b16 %v446
      %v1684 = vunpack.c.l.b16 %v447
      %v1685 = vpack.c.b16 %v1670, %v1669
      %v1686 = vpack.c.b16 %v1672, %v1671
      %v1687 = vpack.c.b16 %v1674, %v1673
      %v1688 = vpack.c.b16 %v1676, %v1675
      %v1689 = vpack.c.b16 %v1678, %v1677
      %v1690 = vpack.c.b16 %v1680, %v1679
      %v1691 = vpack.c.b16 %v1682, %v1681
      %v1692 = vpack.c.b16 %v1684, %v1683
      %1701 = vmatprep.subr.bf16.mxu0 0
      %1702 = vmatpush1.bf16.msra.mxu0 %v1685
      %1703 = vmatprep.subr.bf16.mxu0 0
      %1704 = vmatpush1.bf16.msra.mxu0 %v1686
      %1705 = vmatprep.subr.bf16.mxu0 0
      %1706 = vmatpush1.bf16.msra.mxu0 %v1687
      %1707 = vmatprep.subr.bf16.mxu0 0
      %1708 = vmatpush1.bf16.msra.mxu0 %v1688
      %1709 = vmatprep.subr.bf16.mxu0 0
      %1710 = vmatpush1.bf16.msra.mxu0 %v1689
      %1711 = vmatprep.subr.bf16.mxu0 0
      %1712 = vmatpush1.bf16.msra.mxu0 %v1690
      %1713 = vmatprep.subr.bf16.mxu0 0
      %1714 = vmatpush1.bf16.msra.mxu0 %v1691
      %1715 = vmatprep.subr.bf16.mxu0 0
      %1716 = vmatpush1.bf16.msra.mxu0 %v1692
      %1717 = vmatprep.subr.bf16.mxu0 0
      %1718 = vmatpush1.bf16.msra.mxu0 0
      %1719 = vmatprep.subr.bf16.mxu0 0
      %1720 = vmatpush1.bf16.msra.mxu0 0
      %1721 = vmatprep.subr.bf16.mxu0 0
      %1722 = vmatpush1.bf16.msra.mxu0 0
      %1723 = vmatprep.subr.bf16.mxu0 0
      %1724 = vmatpush1.bf16.msra.mxu0 0
      %1725 = vmatprep.subr.bf16.mxu0 0
      %1726 = vmatpush1.bf16.msra.mxu0 0
      %1727 = vmatprep.subr.bf16.mxu0 0
      %1728 = vmatpush1.bf16.msra.mxu0 0
      %1729 = vmatprep.subr.bf16.mxu0 0
      %1730 = vmatpush1.bf16.msra.mxu0 0
      %1731 = vmatprep.subr.bf16.mxu0 0
      %1732 = vmatpush1.bf16.msra.mxu0 0
      %1733 = vmatprep.mubr.bf16.mxu0 0
      %1734 = vmatmul.mubr.bf16.gmra.mrb[0].mxu0 %v1637
      %v1735 = vpop.f32.mrb[0].mxu0
      %v1736 = vadd.f32 0.0, %v1735
      %v1737 = vpop.f32.mrb[0].mxu0
      %v1738 = vpop.f32.mrb[0].mxu0
      %v1739 = vadd.f32 0.0, %v1738
      %v1740 = vpop.f32.mrb[0].mxu0
      %1741 = vmatprep.mubr.bf16.mxu0 0
      %1742 = vmatmul.mubr.bf16.gmra.mrb[0].mxu0 %v1638
      %v1743 = vpop.f32.mrb[0].mxu0
      %v1744 = vadd.f32 0.0, %v1743
      %v1745 = vpop.f32.mrb[0].mxu0
      %v1746 = vpop.f32.mrb[0].mxu0
      %v1747 = vadd.f32 0.0, %v1746
      %v1748 = vpop.f32.mrb[0].mxu0
      %1749 = vmatprep.mubr.bf16.mxu0 0
      %1750 = vmatmul.mubr.bf16.gmra.mrb[0].mxu0 %v1639
      %v1751 = vpop.f32.mrb[0].mxu0
      %v1752 = vadd.f32 0.0, %v1751
      %v1753 = vpop.f32.mrb[0].mxu0
      %v1754 = vpop.f32.mrb[0].mxu0
      %v1755 = vadd.f32 0.0, %v1754
      %v1756 = vpop.f32.mrb[0].mxu0
      %1757 = vmatprep.mubr.bf16.mxu0 0
      %1758 = vmatmul.mubr.bf16.gmra.mrb[0].mxu0 %v1640
      %v1759 = vpop.f32.mrb[0].mxu0
      %v1760 = vadd.f32 0.0, %v1759
      %v1761 = vpop.f32.mrb[0].mxu0
      %v1762 = vpop.f32.mrb[0].mxu0
      %v1763 = vadd.f32 0.0, %v1762
      %v1764 = vpop.f32.mrb[0].mxu0
      %1765 = vmatprep.mubr.bf16.mxu0 0
      %1766 = vmatmul.mubr.bf16.gmra.mrb[0].mxu0 %v1641
      %v1767 = vpop.f32.mrb[0].mxu0
      %v1768 = vadd.f32 0.0, %v1767
      %v1769 = vpop.f32.mrb[0].mxu0
      %v1770 = vpop.f32.mrb[0].mxu0
      %v1771 = vadd.f32 0.0, %v1770
      %v1772 = vpop.f32.mrb[0].mxu0
      %1773 = vmatprep.mubr.bf16.mxu0 0
      %1774 = vmatmul.mubr.bf16.gmra.mrb[0].mxu0 %v1642
      %v1775 = vpop.f32.mrb[0].mxu0
      %v1776 = vadd.f32 0.0, %v1775
      %v1777 = vpop.f32.mrb[0].mxu0
      %v1778 = vpop.f32.mrb[0].mxu0
      %v1779 = vadd.f32 0.0, %v1778
      %v1780 = vpop.f32.mrb[0].mxu0
      %1781 = vmatprep.mubr.bf16.mxu0 0
      %1782 = vmatmul.mubr.bf16.gmra.mrb[0].mxu0 %v1643
      %v1783 = vpop.f32.mrb[0].mxu0
      %v1784 = vadd.f32 0.0, %v1783
      %v1785 = vpop.f32.mrb[0].mxu0
      %v1786 = vpop.f32.mrb[0].mxu0
      %v1787 = vadd.f32 0.0, %v1786
      %v1788 = vpop.f32.mrb[0].mxu0
      %1789 = vmatprep.mubr.bf16.mxu0 0
      %1790 = vmatmul.mubr.bf16.gmra.mrb[0].mxu0 %v1644
      %v1791 = vpop.f32.mrb[0].mxu0
      %v1792 = vadd.f32 0.0, %v1791
      %v1793 = vpop.f32.mrb[0].mxu0
      %v1794 = vpop.f32.mrb[0].mxu0
      %v1795 = vadd.f32 0.0, %v1794
      %v1796 = vpop.f32.mrb[0].mxu0
      %1797 = vmatprep.mubr.bf16.mxu0 0
      %1798 = vmatmul.mubr.bf16.gmra.mrb[0].mxu0 %v1645
      %v1799 = vpop.f32.mrb[0].mxu0
      %v1800 = vadd.f32 0.0, %v1799
      %v1801 = vpop.f32.mrb[0].mxu0
      %v1802 = vpop.f32.mrb[0].mxu0
      %v1803 = vadd.f32 0.0, %v1802
      %v1804 = vpop.f32.mrb[0].mxu0
      %1805 = vmatprep.mubr.bf16.mxu0 0
      %1806 = vmatmul.mubr.bf16.gmra.mrb[0].mxu0 %v1646
      %v1807 = vpop.f32.mrb[0].mxu0
      %v1808 = vadd.f32 0.0, %v1807
      %v1809 = vpop.f32.mrb[0].mxu0
      %v1810 = vpop.f32.mrb[0].mxu0
      %v1811 = vadd.f32 0.0, %v1810
      %v1812 = vpop.f32.mrb[0].mxu0
      %1813 = vmatprep.mubr.bf16.mxu0 0
      %1814 = vmatmul.mubr.bf16.gmra.mrb[0].mxu0 %v1647
      %v1815 = vpop.f32.mrb[0].mxu0
      %v1816 = vadd.f32 0.0, %v1815
      %v1817 = vpop.f32.mrb[0].mxu0
      %v1818 = vpop.f32.mrb[0].mxu0
      %v1819 = vadd.f32 0.0, %v1818
      %v1820 = vpop.f32.mrb[0].mxu0
      %1821 = vmatprep.mubr.bf16.mxu0 0
      %1822 = vmatmul.mubr.bf16.gmra.mrb[0].mxu0 %v1648
      %v1823 = vpop.f32.mrb[0].mxu0
      %v1824 = vadd.f32 0.0, %v1823
      %v1825 = vpop.f32.mrb[0].mxu0
      %v1826 = vpop.f32.mrb[0].mxu0
      %v1827 = vadd.f32 0.0, %v1826
      %v1828 = vpop.f32.mrb[0].mxu0
      %1829 = vmatprep.mubr.bf16.mxu0 0
      %1830 = vmatmul.mubr.bf16.gmra.mrb[0].mxu0 %v1649
      %v1831 = vpop.f32.mrb[0].mxu0
      %v1832 = vadd.f32 0.0, %v1831
      %v1833 = vpop.f32.mrb[0].mxu0
      %v1834 = vpop.f32.mrb[0].mxu0
      %v1835 = vadd.f32 0.0, %v1834
      %v1836 = vpop.f32.mrb[0].mxu0
      %1837 = vmatprep.mubr.bf16.mxu0 0
      %1838 = vmatmul.mubr.bf16.gmra.mrb[0].mxu0 %v1650
      %v1839 = vpop.f32.mrb[0].mxu0
      %v1840 = vadd.f32 0.0, %v1839
      %v1841 = vpop.f32.mrb[0].mxu0
      %v1842 = vpop.f32.mrb[0].mxu0
      %v1843 = vadd.f32 0.0, %v1842
      %v1844 = vpop.f32.mrb[0].mxu0
      %1845 = vmatprep.mubr.bf16.mxu0 0
      %1846 = vmatmul.mubr.bf16.gmra.mrb[0].mxu0 %v1651
      %v1847 = vpop.f32.mrb[0].mxu0
      %v1848 = vadd.f32 0.0, %v1847
      %v1849 = vpop.f32.mrb[0].mxu0
      %v1850 = vpop.f32.mrb[0].mxu0
      %v1851 = vadd.f32 0.0, %v1850
      %v1852 = vpop.f32.mrb[0].mxu0
      %1853 = vmatprep.mubr.bf16.mxu0 0
      %1854 = vmatmul.mubr.bf16.gmra.mrb[0].mxu0 %v1652
      %v1855 = vpop.f32.mrb[0].mxu0
      %v1856 = vadd.f32 0.0, %v1855
      %v1857 = vpop.f32.mrb[0].mxu0
      %v1858 = vpop.f32.mrb[0].mxu0
      %v1859 = vadd.f32 0.0, %v1858
      %v1860 = vpop.f32.mrb[0].mxu0
      %1861 = vdwg.mxu0
      %v1862 = vadd.f32 %v1573, %v1736
      %v1863 = vadd.f32 %v1574, %v1739
      %v1864 = vadd.f32 %v1575, %v1744
      %v1865 = vadd.f32 %v1576, %v1747
      %v1866 = vadd.f32 %v1577, %v1752
      %v1867 = vadd.f32 %v1578, %v1755
      %v1868 = vadd.f32 %v1579, %v1760
      %v1869 = vadd.f32 %v1580, %v1763
      %v1870 = vadd.f32 %v1581, %v1768
      %v1871 = vadd.f32 %v1582, %v1771
      %v1872 = vadd.f32 %v1583, %v1776
      %v1873 = vadd.f32 %v1584, %v1779
      %v1874 = vadd.f32 %v1585, %v1784
      %v1875 = vadd.f32 %v1586, %v1787
      %v1876 = vadd.f32 %v1587, %v1792
      %v1877 = vadd.f32 %v1588, %v1795
      %v1878 = vadd.f32 %v1589, %v1800
      %v1879 = vadd.f32 %v1590, %v1803
      %v1880 = vadd.f32 %v1591, %v1808
      %v1881 = vadd.f32 %v1592, %v1811
      %v1882 = vadd.f32 %v1593, %v1816
      %v1883 = vadd.f32 %v1594, %v1819
      %v1884 = vadd.f32 %v1595, %v1824
      %v1885 = vadd.f32 %v1596, %v1827
      %v1886 = vadd.f32 %v1597, %v1832
      %v1887 = vadd.f32 %v1598, %v1835
      %v1888 = vadd.f32 %v1599, %v1840
      %v1889 = vadd.f32 %v1600, %v1843
      %v1890 = vadd.f32 %v1601, %v1848
      %v1891 = vadd.f32 %v1602, %v1851
      %v1892 = vadd.f32 %v1603, %v1856
      %v1893 = vadd.f32 %v1604, %v1859
      %v1894 = vld [vmem:[%s258 + $0x2] sm:$0xff]
      %v1895 = vld [vmem:[%s258 + $0xa] sm:$0xff]
      %v1896 = vld [vmem:[%s258 + $0x1a] sm:$0xff]
      %v1897 = vld [vmem:[%s258 + $0x22] sm:$0xff]
      %v1898 = vld [vmem:[%s258 + $0x32] sm:$0xff]
      %v1899 = vld [vmem:[%s258 + $0x3a] sm:$0xff]
      %v1900 = vld [vmem:[%s258 + $0x4a] sm:$0xff]
      %v1901 = vld [vmem:[%s258 + $0x52] sm:$0xff]
      %v1902 = vld [vmem:[%s258 + $0x62] sm:$0xff]
      %v1903 = vld [vmem:[%s258 + $0x6a] sm:$0xff]
      %v1904 = vld [vmem:[%s258 + $0x7a] sm:$0xff]
      %v1905 = vld [vmem:[%s258 + $0x82] sm:$0xff]
      %v1906 = vld [vmem:[%s258 + $0x92] sm:$0xff]
      %v1907 = vld [vmem:[%s258 + $0x9a] sm:$0xff]
      %v1908 = vld [vmem:[%s258 + $0xaa] sm:$0xff]
      %v1909 = vld [vmem:[%s258 + $0xb2] sm:$0xff]
      %v1910 = vld [vmem:[%s258 + $0xc2] sm:$0xff]
      %v1911 = vld [vmem:[%s258 + $0xca] sm:$0xff]
      %v1912 = vld [vmem:[%s258 + $0xda] sm:$0xff]
      %v1913 = vld [vmem:[%s258 + $0xe2] sm:$0xff]
      %v1914 = vld [vmem:[%s258 + $0xf2] sm:$0xff]
      %v1915 = vld [vmem:[%s258 + $0xfa] sm:$0xff]
      %v1916 = vld [vmem:[%s258 + $0x10a] sm:$0xff]
      %v1917 = vld [vmem:[%s258 + $0x112] sm:$0xff]
      %v1918 = vld [vmem:[%s258 + $0x122] sm:$0xff]
      %v1919 = vld [vmem:[%s258 + $0x12a] sm:$0xff]
      %v1920 = vld [vmem:[%s258 + $0x13a] sm:$0xff]
      %v1921 = vld [vmem:[%s258 + $0x142] sm:$0xff]
      %v1922 = vld [vmem:[%s258 + $0x152] sm:$0xff]
      %v1923 = vld [vmem:[%s258 + $0x15a] sm:$0xff]
      %v1924 = vld [vmem:[%s258 + $0x16a] sm:$0xff]
      %v1925 = vld [vmem:[%s258 + $0x172] sm:$0xff]
      %v1926 = vpack.c.bf16 %v1895, %v1894
      %v1927 = vpack.c.bf16 %v1897, %v1896
      %v1928 = vpack.c.bf16 %v1899, %v1898
      %v1929 = vpack.c.bf16 %v1901, %v1900
      %v1930 = vpack.c.bf16 %v1903, %v1902
      %v1931 = vpack.c.bf16 %v1905, %v1904
      %v1932 = vpack.c.bf16 %v1907, %v1906
      %v1933 = vpack.c.bf16 %v1909, %v1908
      %v1934 = vpack.c.bf16 %v1911, %v1910
      %v1935 = vpack.c.bf16 %v1913, %v1912
      %v1936 = vpack.c.bf16 %v1915, %v1914
      %v1937 = vpack.c.bf16 %v1917, %v1916
      %v1938 = vpack.c.bf16 %v1919, %v1918
      %v1939 = vpack.c.bf16 %v1921, %v1920
      %v1940 = vpack.c.bf16 %v1923, %v1922
      %v1941 = vpack.c.bf16 %v1925, %v1924
      %v1958 = vunpack.c.l.b16 %v448
      %v1959 = vunpack.c.l.b16 %v449
      %v1960 = vunpack.c.l.b16 %v450
      %v1961 = vunpack.c.l.b16 %v451
      %v1962 = vunpack.c.l.b16 %v452
      %v1963 = vunpack.c.l.b16 %v453
      %v1964 = vunpack.c.l.b16 %v454
      %v1965 = vunpack.c.l.b16 %v455
      %v1966 = vunpack.c.l.b16 %v456
      %v1967 = vunpack.c.l.b16 %v457
      %v1968 = vunpack.c.l.b16 %v458
      %v1969 = vunpack.c.l.b16 %v459
      %v1970 = vunpack.c.l.b16 %v460
      %v1971 = vunpack.c.l.b16 %v461
      %v1972 = vunpack.c.l.b16 %v462
      %v1973 = vunpack.c.l.b16 %v463
      %v1974 = vpack.c.b16 %v1959, %v1958
      %v1975 = vpack.c.b16 %v1961, %v1960
      %v1976 = vpack.c.b16 %v1963, %v1962
      %v1977 = vpack.c.b16 %v1965, %v1964
      %v1978 = vpack.c.b16 %v1967, %v1966
      %v1979 = vpack.c.b16 %v1969, %v1968
      %v1980 = vpack.c.b16 %v1971, %v1970
      %v1981 = vpack.c.b16 %v1973, %v1972
      %1990 = vmatprep.subr.bf16.mxu0 0
      %1991 = vmatpush1.bf16.msra.mxu0 %v1974
      %1992 = vmatprep.subr.bf16.mxu0 0
      %1993 = vmatpush1.bf16.msra.mxu0 %v1975
      %1994 = vmatprep.subr.bf16.mxu0 0
      %1995 = vmatpush1.bf16.msra.mxu0 %v1976
      %1996 = vmatprep.subr.bf16.mxu0 0
      %1997 = vmatpush1.bf16.msra.mxu0 %v1977
      %1998 = vmatprep.subr.bf16.mxu0 0
      %1999 = vmatpush1.bf16.msra.mxu0 %v1978
      %2000 = vmatprep.subr.bf16.mxu0 0
      %2001 = vmatpush1.bf16.msra.mxu0 %v1979
      %2002 = vmatprep.subr.bf16.mxu0 0
      %2003 = vmatpush1.bf16.msra.mxu0 %v1980
      %2004 = vmatprep.subr.bf16.mxu0 0
      %2005 = vmatpush1.bf16.msra.mxu0 %v1981
      %2006 = vmatprep.subr.bf16.mxu0 0
      %2007 = vmatpush1.bf16.msra.mxu0 0
      %2008 = vmatprep.subr.bf16.mxu0 0
      %2009 = vmatpush1.bf16.msra.mxu0 0
      %2010 = vmatprep.subr.bf16.mxu0 0
      %2011 = vmatpush1.bf16.msra.mxu0 0
      %2012 = vmatprep.subr.bf16.mxu0 0
      %2013 = vmatpush1.bf16.msra.mxu0 0
      %2014 = vmatprep.subr.bf16.mxu0 0
      %2015 = vmatpush1.bf16.msra.mxu0 0
      %2016 = vmatprep.subr.bf16.mxu0 0
      %2017 = vmatpush1.bf16.msra.mxu0 0
      %2018 = vmatprep.subr.bf16.mxu0 0
      %2019 = vmatpush1.bf16.msra.mxu0 0
      %2020 = vmatprep.subr.bf16.mxu0 0
      %2021 = vmatpush1.bf16.msra.mxu0 0
      %2022 = vmatprep.mubr.bf16.mxu0 0
      %2023 = vmatmul.mubr.bf16.gmra.mrb[0].mxu0 %v1926
      %v2024 = vpop.f32.mrb[0].mxu0
      %v2025 = vadd.f32 0.0, %v2024
      %v2026 = vpop.f32.mrb[0].mxu0
      %v2027 = vpop.f32.mrb[0].mxu0
      %v2028 = vadd.f32 0.0, %v2027
      %v2029 = vpop.f32.mrb[0].mxu0
      %2030 = vmatprep.mubr.bf16.mxu0 0
      %2031 = vmatmul.mubr.bf16.gmra.mrb[0].mxu0 %v1927
      %v2032 = vpop.f32.mrb[0].mxu0
      %v2033 = vadd.f32 0.0, %v2032
      %v2034 = vpop.f32.mrb[0].mxu0
      %v2035 = vpop.f32.mrb[0].mxu0
      %v2036 = vadd.f32 0.0, %v2035
      %v2037 = vpop.f32.mrb[0].mxu0
      %2038 = vmatprep.mubr.bf16.mxu0 0
      %2039 = vmatmul.mubr.bf16.gmra.mrb[0].mxu0 %v1928
      %v2040 = vpop.f32.mrb[0].mxu0
      %v2041 = vadd.f32 0.0, %v2040
      %v2042 = vpop.f32.mrb[0].mxu0
      %v2043 = vpop.f32.mrb[0].mxu0
      %v2044 = vadd.f32 0.0, %v2043
      %v2045 = vpop.f32.mrb[0].mxu0
      %2046 = vmatprep.mubr.bf16.mxu0 0
      %2047 = vmatmul.mubr.bf16.gmra.mrb[0].mxu0 %v1929
      %v2048 = vpop.f32.mrb[0].mxu0
      %v2049 = vadd.f32 0.0, %v2048
      %v2050 = vpop.f32.mrb[0].mxu0
      %v2051 = vpop.f32.mrb[0].mxu0
      %v2052 = vadd.f32 0.0, %v2051
      %v2053 = vpop.f32.mrb[0].mxu0
      %2054 = vmatprep.mubr.bf16.mxu0 0
      %2055 = vmatmul.mubr.bf16.gmra.mrb[0].mxu0 %v1930
      %v2056 = vpop.f32.mrb[0].mxu0
      %v2057 = vadd.f32 0.0, %v2056
      %v2058 = vpop.f32.mrb[0].mxu0
      %v2059 = vpop.f32.mrb[0].mxu0
      %v2060 = vadd.f32 0.0, %v2059
      %v2061 = vpop.f32.mrb[0].mxu0
      %2062 = vmatprep.mubr.bf16.mxu0 0
      %2063 = vmatmul.mubr.bf16.gmra.mrb[0].mxu0 %v1931
      %v2064 = vpop.f32.mrb[0].mxu0
      %v2065 = vadd.f32 0.0, %v2064
      %v2066 = vpop.f32.mrb[0].mxu0
      %v2067 = vpop.f32.mrb[0].mxu0
      %v2068 = vadd.f32 0.0, %v2067
      %v2069 = vpop.f32.mrb[0].mxu0
      %2070 = vmatprep.mubr.bf16.mxu0 0
      %2071 = vmatmul.mubr.bf16.gmra.mrb[0].mxu0 %v1932
      %v2072 = vpop.f32.mrb[0].mxu0
      %v2073 = vadd.f32 0.0, %v2072
      %v2074 = vpop.f32.mrb[0].mxu0
      %v2075 = vpop.f32.mrb[0].mxu0
      %v2076 = vadd.f32 0.0, %v2075
      %v2077 = vpop.f32.mrb[0].mxu0
      %2078 = vmatprep.mubr.bf16.mxu0 0
      %2079 = vmatmul.mubr.bf16.gmra.mrb[0].mxu0 %v1933
      %v2080 = vpop.f32.mrb[0].mxu0
      %v2081 = vadd.f32 0.0, %v2080
      %v2082 = vpop.f32.mrb[0].mxu0
      %v2083 = vpop.f32.mrb[0].mxu0
      %v2084 = vadd.f32 0.0, %v2083
      %v2085 = vpop.f32.mrb[0].mxu0
      %2086 = vmatprep.mubr.bf16.mxu0 0
      %2087 = vmatmul.mubr.bf16.gmra.mrb[0].mxu0 %v1934
      %v2088 = vpop.f32.mrb[0].mxu0
      %v2089 = vadd.f32 0.0, %v2088
      %v2090 = vpop.f32.mrb[0].mxu0
      %v2091 = vpop.f32.mrb[0].mxu0
      %v2092 = vadd.f32 0.0, %v2091
      %v2093 = vpop.f32.mrb[0].mxu0
      %2094 = vmatprep.mubr.bf16.mxu0 0
      %2095 = vmatmul.mubr.bf16.gmra.mrb[0].mxu0 %v1935
      %v2096 = vpop.f32.mrb[0].mxu0
      %v2097 = vadd.f32 0.0, %v2096
      %v2098 = vpop.f32.mrb[0].mxu0
      %v2099 = vpop.f32.mrb[0].mxu0
      %v2100 = vadd.f32 0.0, %v2099
      %v2101 = vpop.f32.mrb[0].mxu0
      %2102 = vmatprep.mubr.bf16.mxu0 0
      %2103 = vmatmul.mubr.bf16.gmra.mrb[0].mxu0 %v1936
      %v2104 = vpop.f32.mrb[0].mxu0
      %v2105 = vadd.f32 0.0, %v2104
      %v2106 = vpop.f32.mrb[0].mxu0
      %v2107 = vpop.f32.mrb[0].mxu0
      %v2108 = vadd.f32 0.0, %v2107
      %v2109 = vpop.f32.mrb[0].mxu0
      %2110 = vmatprep.mubr.bf16.mxu0 0
      %2111 = vmatmul.mubr.bf16.gmra.mrb[0].mxu0 %v1937
      %v2112 = vpop.f32.mrb[0].mxu0
      %v2113 = vadd.f32 0.0, %v2112
      %v2114 = vpop.f32.mrb[0].mxu0
      %v2115 = vpop.f32.mrb[0].mxu0
      %v2116 = vadd.f32 0.0, %v2115
      %v2117 = vpop.f32.mrb[0].mxu0
      %2118 = vmatprep.mubr.bf16.mxu0 0
      %2119 = vmatmul.mubr.bf16.gmra.mrb[0].mxu0 %v1938
      %v2120 = vpop.f32.mrb[0].mxu0
      %v2121 = vadd.f32 0.0, %v2120
      %v2122 = vpop.f32.mrb[0].mxu0
      %v2123 = vpop.f32.mrb[0].mxu0
      %v2124 = vadd.f32 0.0, %v2123
      %v2125 = vpop.f32.mrb[0].mxu0
      %2126 = vmatprep.mubr.bf16.mxu0 0
      %2127 = vmatmul.mubr.bf16.gmra.mrb[0].mxu0 %v1939
      %v2128 = vpop.f32.mrb[0].mxu0
      %v2129 = vadd.f32 0.0, %v2128
      %v2130 = vpop.f32.mrb[0].mxu0
      %v2131 = vpop.f32.mrb[0].mxu0
      %v2132 = vadd.f32 0.0, %v2131
      %v2133 = vpop.f32.mrb[0].mxu0
      %2134 = vmatprep.mubr.bf16.mxu0 0
      %2135 = vmatmul.mubr.bf16.gmra.mrb[0].mxu0 %v1940
      %v2136 = vpop.f32.mrb[0].mxu0
      %v2137 = vadd.f32 0.0, %v2136
      %v2138 = vpop.f32.mrb[0].mxu0
      %v2139 = vpop.f32.mrb[0].mxu0
      %v2140 = vadd.f32 0.0, %v2139
      %v2141 = vpop.f32.mrb[0].mxu0
      %2142 = vmatprep.mubr.bf16.mxu0 0
      %2143 = vmatmul.mubr.bf16.gmra.mrb[0].mxu0 %v1941
      %v2144 = vpop.f32.mrb[0].mxu0
      %v2145 = vadd.f32 0.0, %v2144
      %v2146 = vpop.f32.mrb[0].mxu0
      %v2147 = vpop.f32.mrb[0].mxu0
      %v2148 = vadd.f32 0.0, %v2147
      %v2149 = vpop.f32.mrb[0].mxu0
      %2150 = vdwg.mxu0
      %v2151 = vadd.f32 %v1862, %v2025
      %v2152 = vadd.f32 %v1863, %v2028
      %v2153 = vadd.f32 %v1864, %v2033
      %v2154 = vadd.f32 %v1865, %v2036
      %v2155 = vadd.f32 %v1866, %v2041
      %v2156 = vadd.f32 %v1867, %v2044
      %v2157 = vadd.f32 %v1868, %v2049
      %v2158 = vadd.f32 %v1869, %v2052
      %v2159 = vadd.f32 %v1870, %v2057
      %v2160 = vadd.f32 %v1871, %v2060
      %v2161 = vadd.f32 %v1872, %v2065
      %v2162 = vadd.f32 %v1873, %v2068
      %v2163 = vadd.f32 %v1874, %v2073
      %v2164 = vadd.f32 %v1875, %v2076
      %v2165 = vadd.f32 %v1876, %v2081
      %v2166 = vadd.f32 %v1877, %v2084
      %v2167 = vadd.f32 %v1878, %v2089
      %v2168 = vadd.f32 %v1879, %v2092
      %v2169 = vadd.f32 %v1880, %v2097
      %v2170 = vadd.f32 %v1881, %v2100
      %v2171 = vadd.f32 %v1882, %v2105
      %v2172 = vadd.f32 %v1883, %v2108
      %v2173 = vadd.f32 %v1884, %v2113
      %v2174 = vadd.f32 %v1885, %v2116
      %v2175 = vadd.f32 %v1886, %v2121
      %v2176 = vadd.f32 %v1887, %v2124
      %v2177 = vadd.f32 %v1888, %v2129
      %v2178 = vadd.f32 %v1889, %v2132
      %v2179 = vadd.f32 %v1890, %v2137
      %v2180 = vadd.f32 %v1891, %v2140
      %v2181 = vadd.f32 %v1892, %v2145
      %v2182 = vadd.f32 %v1893, %v2148
      %s2183 = scalar_lea.vmem [#allocation2], 48
      %v2184 = vld [vmem:[%s2183] sm:$0xff]
      %v2185 = vld [vmem:[%s2183 + $0x8] sm:$0xff]
      %v2186 = vld [vmem:[%s2183 + $0x18] sm:$0xff]
      %v2187 = vld [vmem:[%s2183 + $0x20] sm:$0xff]
      %v2188 = vld [vmem:[%s2183 + $0x30] sm:$0xff]
      %v2189 = vld [vmem:[%s2183 + $0x38] sm:$0xff]
      %v2190 = vld [vmem:[%s2183 + $0x48] sm:$0xff]
      %v2191 = vld [vmem:[%s2183 + $0x50] sm:$0xff]
      %v2192 = vld [vmem:[%s2183 + $0x60] sm:$0xff]
      %v2193 = vld [vmem:[%s2183 + $0x68] sm:$0xff]
      %v2194 = vld [vmem:[%s2183 + $0x78] sm:$0xff]
      %v2195 = vld [vmem:[%s2183 + $0x80] sm:$0xff]
      %v2196 = vld [vmem:[%s2183 + $0x90] sm:$0xff]
      %v2197 = vld [vmem:[%s2183 + $0x98] sm:$0xff]
      %v2198 = vld [vmem:[%s2183 + $0xa8] sm:$0xff]
      %v2199 = vld [vmem:[%s2183 + $0xb0] sm:$0xff]
      %v2200 = vld [vmem:[%s2183 + $0xc0] sm:$0xff]
      %v2201 = vld [vmem:[%s2183 + $0xc8] sm:$0xff]
      %v2202 = vld [vmem:[%s2183 + $0xd8] sm:$0xff]
      %v2203 = vld [vmem:[%s2183 + $0xe0] sm:$0xff]
      %v2204 = vld [vmem:[%s2183 + $0xf0] sm:$0xff]
      %v2205 = vld [vmem:[%s2183 + $0xf8] sm:$0xff]
      %v2206 = vld [vmem:[%s2183 + $0x108] sm:$0xff]
      %v2207 = vld [vmem:[%s2183 + $0x110] sm:$0xff]
      %v2208 = vld [vmem:[%s2183 + $0x120] sm:$0xff]
      %v2209 = vld [vmem:[%s2183 + $0x128] sm:$0xff]
      %v2210 = vld [vmem:[%s2183 + $0x138] sm:$0xff]
      %v2211 = vld [vmem:[%s2183 + $0x140] sm:$0xff]
      %v2212 = vld [vmem:[%s2183 + $0x150] sm:$0xff]
      %v2213 = vld [vmem:[%s2183 + $0x158] sm:$0xff]
      %v2214 = vld [vmem:[%s2183 + $0x168] sm:$0xff]
      %v2215 = vld [vmem:[%s2183 + $0x170] sm:$0xff]
      %v2216 = vpack.c.bf16 %v2185, %v2184
      %v2217 = vpack.c.bf16 %v2187, %v2186
      %v2218 = vpack.c.bf16 %v2189, %v2188
      %v2219 = vpack.c.bf16 %v2191, %v2190
      %v2220 = vpack.c.bf16 %v2193, %v2192
      %v2221 = vpack.c.bf16 %v2195, %v2194
      %v2222 = vpack.c.bf16 %v2197, %v2196
      %v2223 = vpack.c.bf16 %v2199, %v2198
      %v2224 = vpack.c.bf16 %v2201, %v2200
      %v2225 = vpack.c.bf16 %v2203, %v2202
      %v2226 = vpack.c.bf16 %v2205, %v2204
      %v2227 = vpack.c.bf16 %v2207, %v2206
      %v2228 = vpack.c.bf16 %v2209, %v2208
      %v2229 = vpack.c.bf16 %v2211, %v2210
      %v2230 = vpack.c.bf16 %v2213, %v2212
      %v2231 = vpack.c.bf16 %v2215, %v2214
      %v2248 = vunpack.c.l.b16 %v464
      %v2249 = vunpack.c.l.b16 %v465
      %v2250 = vunpack.c.l.b16 %v466
      %v2251 = vunpack.c.l.b16 %v467
      %v2252 = vunpack.c.l.b16 %v468
      %v2253 = vunpack.c.l.b16 %v469
      %v2254 = vunpack.c.l.b16 %v470
      %v2255 = vunpack.c.l.b16 %v471
      %v2256 = vunpack.c.l.b16 %v472
      %v2257 = vunpack.c.l.b16 %v473
      %v2258 = vunpack.c.l.b16 %v474
      %v2259 = vunpack.c.l.b16 %v475
      %v2260 = vunpack.c.l.b16 %v476
      %v2261 = vunpack.c.l.b16 %v477
      %v2262 = vunpack.c.l.b16 %v478
      %v2263 = vunpack.c.l.b16 %v479
      %v2264 = vpack.c.b16 %v2249, %v2248
      %v2265 = vpack.c.b16 %v2251, %v2250
      %v2266 = vpack.c.b16 %v2253, %v2252
      %v2267 = vpack.c.b16 %v2255, %v2254
      %v2268 = vpack.c.b16 %v2257, %v2256
      %v2269 = vpack.c.b16 %v2259, %v2258
      %v2270 = vpack.c.b16 %v2261, %v2260
      %v2271 = vpack.c.b16 %v2263, %v2262
      %2280 = vmatprep.subr.bf16.mxu0 0
      %2281 = vmatpush1.bf16.msra.mxu0 %v2264
      %2282 = vmatprep.subr.bf16.mxu0 0
      %2283 = vmatpush1.bf16.msra.mxu0 %v2265
      %2284 = vmatprep.subr.bf16.mxu0 0
      %2285 = vmatpush1.bf16.msra.mxu0 %v2266
      %2286 = vmatprep.subr.bf16.mxu0 0
      %2287 = vmatpush1.bf16.msra.mxu0 %v2267
      %2288 = vmatprep.subr.bf16.mxu0 0
      %2289 = vmatpush1.bf16.msra.mxu0 %v2268
      %2290 = vmatprep.subr.bf16.mxu0 0
      %2291 = vmatpush1.bf16.msra.mxu0 %v2269
      %2292 = vmatprep.subr.bf16.mxu0 0
      %2293 = vmatpush1.bf16.msra.mxu0 %v2270
      %2294 = vmatprep.subr.bf16.mxu0 0
      %2295 = vmatpush1.bf16.msra.mxu0 %v2271
      %2296 = vmatprep.subr.bf16.mxu0 0
      %2297 = vmatpush1.bf16.msra.mxu0 0
      %2298 = vmatprep.subr.bf16.mxu0 0
      %2299 = vmatpush1.bf16.msra.mxu0 0
      %2300 = vmatprep.subr.bf16.mxu0 0
      %2301 = vmatpush1.bf16.msra.mxu0 0
      %2302 = vmatprep.subr.bf16.mxu0 0
      %2303 = vmatpush1.bf16.msra.mxu0 0
      %2304 = vmatprep.subr.bf16.mxu0 0
      %2305 = vmatpush1.bf16.msra.mxu0 0
      %2306 = vmatprep.subr.bf16.mxu0 0
      %2307 = vmatpush1.bf16.msra.mxu0 0
      %2308 = vmatprep.subr.bf16.mxu0 0
      %2309 = vmatpush1.bf16.msra.mxu0 0
      %2310 = vmatprep.subr.bf16.mxu0 0
      %2311 = vmatpush1.bf16.msra.mxu0 0
      %2312 = vmatprep.mubr.bf16.mxu0 0
      %2313 = vmatmul.mubr.bf16.gmra.mrb[0].mxu0 %v2216
      %v2314 = vpop.f32.mrb[0].mxu0
      %v2315 = vadd.f32 0.0, %v2314
      %v2316 = vpop.f32.mrb[0].mxu0
      %v2317 = vpop.f32.mrb[0].mxu0
      %v2318 = vadd.f32 0.0, %v2317
      %v2319 = vpop.f32.mrb[0].mxu0
      %2320 = vmatprep.mubr.bf16.mxu0 0
      %2321 = vmatmul.mubr.bf16.gmra.mrb[0].mxu0 %v2217
      %v2322 = vpop.f32.mrb[0].mxu0
      %v2323 = vadd.f32 0.0, %v2322
      %v2324 = vpop.f32.mrb[0].mxu0
      %v2325 = vpop.f32.mrb[0].mxu0
      %v2326 = vadd.f32 0.0, %v2325
      %v2327 = vpop.f32.mrb[0].mxu0
      %2328 = vmatprep.mubr.bf16.mxu0 0
      %2329 = vmatmul.mubr.bf16.gmra.mrb[0].mxu0 %v2218
      %v2330 = vpop.f32.mrb[0].mxu0
      %v2331 = vadd.f32 0.0, %v2330
      %v2332 = vpop.f32.mrb[0].mxu0
      %v2333 = vpop.f32.mrb[0].mxu0
      %v2334 = vadd.f32 0.0, %v2333
      %v2335 = vpop.f32.mrb[0].mxu0
      %2336 = vmatprep.mubr.bf16.mxu0 0
      %2337 = vmatmul.mubr.bf16.gmra.mrb[0].mxu0 %v2219
      %v2338 = vpop.f32.mrb[0].mxu0
      %v2339 = vadd.f32 0.0, %v2338
      %v2340 = vpop.f32.mrb[0].mxu0
      %v2341 = vpop.f32.mrb[0].mxu0
      %v2342 = vadd.f32 0.0, %v2341
      %v2343 = vpop.f32.mrb[0].mxu0
      %2344 = vmatprep.mubr.bf16.mxu0 0
      %2345 = vmatmul.mubr.bf16.gmra.mrb[0].mxu0 %v2220
      %v2346 = vpop.f32.mrb[0].mxu0
      %v2347 = vadd.f32 0.0, %v2346
      %v2348 = vpop.f32.mrb[0].mxu0
      %v2349 = vpop.f32.mrb[0].mxu0
      %v2350 = vadd.f32 0.0, %v2349
      %v2351 = vpop.f32.mrb[0].mxu0
      %2352 = vmatprep.mubr.bf16.mxu0 0
      %2353 = vmatmul.mubr.bf16.gmra.mrb[0].mxu0 %v2221
      %v2354 = vpop.f32.mrb[0].mxu0
      %v2355 = vadd.f32 0.0, %v2354
      %v2356 = vpop.f32.mrb[0].mxu0
      %v2357 = vpop.f32.mrb[0].mxu0
      %v2358 = vadd.f32 0.0, %v2357
      %v2359 = vpop.f32.mrb[0].mxu0
      %2360 = vmatprep.mubr.bf16.mxu0 0
      %2361 = vmatmul.mubr.bf16.gmra.mrb[0].mxu0 %v2222
      %v2362 = vpop.f32.mrb[0].mxu0
      %v2363 = vadd.f32 0.0, %v2362
      %v2364 = vpop.f32.mrb[0].mxu0
      %v2365 = vpop.f32.mrb[0].mxu0
      %v2366 = vadd.f32 0.0, %v2365
      %v2367 = vpop.f32.mrb[0].mxu0
      %2368 = vmatprep.mubr.bf16.mxu0 0
      %2369 = vmatmul.mubr.bf16.gmra.mrb[0].mxu0 %v2223
      %v2370 = vpop.f32.mrb[0].mxu0
      %v2371 = vadd.f32 0.0, %v2370
      %v2372 = vpop.f32.mrb[0].mxu0
      %v2373 = vpop.f32.mrb[0].mxu0
      %v2374 = vadd.f32 0.0, %v2373
      %v2375 = vpop.f32.mrb[0].mxu0
      %2376 = vmatprep.mubr.bf16.mxu0 0
      %2377 = vmatmul.mubr.bf16.gmra.mrb[0].mxu0 %v2224
      %v2378 = vpop.f32.mrb[0].mxu0
      %v2379 = vadd.f32 0.0, %v2378
      %v2380 = vpop.f32.mrb[0].mxu0
      %v2381 = vpop.f32.mrb[0].mxu0
      %v2382 = vadd.f32 0.0, %v2381
      %v2383 = vpop.f32.mrb[0].mxu0
      %2384 = vmatprep.mubr.bf16.mxu0 0
      %2385 = vmatmul.mubr.bf16.gmra.mrb[0].mxu0 %v2225
      %v2386 = vpop.f32.mrb[0].mxu0
      %v2387 = vadd.f32 0.0, %v2386
      %v2388 = vpop.f32.mrb[0].mxu0
      %v2389 = vpop.f32.mrb[0].mxu0
      %v2390 = vadd.f32 0.0, %v2389
      %v2391 = vpop.f32.mrb[0].mxu0
      %2392 = vmatprep.mubr.bf16.mxu0 0
      %2393 = vmatmul.mubr.bf16.gmra.mrb[0].mxu0 %v2226
      %v2394 = vpop.f32.mrb[0].mxu0
      %v2395 = vadd.f32 0.0, %v2394
      %v2396 = vpop.f32.mrb[0].mxu0
      %v2397 = vpop.f32.mrb[0].mxu0
      %v2398 = vadd.f32 0.0, %v2397
      %v2399 = vpop.f32.mrb[0].mxu0
      %2400 = vmatprep.mubr.bf16.mxu0 0
      %2401 = vmatmul.mubr.bf16.gmra.mrb[0].mxu0 %v2227
      %v2402 = vpop.f32.mrb[0].mxu0
      %v2403 = vadd.f32 0.0, %v2402
      %v2404 = vpop.f32.mrb[0].mxu0
      %v2405 = vpop.f32.mrb[0].mxu0
      %v2406 = vadd.f32 0.0, %v2405
      %v2407 = vpop.f32.mrb[0].mxu0
      %2408 = vmatprep.mubr.bf16.mxu0 0
      %2409 = vmatmul.mubr.bf16.gmra.mrb[0].mxu0 %v2228
      %v2410 = vpop.f32.mrb[0].mxu0
      %v2411 = vadd.f32 0.0, %v2410
      %v2412 = vpop.f32.mrb[0].mxu0
      %v2413 = vpop.f32.mrb[0].mxu0
      %v2414 = vadd.f32 0.0, %v2413
      %v2415 = vpop.f32.mrb[0].mxu0
      %2416 = vmatprep.mubr.bf16.mxu0 0
      %2417 = vmatmul.mubr.bf16.gmra.mrb[0].mxu0 %v2229
      %v2418 = vpop.f32.mrb[0].mxu0
      %v2419 = vadd.f32 0.0, %v2418
      %v2420 = vpop.f32.mrb[0].mxu0
      %v2421 = vpop.f32.mrb[0].mxu0
      %v2422 = vadd.f32 0.0, %v2421
      %v2423 = vpop.f32.mrb[0].mxu0
      %2424 = vmatprep.mubr.bf16.mxu0 0
      %2425 = vmatmul.mubr.bf16.gmra.mrb[0].mxu0 %v2230
      %v2426 = vpop.f32.mrb[0].mxu0
      %v2427 = vadd.f32 0.0, %v2426
      %v2428 = vpop.f32.mrb[0].mxu0
      %v2429 = vpop.f32.mrb[0].mxu0
      %v2430 = vadd.f32 0.0, %v2429
      %v2431 = vpop.f32.mrb[0].mxu0
      %2432 = vmatprep.mubr.bf16.mxu0 0
      %2433 = vmatmul.mubr.bf16.gmra.mrb[0].mxu0 %v2231
      %v2434 = vpop.f32.mrb[0].mxu0
      %v2435 = vadd.f32 0.0, %v2434
      %v2436 = vpop.f32.mrb[0].mxu0
      %v2437 = vpop.f32.mrb[0].mxu0
      %v2438 = vadd.f32 0.0, %v2437
      %v2439 = vpop.f32.mrb[0].mxu0
      %2440 = vdwg.mxu0
      %v2441 = vadd.f32 %v2151, %v2315
      %v2442 = vadd.f32 %v2152, %v2318
      %v2443 = vadd.f32 %v2153, %v2323
      %v2444 = vadd.f32 %v2154, %v2326
      %v2445 = vadd.f32 %v2155, %v2331
      %v2446 = vadd.f32 %v2156, %v2334
      %v2447 = vadd.f32 %v2157, %v2339
      %v2448 = vadd.f32 %v2158, %v2342
      %v2449 = vadd.f32 %v2159, %v2347
      %v2450 = vadd.f32 %v2160, %v2350
      %v2451 = vadd.f32 %v2161, %v2355
      %v2452 = vadd.f32 %v2162, %v2358
      %v2453 = vadd.f32 %v2163, %v2363
      %v2454 = vadd.f32 %v2164, %v2366
      %v2455 = vadd.f32 %v2165, %v2371
      %v2456 = vadd.f32 %v2166, %v2374
      %v2457 = vadd.f32 %v2167, %v2379
      %v2458 = vadd.f32 %v2168, %v2382
      %v2459 = vadd.f32 %v2169, %v2387
      %v2460 = vadd.f32 %v2170, %v2390
      %v2461 = vadd.f32 %v2171, %v2395
      %v2462 = vadd.f32 %v2172, %v2398
      %v2463 = vadd.f32 %v2173, %v2403
      %v2464 = vadd.f32 %v2174, %v2406
      %v2465 = vadd.f32 %v2175, %v2411
      %v2466 = vadd.f32 %v2176, %v2414
      %v2467 = vadd.f32 %v2177, %v2419
      %v2468 = vadd.f32 %v2178, %v2422
      %v2469 = vadd.f32 %v2179, %v2427
      %v2470 = vadd.f32 %v2180, %v2430
      %v2471 = vadd.f32 %v2181, %v2435
      %v2472 = vadd.f32 %v2182, %v2438
      %v2473 = vld [vmem:[%s2183 + $0x1] sm:$0xff]
      %v2474 = vld [vmem:[%s2183 + $0x9] sm:$0xff]
      %v2475 = vld [vmem:[%s2183 + $0x19] sm:$0xff]
      %v2476 = vld [vmem:[%s2183 + $0x21] sm:$0xff]
      %v2477 = vld [vmem:[%s2183 + $0x31] sm:$0xff]
      %v2478 = vld [vmem:[%s2183 + $0x39] sm:$0xff]
      %v2479 = vld [vmem:[%s2183 + $0x49] sm:$0xff]
      %v2480 = vld [vmem:[%s2183 + $0x51] sm:$0xff]
      %v2481 = vld [vmem:[%s2183 + $0x61] sm:$0xff]
      %v2482 = vld [vmem:[%s2183 + $0x69] sm:$0xff]
      %v2483 = vld [vmem:[%s2183 + $0x79] sm:$0xff]
      %v2484 = vld [vmem:[%s2183 + $0x81] sm:$0xff]
      %v2485 = vld [vmem:[%s2183 + $0x91] sm:$0xff]
      %v2486 = vld [vmem:[%s2183 + $0x99] sm:$0xff]
      %v2487 = vld [vmem:[%s2183 + $0xa9] sm:$0xff]
      %v2488 = vld [vmem:[%s2183 + $0xb1] sm:$0xff]
      %v2489 = vld [vmem:[%s2183 + $0xc1] sm:$0xff]
      %v2490 = vld [vmem:[%s2183 + $0xc9] sm:$0xff]
      %v2491 = vld [vmem:[%s2183 + $0xd9] sm:$0xff]
      %v2492 = vld [vmem:[%s2183 + $0xe1] sm:$0xff]
      %v2493 = vld [vmem:[%s2183 + $0xf1] sm:$0xff]
      %v2494 = vld [vmem:[%s2183 + $0xf9] sm:$0xff]
      %v2495 = vld [vmem:[%s2183 + $0x109] sm:$0xff]
      %v2496 = vld [vmem:[%s2183 + $0x111] sm:$0xff]
      %v2497 = vld [vmem:[%s2183 + $0x121] sm:$0xff]
      %v2498 = vld [vmem:[%s2183 + $0x129] sm:$0xff]
      %v2499 = vld [vmem:[%s2183 + $0x139] sm:$0xff]
      %v2500 = vld [vmem:[%s2183 + $0x141] sm:$0xff]
      %v2501 = vld [vmem:[%s2183 + $0x151] sm:$0xff]
      %v2502 = vld [vmem:[%s2183 + $0x159] sm:$0xff]
      %v2503 = vld [vmem:[%s2183 + $0x169] sm:$0xff]
      %v2504 = vld [vmem:[%s2183 + $0x171] sm:$0xff]
      %v2505 = vpack.c.bf16 %v2474, %v2473
      %v2506 = vpack.c.bf16 %v2476, %v2475
      %v2507 = vpack.c.bf16 %v2478, %v2477
      %v2508 = vpack.c.bf16 %v2480, %v2479
      %v2509 = vpack.c.bf16 %v2482, %v2481
      %v2510 = vpack.c.bf16 %v2484, %v2483
      %v2511 = vpack.c.bf16 %v2486, %v2485
      %v2512 = vpack.c.bf16 %v2488, %v2487
      %v2513 = vpack.c.bf16 %v2490, %v2489
      %v2514 = vpack.c.bf16 %v2492, %v2491
      %v2515 = vpack.c.bf16 %v2494, %v2493
      %v2516 = vpack.c.bf16 %v2496, %v2495
      %v2517 = vpack.c.bf16 %v2498, %v2497
      %v2518 = vpack.c.bf16 %v2500, %v2499
      %v2519 = vpack.c.bf16 %v2502, %v2501
      %v2520 = vpack.c.bf16 %v2504, %v2503
      %v2537 = vunpack.c.l.b16 %v480
      %v2538 = vunpack.c.l.b16 %v481
      %v2539 = vunpack.c.l.b16 %v482
      %v2540 = vunpack.c.l.b16 %v483
      %v2541 = vunpack.c.l.b16 %v484
      %v2542 = vunpack.c.l.b16 %v485
      %v2543 = vunpack.c.l.b16 %v486
      %v2544 = vunpack.c.l.b16 %v487
      %v2545 = vunpack.c.l.b16 %v488
      %v2546 = vunpack.c.l.b16 %v489
      %v2547 = vunpack.c.l.b16 %v490
      %v2548 = vunpack.c.l.b16 %v491
      %v2549 = vunpack.c.l.b16 %v492
      %v2550 = vunpack.c.l.b16 %v493
      %v2551 = vunpack.c.l.b16 %v494
      %v2552 = vunpack.c.l.b16 %v495
      %v2553 = vpack.c.b16 %v2538, %v2537
      %v2554 = vpack.c.b16 %v2540, %v2539
      %v2555 = vpack.c.b16 %v2542, %v2541
      %v2556 = vpack.c.b16 %v2544, %v2543
      %v2557 = vpack.c.b16 %v2546, %v2545
      %v2558 = vpack.c.b16 %v2548, %v2547
      %v2559 = vpack.c.b16 %v2550, %v2549
      %v2560 = vpack.c.b16 %v2552, %v2551
      %2569 = vmatprep.subr.bf16.mxu0 0
      %2570 = vmatpush1.bf16.msra.mxu0 %v2553
      %2571 = vmatprep.subr.bf16.mxu0 0
      %2572 = vmatpush1.bf16.msra.mxu0 %v2554
      %2573 = vmatprep.subr.bf16.mxu0 0
      %2574 = vmatpush1.bf16.msra.mxu0 %v2555
      %2575 = vmatprep.subr.bf16.mxu0 0
      %2576 = vmatpush1.bf16.msra.mxu0 %v2556
      %2577 = vmatprep.subr.bf16.mxu0 0
      %2578 = vmatpush1.bf16.msra.mxu0 %v2557
      %2579 = vmatprep.subr.bf16.mxu0 0
      %2580 = vmatpush1.bf16.msra.mxu0 %v2558
      %2581 = vmatprep.subr.bf16.mxu0 0
      %2582 = vmatpush1.bf16.msra.mxu0 %v2559
      %2583 = vmatprep.subr.bf16.mxu0 0
      %2584 = vmatpush1.bf16.msra.mxu0 %v2560
      %2585 = vmatprep.subr.bf16.mxu0 0
      %2586 = vmatpush1.bf16.msra.mxu0 0
      %2587 = vmatprep.subr.bf16.mxu0 0
      %2588 = vmatpush1.bf16.msra.mxu0 0
      %2589 = vmatprep.subr.bf16.mxu0 0
      %2590 = vmatpush1.bf16.msra.mxu0 0
      %2591 = vmatprep.subr.bf16.mxu0 0
      %2592 = vmatpush1.bf16.msra.mxu0 0
      %2593 = vmatprep.subr.bf16.mxu0 0
      %2594 = vmatpush1.bf16.msra.mxu0 0
      %2595 = vmatprep.subr.bf16.mxu0 0
      %2596 = vmatpush1.bf16.msra.mxu0 0
      %2597 = vmatprep.subr.bf16.mxu0 0
      %2598 = vmatpush1.bf16.msra.mxu0 0
      %2599 = vmatprep.subr.bf16.mxu0 0
      %2600 = vmatpush1.bf16.msra.mxu0 0
      %2601 = vmatprep.mubr.bf16.mxu0 0
      %2602 = vmatmul.mubr.bf16.gmra.mrb[0].mxu0 %v2505
      %v2603 = vpop.f32.mrb[0].mxu0
      %v2604 = vadd.f32 0.0, %v2603
      %v2605 = vpop.f32.mrb[0].mxu0
      %v2606 = vpop.f32.mrb[0].mxu0
      %v2607 = vadd.f32 0.0, %v2606
      %v2608 = vpop.f32.mrb[0].mxu0
      %2609 = vmatprep.mubr.bf16.mxu0 0
      %2610 = vmatmul.mubr.bf16.gmra.mrb[0].mxu0 %v2506
      %v2611 = vpop.f32.mrb[0].mxu0
      %v2612 = vadd.f32 0.0, %v2611
      %v2613 = vpop.f32.mrb[0].mxu0
      %v2614 = vpop.f32.mrb[0].mxu0
      %v2615 = vadd.f32 0.0, %v2614
      %v2616 = vpop.f32.mrb[0].mxu0
      %2617 = vmatprep.mubr.bf16.mxu0 0
      %2618 = vmatmul.mubr.bf16.gmra.mrb[0].mxu0 %v2507
      %v2619 = vpop.f32.mrb[0].mxu0
      %v2620 = vadd.f32 0.0, %v2619
      %v2621 = vpop.f32.mrb[0].mxu0
      %v2622 = vpop.f32.mrb[0].mxu0
      %v2623 = vadd.f32 0.0, %v2622
      %v2624 = vpop.f32.mrb[0].mxu0
      %2625 = vmatprep.mubr.bf16.mxu0 0
      %2626 = vmatmul.mubr.bf16.gmra.mrb[0].mxu0 %v2508
      %v2627 = vpop.f32.mrb[0].mxu0
      %v2628 = vadd.f32 0.0, %v2627
      %v2629 = vpop.f32.mrb[0].mxu0
      %v2630 = vpop.f32.mrb[0].mxu0
      %v2631 = vadd.f32 0.0, %v2630
      %v2632 = vpop.f32.mrb[0].mxu0
      %2633 = vmatprep.mubr.bf16.mxu0 0
      %2634 = vmatmul.mubr.bf16.gmra.mrb[0].mxu0 %v2509
      %v2635 = vpop.f32.mrb[0].mxu0
      %v2636 = vadd.f32 0.0, %v2635
      %v2637 = vpop.f32.mrb[0].mxu0
      %v2638 = vpop.f32.mrb[0].mxu0
      %v2639 = vadd.f32 0.0, %v2638
      %v2640 = vpop.f32.mrb[0].mxu0
      %2641 = vmatprep.mubr.bf16.mxu0 0
      %2642 = vmatmul.mubr.bf16.gmra.mrb[0].mxu0 %v2510
      %v2643 = vpop.f32.mrb[0].mxu0
      %v2644 = vadd.f32 0.0, %v2643
      %v2645 = vpop.f32.mrb[0].mxu0
      %v2646 = vpop.f32.mrb[0].mxu0
      %v2647 = vadd.f32 0.0, %v2646
      %v2648 = vpop.f32.mrb[0].mxu0
      %2649 = vmatprep.mubr.bf16.mxu0 0
      %2650 = vmatmul.mubr.bf16.gmra.mrb[0].mxu0 %v2511
      %v2651 = vpop.f32.mrb[0].mxu0
      %v2652 = vadd.f32 0.0, %v2651
      %v2653 = vpop.f32.mrb[0].mxu0
      %v2654 = vpop.f32.mrb[0].mxu0
      %v2655 = vadd.f32 0.0, %v2654
      %v2656 = vpop.f32.mrb[0].mxu0
      %2657 = vmatprep.mubr.bf16.mxu0 0
      %2658 = vmatmul.mubr.bf16.gmra.mrb[0].mxu0 %v2512
      %v2659 = vpop.f32.mrb[0].mxu0
      %v2660 = vadd.f32 0.0, %v2659
      %v2661 = vpop.f32.mrb[0].mxu0
      %v2662 = vpop.f32.mrb[0].mxu0
      %v2663 = vadd.f32 0.0, %v2662
      %v2664 = vpop.f32.mrb[0].mxu0
      %2665 = vmatprep.mubr.bf16.mxu0 0
      %2666 = vmatmul.mubr.bf16.gmra.mrb[0].mxu0 %v2513
      %v2667 = vpop.f32.mrb[0].mxu0
      %v2668 = vadd.f32 0.0, %v2667
      %v2669 = vpop.f32.mrb[0].mxu0
      %v2670 = vpop.f32.mrb[0].mxu0
      %v2671 = vadd.f32 0.0, %v2670
      %v2672 = vpop.f32.mrb[0].mxu0
      %2673 = vmatprep.mubr.bf16.mxu0 0
      %2674 = vmatmul.mubr.bf16.gmra.mrb[0].mxu0 %v2514
      %v2675 = vpop.f32.mrb[0].mxu0
      %v2676 = vadd.f32 0.0, %v2675
      %v2677 = vpop.f32.mrb[0].mxu0
      %v2678 = vpop.f32.mrb[0].mxu0
      %v2679 = vadd.f32 0.0, %v2678
      %v2680 = vpop.f32.mrb[0].mxu0
      %2681 = vmatprep.mubr.bf16.mxu0 0
      %2682 = vmatmul.mubr.bf16.gmra.mrb[0].mxu0 %v2515
      %v2683 = vpop.f32.mrb[0].mxu0
      %v2684 = vadd.f32 0.0, %v2683
      %v2685 = vpop.f32.mrb[0].mxu0
      %v2686 = vpop.f32.mrb[0].mxu0
      %v2687 = vadd.f32 0.0, %v2686
      %v2688 = vpop.f32.mrb[0].mxu0
      %2689 = vmatprep.mubr.bf16.mxu0 0
      %2690 = vmatmul.mubr.bf16.gmra.mrb[0].mxu0 %v2516
      %v2691 = vpop.f32.mrb[0].mxu0
      %v2692 = vadd.f32 0.0, %v2691
      %v2693 = vpop.f32.mrb[0].mxu0
      %v2694 = vpop.f32.mrb[0].mxu0
      %v2695 = vadd.f32 0.0, %v2694
      %v2696 = vpop.f32.mrb[0].mxu0
      %2697 = vmatprep.mubr.bf16.mxu0 0
      %2698 = vmatmul.mubr.bf16.gmra.mrb[0].mxu0 %v2517
      %v2699 = vpop.f32.mrb[0].mxu0
      %v2700 = vadd.f32 0.0, %v2699
      %v2701 = vpop.f32.mrb[0].mxu0
      %v2702 = vpop.f32.mrb[0].mxu0
      %v2703 = vadd.f32 0.0, %v2702
      %v2704 = vpop.f32.mrb[0].mxu0
      %2705 = vmatprep.mubr.bf16.mxu0 0
      %2706 = vmatmul.mubr.bf16.gmra.mrb[0].mxu0 %v2518
      %v2707 = vpop.f32.mrb[0].mxu0
      %v2708 = vadd.f32 0.0, %v2707
      %v2709 = vpop.f32.mrb[0].mxu0
      %v2710 = vpop.f32.mrb[0].mxu0
      %v2711 = vadd.f32 0.0, %v2710
      %v2712 = vpop.f32.mrb[0].mxu0
      %2713 = vmatprep.mubr.bf16.mxu0 0
      %2714 = vmatmul.mubr.bf16.gmra.mrb[0].mxu0 %v2519
      %v2715 = vpop.f32.mrb[0].mxu0
      %v2716 = vadd.f32 0.0, %v2715
      %v2717 = vpop.f32.mrb[0].mxu0
      %v2718 = vpop.f32.mrb[0].mxu0
      %v2719 = vadd.f32 0.0, %v2718
      %v2720 = vpop.f32.mrb[0].mxu0
      %2721 = vmatprep.mubr.bf16.mxu0 0
      %2722 = vmatmul.mubr.bf16.gmra.mrb[0].mxu0 %v2520
      %v2723 = vpop.f32.mrb[0].mxu0
      %v2724 = vadd.f32 0.0, %v2723
      %v2725 = vpop.f32.mrb[0].mxu0
      %v2726 = vpop.f32.mrb[0].mxu0
      %v2727 = vadd.f32 0.0, %v2726
      %v2728 = vpop.f32.mrb[0].mxu0
      %2729 = vdwg.mxu0
      %v2730 = vadd.f32 %v2441, %v2604
      %v2731 = vadd.f32 %v2442, %v2607
      %v2732 = vadd.f32 %v2443, %v2612
      %v2733 = vadd.f32 %v2444, %v2615
      %v2734 = vadd.f32 %v2445, %v2620
      %v2735 = vadd.f32 %v2446, %v2623
      %v2736 = vadd.f32 %v2447, %v2628
      %v2737 = vadd.f32 %v2448, %v2631
      %v2738 = vadd.f32 %v2449, %v2636
      %v2739 = vadd.f32 %v2450, %v2639
      %v2740 = vadd.f32 %v2451, %v2644
      %v2741 = vadd.f32 %v2452, %v2647
      %v2742 = vadd.f32 %v2453, %v2652
      %v2743 = vadd.f32 %v2454, %v2655
      %v2744 = vadd.f32 %v2455, %v2660
      %v2745 = vadd.f32 %v2456, %v2663
      %v2746 = vadd.f32 %v2457, %v2668
      %v2747 = vadd.f32 %v2458, %v2671
      %v2748 = vadd.f32 %v2459, %v2676
      %v2749 = vadd.f32 %v2460, %v2679
      %v2750 = vadd.f32 %v2461, %v2684
      %v2751 = vadd.f32 %v2462, %v2687
      %v2752 = vadd.f32 %v2463, %v2692
      %v2753 = vadd.f32 %v2464, %v2695
      %v2754 = vadd.f32 %v2465, %v2700
      %v2755 = vadd.f32 %v2466, %v2703
      %v2756 = vadd.f32 %v2467, %v2708
      %v2757 = vadd.f32 %v2468, %v2711
      %v2758 = vadd.f32 %v2469, %v2716
      %v2759 = vadd.f32 %v2470, %v2719
      %v2760 = vadd.f32 %v2471, %v2724
      %v2761 = vadd.f32 %v2472, %v2727
      %v2762 = vld [vmem:[%s2183 + $0x2] sm:$0xff]
      %v2763 = vld [vmem:[%s2183 + $0xa] sm:$0xff]
      %v2764 = vld [vmem:[%s2183 + $0x1a] sm:$0xff]
      %v2765 = vld [vmem:[%s2183 + $0x22] sm:$0xff]
      %v2766 = vld [vmem:[%s2183 + $0x32] sm:$0xff]
      %v2767 = vld [vmem:[%s2183 + $0x3a] sm:$0xff]
      %v2768 = vld [vmem:[%s2183 + $0x4a] sm:$0xff]
      %v2769 = vld [vmem:[%s2183 + $0x52] sm:$0xff]
      %v2770 = vld [vmem:[%s2183 + $0x62] sm:$0xff]
      %v2771 = vld [vmem:[%s2183 + $0x6a] sm:$0xff]
      %v2772 = vld [vmem:[%s2183 + $0x7a] sm:$0xff]
      %v2773 = vld [vmem:[%s2183 + $0x82] sm:$0xff]
      %v2774 = vld [vmem:[%s2183 + $0x92] sm:$0xff]
      %v2775 = vld [vmem:[%s2183 + $0x9a] sm:$0xff]
      %v2776 = vld [vmem:[%s2183 + $0xaa] sm:$0xff]
      %v2777 = vld [vmem:[%s2183 + $0xb2] sm:$0xff]
      %v2778 = vld [vmem:[%s2183 + $0xc2] sm:$0xff]
      %v2779 = vld [vmem:[%s2183 + $0xca] sm:$0xff]
      %v2780 = vld [vmem:[%s2183 + $0xda] sm:$0xff]
      %v2781 = vld [vmem:[%s2183 + $0xe2] sm:$0xff]
      %v2782 = vld [vmem:[%s2183 + $0xf2] sm:$0xff]
      %v2783 = vld [vmem:[%s2183 + $0xfa] sm:$0xff]
      %v2784 = vld [vmem:[%s2183 + $0x10a] sm:$0xff]
      %v2785 = vld [vmem:[%s2183 + $0x112] sm:$0xff]
      %v2786 = vld [vmem:[%s2183 + $0x122] sm:$0xff]
      %v2787 = vld [vmem:[%s2183 + $0x12a] sm:$0xff]
      %v2788 = vld [vmem:[%s2183 + $0x13a] sm:$0xff]
      %v2789 = vld [vmem:[%s2183 + $0x142] sm:$0xff]
      %v2790 = vld [vmem:[%s2183 + $0x152] sm:$0xff]
      %v2791 = vld [vmem:[%s2183 + $0x15a] sm:$0xff]
      %v2792 = vld [vmem:[%s2183 + $0x16a] sm:$0xff]
      %v2793 = vld [vmem:[%s2183 + $0x172] sm:$0xff]
      %v2794 = vpack.c.bf16 %v2763, %v2762
      %v2795 = vpack.c.bf16 %v2765, %v2764
      %v2796 = vpack.c.bf16 %v2767, %v2766
      %v2797 = vpack.c.bf16 %v2769, %v2768
      %v2798 = vpack.c.bf16 %v2771, %v2770
      %v2799 = vpack.c.bf16 %v2773, %v2772
      %v2800 = vpack.c.bf16 %v2775, %v2774
      %v2801 = vpack.c.bf16 %v2777, %v2776
      %v2802 = vpack.c.bf16 %v2779, %v2778
      %v2803 = vpack.c.bf16 %v2781, %v2780
      %v2804 = vpack.c.bf16 %v2783, %v2782
      %v2805 = vpack.c.bf16 %v2785, %v2784
      %v2806 = vpack.c.bf16 %v2787, %v2786
      %v2807 = vpack.c.bf16 %v2789, %v2788
      %v2808 = vpack.c.bf16 %v2791, %v2790
      %v2809 = vpack.c.bf16 %v2793, %v2792
      %v2826 = vunpack.c.l.b16 %v496
      %v2827 = vunpack.c.l.b16 %v497
      %v2828 = vunpack.c.l.b16 %v498
      %v2829 = vunpack.c.l.b16 %v499
      %v2830 = vunpack.c.l.b16 %v500
      %v2831 = vunpack.c.l.b16 %v501
      %v2832 = vunpack.c.l.b16 %v502
      %v2833 = vunpack.c.l.b16 %v503
      %v2834 = vunpack.c.l.b16 %v504
      %v2835 = vunpack.c.l.b16 %v505
      %v2836 = vunpack.c.l.b16 %v506
      %v2837 = vunpack.c.l.b16 %v507
      %v2838 = vunpack.c.l.b16 %v508
      %v2839 = vunpack.c.l.b16 %v509
      %v2840 = vunpack.c.l.b16 %v510
      %v2841 = vunpack.c.l.b16 %v511
      %v2842 = vpack.c.b16 %v2827, %v2826
      %v2843 = vpack.c.b16 %v2829, %v2828
      %v2844 = vpack.c.b16 %v2831, %v2830
      %v2845 = vpack.c.b16 %v2833, %v2832
      %v2846 = vpack.c.b16 %v2835, %v2834
      %v2847 = vpack.c.b16 %v2837, %v2836
      %v2848 = vpack.c.b16 %v2839, %v2838
      %v2849 = vpack.c.b16 %v2841, %v2840
      %2858 = vmatprep.subr.bf16.mxu0 0
      %2859 = vmatpush1.bf16.msra.mxu0 %v2842
      %2860 = vmatprep.subr.bf16.mxu0 0
      %2861 = vmatpush1.bf16.msra.mxu0 %v2843
      %2862 = vmatprep.subr.bf16.mxu0 0
      %2863 = vmatpush1.bf16.msra.mxu0 %v2844
      %2864 = vmatprep.subr.bf16.mxu0 0
      %2865 = vmatpush1.bf16.msra.mxu0 %v2845
      %2866 = vmatprep.subr.bf16.mxu0 0
      %2867 = vmatpush1.bf16.msra.mxu0 %v2846
      %2868 = vmatprep.subr.bf16.mxu0 0
      %2869 = vmatpush1.bf16.msra.mxu0 %v2847
      %2870 = vmatprep.subr.bf16.mxu0 0
      %2871 = vmatpush1.bf16.msra.mxu0 %v2848
      %2872 = vmatprep.subr.bf16.mxu0 0
      %2873 = vmatpush1.bf16.msra.mxu0 %v2849
      %2874 = vmatprep.subr.bf16.mxu0 0
      %2875 = vmatpush1.bf16.msra.mxu0 0
      %2876 = vmatprep.subr.bf16.mxu0 0
      %2877 = vmatpush1.bf16.msra.mxu0 0
      %2878 = vmatprep.subr.bf16.mxu0 0
      %2879 = vmatpush1.bf16.msra.mxu0 0
      %2880 = vmatprep.subr.bf16.mxu0 0
      %2881 = vmatpush1.bf16.msra.mxu0 0
      %2882 = vmatprep.subr.bf16.mxu0 0
      %2883 = vmatpush1.bf16.msra.mxu0 0
      %2884 = vmatprep.subr.bf16.mxu0 0
      %2885 = vmatpush1.bf16.msra.mxu0 0
      %2886 = vmatprep.subr.bf16.mxu0 0
      %2887 = vmatpush1.bf16.msra.mxu0 0
      %2888 = vmatprep.subr.bf16.mxu0 0
      %2889 = vmatpush1.bf16.msra.mxu0 0
      %2890 = vmatprep.mubr.bf16.mxu0 0
      %2891 = vmatmul.mubr.bf16.gmra.mrb[0].mxu0 %v2794
      %v2892 = vpop.f32.mrb[0].mxu0
      %v2893 = vadd.f32 0.0, %v2892
      %v2894 = vpop.f32.mrb[0].mxu0
      %v2895 = vpop.f32.mrb[0].mxu0
      %v2896 = vadd.f32 0.0, %v2895
      %v2897 = vpop.f32.mrb[0].mxu0
      %2898 = vmatprep.mubr.bf16.mxu0 0
      %2899 = vmatmul.mubr.bf16.gmra.mrb[0].mxu0 %v2795
      %v2900 = vpop.f32.mrb[0].mxu0
      %v2901 = vadd.f32 0.0, %v2900
      %v2902 = vpop.f32.mrb[0].mxu0
      %v2903 = vpop.f32.mrb[0].mxu0
      %v2904 = vadd.f32 0.0, %v2903
      %v2905 = vpop.f32.mrb[0].mxu0
      %2906 = vmatprep.mubr.bf16.mxu0 0
      %2907 = vmatmul.mubr.bf16.gmra.mrb[0].mxu0 %v2796
      %v2908 = vpop.f32.mrb[0].mxu0
      %v2909 = vadd.f32 0.0, %v2908
      %v2910 = vpop.f32.mrb[0].mxu0
      %v2911 = vpop.f32.mrb[0].mxu0
      %v2912 = vadd.f32 0.0, %v2911
      %v2913 = vpop.f32.mrb[0].mxu0
      %2914 = vmatprep.mubr.bf16.mxu0 0
      %2915 = vmatmul.mubr.bf16.gmra.mrb[0].mxu0 %v2797
      %v2916 = vpop.f32.mrb[0].mxu0
      %v2917 = vadd.f32 0.0, %v2916
      %v2918 = vpop.f32.mrb[0].mxu0
      %v2919 = vpop.f32.mrb[0].mxu0
      %v2920 = vadd.f32 0.0, %v2919
      %v2921 = vpop.f32.mrb[0].mxu0
      %2922 = vmatprep.mubr.bf16.mxu0 0
      %2923 = vmatmul.mubr.bf16.gmra.mrb[0].mxu0 %v2798
      %v2924 = vpop.f32.mrb[0].mxu0
      %v2925 = vadd.f32 0.0, %v2924
      %v2926 = vpop.f32.mrb[0].mxu0
      %v2927 = vpop.f32.mrb[0].mxu0
      %v2928 = vadd.f32 0.0, %v2927
      %v2929 = vpop.f32.mrb[0].mxu0
      %2930 = vmatprep.mubr.bf16.mxu0 0
      %2931 = vmatmul.mubr.bf16.gmra.mrb[0].mxu0 %v2799
      %v2932 = vpop.f32.mrb[0].mxu0
      %v2933 = vadd.f32 0.0, %v2932
      %v2934 = vpop.f32.mrb[0].mxu0
      %v2935 = vpop.f32.mrb[0].mxu0
      %v2936 = vadd.f32 0.0, %v2935
      %v2937 = vpop.f32.mrb[0].mxu0
      %2938 = vmatprep.mubr.bf16.mxu0 0
      %2939 = vmatmul.mubr.bf16.gmra.mrb[0].mxu0 %v2800
      %v2940 = vpop.f32.mrb[0].mxu0
      %v2941 = vadd.f32 0.0, %v2940
      %v2942 = vpop.f32.mrb[0].mxu0
      %v2943 = vpop.f32.mrb[0].mxu0
      %v2944 = vadd.f32 0.0, %v2943
      %v2945 = vpop.f32.mrb[0].mxu0
      %2946 = vmatprep.mubr.bf16.mxu0 0
      %2947 = vmatmul.mubr.bf16.gmra.mrb[0].mxu0 %v2801
      %v2948 = vpop.f32.mrb[0].mxu0
      %v2949 = vadd.f32 0.0, %v2948
      %v2950 = vpop.f32.mrb[0].mxu0
      %v2951 = vpop.f32.mrb[0].mxu0
      %v2952 = vadd.f32 0.0, %v2951
      %v2953 = vpop.f32.mrb[0].mxu0
      %2954 = vmatprep.mubr.bf16.mxu0 0
      %2955 = vmatmul.mubr.bf16.gmra.mrb[0].mxu0 %v2802
      %v2956 = vpop.f32.mrb[0].mxu0
      %v2957 = vadd.f32 0.0, %v2956
      %v2958 = vpop.f32.mrb[0].mxu0
      %v2959 = vpop.f32.mrb[0].mxu0
      %v2960 = vadd.f32 0.0, %v2959
      %v2961 = vpop.f32.mrb[0].mxu0
      %2962 = vmatprep.mubr.bf16.mxu0 0
      %2963 = vmatmul.mubr.bf16.gmra.mrb[0].mxu0 %v2803
      %v2964 = vpop.f32.mrb[0].mxu0
      %v2965 = vadd.f32 0.0, %v2964
      %v2966 = vpop.f32.mrb[0].mxu0
      %v2967 = vpop.f32.mrb[0].mxu0
      %v2968 = vadd.f32 0.0, %v2967
      %v2969 = vpop.f32.mrb[0].mxu0
      %2970 = vmatprep.mubr.bf16.mxu0 0
      %2971 = vmatmul.mubr.bf16.gmra.mrb[0].mxu0 %v2804
      %v2972 = vpop.f32.mrb[0].mxu0
      %v2973 = vadd.f32 0.0, %v2972
      %v2974 = vpop.f32.mrb[0].mxu0
      %v2975 = vpop.f32.mrb[0].mxu0
      %v2976 = vadd.f32 0.0, %v2975
      %v2977 = vpop.f32.mrb[0].mxu0
      %2978 = vmatprep.mubr.bf16.mxu0 0
      %2979 = vmatmul.mubr.bf16.gmra.mrb[0].mxu0 %v2805
      %v2980 = vpop.f32.mrb[0].mxu0
      %v2981 = vadd.f32 0.0, %v2980
      %v2982 = vpop.f32.mrb[0].mxu0
      %v2983 = vpop.f32.mrb[0].mxu0
      %v2984 = vadd.f32 0.0, %v2983
      %v2985 = vpop.f32.mrb[0].mxu0
      %2986 = vmatprep.mubr.bf16.mxu0 0
      %2987 = vmatmul.mubr.bf16.gmra.mrb[0].mxu0 %v2806
      %v2988 = vpop.f32.mrb[0].mxu0
      %v2989 = vadd.f32 0.0, %v2988
      %v2990 = vpop.f32.mrb[0].mxu0
      %v2991 = vpop.f32.mrb[0].mxu0
      %v2992 = vadd.f32 0.0, %v2991
      %v2993 = vpop.f32.mrb[0].mxu0
      %2994 = vmatprep.mubr.bf16.mxu0 0
      %2995 = vmatmul.mubr.bf16.gmra.mrb[0].mxu0 %v2807
      %v2996 = vpop.f32.mrb[0].mxu0
      %v2997 = vadd.f32 0.0, %v2996
      %v2998 = vpop.f32.mrb[0].mxu0
      %v2999 = vpop.f32.mrb[0].mxu0
      %v3000 = vadd.f32 0.0, %v2999
      %v3001 = vpop.f32.mrb[0].mxu0
      %3002 = vmatprep.mubr.bf16.mxu0 0
      %3003 = vmatmul.mubr.bf16.gmra.mrb[0].mxu0 %v2808
      %v3004 = vpop.f32.mrb[0].mxu0
      %v3005 = vadd.f32 0.0, %v3004
      %v3006 = vpop.f32.mrb[0].mxu0
      %v3007 = vpop.f32.mrb[0].mxu0
      %v3008 = vadd.f32 0.0, %v3007
      %v3009 = vpop.f32.mrb[0].mxu0
      %3010 = vmatprep.mubr.bf16.mxu0 0
      %3011 = vmatmul.mubr.bf16.gmra.mrb[0].mxu0 %v2809
      %v3012 = vpop.f32.mrb[0].mxu0
      %v3013 = vadd.f32 0.0, %v3012
      %v3014 = vpop.f32.mrb[0].mxu0
      %v3015 = vpop.f32.mrb[0].mxu0
      %v3016 = vadd.f32 0.0, %v3015
      %v3017 = vpop.f32.mrb[0].mxu0
      %3018 = vdwg.mxu0
      %v3019 = vadd.f32 %v2730, %v2893
      %v3020 = vadd.f32 %v2731, %v2896
      %v3021 = vadd.f32 %v2732, %v2901
      %v3022 = vadd.f32 %v2733, %v2904
      %v3023 = vadd.f32 %v2734, %v2909
      %v3024 = vadd.f32 %v2735, %v2912
      %v3025 = vadd.f32 %v2736, %v2917
      %v3026 = vadd.f32 %v2737, %v2920
      %v3027 = vadd.f32 %v2738, %v2925
      %v3028 = vadd.f32 %v2739, %v2928
      %v3029 = vadd.f32 %v2740, %v2933
      %v3030 = vadd.f32 %v2741, %v2936
      %v3031 = vadd.f32 %v2742, %v2941
      %v3032 = vadd.f32 %v2743, %v2944
      %v3033 = vadd.f32 %v2744, %v2949
      %v3034 = vadd.f32 %v2745, %v2952
      %v3035 = vadd.f32 %v2746, %v2957
      %v3036 = vadd.f32 %v2747, %v2960
      %v3037 = vadd.f32 %v2748, %v2965
      %v3038 = vadd.f32 %v2749, %v2968
      %v3039 = vadd.f32 %v2750, %v2973
      %v3040 = vadd.f32 %v2751, %v2976
      %v3041 = vadd.f32 %v2752, %v2981
      %v3042 = vadd.f32 %v2753, %v2984
      %v3043 = vadd.f32 %v2754, %v2989
      %v3044 = vadd.f32 %v2755, %v2992
      %v3045 = vadd.f32 %v2756, %v2997
      %v3046 = vadd.f32 %v2757, %v3000
      %v3047 = vadd.f32 %v2758, %v3005
      %v3048 = vadd.f32 %v2759, %v3008
      %v3049 = vadd.f32 %v2760, %v3013
      %v3050 = vadd.f32 %v2761, %v3016
      %v3052 = vlaneseq
      %v3053 = vshrl.u32 %v3052, 7
      %v3054 = vsub.s32 0, %v3053
      %v3055 = vrot.slane %v512, %v3054
      %v3057 = vadd.f32 %v3019, %v3055
      %v3058 = vadd.f32 %v3020, %v3055
      %v3059 = vadd.f32 %v3021, %v3055
      %v3060 = vadd.f32 %v3022, %v3055
      %v3061 = vadd.f32 %v3023, %v3055
      %v3062 = vadd.f32 %v3024, %v3055
      %v3063 = vadd.f32 %v3025, %v3055
      %v3064 = vadd.f32 %v3026, %v3055
      %v3065 = vadd.f32 %v3027, %v3055
      %v3066 = vadd.f32 %v3028, %v3055
      %v3067 = vadd.f32 %v3029, %v3055
      %v3068 = vadd.f32 %v3030, %v3055
      %v3069 = vadd.f32 %v3031, %v3055
      %v3070 = vadd.f32 %v3032, %v3055
      %v3071 = vadd.f32 %v3033, %v3055
      %v3072 = vadd.f32 %v3034, %v3055
      %v3073 = vadd.f32 %v3035, %v3055
      %v3074 = vadd.f32 %v3036, %v3055
      %v3075 = vadd.f32 %v3037, %v3055
      %v3076 = vadd.f32 %v3038, %v3055
      %v3077 = vadd.f32 %v3039, %v3055
      %v3078 = vadd.f32 %v3040, %v3055
      %v3079 = vadd.f32 %v3041, %v3055
      %v3080 = vadd.f32 %v3042, %v3055
      %v3081 = vadd.f32 %v3043, %v3055
      %v3082 = vadd.f32 %v3044, %v3055
      %v3083 = vadd.f32 %v3045, %v3055
      %v3084 = vadd.f32 %v3046, %v3055
      %v3085 = vadd.f32 %v3047, %v3055
      %v3086 = vadd.f32 %v3048, %v3055
      %v3087 = vadd.f32 %v3049, %v3055
      %v3088 = vadd.f32 %v3050, %v3055
      %v3089 = vmax.f32 %v3057, 0.0
      %v3090 = vmax.f32 %v3058, 0.0
      %v3091 = vmax.f32 %v3059, 0.0
      %v3092 = vmax.f32 %v3060, 0.0
      %v3093 = vmax.f32 %v3061, 0.0
      %v3094 = vmax.f32 %v3062, 0.0
      %v3095 = vmax.f32 %v3063, 0.0
      %v3096 = vmax.f32 %v3064, 0.0
      %v3097 = vmax.f32 %v3065, 0.0
      %v3098 = vmax.f32 %v3066, 0.0
      %v3099 = vmax.f32 %v3067, 0.0
      %v3100 = vmax.f32 %v3068, 0.0
      %v3101 = vmax.f32 %v3069, 0.0
      %v3102 = vmax.f32 %v3070, 0.0
      %v3103 = vmax.f32 %v3071, 0.0
      %v3104 = vmax.f32 %v3072, 0.0
      %v3105 = vmax.f32 %v3073, 0.0
      %v3106 = vmax.f32 %v3074, 0.0
      %v3107 = vmax.f32 %v3075, 0.0
      %v3108 = vmax.f32 %v3076, 0.0
      %v3109 = vmax.f32 %v3077, 0.0
      %v3110 = vmax.f32 %v3078, 0.0
      %v3111 = vmax.f32 %v3079, 0.0
      %v3112 = vmax.f32 %v3080, 0.0
      %v3113 = vmax.f32 %v3081, 0.0
      %v3114 = vmax.f32 %v3082, 0.0
      %v3115 = vmax.f32 %v3083, 0.0
      %v3116 = vmax.f32 %v3084, 0.0
      %v3117 = vmax.f32 %v3085, 0.0
      %v3118 = vmax.f32 %v3086, 0.0
      %v3119 = vmax.f32 %v3087, 0.0
      %v3120 = vmax.f32 %v3088, 0.0
      %s3121 = scalar_lea.vmem [#allocation3], 24
      %3122 = vst [vmem:[%s3121 + $0x1] sm:$0xff] %v3089
      %3123 = vst [vmem:[%s3121 + $0x9] sm:$0xff] %v3090
      %3124 = vst [vmem:[%s3121 + $0x19] sm:$0xff] %v3091
      %3125 = vst [vmem:[%s3121 + $0x21] sm:$0xff] %v3092
      %3126 = vst [vmem:[%s3121 + $0x31] sm:$0xff] %v3093
      %3127 = vst [vmem:[%s3121 + $0x39] sm:$0xff] %v3094
      %3128 = vst [vmem:[%s3121 + $0x49] sm:$0xff] %v3095
      %3129 = vst [vmem:[%s3121 + $0x51] sm:$0xff] %v3096
      %3130 = vst [vmem:[%s3121 + $0x61] sm:$0xff] %v3097
      %3131 = vst [vmem:[%s3121 + $0x69] sm:$0xff] %v3098
      %3132 = vst [vmem:[%s3121 + $0x79] sm:$0xff] %v3099
      %3133 = vst [vmem:[%s3121 + $0x81] sm:$0xff] %v3100
      %3134 = vst [vmem:[%s3121 + $0x91] sm:$0xff] %v3101
      %3135 = vst [vmem:[%s3121 + $0x99] sm:$0xff] %v3102
      %3136 = vst [vmem:[%s3121 + $0xa9] sm:$0xff] %v3103
      %3137 = vst [vmem:[%s3121 + $0xb1] sm:$0xff] %v3104
      %3138 = vst [vmem:[%s3121 + $0xc1] sm:$0xff] %v3105
      %3139 = vst [vmem:[%s3121 + $0xc9] sm:$0xff] %v3106
      %3140 = vst [vmem:[%s3121 + $0xd9] sm:$0xff] %v3107
      %3141 = vst [vmem:[%s3121 + $0xe1] sm:$0xff] %v3108
      %3142 = vst [vmem:[%s3121 + $0xf1] sm:$0xff] %v3109
      %3143 = vst [vmem:[%s3121 + $0xf9] sm:$0xff] %v3110
      %3144 = vst [vmem:[%s3121 + $0x109] sm:$0xff] %v3111
      %3145 = vst [vmem:[%s3121 + $0x111] sm:$0xff] %v3112
      %3146 = vst [vmem:[%s3121 + $0x121] sm:$0xff] %v3113
      %3147 = vst [vmem:[%s3121 + $0x129] sm:$0xff] %v3114
      %3148 = vst [vmem:[%s3121 + $0x139] sm:$0xff] %v3115
      %3149 = vst [vmem:[%s3121 + $0x141] sm:$0xff] %v3116
      %3150 = vst [vmem:[%s3121 + $0x151] sm:$0xff] %v3117
      %3151 = vst [vmem:[%s3121 + $0x159] sm:$0xff] %v3118
      %3152 = vst [vmem:[%s3121 + $0x169] sm:$0xff] %v3119
      %3153 = vst [vmem:[%s3121 + $0x171] sm:$0xff] %v3120
      %3154 = vst [vmem:[#allocation3 + $0x1] sm:$0xff] %v3091
      %3155 = vst [vmem:[#allocation3 + $0x9] sm:$0xff] %v3092
      %s3156 = scalar_lea.vmem [#allocation3], 408
      %3157 = vst [vmem:[%s3156 + $0x1] sm:$0xff] %v3117
      %3158 = vst [vmem:[%s3156 + $0x9] sm:$0xff] %v3118
      %v3159 = vld [vmem:[#allocation3 + $0x2] sm:$0x1]
      %v3160 = vld [vmem:[#allocation3 + $0x1a] sm:$0x1]
      %v3161 = vld [vmem:[#allocation3 + $0x32] sm:$0x1]
      %v3162 = vld [vmem:[#allocation3 + $0x4a] sm:$0x1]
      %v3163 = vld [vmem:[#allocation3 + $0x62] sm:$0x1]
      %v3164 = vld [vmem:[#allocation3 + $0x7a] sm:$0x1]
      %v3165 = vld [vmem:[#allocation3 + $0x92] sm:$0x1]
      %v3166 = vld [vmem:[#allocation3 + $0xaa] sm:$0x1]
      %v3167 = vld [vmem:[#allocation3 + $0xc2] sm:$0x1]
      %v3168 = vld [vmem:[#allocation3 + $0xda] sm:$0x1]
      %v3169 = vld [vmem:[#allocation3 + $0xf2] sm:$0x1]
      %v3170 = vld [vmem:[#allocation3 + $0x10a] sm:$0x1]
      %v3171 = vld [vmem:[#allocation3 + $0x122] sm:$0x1]
      %v3172 = vld [vmem:[#allocation3 + $0x13a] sm:$0x1]
      %v3173 = vld [vmem:[#allocation3 + $0x152] sm:$0x1]
      %v3174 = vld [vmem:[#allocation3 + $0x16a] sm:$0x1]
      %v3175 = vld [vmem:[#allocation3 + $0x182] sm:$0x1]
      %v3176 = vld [vmem:[#allocation3 + $0x19a] sm:$0x1]
      %3177 = vst [vmem:[#allocation3] sm:$0x1] %v3159
      %3178 = vst [vmem:[#allocation3 + $0x18] sm:$0x1] %v3160
      %3179 = vst [vmem:[#allocation3 + $0x30] sm:$0x1] %v3161
      %3180 = vst [vmem:[#allocation3 + $0x48] sm:$0x1] %v3162
      %3181 = vst [vmem:[#allocation3 + $0x60] sm:$0x1] %v3163
      %3182 = vst [vmem:[#allocation3 + $0x78] sm:$0x1] %v3164
      %3183 = vst [vmem:[#allocation3 + $0x90] sm:$0x1] %v3165
      %3184 = vst [vmem:[#allocation3 + $0xa8] sm:$0x1] %v3166
      %3185 = vst [vmem:[#allocation3 + $0xc0] sm:$0x1] %v3167
      %3186 = vst [vmem:[#allocation3 + $0xd8] sm:$0x1] %v3168
      %3187 = vst [vmem:[#allocation3 + $0xf0] sm:$0x1] %v3169
      %3188 = vst [vmem:[#allocation3 + $0x108] sm:$0x1] %v3170
      %3189 = vst [vmem:[#allocation3 + $0x120] sm:$0x1] %v3171
      %3190 = vst [vmem:[#allocation3 + $0x138] sm:$0x1] %v3172
      %3191 = vst [vmem:[#allocation3 + $0x150] sm:$0x1] %v3173
      %3192 = vst [vmem:[#allocation3 + $0x168] sm:$0x1] %v3174
      %3193 = vst [vmem:[#allocation3 + $0x180] sm:$0x1] %v3175
      %3194 = vst [vmem:[#allocation3 + $0x198] sm:$0x1] %v3176
      %v3195 = vld [vmem:[#allocation3 + $0xf] sm:$0x1]
      %v3196 = vld [vmem:[#allocation3 + $0x27] sm:$0x1]
      %v3197 = vld [vmem:[#allocation3 + $0x3f] sm:$0x1]
      %v3198 = vld [vmem:[#allocation3 + $0x57] sm:$0x1]
      %v3199 = vld [vmem:[#allocation3 + $0x6f] sm:$0x1]
      %v3200 = vld [vmem:[#allocation3 + $0x87] sm:$0x1]
      %v3201 = vld [vmem:[#allocation3 + $0x9f] sm:$0x1]
      %v3202 = vld [vmem:[#allocation3 + $0xb7] sm:$0x1]
      %v3203 = vld [vmem:[#allocation3 + $0xcf] sm:$0x1]
      %v3204 = vld [vmem:[#allocation3 + $0xe7] sm:$0x1]
      %v3205 = vld [vmem:[#allocation3 + $0xff] sm:$0x1]
      %v3206 = vld [vmem:[#allocation3 + $0x117] sm:$0x1]
      %v3207 = vld [vmem:[#allocation3 + $0x12f] sm:$0x1]
      %v3208 = vld [vmem:[#allocation3 + $0x147] sm:$0x1]
      %v3209 = vld [vmem:[#allocation3 + $0x15f] sm:$0x1]
      %v3210 = vld [vmem:[#allocation3 + $0x177] sm:$0x1]
      %v3211 = vld [vmem:[#allocation3 + $0x18f] sm:$0x1]
      %v3212 = vld [vmem:[#allocation3 + $0x1a7] sm:$0x1]
      %3213 = vst [vmem:[#allocation3 + $0x11] sm:$0x1] %v3195
      %3214 = vst [vmem:[#allocation3 + $0x29] sm:$0x1] %v3196
      %3215 = vst [vmem:[#allocation3 + $0x41] sm:$0x1] %v3197
      %3216 = vst [vmem:[#allocation3 + $0x59] sm:$0x1] %v3198
      %3217 = vst [vmem:[#allocation3 + $0x71] sm:$0x1] %v3199
      %3218 = vst [vmem:[#allocation3 + $0x89] sm:$0x1] %v3200
      %3219 = vst [vmem:[#allocation3 + $0xa1] sm:$0x1] %v3201
      %3220 = vst [vmem:[#allocation3 + $0xb9] sm:$0x1] %v3202
      %3221 = vst [vmem:[#allocation3 + $0xd1] sm:$0x1] %v3203
      %3222 = vst [vmem:[#allocation3 + $0xe9] sm:$0x1] %v3204
      %3223 = vst [vmem:[#allocation3 + $0x101] sm:$0x1] %v3205
      %3224 = vst [vmem:[#allocation3 + $0x119] sm:$0x1] %v3206
      %3225 = vst [vmem:[#allocation3 + $0x131] sm:$0x1] %v3207
      %3226 = vst [vmem:[#allocation3 + $0x149] sm:$0x1] %v3208
      %3227 = vst [vmem:[#allocation3 + $0x161] sm:$0x1] %v3209
      %3228 = vst [vmem:[#allocation3 + $0x179] sm:$0x1] %v3210
      %3229 = vst [vmem:[#allocation3 + $0x191] sm:$0x1] %v3211
      %3230 = vst [vmem:[#allocation3 + $0x1a9] sm:$0x1] %v3212
      %v3231 = vld [vmem:[%s3] sm:$0xf]
      %v3232 = vld [vmem:[%s3 + $0x4] sm:$0xf]
      %v3233 = vld [vmem:[%s3 + $0x8] sm:$0xf]
      %v3234 = vld [vmem:[%s3 + $0xc] sm:$0xf]
      %v3235 = vld [vmem:[%s3 + $0x10] sm:$0xf]
      %v3236 = vld [vmem:[%s3 + $0x14] sm:$0xf]
      %v3237 = vld [vmem:[%s3 + $0x18] sm:$0xf]
      %v3238 = vld [vmem:[%s3 + $0x1c] sm:$0xf]
      %v3239 = vld [vmem:[%s3 + $0x20] sm:$0xf]
      %v3240 = vld [vmem:[%s3 + $0x24] sm:$0xf]
      %v3241 = vld [vmem:[%s3 + $0x28] sm:$0xf]
      %v3242 = vld [vmem:[%s3 + $0x2c] sm:$0xf]
      %v3243 = vld [vmem:[%s3 + $0x30] sm:$0xf]
      %v3244 = vld [vmem:[%s3 + $0x34] sm:$0xf]
      %v3245 = vld [vmem:[%s3 + $0x38] sm:$0xf]
      %v3246 = vld [vmem:[%s3 + $0x3c] sm:$0xf]
      %v3247 = vld [vmem:[%s3 + $0x40] sm:$0xf]
      %v3248 = vld [vmem:[%s3 + $0x44] sm:$0xf]
      %v3249 = vld [vmem:[%s3 + $0x48] sm:$0xf]
      %v3250 = vld [vmem:[%s3 + $0x4c] sm:$0xf]
      %v3251 = vld [vmem:[%s3 + $0x50] sm:$0xf]
      %v3252 = vld [vmem:[%s3 + $0x54] sm:$0xf]
      %v3253 = vld [vmem:[%s3 + $0x58] sm:$0xf]
      %v3254 = vld [vmem:[%s3 + $0x5c] sm:$0xf]
      %v3255 = vld [vmem:[%s3 + $0x60] sm:$0xf]
      %v3256 = vld [vmem:[%s3 + $0x64] sm:$0xf]
      %v3257 = vld [vmem:[%s3 + $0x68] sm:$0xf]
      %v3258 = vld [vmem:[%s3 + $0x6c] sm:$0xf]
      %v3259 = vld [vmem:[%s3 + $0x70] sm:$0xf]
      %v3260 = vld [vmem:[%s3 + $0x74] sm:$0xf]
      %v3261 = vld [vmem:[%s3 + $0x78] sm:$0xf]
      %v3262 = vld [vmem:[%s3 + $0x7c] sm:$0xf]
      %v3263 = vld [vmem:[%s3 + $0x80] sm:$0xf]
      %v3264 = vld [vmem:[%s3 + $0x84] sm:$0xf]
      %v3265 = vld [vmem:[%s3 + $0x88] sm:$0xf]
      %v3266 = vld [vmem:[%s3 + $0x8c] sm:$0xf]
      %v3267 = vld [vmem:[%s3 + $0x90] sm:$0xf]
      %v3268 = vld [vmem:[%s3 + $0x94] sm:$0xf]
      %v3269 = vld [vmem:[%s3 + $0x98] sm:$0xf]
      %v3270 = vld [vmem:[%s3 + $0x9c] sm:$0xf]
      %v3271 = vld [vmem:[%s3 + $0xa0] sm:$0xf]
      %v3272 = vld [vmem:[%s3 + $0xa4] sm:$0xf]
      %v3273 = vld [vmem:[%s3 + $0xa8] sm:$0xf]
      %v3274 = vld [vmem:[%s3 + $0xac] sm:$0xf]
      %v3275 = vld [vmem:[%s3 + $0xb0] sm:$0xf]
      %v3276 = vld [vmem:[%s3 + $0xb4] sm:$0xf]
      %v3277 = vld [vmem:[%s3 + $0xb8] sm:$0xf]
      %v3278 = vld [vmem:[%s3 + $0xbc] sm:$0xf]
      %v3279 = vld [vmem:[%s3 + $0xc0] sm:$0xf]
      %v3280 = vld [vmem:[%s3 + $0xc4] sm:$0xf]
      %v3281 = vld [vmem:[%s3 + $0xc8] sm:$0xf]
      %v3282 = vld [vmem:[%s3 + $0xcc] sm:$0xf]
      %v3283 = vld [vmem:[%s3 + $0xd0] sm:$0xf]
      %v3284 = vld [vmem:[%s3 + $0xd4] sm:$0xf]
      %v3285 = vld [vmem:[%s3 + $0xd8] sm:$0xf]
      %v3286 = vld [vmem:[%s3 + $0xdc] sm:$0xf]
      %v3287 = vld [vmem:[%s3 + $0xe0] sm:$0xf]
      %v3288 = vld [vmem:[%s3 + $0xe4] sm:$0xf]
      %v3289 = vld [vmem:[%s3 + $0xe8] sm:$0xf]
      %v3290 = vld [vmem:[%s3 + $0xec] sm:$0xf]
      %v3291 = vld [vmem:[%s3 + $0xf0] sm:$0xf]
      %v3292 = vld [vmem:[%s3 + $0xf4] sm:$0xf]
      %v3293 = vld [vmem:[%s3 + $0xf8] sm:$0xf]
      %v3294 = vld [vmem:[%s3 + $0xfc] sm:$0xf]
      %v3295 = vld [vmem:[%s3 + $0x100] sm:$0xf]
      %v3296 = vld [vmem:[%s3 + $0x104] sm:$0xf]
      %v3297 = vld [vmem:[%s3 + $0x108] sm:$0xf]
      %v3298 = vld [vmem:[%s3 + $0x10c] sm:$0xf]
      %v3299 = vld [vmem:[%s3 + $0x110] sm:$0xf]
      %v3300 = vld [vmem:[%s3 + $0x114] sm:$0xf]
      %v3301 = vld [vmem:[%s3 + $0x118] sm:$0xf]
      %v3302 = vld [vmem:[%s3 + $0x11c] sm:$0xf]
      %v3303 = vld [vmem:[%s3 + $0x120] sm:$0xf]
      %v3304 = vld [vmem:[%s3 + $0x124] sm:$0xf]
      %v3305 = vld [vmem:[%s3 + $0x128] sm:$0xf]
      %v3306 = vld [vmem:[%s3 + $0x12c] sm:$0xf]
      %v3307 = vld [vmem:[%s3 + $0x130] sm:$0xf]
      %v3308 = vld [vmem:[%s3 + $0x134] sm:$0xf]
      %v3309 = vld [vmem:[%s3 + $0x138] sm:$0xf]
      %v3310 = vld [vmem:[%s3 + $0x13c] sm:$0xf]
      %v3311 = vld [vmem:[%s3 + $0x140] sm:$0xf]
      %v3312 = vld [vmem:[%s3 + $0x144] sm:$0xf]
      %v3313 = vld [vmem:[%s3 + $0x148] sm:$0xf]
      %v3314 = vld [vmem:[%s3 + $0x14c] sm:$0xf]
      %v3315 = vld [vmem:[%s3 + $0x150] sm:$0xf]
      %v3316 = vld [vmem:[%s3 + $0x154] sm:$0xf]
      %v3317 = vld [vmem:[%s3 + $0x158] sm:$0xf]
      %v3318 = vld [vmem:[%s3 + $0x15c] sm:$0xf]
      %v3319 = vld [vmem:[%s3 + $0x160] sm:$0xf]
      %v3320 = vld [vmem:[%s3 + $0x164] sm:$0xf]
      %v3321 = vld [vmem:[%s3 + $0x168] sm:$0xf]
      %v3322 = vld [vmem:[%s3 + $0x16c] sm:$0xf]
      %v3323 = vld [vmem:[%s3 + $0x170] sm:$0xf]
      %v3324 = vld [vmem:[%s3 + $0x174] sm:$0xf]
      %v3325 = vld [vmem:[%s3 + $0x178] sm:$0xf]
      %v3326 = vld [vmem:[%s3 + $0x17c] sm:$0xf]
      %v3327 = vld [vmem:[%s3 + $0x180] sm:$0xf]
      %v3328 = vld [vmem:[%s3 + $0x184] sm:$0xf]
      %v3329 = vld [vmem:[%s3 + $0x188] sm:$0xf]
      %v3330 = vld [vmem:[%s3 + $0x18c] sm:$0xf]
      %v3331 = vld [vmem:[%s3 + $0x190] sm:$0xf]
      %v3332 = vld [vmem:[%s3 + $0x194] sm:$0xf]
      %v3333 = vld [vmem:[%s3 + $0x198] sm:$0xf]
      %v3334 = vld [vmem:[%s3 + $0x19c] sm:$0xf]
      %v3335 = vld [vmem:[%s3 + $0x1a0] sm:$0xf]
      %v3336 = vld [vmem:[%s3 + $0x1a4] sm:$0xf]
      %v3337 = vld [vmem:[%s3 + $0x1a8] sm:$0xf]
      %v3338 = vld [vmem:[%s3 + $0x1ac] sm:$0xf]
      %v3339 = vld [vmem:[%s3 + $0x1b0] sm:$0xf]
      %v3340 = vld [vmem:[%s3 + $0x1b4] sm:$0xf]
      %v3341 = vld [vmem:[%s3 + $0x1b8] sm:$0xf]
      %v3342 = vld [vmem:[%s3 + $0x1bc] sm:$0xf]
      %v3343 = vld [vmem:[%s3 + $0x1c0] sm:$0xf]
      %v3344 = vld [vmem:[%s3 + $0x1c4] sm:$0xf]
      %v3345 = vld [vmem:[%s3 + $0x1c8] sm:$0xf]
      %v3346 = vld [vmem:[%s3 + $0x1cc] sm:$0xf]
      %v3347 = vld [vmem:[%s3 + $0x1d0] sm:$0xf]
      %v3348 = vld [vmem:[%s3 + $0x1d4] sm:$0xf]
      %v3349 = vld [vmem:[%s3 + $0x1d8] sm:$0xf]
      %v3350 = vld [vmem:[%s3 + $0x1dc] sm:$0xf]
      %v3351 = vld [vmem:[%s3 + $0x1e0] sm:$0xf]
      %v3352 = vld [vmem:[%s3 + $0x1e4] sm:$0xf]
      %v3353 = vld [vmem:[%s3 + $0x1e8] sm:$0xf]
      %v3354 = vld [vmem:[%s3 + $0x1ec] sm:$0xf]
      %v3355 = vld [vmem:[%s3 + $0x1f0] sm:$0xf]
      %v3356 = vld [vmem:[%s3 + $0x1f4] sm:$0xf]
      %v3357 = vld [vmem:[%s3 + $0x1f8] sm:$0xf]
      %v3358 = vld [vmem:[%s3 + $0x1fc] sm:$0xf]
      %v3359 = vld [vmem:[%s3 + $0x200] sm:$0xf]
      %v3360 = vld [vmem:[%s3 + $0x204] sm:$0xf]
      %v3361 = vld [vmem:[%s3 + $0x208] sm:$0xf]
      %v3362 = vld [vmem:[%s3 + $0x20c] sm:$0xf]
      %v3363 = vld [vmem:[%s3 + $0x210] sm:$0xf]
      %v3364 = vld [vmem:[%s3 + $0x214] sm:$0xf]
      %v3365 = vld [vmem:[%s3 + $0x218] sm:$0xf]
      %v3366 = vld [vmem:[%s3 + $0x21c] sm:$0xf]
      %v3367 = vld [vmem:[%s3 + $0x220] sm:$0xf]
      %v3368 = vld [vmem:[%s3 + $0x224] sm:$0xf]
      %v3369 = vld [vmem:[%s3 + $0x228] sm:$0xf]
      %v3370 = vld [vmem:[%s3 + $0x22c] sm:$0xf]
      %v3371 = vld [vmem:[%s3 + $0x230] sm:$0xf]
      %v3372 = vld [vmem:[%s3 + $0x234] sm:$0xf]
      %v3373 = vld [vmem:[%s3 + $0x238] sm:$0xf]
      %v3374 = vld [vmem:[%s3 + $0x23c] sm:$0xf]
      %v3375 = vld [vmem:[%s4] sm:$0x1]
      %v3376 = vld [vmem:[#allocation3] sm:$0xff]
      %v3377 = vld [vmem:[#allocation3 + $0x8] sm:$0xff]
      %v3378 = vld [vmem:[#allocation3 + $0x18] sm:$0xff]
      %v3379 = vld [vmem:[#allocation3 + $0x20] sm:$0xff]
      %v3380 = vld [vmem:[#allocation3 + $0x30] sm:$0xff]
      %v3381 = vld [vmem:[#allocation3 + $0x38] sm:$0xff]
      %v3382 = vld [vmem:[#allocation3 + $0x48] sm:$0xff]
      %v3383 = vld [vmem:[#allocation3 + $0x50] sm:$0xff]
      %v3384 = vld [vmem:[#allocation3 + $0x60] sm:$0xff]
      %v3385 = vld [vmem:[#allocation3 + $0x68] sm:$0xff]
      %v3386 = vld [vmem:[#allocation3 + $0x78] sm:$0xff]
      %v3387 = vld [vmem:[#allocation3 + $0x80] sm:$0xff]
      %v3388 = vld [vmem:[#allocation3 + $0x90] sm:$0xff]
      %v3389 = vld [vmem:[#allocation3 + $0x98] sm:$0xff]
      %v3390 = vld [vmem:[#allocation3 + $0xa8] sm:$0xff]
      %v3391 = vld [vmem:[#allocation3 + $0xb0] sm:$0xff]
      %v3392 = vld [vmem:[#allocation3 + $0xc0] sm:$0xff]
      %v3393 = vld [vmem:[#allocation3 + $0xc8] sm:$0xff]
      %v3394 = vld [vmem:[#allocation3 + $0xd8] sm:$0xff]
      %v3395 = vld [vmem:[#allocation3 + $0xe0] sm:$0xff]
      %v3396 = vld [vmem:[#allocation3 + $0xf0] sm:$0xff]
      %v3397 = vld [vmem:[#allocation3 + $0xf8] sm:$0xff]
      %v3398 = vld [vmem:[#allocation3 + $0x108] sm:$0xff]
      %v3399 = vld [vmem:[#allocation3 + $0x110] sm:$0xff]
      %v3400 = vld [vmem:[#allocation3 + $0x120] sm:$0xff]
      %v3401 = vld [vmem:[#allocation3 + $0x128] sm:$0xff]
      %v3402 = vld [vmem:[#allocation3 + $0x138] sm:$0xff]
      %v3403 = vld [vmem:[#allocation3 + $0x140] sm:$0xff]
      %v3404 = vld [vmem:[#allocation3 + $0x150] sm:$0xff]
      %v3405 = vld [vmem:[#allocation3 + $0x158] sm:$0xff]
      %v3406 = vld [vmem:[#allocation3 + $0x168] sm:$0xff]
      %v3407 = vld [vmem:[#allocation3 + $0x170] sm:$0xff]
      %v3408 = vpack.c.bf16 %v3377, %v3376
      %v3409 = vpack.c.bf16 %v3379, %v3378
      %v3410 = vpack.c.bf16 %v3381, %v3380
      %v3411 = vpack.c.bf16 %v3383, %v3382
      %v3412 = vpack.c.bf16 %v3385, %v3384
      %v3413 = vpack.c.bf16 %v3387, %v3386
      %v3414 = vpack.c.bf16 %v3389, %v3388
      %v3415 = vpack.c.bf16 %v3391, %v3390
      %v3416 = vpack.c.bf16 %v3393, %v3392
      %v3417 = vpack.c.bf16 %v3395, %v3394
      %v3418 = vpack.c.bf16 %v3397, %v3396
      %v3419 = vpack.c.bf16 %v3399, %v3398
      %v3420 = vpack.c.bf16 %v3401, %v3400
      %v3421 = vpack.c.bf16 %v3403, %v3402
      %v3422 = vpack.c.bf16 %v3405, %v3404
      %v3423 = vpack.c.bf16 %v3407, %v3406
      %v3424 = vld [vmem:[#allocation3 + $0x1] sm:$0xff]
      %v3425 = vld [vmem:[#allocation3 + $0x9] sm:$0xff]
      %v3426 = vld [vmem:[#allocation3 + $0x19] sm:$0xff]
      %v3427 = vld [vmem:[#allocation3 + $0x21] sm:$0xff]
      %v3428 = vld [vmem:[#allocation3 + $0x31] sm:$0xff]
      %v3429 = vld [vmem:[#allocation3 + $0x39] sm:$0xff]
      %v3430 = vld [vmem:[#allocation3 + $0x49] sm:$0xff]
      %v3431 = vld [vmem:[#allocation3 + $0x51] sm:$0xff]
      %v3432 = vld [vmem:[#allocation3 + $0x61] sm:$0xff]
      %v3433 = vld [vmem:[#allocation3 + $0x69] sm:$0xff]
      %v3434 = vld [vmem:[#allocation3 + $0x79] sm:$0xff]
      %v3435 = vld [vmem:[#allocation3 + $0x81] sm:$0xff]
      %v3436 = vld [vmem:[#allocation3 + $0x91] sm:$0xff]
      %v3437 = vld [vmem:[#allocation3 + $0x99] sm:$0xff]
      %v3438 = vld [vmem:[#allocation3 + $0xa9] sm:$0xff]
      %v3439 = vld [vmem:[#allocation3 + $0xb1] sm:$0xff]
      %v3440 = vld [vmem:[#allocation3 + $0xc1] sm:$0xff]
      %v3441 = vld [vmem:[#allocation3 + $0xc9] sm:$0xff]
      %v3442 = vld [vmem:[#allocation3 + $0xd9] sm:$0xff]
      %v3443 = vld [vmem:[#allocation3 + $0xe1] sm:$0xff]
      %v3444 = vld [vmem:[#allocation3 + $0xf1] sm:$0xff]
      %v3445 = vld [vmem:[#allocation3 + $0xf9] sm:$0xff]
      %v3446 = vld [vmem:[#allocation3 + $0x109] sm:$0xff]
      %v3447 = vld [vmem:[#allocation3 + $0x111] sm:$0xff]
      %v3448 = vld [vmem:[#allocation3 + $0x121] sm:$0xff]
      %v3449 = vld [vmem:[#allocation3 + $0x129] sm:$0xff]
      %v3450 = vld [vmem:[#allocation3 + $0x139] sm:$0xff]
      %v3451 = vld [vmem:[#allocation3 + $0x141] sm:$0xff]
      %v3452 = vld [vmem:[#allocation3 + $0x151] sm:$0xff]
      %v3453 = vld [vmem:[#allocation3 + $0x159] sm:$0xff]
      %v3454 = vld [vmem:[#allocation3 + $0x169] sm:$0xff]
      %v3455 = vld [vmem:[#allocation3 + $0x171] sm:$0xff]
      %v3456 = vpack.c.bf16 %v3425, %v3424
      %v3457 = vpack.c.bf16 %v3427, %v3426
      %v3458 = vpack.c.bf16 %v3429, %v3428
      %v3459 = vpack.c.bf16 %v3431, %v3430
      %v3460 = vpack.c.bf16 %v3433, %v3432
      %v3461 = vpack.c.bf16 %v3435, %v3434
      %v3462 = vpack.c.bf16 %v3437, %v3436
      %v3463 = vpack.c.bf16 %v3439, %v3438
      %v3464 = vpack.c.bf16 %v3441, %v3440
      %v3465 = vpack.c.bf16 %v3443, %v3442
      %v3466 = vpack.c.bf16 %v3445, %v3444
      %v3467 = vpack.c.bf16 %v3447, %v3446
      %v3468 = vpack.c.bf16 %v3449, %v3448
      %v3469 = vpack.c.bf16 %v3451, %v3450
      %v3470 = vpack.c.bf16 %v3453, %v3452
      %v3471 = vpack.c.bf16 %v3455, %v3454
      %v3488 = vunpack.c.l.b16 %v3247
      %v3489 = vunpack.c.l.b16 %v3248
      %v3490 = vunpack.c.l.b16 %v3249
      %v3491 = vunpack.c.l.b16 %v3250
      %v3492 = vunpack.c.l.b16 %v3251
      %v3493 = vunpack.c.l.b16 %v3252
      %v3494 = vunpack.c.l.b16 %v3253
      %v3495 = vunpack.c.l.b16 %v3254
      %v3496 = vunpack.c.l.b16 %v3255
      %v3497 = vunpack.c.l.b16 %v3256
      %v3498 = vunpack.c.l.b16 %v3257
      %v3499 = vunpack.c.l.b16 %v3258
      %v3500 = vunpack.c.l.b16 %v3259
      %v3501 = vunpack.c.l.b16 %v3260
      %v3502 = vunpack.c.l.b16 %v3261
      %v3503 = vunpack.c.l.b16 %v3262
      %v3504 = vpack.c.b16 %v3489, %v3488
      %v3505 = vpack.c.b16 %v3491, %v3490
      %v3506 = vpack.c.b16 %v3493, %v3492
      %v3507 = vpack.c.b16 %v3495, %v3494
      %v3508 = vpack.c.b16 %v3497, %v3496
      %v3509 = vpack.c.b16 %v3499, %v3498
      %v3510 = vpack.c.b16 %v3501, %v3500
      %v3511 = vpack.c.b16 %v3503, %v3502
      %3520 = vmatprep.subr.bf16.mxu0 0
      %3521 = vmatpush1.bf16.msra.mxu0 %v3504
      %3522 = vmatprep.subr.bf16.mxu0 0
      %3523 = vmatpush1.bf16.msra.mxu0 %v3505
      %3524 = vmatprep.subr.bf16.mxu0 0
      %3525 = vmatpush1.bf16.msra.mxu0 %v3506
      %3526 = vmatprep.subr.bf16.mxu0 0
      %3527 = vmatpush1.bf16.msra.mxu0 %v3507
      %3528 = vmatprep.subr.bf16.mxu0 0
      %3529 = vmatpush1.bf16.msra.mxu0 %v3508
      %3530 = vmatprep.subr.bf16.mxu0 0
      %3531 = vmatpush1.bf16.msra.mxu0 %v3509
      %3532 = vmatprep.subr.bf16.mxu0 0
      %3533 = vmatpush1.bf16.msra.mxu0 %v3510
      %3534 = vmatprep.subr.bf16.mxu0 0
      %3535 = vmatpush1.bf16.msra.mxu0 %v3511
      %3536 = vmatprep.subr.bf16.mxu0 0
      %3537 = vmatpush1.bf16.msra.mxu0 0
      %3538 = vmatprep.subr.bf16.mxu0 0
      %3539 = vmatpush1.bf16.msra.mxu0 0
      %3540 = vmatprep.subr.bf16.mxu0 0
      %3541 = vmatpush1.bf16.msra.mxu0 0
      %3542 = vmatprep.subr.bf16.mxu0 0
      %3543 = vmatpush1.bf16.msra.mxu0 0
      %3544 = vmatprep.subr.bf16.mxu0 0
      %3545 = vmatpush1.bf16.msra.mxu0 0
      %3546 = vmatprep.subr.bf16.mxu0 0
      %3547 = vmatpush1.bf16.msra.mxu0 0
      %3548 = vmatprep.subr.bf16.mxu0 0
      %3549 = vmatpush1.bf16.msra.mxu0 0
      %3550 = vmatprep.subr.bf16.mxu0 0
      %3551 = vmatpush1.bf16.msra.mxu0 0
      %3552 = vmatprep.mubr.bf16.mxu0 0
      %3553 = vmatmul.mubr.bf16.gmra.mrb[0].mxu0 %v3456
      %v3554 = vpop.f32.mrb[0].mxu0
      %v3555 = vadd.f32 0.0, %v3554
      %v3556 = vpop.f32.mrb[0].mxu0
      %v3557 = vpop.f32.mrb[0].mxu0
      %v3558 = vadd.f32 0.0, %v3557
      %v3559 = vpop.f32.mrb[0].mxu0
      %3560 = vmatprep.mubr.bf16.mxu0 0
      %3561 = vmatmul.mubr.bf16.gmra.mrb[0].mxu0 %v3457
      %v3562 = vpop.f32.mrb[0].mxu0
      %v3563 = vadd.f32 0.0, %v3562
      %v3564 = vpop.f32.mrb[0].mxu0
      %v3565 = vpop.f32.mrb[0].mxu0
      %v3566 = vadd.f32 0.0, %v3565
      %v3567 = vpop.f32.mrb[0].mxu0
      %3568 = vmatprep.mubr.bf16.mxu0 0
      %3569 = vmatmul.mubr.bf16.gmra.mrb[0].mxu0 %v3458
      %v3570 = vpop.f32.mrb[0].mxu0
      %v3571 = vadd.f32 0.0, %v3570
      %v3572 = vpop.f32.mrb[0].mxu0
      %v3573 = vpop.f32.mrb[0].mxu0
      %v3574 = vadd.f32 0.0, %v3573
      %v3575 = vpop.f32.mrb[0].mxu0
      %3576 = vmatprep.mubr.bf16.mxu0 0
      %3577 = vmatmul.mubr.bf16.gmra.mrb[0].mxu0 %v3459
      %v3578 = vpop.f32.mrb[0].mxu0
      %v3579 = vadd.f32 0.0, %v3578
      %v3580 = vpop.f32.mrb[0].mxu0
      %v3581 = vpop.f32.mrb[0].mxu0
      %v3582 = vadd.f32 0.0, %v3581
      %v3583 = vpop.f32.mrb[0].mxu0
      %3584 = vmatprep.mubr.bf16.mxu0 0
      %3585 = vmatmul.mubr.bf16.gmra.mrb[0].mxu0 %v3460
      %v3586 = vpop.f32.mrb[0].mxu0
      %v3587 = vadd.f32 0.0, %v3586
      %v3588 = vpop.f32.mrb[0].mxu0
      %v3589 = vpop.f32.mrb[0].mxu0
      %v3590 = vadd.f32 0.0, %v3589
      %v3591 = vpop.f32.mrb[0].mxu0
      %3592 = vmatprep.mubr.bf16.mxu0 0
      %3593 = vmatmul.mubr.bf16.gmra.mrb[0].mxu0 %v3461
      %v3594 = vpop.f32.mrb[0].mxu0
      %v3595 = vadd.f32 0.0, %v3594
      %v3596 = vpop.f32.mrb[0].mxu0
      %v3597 = vpop.f32.mrb[0].mxu0
      %v3598 = vadd.f32 0.0, %v3597
      %v3599 = vpop.f32.mrb[0].mxu0
      %3600 = vmatprep.mubr.bf16.mxu0 0
      %3601 = vmatmul.mubr.bf16.gmra.mrb[0].mxu0 %v3462
      %v3602 = vpop.f32.mrb[0].mxu0
      %v3603 = vadd.f32 0.0, %v3602
      %v3604 = vpop.f32.mrb[0].mxu0
      %v3605 = vpop.f32.mrb[0].mxu0
      %v3606 = vadd.f32 0.0, %v3605
      %v3607 = vpop.f32.mrb[0].mxu0
      %3608 = vmatprep.mubr.bf16.mxu0 0
      %3609 = vmatmul.mubr.bf16.gmra.mrb[0].mxu0 %v3463
      %v3610 = vpop.f32.mrb[0].mxu0
      %v3611 = vadd.f32 0.0, %v3610
      %v3612 = vpop.f32.mrb[0].mxu0
      %v3613 = vpop.f32.mrb[0].mxu0
      %v3614 = vadd.f32 0.0, %v3613
      %v3615 = vpop.f32.mrb[0].mxu0
      %3616 = vmatprep.mubr.bf16.mxu0 0
      %3617 = vmatmul.mubr.bf16.gmra.mrb[0].mxu0 %v3464
      %v3618 = vpop.f32.mrb[0].mxu0
      %v3619 = vadd.f32 0.0, %v3618
      %v3620 = vpop.f32.mrb[0].mxu0
      %v3621 = vpop.f32.mrb[0].mxu0
      %v3622 = vadd.f32 0.0, %v3621
      %v3623 = vpop.f32.mrb[0].mxu0
      %3624 = vmatprep.mubr.bf16.mxu0 0
      %3625 = vmatmul.mubr.bf16.gmra.mrb[0].mxu0 %v3465
      %v3626 = vpop.f32.mrb[0].mxu0
      %v3627 = vadd.f32 0.0, %v3626
      %v3628 = vpop.f32.mrb[0].mxu0
      %v3629 = vpop.f32.mrb[0].mxu0
      %v3630 = vadd.f32 0.0, %v3629
      %v3631 = vpop.f32.mrb[0].mxu0
      %3632 = vmatprep.mubr.bf16.mxu0 0
      %3633 = vmatmul.mubr.bf16.gmra.mrb[0].mxu0 %v3466
      %v3634 = vpop.f32.mrb[0].mxu0
      %v3635 = vadd.f32 0.0, %v3634
      %v3636 = vpop.f32.mrb[0].mxu0
      %v3637 = vpop.f32.mrb[0].mxu0
      %v3638 = vadd.f32 0.0, %v3637
      %v3639 = vpop.f32.mrb[0].mxu0
      %3640 = vmatprep.mubr.bf16.mxu0 0
      %3641 = vmatmul.mubr.bf16.gmra.mrb[0].mxu0 %v3467
      %v3642 = vpop.f32.mrb[0].mxu0
      %v3643 = vadd.f32 0.0, %v3642
      %v3644 = vpop.f32.mrb[0].mxu0
      %v3645 = vpop.f32.mrb[0].mxu0
      %v3646 = vadd.f32 0.0, %v3645
      %v3647 = vpop.f32.mrb[0].mxu0
      %3648 = vmatprep.mubr.bf16.mxu0 0
      %3649 = vmatmul.mubr.bf16.gmra.mrb[0].mxu0 %v3468
      %v3650 = vpop.f32.mrb[0].mxu0
      %v3651 = vadd.f32 0.0, %v3650
      %v3652 = vpop.f32.mrb[0].mxu0
      %v3653 = vpop.f32.mrb[0].mxu0
      %v3654 = vadd.f32 0.0, %v3653
      %v3655 = vpop.f32.mrb[0].mxu0
      %3656 = vmatprep.mubr.bf16.mxu0 0
      %3657 = vmatmul.mubr.bf16.gmra.mrb[0].mxu0 %v3469
      %v3658 = vpop.f32.mrb[0].mxu0
      %v3659 = vadd.f32 0.0, %v3658
      %v3660 = vpop.f32.mrb[0].mxu0
      %v3661 = vpop.f32.mrb[0].mxu0
      %v3662 = vadd.f32 0.0, %v3661
      %v3663 = vpop.f32.mrb[0].mxu0
      %3664 = vmatprep.mubr.bf16.mxu0 0
      %3665 = vmatmul.mubr.bf16.gmra.mrb[0].mxu0 %v3470
      %v3666 = vpop.f32.mrb[0].mxu0
      %v3667 = vadd.f32 0.0, %v3666
      %v3668 = vpop.f32.mrb[0].mxu0
      %v3669 = vpop.f32.mrb[0].mxu0
      %v3670 = vadd.f32 0.0, %v3669
      %v3671 = vpop.f32.mrb[0].mxu0
      %3672 = vmatprep.mubr.bf16.mxu0 0
      %3673 = vmatmul.mubr.bf16.gmra.mrb[0].mxu0 %v3471
      %v3674 = vpop.f32.mrb[0].mxu0
      %v3675 = vadd.f32 0.0, %v3674
      %v3676 = vpop.f32.mrb[0].mxu0
      %v3677 = vpop.f32.mrb[0].mxu0
      %v3678 = vadd.f32 0.0, %v3677
      %v3679 = vpop.f32.mrb[0].mxu0
      %3680 = vdwg.mxu0
      %v3697 = vunpack.c.l.b16 %v3231
      %v3698 = vunpack.c.l.b16 %v3232
      %v3699 = vunpack.c.l.b16 %v3233
      %v3700 = vunpack.c.l.b16 %v3234
      %v3701 = vunpack.c.l.b16 %v3235
      %v3702 = vunpack.c.l.b16 %v3236
      %v3703 = vunpack.c.l.b16 %v3237
      %v3704 = vunpack.c.l.b16 %v3238
      %v3705 = vunpack.c.l.b16 %v3239
      %v3706 = vunpack.c.l.b16 %v3240
      %v3707 = vunpack.c.l.b16 %v3241
      %v3708 = vunpack.c.l.b16 %v3242
      %v3709 = vunpack.c.l.b16 %v3243
      %v3710 = vunpack.c.l.b16 %v3244
      %v3711 = vunpack.c.l.b16 %v3245
      %v3712 = vunpack.c.l.b16 %v3246
      %v3713 = vpack.c.b16 %v3698, %v3697
      %v3714 = vpack.c.b16 %v3700, %v3699
      %v3715 = vpack.c.b16 %v3702, %v3701
      %v3716 = vpack.c.b16 %v3704, %v3703
      %v3717 = vpack.c.b16 %v3706, %v3705
      %v3718 = vpack.c.b16 %v3708, %v3707
      %v3719 = vpack.c.b16 %v3710, %v3709
      %v3720 = vpack.c.b16 %v3712, %v3711
      %3729 = vmatprep.subr.bf16.mxu0 0
      %3730 = vmatpush1.bf16.msra.mxu0 %v3713
      %3731 = vmatprep.subr.bf16.mxu0 0
      %3732 = vmatpush1.bf16.msra.mxu0 %v3714
      %3733 = vmatprep.subr.bf16.mxu0 0
      %3734 = vmatpush1.bf16.msra.mxu0 %v3715
      %3735 = vmatprep.subr.bf16.mxu0 0
      %3736 = vmatpush1.bf16.msra.mxu0 %v3716
      %3737 = vmatprep.subr.bf16.mxu0 0
      %3738 = vmatpush1.bf16.msra.mxu0 %v3717
      %3739 = vmatprep.subr.bf16.mxu0 0
      %3740 = vmatpush1.bf16.msra.mxu0 %v3718
      %3741 = vmatprep.subr.bf16.mxu0 0
      %3742 = vmatpush1.bf16.msra.mxu0 %v3719
      %3743 = vmatprep.subr.bf16.mxu0 0
      %3744 = vmatpush1.bf16.msra.mxu0 %v3720
      %3745 = vmatprep.subr.bf16.mxu0 0
      %3746 = vmatpush1.bf16.msra.mxu0 0
      %3747 = vmatprep.subr.bf16.mxu0 0
      %3748 = vmatpush1.bf16.msra.mxu0 0
      %3749 = vmatprep.subr.bf16.mxu0 0
      %3750 = vmatpush1.bf16.msra.mxu0 0
      %3751 = vmatprep.subr.bf16.mxu0 0
      %3752 = vmatpush1.bf16.msra.mxu0 0
      %3753 = vmatprep.subr.bf16.mxu0 0
      %3754 = vmatpush1.bf16.msra.mxu0 0
      %3755 = vmatprep.subr.bf16.mxu0 0
      %3756 = vmatpush1.bf16.msra.mxu0 0
      %3757 = vmatprep.subr.bf16.mxu0 0
      %3758 = vmatpush1.bf16.msra.mxu0 0
      %3759 = vmatprep.subr.bf16.mxu0 0
      %3760 = vmatpush1.bf16.msra.mxu0 0
      %3761 = vmatprep.mubr.bf16.mxu0 0
      %3762 = vmatmul.mubr.bf16.gmra.mrb[0].mxu0 %v3408
      %v3763 = vpop.f32.mrb[0].mxu0
      %v3764 = vadd.f32 %v3555, %v3763
      %v3765 = vpop.f32.mrb[0].mxu0
      %v3766 = vpop.f32.mrb[0].mxu0
      %v3767 = vadd.f32 %v3558, %v3766
      %v3768 = vpop.f32.mrb[0].mxu0
      %3769 = vmatprep.mubr.bf16.mxu0 0
      %3770 = vmatmul.mubr.bf16.gmra.mrb[0].mxu0 %v3409
      %v3771 = vpop.f32.mrb[0].mxu0
      %v3772 = vadd.f32 %v3563, %v3771
      %v3773 = vpop.f32.mrb[0].mxu0
      %v3774 = vpop.f32.mrb[0].mxu0
      %v3775 = vadd.f32 %v3566, %v3774
      %v3776 = vpop.f32.mrb[0].mxu0
      %3777 = vmatprep.mubr.bf16.mxu0 0
      %3778 = vmatmul.mubr.bf16.gmra.mrb[0].mxu0 %v3410
      %v3779 = vpop.f32.mrb[0].mxu0
      %v3780 = vadd.f32 %v3571, %v3779
      %v3781 = vpop.f32.mrb[0].mxu0
      %v3782 = vpop.f32.mrb[0].mxu0
      %v3783 = vadd.f32 %v3574, %v3782
      %v3784 = vpop.f32.mrb[0].mxu0
      %3785 = vmatprep.mubr.bf16.mxu0 0
      %3786 = vmatmul.mubr.bf16.gmra.mrb[0].mxu0 %v3411
      %v3787 = vpop.f32.mrb[0].mxu0
      %v3788 = vadd.f32 %v3579, %v3787
      %v3789 = vpop.f32.mrb[0].mxu0
      %v3790 = vpop.f32.mrb[0].mxu0
      %v3791 = vadd.f32 %v3582, %v3790
      %v3792 = vpop.f32.mrb[0].mxu0
      %3793 = vmatprep.mubr.bf16.mxu0 0
      %3794 = vmatmul.mubr.bf16.gmra.mrb[0].mxu0 %v3412
      %v3795 = vpop.f32.mrb[0].mxu0
      %v3796 = vadd.f32 %v3587, %v3795
      %v3797 = vpop.f32.mrb[0].mxu0
      %v3798 = vpop.f32.mrb[0].mxu0
      %v3799 = vadd.f32 %v3590, %v3798
      %v3800 = vpop.f32.mrb[0].mxu0
      %3801 = vmatprep.mubr.bf16.mxu0 0
      %3802 = vmatmul.mubr.bf16.gmra.mrb[0].mxu0 %v3413
      %v3803 = vpop.f32.mrb[0].mxu0
      %v3804 = vadd.f32 %v3595, %v3803
      %v3805 = vpop.f32.mrb[0].mxu0
      %v3806 = vpop.f32.mrb[0].mxu0
      %v3807 = vadd.f32 %v3598, %v3806
      %v3808 = vpop.f32.mrb[0].mxu0
      %3809 = vmatprep.mubr.bf16.mxu0 0
      %3810 = vmatmul.mubr.bf16.gmra.mrb[0].mxu0 %v3414
      %v3811 = vpop.f32.mrb[0].mxu0
      %v3812 = vadd.f32 %v3603, %v3811
      %v3813 = vpop.f32.mrb[0].mxu0
      %v3814 = vpop.f32.mrb[0].mxu0
      %v3815 = vadd.f32 %v3606, %v3814
      %v3816 = vpop.f32.mrb[0].mxu0
      %3817 = vmatprep.mubr.bf16.mxu0 0
      %3818 = vmatmul.mubr.bf16.gmra.mrb[0].mxu0 %v3415
      %v3819 = vpop.f32.mrb[0].mxu0
      %v3820 = vadd.f32 %v3611, %v3819
      %v3821 = vpop.f32.mrb[0].mxu0
      %v3822 = vpop.f32.mrb[0].mxu0
      %v3823 = vadd.f32 %v3614, %v3822
      %v3824 = vpop.f32.mrb[0].mxu0
      %3825 = vmatprep.mubr.bf16.mxu0 0
      %3826 = vmatmul.mubr.bf16.gmra.mrb[0].mxu0 %v3416
      %v3827 = vpop.f32.mrb[0].mxu0
      %v3828 = vadd.f32 %v3619, %v3827
      %v3829 = vpop.f32.mrb[0].mxu0
      %v3830 = vpop.f32.mrb[0].mxu0
      %v3831 = vadd.f32 %v3622, %v3830
      %v3832 = vpop.f32.mrb[0].mxu0
      %3833 = vmatprep.mubr.bf16.mxu0 0
      %3834 = vmatmul.mubr.bf16.gmra.mrb[0].mxu0 %v3417
      %v3835 = vpop.f32.mrb[0].mxu0
      %v3836 = vadd.f32 %v3627, %v3835
      %v3837 = vpop.f32.mrb[0].mxu0
      %v3838 = vpop.f32.mrb[0].mxu0
      %v3839 = vadd.f32 %v3630, %v3838
      %v3840 = vpop.f32.mrb[0].mxu0
      %3841 = vmatprep.mubr.bf16.mxu0 0
      %3842 = vmatmul.mubr.bf16.gmra.mrb[0].mxu0 %v3418
      %v3843 = vpop.f32.mrb[0].mxu0
      %v3844 = vadd.f32 %v3635, %v3843
      %v3845 = vpop.f32.mrb[0].mxu0
      %v3846 = vpop.f32.mrb[0].mxu0
      %v3847 = vadd.f32 %v3638, %v3846
      %v3848 = vpop.f32.mrb[0].mxu0
      %3849 = vmatprep.mubr.bf16.mxu0 0
      %3850 = vmatmul.mubr.bf16.gmra.mrb[0].mxu0 %v3419
      %v3851 = vpop.f32.mrb[0].mxu0
      %v3852 = vadd.f32 %v3643, %v3851
      %v3853 = vpop.f32.mrb[0].mxu0
      %v3854 = vpop.f32.mrb[0].mxu0
      %v3855 = vadd.f32 %v3646, %v3854
      %v3856 = vpop.f32.mrb[0].mxu0
      %3857 = vmatprep.mubr.bf16.mxu0 0
      %3858 = vmatmul.mubr.bf16.gmra.mrb[0].mxu0 %v3420
      %v3859 = vpop.f32.mrb[0].mxu0
      %v3860 = vadd.f32 %v3651, %v3859
      %v3861 = vpop.f32.mrb[0].mxu0
      %v3862 = vpop.f32.mrb[0].mxu0
      %v3863 = vadd.f32 %v3654, %v3862
      %v3864 = vpop.f32.mrb[0].mxu0
      %3865 = vmatprep.mubr.bf16.mxu0 0
      %3866 = vmatmul.mubr.bf16.gmra.mrb[0].mxu0 %v3421
      %v3867 = vpop.f32.mrb[0].mxu0
      %v3868 = vadd.f32 %v3659, %v3867
      %v3869 = vpop.f32.mrb[0].mxu0
      %v3870 = vpop.f32.mrb[0].mxu0
      %v3871 = vadd.f32 %v3662, %v3870
      %v3872 = vpop.f32.mrb[0].mxu0
      %3873 = vmatprep.mubr.bf16.mxu0 0
      %3874 = vmatmul.mubr.bf16.gmra.mrb[0].mxu0 %v3422
      %v3875 = vpop.f32.mrb[0].mxu0
      %v3876 = vadd.f32 %v3667, %v3875
      %v3877 = vpop.f32.mrb[0].mxu0
      %v3878 = vpop.f32.mrb[0].mxu0
      %v3879 = vadd.f32 %v3670, %v3878
      %v3880 = vpop.f32.mrb[0].mxu0
      %3881 = vmatprep.mubr.bf16.mxu0 0
      %3882 = vmatmul.mubr.bf16.gmra.mrb[0].mxu0 %v3423
      %v3883 = vpop.f32.mrb[0].mxu0
      %v3884 = vadd.f32 %v3675, %v3883
      %v3885 = vpop.f32.mrb[0].mxu0
      %v3886 = vpop.f32.mrb[0].mxu0
      %v3887 = vadd.f32 %v3678, %v3886
      %v3888 = vpop.f32.mrb[0].mxu0
      %3889 = vdwg.mxu0
      %v3890 = vld [vmem:[#allocation3 + $0x2] sm:$0xff]
      %v3891 = vld [vmem:[#allocation3 + $0xa] sm:$0xff]
      %v3892 = vld [vmem:[#allocation3 + $0x1a] sm:$0xff]
      %v3893 = vld [vmem:[#allocation3 + $0x22] sm:$0xff]
      %v3894 = vld [vmem:[#allocation3 + $0x32] sm:$0xff]
      %v3895 = vld [vmem:[#allocation3 + $0x3a] sm:$0xff]
      %v3896 = vld [vmem:[#allocation3 + $0x4a] sm:$0xff]
      %v3897 = vld [vmem:[#allocation3 + $0x52] sm:$0xff]
      %v3898 = vld [vmem:[#allocation3 + $0x62] sm:$0xff]
      %v3899 = vld [vmem:[#allocation3 + $0x6a] sm:$0xff]
      %v3900 = vld [vmem:[#allocation3 + $0x7a] sm:$0xff]
      %v3901 = vld [vmem:[#allocation3 + $0x82] sm:$0xff]
      %v3902 = vld [vmem:[#allocation3 + $0x92] sm:$0xff]
      %v3903 = vld [vmem:[#allocation3 + $0x9a] sm:$0xff]
      %v3904 = vld [vmem:[#allocation3 + $0xaa] sm:$0xff]
      %v3905 = vld [vmem:[#allocation3 + $0xb2] sm:$0xff]
      %v3906 = vld [vmem:[#allocation3 + $0xc2] sm:$0xff]
      %v3907 = vld [vmem:[#allocation3 + $0xca] sm:$0xff]
      %v3908 = vld [vmem:[#allocation3 + $0xda] sm:$0xff]
      %v3909 = vld [vmem:[#allocation3 + $0xe2] sm:$0xff]
      %v3910 = vld [vmem:[#allocation3 + $0xf2] sm:$0xff]
      %v3911 = vld [vmem:[#allocation3 + $0xfa] sm:$0xff]
      %v3912 = vld [vmem:[#allocation3 + $0x10a] sm:$0xff]
      %v3913 = vld [vmem:[#allocation3 + $0x112] sm:$0xff]
      %v3914 = vld [vmem:[#allocation3 + $0x122] sm:$0xff]
      %v3915 = vld [vmem:[#allocation3 + $0x12a] sm:$0xff]
      %v3916 = vld [vmem:[#allocation3 + $0x13a] sm:$0xff]
      %v3917 = vld [vmem:[#allocation3 + $0x142] sm:$0xff]
      %v3918 = vld [vmem:[#allocation3 + $0x152] sm:$0xff]
      %v3919 = vld [vmem:[#allocation3 + $0x15a] sm:$0xff]
      %v3920 = vld [vmem:[#allocation3 + $0x16a] sm:$0xff]
      %v3921 = vld [vmem:[#allocation3 + $0x172] sm:$0xff]
      %v3922 = vpack.c.bf16 %v3891, %v3890
      %v3923 = vpack.c.bf16 %v3893, %v3892
      %v3924 = vpack.c.bf16 %v3895, %v3894
      %v3925 = vpack.c.bf16 %v3897, %v3896
      %v3926 = vpack.c.bf16 %v3899, %v3898
      %v3927 = vpack.c.bf16 %v3901, %v3900
      %v3928 = vpack.c.bf16 %v3903, %v3902
      %v3929 = vpack.c.bf16 %v3905, %v3904
      %v3930 = vpack.c.bf16 %v3907, %v3906
      %v3931 = vpack.c.bf16 %v3909, %v3908
      %v3932 = vpack.c.bf16 %v3911, %v3910
      %v3933 = vpack.c.bf16 %v3913, %v3912
      %v3934 = vpack.c.bf16 %v3915, %v3914
      %v3935 = vpack.c.bf16 %v3917, %v3916
      %v3936 = vpack.c.bf16 %v3919, %v3918
      %v3937 = vpack.c.bf16 %v3921, %v3920
      %v3954 = vunpack.c.l.b16 %v3263
      %v3955 = vunpack.c.l.b16 %v3264
      %v3956 = vunpack.c.l.b16 %v3265
      %v3957 = vunpack.c.l.b16 %v3266
      %v3958 = vunpack.c.l.b16 %v3267
      %v3959 = vunpack.c.l.b16 %v3268
      %v3960 = vunpack.c.l.b16 %v3269
      %v3961 = vunpack.c.l.b16 %v3270
      %v3962 = vunpack.c.l.b16 %v3271
      %v3963 = vunpack.c.l.b16 %v3272
      %v3964 = vunpack.c.l.b16 %v3273
      %v3965 = vunpack.c.l.b16 %v3274
      %v3966 = vunpack.c.l.b16 %v3275
      %v3967 = vunpack.c.l.b16 %v3276
      %v3968 = vunpack.c.l.b16 %v3277
      %v3969 = vunpack.c.l.b16 %v3278
      %v3970 = vpack.c.b16 %v3955, %v3954
      %v3971 = vpack.c.b16 %v3957, %v3956
      %v3972 = vpack.c.b16 %v3959, %v3958
      %v3973 = vpack.c.b16 %v3961, %v3960
      %v3974 = vpack.c.b16 %v3963, %v3962
      %v3975 = vpack.c.b16 %v3965, %v3964
      %v3976 = vpack.c.b16 %v3967, %v3966
      %v3977 = vpack.c.b16 %v3969, %v3968
      %3986 = vmatprep.subr.bf16.mxu0 0
      %3987 = vmatpush1.bf16.msra.mxu0 %v3970
      %3988 = vmatprep.subr.bf16.mxu0 0
      %3989 = vmatpush1.bf16.msra.mxu0 %v3971
      %3990 = vmatprep.subr.bf16.mxu0 0
      %3991 = vmatpush1.bf16.msra.mxu0 %v3972
      %3992 = vmatprep.subr.bf16.mxu0 0
      %3993 = vmatpush1.bf16.msra.mxu0 %v3973
      %3994 = vmatprep.subr.bf16.mxu0 0
      %3995 = vmatpush1.bf16.msra.mxu0 %v3974
      %3996 = vmatprep.subr.bf16.mxu0 0
      %3997 = vmatpush1.bf16.msra.mxu0 %v3975
      %3998 = vmatprep.subr.bf16.mxu0 0
      %3999 = vmatpush1.bf16.msra.mxu0 %v3976
      %4000 = vmatprep.subr.bf16.mxu0 0
      %4001 = vmatpush1.bf16.msra.mxu0 %v3977
      %4002 = vmatprep.subr.bf16.mxu0 0
      %4003 = vmatpush1.bf16.msra.mxu0 0
      %4004 = vmatprep.subr.bf16.mxu0 0
      %4005 = vmatpush1.bf16.msra.mxu0 0
      %4006 = vmatprep.subr.bf16.mxu0 0
      %4007 = vmatpush1.bf16.msra.mxu0 0
      %4008 = vmatprep.subr.bf16.mxu0 0
      %4009 = vmatpush1.bf16.msra.mxu0 0
      %4010 = vmatprep.subr.bf16.mxu0 0
      %4011 = vmatpush1.bf16.msra.mxu0 0
      %4012 = vmatprep.subr.bf16.mxu0 0
      %4013 = vmatpush1.bf16.msra.mxu0 0
      %4014 = vmatprep.subr.bf16.mxu0 0
      %4015 = vmatpush1.bf16.msra.mxu0 0
      %4016 = vmatprep.subr.bf16.mxu0 0
      %4017 = vmatpush1.bf16.msra.mxu0 0
      %4018 = vmatprep.mubr.bf16.mxu0 0
      %4019 = vmatmul.mubr.bf16.gmra.mrb[0].mxu0 %v3922
      %v4020 = vpop.f32.mrb[0].mxu0
      %v4021 = vadd.f32 0.0, %v4020
      %v4022 = vpop.f32.mrb[0].mxu0
      %v4023 = vpop.f32.mrb[0].mxu0
      %v4024 = vadd.f32 0.0, %v4023
      %v4025 = vpop.f32.mrb[0].mxu0
      %4026 = vmatprep.mubr.bf16.mxu0 0
      %4027 = vmatmul.mubr.bf16.gmra.mrb[0].mxu0 %v3923
      %v4028 = vpop.f32.mrb[0].mxu0
      %v4029 = vadd.f32 0.0, %v4028
      %v4030 = vpop.f32.mrb[0].mxu0
      %v4031 = vpop.f32.mrb[0].mxu0
      %v4032 = vadd.f32 0.0, %v4031
      %v4033 = vpop.f32.mrb[0].mxu0
      %4034 = vmatprep.mubr.bf16.mxu0 0
      %4035 = vmatmul.mubr.bf16.gmra.mrb[0].mxu0 %v3924
      %v4036 = vpop.f32.mrb[0].mxu0
      %v4037 = vadd.f32 0.0, %v4036
      %v4038 = vpop.f32.mrb[0].mxu0
      %v4039 = vpop.f32.mrb[0].mxu0
      %v4040 = vadd.f32 0.0, %v4039
      %v4041 = vpop.f32.mrb[0].mxu0
      %4042 = vmatprep.mubr.bf16.mxu0 0
      %4043 = vmatmul.mubr.bf16.gmra.mrb[0].mxu0 %v3925
      %v4044 = vpop.f32.mrb[0].mxu0
      %v4045 = vadd.f32 0.0, %v4044
      %v4046 = vpop.f32.mrb[0].mxu0
      %v4047 = vpop.f32.mrb[0].mxu0
      %v4048 = vadd.f32 0.0, %v4047
      %v4049 = vpop.f32.mrb[0].mxu0
      %4050 = vmatprep.mubr.bf16.mxu0 0
      %4051 = vmatmul.mubr.bf16.gmra.mrb[0].mxu0 %v3926
      %v4052 = vpop.f32.mrb[0].mxu0
      %v4053 = vadd.f32 0.0, %v4052
      %v4054 = vpop.f32.mrb[0].mxu0
      %v4055 = vpop.f32.mrb[0].mxu0
      %v4056 = vadd.f32 0.0, %v4055
      %v4057 = vpop.f32.mrb[0].mxu0
      %4058 = vmatprep.mubr.bf16.mxu0 0
      %4059 = vmatmul.mubr.bf16.gmra.mrb[0].mxu0 %v3927
      %v4060 = vpop.f32.mrb[0].mxu0
      %v4061 = vadd.f32 0.0, %v4060
      %v4062 = vpop.f32.mrb[0].mxu0
      %v4063 = vpop.f32.mrb[0].mxu0
      %v4064 = vadd.f32 0.0, %v4063
      %v4065 = vpop.f32.mrb[0].mxu0
      %4066 = vmatprep.mubr.bf16.mxu0 0
      %4067 = vmatmul.mubr.bf16.gmra.mrb[0].mxu0 %v3928
      %v4068 = vpop.f32.mrb[0].mxu0
      %v4069 = vadd.f32 0.0, %v4068
      %v4070 = vpop.f32.mrb[0].mxu0
      %v4071 = vpop.f32.mrb[0].mxu0
      %v4072 = vadd.f32 0.0, %v4071
      %v4073 = vpop.f32.mrb[0].mxu0
      %4074 = vmatprep.mubr.bf16.mxu0 0
      %4075 = vmatmul.mubr.bf16.gmra.mrb[0].mxu0 %v3929
      %v4076 = vpop.f32.mrb[0].mxu0
      %v4077 = vadd.f32 0.0, %v4076
      %v4078 = vpop.f32.mrb[0].mxu0
      %v4079 = vpop.f32.mrb[0].mxu0
      %v4080 = vadd.f32 0.0, %v4079
      %v4081 = vpop.f32.mrb[0].mxu0
      %4082 = vmatprep.mubr.bf16.mxu0 0
      %4083 = vmatmul.mubr.bf16.gmra.mrb[0].mxu0 %v3930
      %v4084 = vpop.f32.mrb[0].mxu0
      %v4085 = vadd.f32 0.0, %v4084
      %v4086 = vpop.f32.mrb[0].mxu0
      %v4087 = vpop.f32.mrb[0].mxu0
      %v4088 = vadd.f32 0.0, %v4087
      %v4089 = vpop.f32.mrb[0].mxu0
      %4090 = vmatprep.mubr.bf16.mxu0 0
      %4091 = vmatmul.mubr.bf16.gmra.mrb[0].mxu0 %v3931
      %v4092 = vpop.f32.mrb[0].mxu0
      %v4093 = vadd.f32 0.0, %v4092
      %v4094 = vpop.f32.mrb[0].mxu0
      %v4095 = vpop.f32.mrb[0].mxu0
      %v4096 = vadd.f32 0.0, %v4095
      %v4097 = vpop.f32.mrb[0].mxu0
      %4098 = vmatprep.mubr.bf16.mxu0 0
      %4099 = vmatmul.mubr.bf16.gmra.mrb[0].mxu0 %v3932
      %v4100 = vpop.f32.mrb[0].mxu0
      %v4101 = vadd.f32 0.0, %v4100
      %v4102 = vpop.f32.mrb[0].mxu0
      %v4103 = vpop.f32.mrb[0].mxu0
      %v4104 = vadd.f32 0.0, %v4103
      %v4105 = vpop.f32.mrb[0].mxu0
      %4106 = vmatprep.mubr.bf16.mxu0 0
      %4107 = vmatmul.mubr.bf16.gmra.mrb[0].mxu0 %v3933
      %v4108 = vpop.f32.mrb[0].mxu0
      %v4109 = vadd.f32 0.0, %v4108
      %v4110 = vpop.f32.mrb[0].mxu0
      %v4111 = vpop.f32.mrb[0].mxu0
      %v4112 = vadd.f32 0.0, %v4111
      %v4113 = vpop.f32.mrb[0].mxu0
      %4114 = vmatprep.mubr.bf16.mxu0 0
      %4115 = vmatmul.mubr.bf16.gmra.mrb[0].mxu0 %v3934
      %v4116 = vpop.f32.mrb[0].mxu0
      %v4117 = vadd.f32 0.0, %v4116
      %v4118 = vpop.f32.mrb[0].mxu0
      %v4119 = vpop.f32.mrb[0].mxu0
      %v4120 = vadd.f32 0.0, %v4119
      %v4121 = vpop.f32.mrb[0].mxu0
      %4122 = vmatprep.mubr.bf16.mxu0 0
      %4123 = vmatmul.mubr.bf16.gmra.mrb[0].mxu0 %v3935
      %v4124 = vpop.f32.mrb[0].mxu0
      %v4125 = vadd.f32 0.0, %v4124
      %v4126 = vpop.f32.mrb[0].mxu0
      %v4127 = vpop.f32.mrb[0].mxu0
      %v4128 = vadd.f32 0.0, %v4127
      %v4129 = vpop.f32.mrb[0].mxu0
      %4130 = vmatprep.mubr.bf16.mxu0 0
      %4131 = vmatmul.mubr.bf16.gmra.mrb[0].mxu0 %v3936
      %v4132 = vpop.f32.mrb[0].mxu0
      %v4133 = vadd.f32 0.0, %v4132
      %v4134 = vpop.f32.mrb[0].mxu0
      %v4135 = vpop.f32.mrb[0].mxu0
      %v4136 = vadd.f32 0.0, %v4135
      %v4137 = vpop.f32.mrb[0].mxu0
      %4138 = vmatprep.mubr.bf16.mxu0 0
      %4139 = vmatmul.mubr.bf16.gmra.mrb[0].mxu0 %v3937
      %v4140 = vpop.f32.mrb[0].mxu0
      %v4141 = vadd.f32 0.0, %v4140
      %v4142 = vpop.f32.mrb[0].mxu0
      %v4143 = vpop.f32.mrb[0].mxu0
      %v4144 = vadd.f32 0.0, %v4143
      %v4145 = vpop.f32.mrb[0].mxu0
      %4146 = vdwg.mxu0
      %v4147 = vadd.f32 %v3764, %v4021
      %v4148 = vadd.f32 %v3767, %v4024
      %v4149 = vadd.f32 %v3772, %v4029
      %v4150 = vadd.f32 %v3775, %v4032
      %v4151 = vadd.f32 %v3780, %v4037
      %v4152 = vadd.f32 %v3783, %v4040
      %v4153 = vadd.f32 %v3788, %v4045
      %v4154 = vadd.f32 %v3791, %v4048
      %v4155 = vadd.f32 %v3796, %v4053
      %v4156 = vadd.f32 %v3799, %v4056
      %v4157 = vadd.f32 %v3804, %v4061
      %v4158 = vadd.f32 %v3807, %v4064
      %v4159 = vadd.f32 %v3812, %v4069
      %v4160 = vadd.f32 %v3815, %v4072
      %v4161 = vadd.f32 %v3820, %v4077
      %v4162 = vadd.f32 %v3823, %v4080
      %v4163 = vadd.f32 %v3828, %v4085
      %v4164 = vadd.f32 %v3831, %v4088
      %v4165 = vadd.f32 %v3836, %v4093
      %v4166 = vadd.f32 %v3839, %v4096
      %v4167 = vadd.f32 %v3844, %v4101
      %v4168 = vadd.f32 %v3847, %v4104
      %v4169 = vadd.f32 %v3852, %v4109
      %v4170 = vadd.f32 %v3855, %v4112
      %v4171 = vadd.f32 %v3860, %v4117
      %v4172 = vadd.f32 %v3863, %v4120
      %v4173 = vadd.f32 %v3868, %v4125
      %v4174 = vadd.f32 %v3871, %v4128
      %v4175 = vadd.f32 %v3876, %v4133
      %v4176 = vadd.f32 %v3879, %v4136
      %v4177 = vadd.f32 %v3884, %v4141
      %v4178 = vadd.f32 %v3887, %v4144
      %v4179 = vld [vmem:[%s3121] sm:$0xff]
      %v4180 = vld [vmem:[%s3121 + $0x8] sm:$0xff]
      %v4181 = vld [vmem:[%s3121 + $0x18] sm:$0xff]
      %v4182 = vld [vmem:[%s3121 + $0x20] sm:$0xff]
      %v4183 = vld [vmem:[%s3121 + $0x30] sm:$0xff]
      %v4184 = vld [vmem:[%s3121 + $0x38] sm:$0xff]
      %v4185 = vld [vmem:[%s3121 + $0x48] sm:$0xff]
      %v4186 = vld [vmem:[%s3121 + $0x50] sm:$0xff]
      %v4187 = vld [vmem:[%s3121 + $0x60] sm:$0xff]
      %v4188 = vld [vmem:[%s3121 + $0x68] sm:$0xff]
      %v4189 = vld [vmem:[%s3121 + $0x78] sm:$0xff]
      %v4190 = vld [vmem:[%s3121 + $0x80] sm:$0xff]
      %v4191 = vld [vmem:[%s3121 + $0x90] sm:$0xff]
      %v4192 = vld [vmem:[%s3121 + $0x98] sm:$0xff]
      %v4193 = vld [vmem:[%s3121 + $0xa8] sm:$0xff]
      %v4194 = vld [vmem:[%s3121 + $0xb0] sm:$0xff]
      %v4195 = vld [vmem:[%s3121 + $0xc0] sm:$0xff]
      %v4196 = vld [vmem:[%s3121 + $0xc8] sm:$0xff]
      %v4197 = vld [vmem:[%s3121 + $0xd8] sm:$0xff]
      %v4198 = vld [vmem:[%s3121 + $0xe0] sm:$0xff]
      %v4199 = vld [vmem:[%s3121 + $0xf0] sm:$0xff]
      %v4200 = vld [vmem:[%s3121 + $0xf8] sm:$0xff]
      %v4201 = vld [vmem:[%s3121 + $0x108] sm:$0xff]
      %v4202 = vld [vmem:[%s3121 + $0x110] sm:$0xff]
      %v4203 = vld [vmem:[%s3121 + $0x120] sm:$0xff]
      %v4204 = vld [vmem:[%s3121 + $0x128] sm:$0xff]
      %v4205 = vld [vmem:[%s3121 + $0x138] sm:$0xff]
      %v4206 = vld [vmem:[%s3121 + $0x140] sm:$0xff]
      %v4207 = vld [vmem:[%s3121 + $0x150] sm:$0xff]
      %v4208 = vld [vmem:[%s3121 + $0x158] sm:$0xff]
      %v4209 = vld [vmem:[%s3121 + $0x168] sm:$0xff]
      %v4210 = vld [vmem:[%s3121 + $0x170] sm:$0xff]
      %v4211 = vpack.c.bf16 %v4180, %v4179
      %v4212 = vpack.c.bf16 %v4182, %v4181
      %v4213 = vpack.c.bf16 %v4184, %v4183
      %v4214 = vpack.c.bf16 %v4186, %v4185
      %v4215 = vpack.c.bf16 %v4188, %v4187
      %v4216 = vpack.c.bf16 %v4190, %v4189
      %v4217 = vpack.c.bf16 %v4192, %v4191
      %v4218 = vpack.c.bf16 %v4194, %v4193
      %v4219 = vpack.c.bf16 %v4196, %v4195
      %v4220 = vpack.c.bf16 %v4198, %v4197
      %v4221 = vpack.c.bf16 %v4200, %v4199
      %v4222 = vpack.c.bf16 %v4202, %v4201
      %v4223 = vpack.c.bf16 %v4204, %v4203
      %v4224 = vpack.c.bf16 %v4206, %v4205
      %v4225 = vpack.c.bf16 %v4208, %v4207
      %v4226 = vpack.c.bf16 %v4210, %v4209
      %v4243 = vunpack.c.l.b16 %v3279
      %v4244 = vunpack.c.l.b16 %v3280
      %v4245 = vunpack.c.l.b16 %v3281
      %v4246 = vunpack.c.l.b16 %v3282
      %v4247 = vunpack.c.l.b16 %v3283
      %v4248 = vunpack.c.l.b16 %v3284
      %v4249 = vunpack.c.l.b16 %v3285
      %v4250 = vunpack.c.l.b16 %v3286
      %v4251 = vunpack.c.l.b16 %v3287
      %v4252 = vunpack.c.l.b16 %v3288
      %v4253 = vunpack.c.l.b16 %v3289
      %v4254 = vunpack.c.l.b16 %v3290
      %v4255 = vunpack.c.l.b16 %v3291
      %v4256 = vunpack.c.l.b16 %v3292
      %v4257 = vunpack.c.l.b16 %v3293
      %v4258 = vunpack.c.l.b16 %v3294
      %v4259 = vpack.c.b16 %v4244, %v4243
      %v4260 = vpack.c.b16 %v4246, %v4245
      %v4261 = vpack.c.b16 %v4248, %v4247
      %v4262 = vpack.c.b16 %v4250, %v4249
      %v4263 = vpack.c.b16 %v4252, %v4251
      %v4264 = vpack.c.b16 %v4254, %v4253
      %v4265 = vpack.c.b16 %v4256, %v4255
      %v4266 = vpack.c.b16 %v4258, %v4257
      %4275 = vmatprep.subr.bf16.mxu0 0
      %4276 = vmatpush1.bf16.msra.mxu0 %v4259
      %4277 = vmatprep.subr.bf16.mxu0 0
      %4278 = vmatpush1.bf16.msra.mxu0 %v4260
      %4279 = vmatprep.subr.bf16.mxu0 0
      %4280 = vmatpush1.bf16.msra.mxu0 %v4261
      %4281 = vmatprep.subr.bf16.mxu0 0
      %4282 = vmatpush1.bf16.msra.mxu0 %v4262
      %4283 = vmatprep.subr.bf16.mxu0 0
      %4284 = vmatpush1.bf16.msra.mxu0 %v4263
      %4285 = vmatprep.subr.bf16.mxu0 0
      %4286 = vmatpush1.bf16.msra.mxu0 %v4264
      %4287 = vmatprep.subr.bf16.mxu0 0
      %4288 = vmatpush1.bf16.msra.mxu0 %v4265
      %4289 = vmatprep.subr.bf16.mxu0 0
      %4290 = vmatpush1.bf16.msra.mxu0 %v4266
      %4291 = vmatprep.subr.bf16.mxu0 0
      %4292 = vmatpush1.bf16.msra.mxu0 0
      %4293 = vmatprep.subr.bf16.mxu0 0
      %4294 = vmatpush1.bf16.msra.mxu0 0
      %4295 = vmatprep.subr.bf16.mxu0 0
      %4296 = vmatpush1.bf16.msra.mxu0 0
      %4297 = vmatprep.subr.bf16.mxu0 0
      %4298 = vmatpush1.bf16.msra.mxu0 0
      %4299 = vmatprep.subr.bf16.mxu0 0
      %4300 = vmatpush1.bf16.msra.mxu0 0
      %4301 = vmatprep.subr.bf16.mxu0 0
      %4302 = vmatpush1.bf16.msra.mxu0 0
      %4303 = vmatprep.subr.bf16.mxu0 0
      %4304 = vmatpush1.bf16.msra.mxu0 0
      %4305 = vmatprep.subr.bf16.mxu0 0
      %4306 = vmatpush1.bf16.msra.mxu0 0
      %4307 = vmatprep.mubr.bf16.mxu0 0
      %4308 = vmatmul.mubr.bf16.gmra.mrb[0].mxu0 %v4211
      %v4309 = vpop.f32.mrb[0].mxu0
      %v4310 = vadd.f32 0.0, %v4309
      %v4311 = vpop.f32.mrb[0].mxu0
      %v4312 = vpop.f32.mrb[0].mxu0
      %v4313 = vadd.f32 0.0, %v4312
      %v4314 = vpop.f32.mrb[0].mxu0
      %4315 = vmatprep.mubr.bf16.mxu0 0
      %4316 = vmatmul.mubr.bf16.gmra.mrb[0].mxu0 %v4212
      %v4317 = vpop.f32.mrb[0].mxu0
      %v4318 = vadd.f32 0.0, %v4317
      %v4319 = vpop.f32.mrb[0].mxu0
      %v4320 = vpop.f32.mrb[0].mxu0
      %v4321 = vadd.f32 0.0, %v4320
      %v4322 = vpop.f32.mrb[0].mxu0
      %4323 = vmatprep.mubr.bf16.mxu0 0
      %4324 = vmatmul.mubr.bf16.gmra.mrb[0].mxu0 %v4213
      %v4325 = vpop.f32.mrb[0].mxu0
      %v4326 = vadd.f32 0.0, %v4325
      %v4327 = vpop.f32.mrb[0].mxu0
      %v4328 = vpop.f32.mrb[0].mxu0
      %v4329 = vadd.f32 0.0, %v4328
      %v4330 = vpop.f32.mrb[0].mxu0
      %4331 = vmatprep.mubr.bf16.mxu0 0
      %4332 = vmatmul.mubr.bf16.gmra.mrb[0].mxu0 %v4214
      %v4333 = vpop.f32.mrb[0].mxu0
      %v4334 = vadd.f32 0.0, %v4333
      %v4335 = vpop.f32.mrb[0].mxu0
      %v4336 = vpop.f32.mrb[0].mxu0
      %v4337 = vadd.f32 0.0, %v4336
      %v4338 = vpop.f32.mrb[0].mxu0
      %4339 = vmatprep.mubr.bf16.mxu0 0
      %4340 = vmatmul.mubr.bf16.gmra.mrb[0].mxu0 %v4215
      %v4341 = vpop.f32.mrb[0].mxu0
      %v4342 = vadd.f32 0.0, %v4341
      %v4343 = vpop.f32.mrb[0].mxu0
      %v4344 = vpop.f32.mrb[0].mxu0
      %v4345 = vadd.f32 0.0, %v4344
      %v4346 = vpop.f32.mrb[0].mxu0
      %4347 = vmatprep.mubr.bf16.mxu0 0
      %4348 = vmatmul.mubr.bf16.gmra.mrb[0].mxu0 %v4216
      %v4349 = vpop.f32.mrb[0].mxu0
      %v4350 = vadd.f32 0.0, %v4349
      %v4351 = vpop.f32.mrb[0].mxu0
      %v4352 = vpop.f32.mrb[0].mxu0
      %v4353 = vadd.f32 0.0, %v4352
      %v4354 = vpop.f32.mrb[0].mxu0
      %4355 = vmatprep.mubr.bf16.mxu0 0
      %4356 = vmatmul.mubr.bf16.gmra.mrb[0].mxu0 %v4217
      %v4357 = vpop.f32.mrb[0].mxu0
      %v4358 = vadd.f32 0.0, %v4357
      %v4359 = vpop.f32.mrb[0].mxu0
      %v4360 = vpop.f32.mrb[0].mxu0
      %v4361 = vadd.f32 0.0, %v4360
      %v4362 = vpop.f32.mrb[0].mxu0
      %4363 = vmatprep.mubr.bf16.mxu0 0
      %4364 = vmatmul.mubr.bf16.gmra.mrb[0].mxu0 %v4218
      %v4365 = vpop.f32.mrb[0].mxu0
      %v4366 = vadd.f32 0.0, %v4365
      %v4367 = vpop.f32.mrb[0].mxu0
      %v4368 = vpop.f32.mrb[0].mxu0
      %v4369 = vadd.f32 0.0, %v4368
      %v4370 = vpop.f32.mrb[0].mxu0
      %4371 = vmatprep.mubr.bf16.mxu0 0
      %4372 = vmatmul.mubr.bf16.gmra.mrb[0].mxu0 %v4219
      %v4373 = vpop.f32.mrb[0].mxu0
      %v4374 = vadd.f32 0.0, %v4373
      %v4375 = vpop.f32.mrb[0].mxu0
      %v4376 = vpop.f32.mrb[0].mxu0
      %v4377 = vadd.f32 0.0, %v4376
      %v4378 = vpop.f32.mrb[0].mxu0
      %4379 = vmatprep.mubr.bf16.mxu0 0
      %4380 = vmatmul.mubr.bf16.gmra.mrb[0].mxu0 %v4220
      %v4381 = vpop.f32.mrb[0].mxu0
      %v4382 = vadd.f32 0.0, %v4381
      %v4383 = vpop.f32.mrb[0].mxu0
      %v4384 = vpop.f32.mrb[0].mxu0
      %v4385 = vadd.f32 0.0, %v4384
      %v4386 = vpop.f32.mrb[0].mxu0
      %4387 = vmatprep.mubr.bf16.mxu0 0
      %4388 = vmatmul.mubr.bf16.gmra.mrb[0].mxu0 %v4221
      %v4389 = vpop.f32.mrb[0].mxu0
      %v4390 = vadd.f32 0.0, %v4389
      %v4391 = vpop.f32.mrb[0].mxu0
      %v4392 = vpop.f32.mrb[0].mxu0
      %v4393 = vadd.f32 0.0, %v4392
      %v4394 = vpop.f32.mrb[0].mxu0
      %4395 = vmatprep.mubr.bf16.mxu0 0
      %4396 = vmatmul.mubr.bf16.gmra.mrb[0].mxu0 %v4222
      %v4397 = vpop.f32.mrb[0].mxu0
      %v4398 = vadd.f32 0.0, %v4397
      %v4399 = vpop.f32.mrb[0].mxu0
      %v4400 = vpop.f32.mrb[0].mxu0
      %v4401 = vadd.f32 0.0, %v4400
      %v4402 = vpop.f32.mrb[0].mxu0
      %4403 = vmatprep.mubr.bf16.mxu0 0
      %4404 = vmatmul.mubr.bf16.gmra.mrb[0].mxu0 %v4223
      %v4405 = vpop.f32.mrb[0].mxu0
      %v4406 = vadd.f32 0.0, %v4405
      %v4407 = vpop.f32.mrb[0].mxu0
      %v4408 = vpop.f32.mrb[0].mxu0
      %v4409 = vadd.f32 0.0, %v4408
      %v4410 = vpop.f32.mrb[0].mxu0
      %4411 = vmatprep.mubr.bf16.mxu0 0
      %4412 = vmatmul.mubr.bf16.gmra.mrb[0].mxu0 %v4224
      %v4413 = vpop.f32.mrb[0].mxu0
      %v4414 = vadd.f32 0.0, %v4413
      %v4415 = vpop.f32.mrb[0].mxu0
      %v4416 = vpop.f32.mrb[0].mxu0
      %v4417 = vadd.f32 0.0, %v4416
      %v4418 = vpop.f32.mrb[0].mxu0
      %4419 = vmatprep.mubr.bf16.mxu0 0
      %4420 = vmatmul.mubr.bf16.gmra.mrb[0].mxu0 %v4225
      %v4421 = vpop.f32.mrb[0].mxu0
      %v4422 = vadd.f32 0.0, %v4421
      %v4423 = vpop.f32.mrb[0].mxu0
      %v4424 = vpop.f32.mrb[0].mxu0
      %v4425 = vadd.f32 0.0, %v4424
      %v4426 = vpop.f32.mrb[0].mxu0
      %4427 = vmatprep.mubr.bf16.mxu0 0
      %4428 = vmatmul.mubr.bf16.gmra.mrb[0].mxu0 %v4226
      %v4429 = vpop.f32.mrb[0].mxu0
      %v4430 = vadd.f32 0.0, %v4429
      %v4431 = vpop.f32.mrb[0].mxu0
      %v4432 = vpop.f32.mrb[0].mxu0
      %v4433 = vadd.f32 0.0, %v4432
      %v4434 = vpop.f32.mrb[0].mxu0
      %4435 = vdwg.mxu0
      %v4436 = vadd.f32 %v4147, %v4310
      %v4437 = vadd.f32 %v4148, %v4313
      %v4438 = vadd.f32 %v4149, %v4318
      %v4439 = vadd.f32 %v4150, %v4321
      %v4440 = vadd.f32 %v4151, %v4326
      %v4441 = vadd.f32 %v4152, %v4329
      %v4442 = vadd.f32 %v4153, %v4334
      %v4443 = vadd.f32 %v4154, %v4337
      %v4444 = vadd.f32 %v4155, %v4342
      %v4445 = vadd.f32 %v4156, %v4345
      %v4446 = vadd.f32 %v4157, %v4350
      %v4447 = vadd.f32 %v4158, %v4353
      %v4448 = vadd.f32 %v4159, %v4358
      %v4449 = vadd.f32 %v4160, %v4361
      %v4450 = vadd.f32 %v4161, %v4366
      %v4451 = vadd.f32 %v4162, %v4369
      %v4452 = vadd.f32 %v4163, %v4374
      %v4453 = vadd.f32 %v4164, %v4377
      %v4454 = vadd.f32 %v4165, %v4382
      %v4455 = vadd.f32 %v4166, %v4385
      %v4456 = vadd.f32 %v4167, %v4390
      %v4457 = vadd.f32 %v4168, %v4393
      %v4458 = vadd.f32 %v4169, %v4398
      %v4459 = vadd.f32 %v4170, %v4401
      %v4460 = vadd.f32 %v4171, %v4406
      %v4461 = vadd.f32 %v4172, %v4409
      %v4462 = vadd.f32 %v4173, %v4414
      %v4463 = vadd.f32 %v4174, %v4417
      %v4464 = vadd.f32 %v4175, %v4422
      %v4465 = vadd.f32 %v4176, %v4425
      %v4466 = vadd.f32 %v4177, %v4430
      %v4467 = vadd.f32 %v4178, %v4433
      %v4468 = vld [vmem:[%s3121 + $0x1] sm:$0xff]
      %v4469 = vld [vmem:[%s3121 + $0x9] sm:$0xff]
      %v4470 = vld [vmem:[%s3121 + $0x19] sm:$0xff]
      %v4471 = vld [vmem:[%s3121 + $0x21] sm:$0xff]
      %v4472 = vld [vmem:[%s3121 + $0x31] sm:$0xff]
      %v4473 = vld [vmem:[%s3121 + $0x39] sm:$0xff]
      %v4474 = vld [vmem:[%s3121 + $0x49] sm:$0xff]
      %v4475 = vld [vmem:[%s3121 + $0x51] sm:$0xff]
      %v4476 = vld [vmem:[%s3121 + $0x61] sm:$0xff]
      %v4477 = vld [vmem:[%s3121 + $0x69] sm:$0xff]
      %v4478 = vld [vmem:[%s3121 + $0x79] sm:$0xff]
      %v4479 = vld [vmem:[%s3121 + $0x81] sm:$0xff]
      %v4480 = vld [vmem:[%s3121 + $0x91] sm:$0xff]
      %v4481 = vld [vmem:[%s3121 + $0x99] sm:$0xff]
      %v4482 = vld [vmem:[%s3121 + $0xa9] sm:$0xff]
      %v4483 = vld [vmem:[%s3121 + $0xb1] sm:$0xff]
      %v4484 = vld [vmem:[%s3121 + $0xc1] sm:$0xff]
      %v4485 = vld [vmem:[%s3121 + $0xc9] sm:$0xff]
      %v4486 = vld [vmem:[%s3121 + $0xd9] sm:$0xff]
      %v4487 = vld [vmem:[%s3121 + $0xe1] sm:$0xff]
      %v4488 = vld [vmem:[%s3121 + $0xf1] sm:$0xff]
      %v4489 = vld [vmem:[%s3121 + $0xf9] sm:$0xff]
      %v4490 = vld [vmem:[%s3121 + $0x109] sm:$0xff]
      %v4491 = vld [vmem:[%s3121 + $0x111] sm:$0xff]
      %v4492 = vld [vmem:[%s3121 + $0x121] sm:$0xff]
      %v4493 = vld [vmem:[%s3121 + $0x129] sm:$0xff]
      %v4494 = vld [vmem:[%s3121 + $0x139] sm:$0xff]
      %v4495 = vld [vmem:[%s3121 + $0x141] sm:$0xff]
      %v4496 = vld [vmem:[%s3121 + $0x151] sm:$0xff]
      %v4497 = vld [vmem:[%s3121 + $0x159] sm:$0xff]
      %v4498 = vld [vmem:[%s3121 + $0x169] sm:$0xff]
      %v4499 = vld [vmem:[%s3121 + $0x171] sm:$0xff]
      %v4500 = vpack.c.bf16 %v4469, %v4468
      %v4501 = vpack.c.bf16 %v4471, %v4470
      %v4502 = vpack.c.bf16 %v4473, %v4472
      %v4503 = vpack.c.bf16 %v4475, %v4474
      %v4504 = vpack.c.bf16 %v4477, %v4476
      %v4505 = vpack.c.bf16 %v4479, %v4478
      %v4506 = vpack.c.bf16 %v4481, %v4480
      %v4507 = vpack.c.bf16 %v4483, %v4482
      %v4508 = vpack.c.bf16 %v4485, %v4484
      %v4509 = vpack.c.bf16 %v4487, %v4486
      %v4510 = vpack.c.bf16 %v4489, %v4488
      %v4511 = vpack.c.bf16 %v4491, %v4490
      %v4512 = vpack.c.bf16 %v4493, %v4492
      %v4513 = vpack.c.bf16 %v4495, %v4494
      %v4514 = vpack.c.bf16 %v4497, %v4496
      %v4515 = vpack.c.bf16 %v4499, %v4498
      %v4532 = vunpack.c.l.b16 %v3295
      %v4533 = vunpack.c.l.b16 %v3296
      %v4534 = vunpack.c.l.b16 %v3297
      %v4535 = vunpack.c.l.b16 %v3298
      %v4536 = vunpack.c.l.b16 %v3299
      %v4537 = vunpack.c.l.b16 %v3300
      %v4538 = vunpack.c.l.b16 %v3301
      %v4539 = vunpack.c.l.b16 %v3302
      %v4540 = vunpack.c.l.b16 %v3303
      %v4541 = vunpack.c.l.b16 %v3304
      %v4542 = vunpack.c.l.b16 %v3305
      %v4543 = vunpack.c.l.b16 %v3306
      %v4544 = vunpack.c.l.b16 %v3307
      %v4545 = vunpack.c.l.b16 %v3308
      %v4546 = vunpack.c.l.b16 %v3309
      %v4547 = vunpack.c.l.b16 %v3310
      %v4548 = vpack.c.b16 %v4533, %v4532
      %v4549 = vpack.c.b16 %v4535, %v4534
      %v4550 = vpack.c.b16 %v4537, %v4536
      %v4551 = vpack.c.b16 %v4539, %v4538
      %v4552 = vpack.c.b16 %v4541, %v4540
      %v4553 = vpack.c.b16 %v4543, %v4542
      %v4554 = vpack.c.b16 %v4545, %v4544
      %v4555 = vpack.c.b16 %v4547, %v4546
      %4564 = vmatprep.subr.bf16.mxu0 0
      %4565 = vmatpush1.bf16.msra.mxu0 %v4548
      %4566 = vmatprep.subr.bf16.mxu0 0
      %4567 = vmatpush1.bf16.msra.mxu0 %v4549
      %4568 = vmatprep.subr.bf16.mxu0 0
      %4569 = vmatpush1.bf16.msra.mxu0 %v4550
      %4570 = vmatprep.subr.bf16.mxu0 0
      %4571 = vmatpush1.bf16.msra.mxu0 %v4551
      %4572 = vmatprep.subr.bf16.mxu0 0
      %4573 = vmatpush1.bf16.msra.mxu0 %v4552
      %4574 = vmatprep.subr.bf16.mxu0 0
      %4575 = vmatpush1.bf16.msra.mxu0 %v4553
      %4576 = vmatprep.subr.bf16.mxu0 0
      %4577 = vmatpush1.bf16.msra.mxu0 %v4554
      %4578 = vmatprep.subr.bf16.mxu0 0
      %4579 = vmatpush1.bf16.msra.mxu0 %v4555
      %4580 = vmatprep.subr.bf16.mxu0 0
      %4581 = vmatpush1.bf16.msra.mxu0 0
      %4582 = vmatprep.subr.bf16.mxu0 0
      %4583 = vmatpush1.bf16.msra.mxu0 0
      %4584 = vmatprep.subr.bf16.mxu0 0
      %4585 = vmatpush1.bf16.msra.mxu0 0
      %4586 = vmatprep.subr.bf16.mxu0 0
      %4587 = vmatpush1.bf16.msra.mxu0 0
      %4588 = vmatprep.subr.bf16.mxu0 0
      %4589 = vmatpush1.bf16.msra.mxu0 0
      %4590 = vmatprep.subr.bf16.mxu0 0
      %4591 = vmatpush1.bf16.msra.mxu0 0
      %4592 = vmatprep.subr.bf16.mxu0 0
      %4593 = vmatpush1.bf16.msra.mxu0 0
      %4594 = vmatprep.subr.bf16.mxu0 0
      %4595 = vmatpush1.bf16.msra.mxu0 0
      %4596 = vmatprep.mubr.bf16.mxu0 0
      %4597 = vmatmul.mubr.bf16.gmra.mrb[0].mxu0 %v4500
      %v4598 = vpop.f32.mrb[0].mxu0
      %v4599 = vadd.f32 0.0, %v4598
      %v4600 = vpop.f32.mrb[0].mxu0
      %v4601 = vpop.f32.mrb[0].mxu0
      %v4602 = vadd.f32 0.0, %v4601
      %v4603 = vpop.f32.mrb[0].mxu0
      %4604 = vmatprep.mubr.bf16.mxu0 0
      %4605 = vmatmul.mubr.bf16.gmra.mrb[0].mxu0 %v4501
      %v4606 = vpop.f32.mrb[0].mxu0
      %v4607 = vadd.f32 0.0, %v4606
      %v4608 = vpop.f32.mrb[0].mxu0
      %v4609 = vpop.f32.mrb[0].mxu0
      %v4610 = vadd.f32 0.0, %v4609
      %v4611 = vpop.f32.mrb[0].mxu0
      %4612 = vmatprep.mubr.bf16.mxu0 0
      %4613 = vmatmul.mubr.bf16.gmra.mrb[0].mxu0 %v4502
      %v4614 = vpop.f32.mrb[0].mxu0
      %v4615 = vadd.f32 0.0, %v4614
      %v4616 = vpop.f32.mrb[0].mxu0
      %v4617 = vpop.f32.mrb[0].mxu0
      %v4618 = vadd.f32 0.0, %v4617
      %v4619 = vpop.f32.mrb[0].mxu0
      %4620 = vmatprep.mubr.bf16.mxu0 0
      %4621 = vmatmul.mubr.bf16.gmra.mrb[0].mxu0 %v4503
      %v4622 = vpop.f32.mrb[0].mxu0
      %v4623 = vadd.f32 0.0, %v4622
      %v4624 = vpop.f32.mrb[0].mxu0
      %v4625 = vpop.f32.mrb[0].mxu0
      %v4626 = vadd.f32 0.0, %v4625
      %v4627 = vpop.f32.mrb[0].mxu0
      %4628 = vmatprep.mubr.bf16.mxu0 0
      %4629 = vmatmul.mubr.bf16.gmra.mrb[0].mxu0 %v4504
      %v4630 = vpop.f32.mrb[0].mxu0
      %v4631 = vadd.f32 0.0, %v4630
      %v4632 = vpop.f32.mrb[0].mxu0
      %v4633 = vpop.f32.mrb[0].mxu0
      %v4634 = vadd.f32 0.0, %v4633
      %v4635 = vpop.f32.mrb[0].mxu0
      %4636 = vmatprep.mubr.bf16.mxu0 0
      %4637 = vmatmul.mubr.bf16.gmra.mrb[0].mxu0 %v4505
      %v4638 = vpop.f32.mrb[0].mxu0
      %v4639 = vadd.f32 0.0, %v4638
      %v4640 = vpop.f32.mrb[0].mxu0
      %v4641 = vpop.f32.mrb[0].mxu0
      %v4642 = vadd.f32 0.0, %v4641
      %v4643 = vpop.f32.mrb[0].mxu0
      %4644 = vmatprep.mubr.bf16.mxu0 0
      %4645 = vmatmul.mubr.bf16.gmra.mrb[0].mxu0 %v4506
      %v4646 = vpop.f32.mrb[0].mxu0
      %v4647 = vadd.f32 0.0, %v4646
      %v4648 = vpop.f32.mrb[0].mxu0
      %v4649 = vpop.f32.mrb[0].mxu0
      %v4650 = vadd.f32 0.0, %v4649
      %v4651 = vpop.f32.mrb[0].mxu0
      %4652 = vmatprep.mubr.bf16.mxu0 0
      %4653 = vmatmul.mubr.bf16.gmra.mrb[0].mxu0 %v4507
      %v4654 = vpop.f32.mrb[0].mxu0
      %v4655 = vadd.f32 0.0, %v4654
      %v4656 = vpop.f32.mrb[0].mxu0
      %v4657 = vpop.f32.mrb[0].mxu0
      %v4658 = vadd.f32 0.0, %v4657
      %v4659 = vpop.f32.mrb[0].mxu0
      %4660 = vmatprep.mubr.bf16.mxu0 0
      %4661 = vmatmul.mubr.bf16.gmra.mrb[0].mxu0 %v4508
      %v4662 = vpop.f32.mrb[0].mxu0
      %v4663 = vadd.f32 0.0, %v4662
      %v4664 = vpop.f32.mrb[0].mxu0
      %v4665 = vpop.f32.mrb[0].mxu0
      %v4666 = vadd.f32 0.0, %v4665
      %v4667 = vpop.f32.mrb[0].mxu0
      %4668 = vmatprep.mubr.bf16.mxu0 0
      %4669 = vmatmul.mubr.bf16.gmra.mrb[0].mxu0 %v4509
      %v4670 = vpop.f32.mrb[0].mxu0
      %v4671 = vadd.f32 0.0, %v4670
      %v4672 = vpop.f32.mrb[0].mxu0
      %v4673 = vpop.f32.mrb[0].mxu0
      %v4674 = vadd.f32 0.0, %v4673
      %v4675 = vpop.f32.mrb[0].mxu0
      %4676 = vmatprep.mubr.bf16.mxu0 0
      %4677 = vmatmul.mubr.bf16.gmra.mrb[0].mxu0 %v4510
      %v4678 = vpop.f32.mrb[0].mxu0
      %v4679 = vadd.f32 0.0, %v4678
      %v4680 = vpop.f32.mrb[0].mxu0
      %v4681 = vpop.f32.mrb[0].mxu0
      %v4682 = vadd.f32 0.0, %v4681
      %v4683 = vpop.f32.mrb[0].mxu0
      %4684 = vmatprep.mubr.bf16.mxu0 0
      %4685 = vmatmul.mubr.bf16.gmra.mrb[0].mxu0 %v4511
      %v4686 = vpop.f32.mrb[0].mxu0
      %v4687 = vadd.f32 0.0, %v4686
      %v4688 = vpop.f32.mrb[0].mxu0
      %v4689 = vpop.f32.mrb[0].mxu0
      %v4690 = vadd.f32 0.0, %v4689
      %v4691 = vpop.f32.mrb[0].mxu0
      %4692 = vmatprep.mubr.bf16.mxu0 0
      %4693 = vmatmul.mubr.bf16.gmra.mrb[0].mxu0 %v4512
      %v4694 = vpop.f32.mrb[0].mxu0
      %v4695 = vadd.f32 0.0, %v4694
      %v4696 = vpop.f32.mrb[0].mxu0
      %v4697 = vpop.f32.mrb[0].mxu0
      %v4698 = vadd.f32 0.0, %v4697
      %v4699 = vpop.f32.mrb[0].mxu0
      %4700 = vmatprep.mubr.bf16.mxu0 0
      %4701 = vmatmul.mubr.bf16.gmra.mrb[0].mxu0 %v4513
      %v4702 = vpop.f32.mrb[0].mxu0
      %v4703 = vadd.f32 0.0, %v4702
      %v4704 = vpop.f32.mrb[0].mxu0
      %v4705 = vpop.f32.mrb[0].mxu0
      %v4706 = vadd.f32 0.0, %v4705
      %v4707 = vpop.f32.mrb[0].mxu0
      %4708 = vmatprep.mubr.bf16.mxu0 0
      %4709 = vmatmul.mubr.bf16.gmra.mrb[0].mxu0 %v4514
      %v4710 = vpop.f32.mrb[0].mxu0
      %v4711 = vadd.f32 0.0, %v4710
      %v4712 = vpop.f32.mrb[0].mxu0
      %v4713 = vpop.f32.mrb[0].mxu0
      %v4714 = vadd.f32 0.0, %v4713
      %v4715 = vpop.f32.mrb[0].mxu0
      %4716 = vmatprep.mubr.bf16.mxu0 0
      %4717 = vmatmul.mubr.bf16.gmra.mrb[0].mxu0 %v4515
      %v4718 = vpop.f32.mrb[0].mxu0
      %v4719 = vadd.f32 0.0, %v4718
      %v4720 = vpop.f32.mrb[0].mxu0
      %v4721 = vpop.f32.mrb[0].mxu0
      %v4722 = vadd.f32 0.0, %v4721
      %v4723 = vpop.f32.mrb[0].mxu0
      %4724 = vdwg.mxu0
      %v4725 = vadd.f32 %v4436, %v4599
      %v4726 = vadd.f32 %v4437, %v4602
      %v4727 = vadd.f32 %v4438, %v4607
      %v4728 = vadd.f32 %v4439, %v4610
      %v4729 = vadd.f32 %v4440, %v4615
      %v4730 = vadd.f32 %v4441, %v4618
      %v4731 = vadd.f32 %v4442, %v4623
      %v4732 = vadd.f32 %v4443, %v4626
      %v4733 = vadd.f32 %v4444, %v4631
      %v4734 = vadd.f32 %v4445, %v4634
      %v4735 = vadd.f32 %v4446, %v4639
      %v4736 = vadd.f32 %v4447, %v4642
      %v4737 = vadd.f32 %v4448, %v4647
      %v4738 = vadd.f32 %v4449, %v4650
      %v4739 = vadd.f32 %v4450, %v4655
      %v4740 = vadd.f32 %v4451, %v4658
      %v4741 = vadd.f32 %v4452, %v4663
      %v4742 = vadd.f32 %v4453, %v4666
      %v4743 = vadd.f32 %v4454, %v4671
      %v4744 = vadd.f32 %v4455, %v4674
      %v4745 = vadd.f32 %v4456, %v4679
      %v4746 = vadd.f32 %v4457, %v4682
      %v4747 = vadd.f32 %v4458, %v4687
      %v4748 = vadd.f32 %v4459, %v4690
      %v4749 = vadd.f32 %v4460, %v4695
      %v4750 = vadd.f32 %v4461, %v4698
      %v4751 = vadd.f32 %v4462, %v4703
      %v4752 = vadd.f32 %v4463, %v4706
      %v4753 = vadd.f32 %v4464, %v4711
      %v4754 = vadd.f32 %v4465, %v4714
      %v4755 = vadd.f32 %v4466, %v4719
      %v4756 = vadd.f32 %v4467, %v4722
      %v4757 = vld [vmem:[%s3121 + $0x2] sm:$0xff]
      %v4758 = vld [vmem:[%s3121 + $0xa] sm:$0xff]
      %v4759 = vld [vmem:[%s3121 + $0x1a] sm:$0xff]
      %v4760 = vld [vmem:[%s3121 + $0x22] sm:$0xff]
      %v4761 = vld [vmem:[%s3121 + $0x32] sm:$0xff]
      %v4762 = vld [vmem:[%s3121 + $0x3a] sm:$0xff]
      %v4763 = vld [vmem:[%s3121 + $0x4a] sm:$0xff]
      %v4764 = vld [vmem:[%s3121 + $0x52] sm:$0xff]
      %v4765 = vld [vmem:[%s3121 + $0x62] sm:$0xff]
      %v4766 = vld [vmem:[%s3121 + $0x6a] sm:$0xff]
      %v4767 = vld [vmem:[%s3121 + $0x7a] sm:$0xff]
      %v4768 = vld [vmem:[%s3121 + $0x82] sm:$0xff]
      %v4769 = vld [vmem:[%s3121 + $0x92] sm:$0xff]
      %v4770 = vld [vmem:[%s3121 + $0x9a] sm:$0xff]
      %v4771 = vld [vmem:[%s3121 + $0xaa] sm:$0xff]
      %v4772 = vld [vmem:[%s3121 + $0xb2] sm:$0xff]
      %v4773 = vld [vmem:[%s3121 + $0xc2] sm:$0xff]
      %v4774 = vld [vmem:[%s3121 + $0xca] sm:$0xff]
      %v4775 = vld [vmem:[%s3121 + $0xda] sm:$0xff]
      %v4776 = vld [vmem:[%s3121 + $0xe2] sm:$0xff]
      %v4777 = vld [vmem:[%s3121 + $0xf2] sm:$0xff]
      %v4778 = vld [vmem:[%s3121 + $0xfa] sm:$0xff]
      %v4779 = vld [vmem:[%s3121 + $0x10a] sm:$0xff]
      %v4780 = vld [vmem:[%s3121 + $0x112] sm:$0xff]
      %v4781 = vld [vmem:[%s3121 + $0x122] sm:$0xff]
      %v4782 = vld [vmem:[%s3121 + $0x12a] sm:$0xff]
      %v4783 = vld [vmem:[%s3121 + $0x13a] sm:$0xff]
      %v4784 = vld [vmem:[%s3121 + $0x142] sm:$0xff]
      %v4785 = vld [vmem:[%s3121 + $0x152] sm:$0xff]
      %v4786 = vld [vmem:[%s3121 + $0x15a] sm:$0xff]
      %v4787 = vld [vmem:[%s3121 + $0x16a] sm:$0xff]
      %v4788 = vld [vmem:[%s3121 + $0x172] sm:$0xff]
      %v4789 = vpack.c.bf16 %v4758, %v4757
      %v4790 = vpack.c.bf16 %v4760, %v4759
      %v4791 = vpack.c.bf16 %v4762, %v4761
      %v4792 = vpack.c.bf16 %v4764, %v4763
      %v4793 = vpack.c.bf16 %v4766, %v4765
      %v4794 = vpack.c.bf16 %v4768, %v4767
      %v4795 = vpack.c.bf16 %v4770, %v4769
      %v4796 = vpack.c.bf16 %v4772, %v4771
      %v4797 = vpack.c.bf16 %v4774, %v4773
      %v4798 = vpack.c.bf16 %v4776, %v4775
      %v4799 = vpack.c.bf16 %v4778, %v4777
      %v4800 = vpack.c.bf16 %v4780, %v4779
      %v4801 = vpack.c.bf16 %v4782, %v4781
      %v4802 = vpack.c.bf16 %v4784, %v4783
      %v4803 = vpack.c.bf16 %v4786, %v4785
      %v4804 = vpack.c.bf16 %v4788, %v4787
      %v4821 = vunpack.c.l.b16 %v3311
      %v4822 = vunpack.c.l.b16 %v3312
      %v4823 = vunpack.c.l.b16 %v3313
      %v4824 = vunpack.c.l.b16 %v3314
      %v4825 = vunpack.c.l.b16 %v3315
      %v4826 = vunpack.c.l.b16 %v3316
      %v4827 = vunpack.c.l.b16 %v3317
      %v4828 = vunpack.c.l.b16 %v3318
      %v4829 = vunpack.c.l.b16 %v3319
      %v4830 = vunpack.c.l.b16 %v3320
      %v4831 = vunpack.c.l.b16 %v3321
      %v4832 = vunpack.c.l.b16 %v3322
      %v4833 = vunpack.c.l.b16 %v3323
      %v4834 = vunpack.c.l.b16 %v3324
      %v4835 = vunpack.c.l.b16 %v3325
      %v4836 = vunpack.c.l.b16 %v3326
      %v4837 = vpack.c.b16 %v4822, %v4821
      %v4838 = vpack.c.b16 %v4824, %v4823
      %v4839 = vpack.c.b16 %v4826, %v4825
      %v4840 = vpack.c.b16 %v4828, %v4827
      %v4841 = vpack.c.b16 %v4830, %v4829
      %v4842 = vpack.c.b16 %v4832, %v4831
      %v4843 = vpack.c.b16 %v4834, %v4833
      %v4844 = vpack.c.b16 %v4836, %v4835
      %4853 = vmatprep.subr.bf16.mxu0 0
      %4854 = vmatpush1.bf16.msra.mxu0 %v4837
      %4855 = vmatprep.subr.bf16.mxu0 0
      %4856 = vmatpush1.bf16.msra.mxu0 %v4838
      %4857 = vmatprep.subr.bf16.mxu0 0
      %4858 = vmatpush1.bf16.msra.mxu0 %v4839
      %4859 = vmatprep.subr.bf16.mxu0 0
      %4860 = vmatpush1.bf16.msra.mxu0 %v4840
      %4861 = vmatprep.subr.bf16.mxu0 0
      %4862 = vmatpush1.bf16.msra.mxu0 %v4841
      %4863 = vmatprep.subr.bf16.mxu0 0
      %4864 = vmatpush1.bf16.msra.mxu0 %v4842
      %4865 = vmatprep.subr.bf16.mxu0 0
      %4866 = vmatpush1.bf16.msra.mxu0 %v4843
      %4867 = vmatprep.subr.bf16.mxu0 0
      %4868 = vmatpush1.bf16.msra.mxu0 %v4844
      %4869 = vmatprep.subr.bf16.mxu0 0
      %4870 = vmatpush1.bf16.msra.mxu0 0
      %4871 = vmatprep.subr.bf16.mxu0 0
      %4872 = vmatpush1.bf16.msra.mxu0 0
      %4873 = vmatprep.subr.bf16.mxu0 0
      %4874 = vmatpush1.bf16.msra.mxu0 0
      %4875 = vmatprep.subr.bf16.mxu0 0
      %4876 = vmatpush1.bf16.msra.mxu0 0
      %4877 = vmatprep.subr.bf16.mxu0 0
      %4878 = vmatpush1.bf16.msra.mxu0 0
      %4879 = vmatprep.subr.bf16.mxu0 0
      %4880 = vmatpush1.bf16.msra.mxu0 0
      %4881 = vmatprep.subr.bf16.mxu0 0
      %4882 = vmatpush1.bf16.msra.mxu0 0
      %4883 = vmatprep.subr.bf16.mxu0 0
      %4884 = vmatpush1.bf16.msra.mxu0 0
      %4885 = vmatprep.mubr.bf16.mxu0 0
      %4886 = vmatmul.mubr.bf16.gmra.mrb[0].mxu0 %v4789
      %v4887 = vpop.f32.mrb[0].mxu0
      %v4888 = vadd.f32 0.0, %v4887
      %v4889 = vpop.f32.mrb[0].mxu0
      %v4890 = vpop.f32.mrb[0].mxu0
      %v4891 = vadd.f32 0.0, %v4890
      %v4892 = vpop.f32.mrb[0].mxu0
      %4893 = vmatprep.mubr.bf16.mxu0 0
      %4894 = vmatmul.mubr.bf16.gmra.mrb[0].mxu0 %v4790
      %v4895 = vpop.f32.mrb[0].mxu0
      %v4896 = vadd.f32 0.0, %v4895
      %v4897 = vpop.f32.mrb[0].mxu0
      %v4898 = vpop.f32.mrb[0].mxu0
      %v4899 = vadd.f32 0.0, %v4898
      %v4900 = vpop.f32.mrb[0].mxu0
      %4901 = vmatprep.mubr.bf16.mxu0 0
      %4902 = vmatmul.mubr.bf16.gmra.mrb[0].mxu0 %v4791
      %v4903 = vpop.f32.mrb[0].mxu0
      %v4904 = vadd.f32 0.0, %v4903
      %v4905 = vpop.f32.mrb[0].mxu0
      %v4906 = vpop.f32.mrb[0].mxu0
      %v4907 = vadd.f32 0.0, %v4906
      %v4908 = vpop.f32.mrb[0].mxu0
      %4909 = vmatprep.mubr.bf16.mxu0 0
      %4910 = vmatmul.mubr.bf16.gmra.mrb[0].mxu0 %v4792
      %v4911 = vpop.f32.mrb[0].mxu0
      %v4912 = vadd.f32 0.0, %v4911
      %v4913 = vpop.f32.mrb[0].mxu0
      %v4914 = vpop.f32.mrb[0].mxu0
      %v4915 = vadd.f32 0.0, %v4914
      %v4916 = vpop.f32.mrb[0].mxu0
      %4917 = vmatprep.mubr.bf16.mxu0 0
      %4918 = vmatmul.mubr.bf16.gmra.mrb[0].mxu0 %v4793
      %v4919 = vpop.f32.mrb[0].mxu0
      %v4920 = vadd.f32 0.0, %v4919
      %v4921 = vpop.f32.mrb[0].mxu0
      %v4922 = vpop.f32.mrb[0].mxu0
      %v4923 = vadd.f32 0.0, %v4922
      %v4924 = vpop.f32.mrb[0].mxu0
      %4925 = vmatprep.mubr.bf16.mxu0 0
      %4926 = vmatmul.mubr.bf16.gmra.mrb[0].mxu0 %v4794
      %v4927 = vpop.f32.mrb[0].mxu0
      %v4928 = vadd.f32 0.0, %v4927
      %v4929 = vpop.f32.mrb[0].mxu0
      %v4930 = vpop.f32.mrb[0].mxu0
      %v4931 = vadd.f32 0.0, %v4930
      %v4932 = vpop.f32.mrb[0].mxu0
      %4933 = vmatprep.mubr.bf16.mxu0 0
      %4934 = vmatmul.mubr.bf16.gmra.mrb[0].mxu0 %v4795
      %v4935 = vpop.f32.mrb[0].mxu0
      %v4936 = vadd.f32 0.0, %v4935
      %v4937 = vpop.f32.mrb[0].mxu0
      %v4938 = vpop.f32.mrb[0].mxu0
      %v4939 = vadd.f32 0.0, %v4938
      %v4940 = vpop.f32.mrb[0].mxu0
      %4941 = vmatprep.mubr.bf16.mxu0 0
      %4942 = vmatmul.mubr.bf16.gmra.mrb[0].mxu0 %v4796
      %v4943 = vpop.f32.mrb[0].mxu0
      %v4944 = vadd.f32 0.0, %v4943
      %v4945 = vpop.f32.mrb[0].mxu0
      %v4946 = vpop.f32.mrb[0].mxu0
      %v4947 = vadd.f32 0.0, %v4946
      %v4948 = vpop.f32.mrb[0].mxu0
      %4949 = vmatprep.mubr.bf16.mxu0 0
      %4950 = vmatmul.mubr.bf16.gmra.mrb[0].mxu0 %v4797
      %v4951 = vpop.f32.mrb[0].mxu0
      %v4952 = vadd.f32 0.0, %v4951
      %v4953 = vpop.f32.mrb[0].mxu0
      %v4954 = vpop.f32.mrb[0].mxu0
      %v4955 = vadd.f32 0.0, %v4954
      %v4956 = vpop.f32.mrb[0].mxu0
      %4957 = vmatprep.mubr.bf16.mxu0 0
      %4958 = vmatmul.mubr.bf16.gmra.mrb[0].mxu0 %v4798
      %v4959 = vpop.f32.mrb[0].mxu0
      %v4960 = vadd.f32 0.0, %v4959
      %v4961 = vpop.f32.mrb[0].mxu0
      %v4962 = vpop.f32.mrb[0].mxu0
      %v4963 = vadd.f32 0.0, %v4962
      %v4964 = vpop.f32.mrb[0].mxu0
      %4965 = vmatprep.mubr.bf16.mxu0 0
      %4966 = vmatmul.mubr.bf16.gmra.mrb[0].mxu0 %v4799
      %v4967 = vpop.f32.mrb[0].mxu0
      %v4968 = vadd.f32 0.0, %v4967
      %v4969 = vpop.f32.mrb[0].mxu0
      %v4970 = vpop.f32.mrb[0].mxu0
      %v4971 = vadd.f32 0.0, %v4970
      %v4972 = vpop.f32.mrb[0].mxu0
      %4973 = vmatprep.mubr.bf16.mxu0 0
      %4974 = vmatmul.mubr.bf16.gmra.mrb[0].mxu0 %v4800
      %v4975 = vpop.f32.mrb[0].mxu0
      %v4976 = vadd.f32 0.0, %v4975
      %v4977 = vpop.f32.mrb[0].mxu0
      %v4978 = vpop.f32.mrb[0].mxu0
      %v4979 = vadd.f32 0.0, %v4978
      %v4980 = vpop.f32.mrb[0].mxu0
      %4981 = vmatprep.mubr.bf16.mxu0 0
      %4982 = vmatmul.mubr.bf16.gmra.mrb[0].mxu0 %v4801
      %v4983 = vpop.f32.mrb[0].mxu0
      %v4984 = vadd.f32 0.0, %v4983
      %v4985 = vpop.f32.mrb[0].mxu0
      %v4986 = vpop.f32.mrb[0].mxu0
      %v4987 = vadd.f32 0.0, %v4986
      %v4988 = vpop.f32.mrb[0].mxu0
      %4989 = vmatprep.mubr.bf16.mxu0 0
      %4990 = vmatmul.mubr.bf16.gmra.mrb[0].mxu0 %v4802
      %v4991 = vpop.f32.mrb[0].mxu0
      %v4992 = vadd.f32 0.0, %v4991
      %v4993 = vpop.f32.mrb[0].mxu0
      %v4994 = vpop.f32.mrb[0].mxu0
      %v4995 = vadd.f32 0.0, %v4994
      %v4996 = vpop.f32.mrb[0].mxu0
      %4997 = vmatprep.mubr.bf16.mxu0 0
      %4998 = vmatmul.mubr.bf16.gmra.mrb[0].mxu0 %v4803
      %v4999 = vpop.f32.mrb[0].mxu0
      %v5000 = vadd.f32 0.0, %v4999
      %v5001 = vpop.f32.mrb[0].mxu0
      %v5002 = vpop.f32.mrb[0].mxu0
      %v5003 = vadd.f32 0.0, %v5002
      %v5004 = vpop.f32.mrb[0].mxu0
      %5005 = vmatprep.mubr.bf16.mxu0 0
      %5006 = vmatmul.mubr.bf16.gmra.mrb[0].mxu0 %v4804
      %v5007 = vpop.f32.mrb[0].mxu0
      %v5008 = vadd.f32 0.0, %v5007
      %v5009 = vpop.f32.mrb[0].mxu0
      %v5010 = vpop.f32.mrb[0].mxu0
      %v5011 = vadd.f32 0.0, %v5010
      %v5012 = vpop.f32.mrb[0].mxu0
      %5013 = vdwg.mxu0
      %v5014 = vadd.f32 %v4725, %v4888
      %v5015 = vadd.f32 %v4726, %v4891
      %v5016 = vadd.f32 %v4727, %v4896
      %v5017 = vadd.f32 %v4728, %v4899
      %v5018 = vadd.f32 %v4729, %v4904
      %v5019 = vadd.f32 %v4730, %v4907
      %v5020 = vadd.f32 %v4731, %v4912
      %v5021 = vadd.f32 %v4732, %v4915
      %v5022 = vadd.f32 %v4733, %v4920
      %v5023 = vadd.f32 %v4734, %v4923
      %v5024 = vadd.f32 %v4735, %v4928
      %v5025 = vadd.f32 %v4736, %v4931
      %v5026 = vadd.f32 %v4737, %v4936
      %v5027 = vadd.f32 %v4738, %v4939
      %v5028 = vadd.f32 %v4739, %v4944
      %v5029 = vadd.f32 %v4740, %v4947
      %v5030 = vadd.f32 %v4741, %v4952
      %v5031 = vadd.f32 %v4742, %v4955
      %v5032 = vadd.f32 %v4743, %v4960
      %v5033 = vadd.f32 %v4744, %v4963
      %v5034 = vadd.f32 %v4745, %v4968
      %v5035 = vadd.f32 %v4746, %v4971
      %v5036 = vadd.f32 %v4747, %v4976
      %v5037 = vadd.f32 %v4748, %v4979
      %v5038 = vadd.f32 %v4749, %v4984
      %v5039 = vadd.f32 %v4750, %v4987
      %v5040 = vadd.f32 %v4751, %v4992
      %v5041 = vadd.f32 %v4752, %v4995
      %v5042 = vadd.f32 %v4753, %v5000
      %v5043 = vadd.f32 %v4754, %v5003
      %v5044 = vadd.f32 %v4755, %v5008
      %v5045 = vadd.f32 %v4756, %v5011
      %s5046 = scalar_lea.vmem [#allocation3], 48
      %v5047 = vld [vmem:[%s5046] sm:$0xff]
      %v5048 = vld [vmem:[%s5046 + $0x8] sm:$0xff]
      %v5049 = vld [vmem:[%s5046 + $0x18] sm:$0xff]
      %v5050 = vld [vmem:[%s5046 + $0x20] sm:$0xff]
      %v5051 = vld [vmem:[%s5046 + $0x30] sm:$0xff]
      %v5052 = vld [vmem:[%s5046 + $0x38] sm:$0xff]
      %v5053 = vld [vmem:[%s5046 + $0x48] sm:$0xff]
      %v5054 = vld [vmem:[%s5046 + $0x50] sm:$0xff]
      %v5055 = vld [vmem:[%s5046 + $0x60] sm:$0xff]
      %v5056 = vld [vmem:[%s5046 + $0x68] sm:$0xff]
      %v5057 = vld [vmem:[%s5046 + $0x78] sm:$0xff]
      %v5058 = vld [vmem:[%s5046 + $0x80] sm:$0xff]
      %v5059 = vld [vmem:[%s5046 + $0x90] sm:$0xff]
      %v5060 = vld [vmem:[%s5046 + $0x98] sm:$0xff]
      %v5061 = vld [vmem:[%s5046 + $0xa8] sm:$0xff]
      %v5062 = vld [vmem:[%s5046 + $0xb0] sm:$0xff]
      %v5063 = vld [vmem:[%s5046 + $0xc0] sm:$0xff]
      %v5064 = vld [vmem:[%s5046 + $0xc8] sm:$0xff]
      %v5065 = vld [vmem:[%s5046 + $0xd8] sm:$0xff]
      %v5066 = vld [vmem:[%s5046 + $0xe0] sm:$0xff]
      %v5067 = vld [vmem:[%s5046 + $0xf0] sm:$0xff]
      %v5068 = vld [vmem:[%s5046 + $0xf8] sm:$0xff]
      %v5069 = vld [vmem:[%s5046 + $0x108] sm:$0xff]
      %v5070 = vld [vmem:[%s5046 + $0x110] sm:$0xff]
      %v5071 = vld [vmem:[%s5046 + $0x120] sm:$0xff]
      %v5072 = vld [vmem:[%s5046 + $0x128] sm:$0xff]
      %v5073 = vld [vmem:[%s5046 + $0x138] sm:$0xff]
      %v5074 = vld [vmem:[%s5046 + $0x140] sm:$0xff]
      %v5075 = vld [vmem:[%s5046 + $0x150] sm:$0xff]
      %v5076 = vld [vmem:[%s5046 + $0x158] sm:$0xff]
      %v5077 = vld [vmem:[%s5046 + $0x168] sm:$0xff]
      %v5078 = vld [vmem:[%s5046 + $0x170] sm:$0xff]
      %v5079 = vpack.c.bf16 %v5048, %v5047
      %v5080 = vpack.c.bf16 %v5050, %v5049
      %v5081 = vpack.c.bf16 %v5052, %v5051
      %v5082 = vpack.c.bf16 %v5054, %v5053
      %v5083 = vpack.c.bf16 %v5056, %v5055
      %v5084 = vpack.c.bf16 %v5058, %v5057
      %v5085 = vpack.c.bf16 %v5060, %v5059
      %v5086 = vpack.c.bf16 %v5062, %v5061
      %v5087 = vpack.c.bf16 %v5064, %v5063
      %v5088 = vpack.c.bf16 %v5066, %v5065
      %v5089 = vpack.c.bf16 %v5068, %v5067
      %v5090 = vpack.c.bf16 %v5070, %v5069
      %v5091 = vpack.c.bf16 %v5072, %v5071
      %v5092 = vpack.c.bf16 %v5074, %v5073
      %v5093 = vpack.c.bf16 %v5076, %v5075
      %v5094 = vpack.c.bf16 %v5078, %v5077
      %v5111 = vunpack.c.l.b16 %v3327
      %v5112 = vunpack.c.l.b16 %v3328
      %v5113 = vunpack.c.l.b16 %v3329
      %v5114 = vunpack.c.l.b16 %v3330
      %v5115 = vunpack.c.l.b16 %v3331
      %v5116 = vunpack.c.l.b16 %v3332
      %v5117 = vunpack.c.l.b16 %v3333
      %v5118 = vunpack.c.l.b16 %v3334
      %v5119 = vunpack.c.l.b16 %v3335
      %v5120 = vunpack.c.l.b16 %v3336
      %v5121 = vunpack.c.l.b16 %v3337
      %v5122 = vunpack.c.l.b16 %v3338
      %v5123 = vunpack.c.l.b16 %v3339
      %v5124 = vunpack.c.l.b16 %v3340
      %v5125 = vunpack.c.l.b16 %v3341
      %v5126 = vunpack.c.l.b16 %v3342
      %v5127 = vpack.c.b16 %v5112, %v5111
      %v5128 = vpack.c.b16 %v5114, %v5113
      %v5129 = vpack.c.b16 %v5116, %v5115
      %v5130 = vpack.c.b16 %v5118, %v5117
      %v5131 = vpack.c.b16 %v5120, %v5119
      %v5132 = vpack.c.b16 %v5122, %v5121
      %v5133 = vpack.c.b16 %v5124, %v5123
      %v5134 = vpack.c.b16 %v5126, %v5125
      %5143 = vmatprep.subr.bf16.mxu0 0
      %5144 = vmatpush1.bf16.msra.mxu0 %v5127
      %5145 = vmatprep.subr.bf16.mxu0 0
      %5146 = vmatpush1.bf16.msra.mxu0 %v5128
      %5147 = vmatprep.subr.bf16.mxu0 0
      %5148 = vmatpush1.bf16.msra.mxu0 %v5129
      %5149 = vmatprep.subr.bf16.mxu0 0
      %5150 = vmatpush1.bf16.msra.mxu0 %v5130
      %5151 = vmatprep.subr.bf16.mxu0 0
      %5152 = vmatpush1.bf16.msra.mxu0 %v5131
      %5153 = vmatprep.subr.bf16.mxu0 0
      %5154 = vmatpush1.bf16.msra.mxu0 %v5132
      %5155 = vmatprep.subr.bf16.mxu0 0
      %5156 = vmatpush1.bf16.msra.mxu0 %v5133
      %5157 = vmatprep.subr.bf16.mxu0 0
      %5158 = vmatpush1.bf16.msra.mxu0 %v5134
      %5159 = vmatprep.subr.bf16.mxu0 0
      %5160 = vmatpush1.bf16.msra.mxu0 0
      %5161 = vmatprep.subr.bf16.mxu0 0
      %5162 = vmatpush1.bf16.msra.mxu0 0
      %5163 = vmatprep.subr.bf16.mxu0 0
      %5164 = vmatpush1.bf16.msra.mxu0 0
      %5165 = vmatprep.subr.bf16.mxu0 0
      %5166 = vmatpush1.bf16.msra.mxu0 0
      %5167 = vmatprep.subr.bf16.mxu0 0
      %5168 = vmatpush1.bf16.msra.mxu0 0
      %5169 = vmatprep.subr.bf16.mxu0 0
      %5170 = vmatpush1.bf16.msra.mxu0 0
      %5171 = vmatprep.subr.bf16.mxu0 0
      %5172 = vmatpush1.bf16.msra.mxu0 0
      %5173 = vmatprep.subr.bf16.mxu0 0
      %5174 = vmatpush1.bf16.msra.mxu0 0
      %5175 = vmatprep.mubr.bf16.mxu0 0
      %5176 = vmatmul.mubr.bf16.gmra.mrb[0].mxu0 %v5079
      %v5177 = vpop.f32.mrb[0].mxu0
      %v5178 = vadd.f32 0.0, %v5177
      %v5179 = vpop.f32.mrb[0].mxu0
      %v5180 = vpop.f32.mrb[0].mxu0
      %v5181 = vadd.f32 0.0, %v5180
      %v5182 = vpop.f32.mrb[0].mxu0
      %5183 = vmatprep.mubr.bf16.mxu0 0
      %5184 = vmatmul.mubr.bf16.gmra.mrb[0].mxu0 %v5080
      %v5185 = vpop.f32.mrb[0].mxu0
      %v5186 = vadd.f32 0.0, %v5185
      %v5187 = vpop.f32.mrb[0].mxu0
      %v5188 = vpop.f32.mrb[0].mxu0
      %v5189 = vadd.f32 0.0, %v5188
      %v5190 = vpop.f32.mrb[0].mxu0
      %5191 = vmatprep.mubr.bf16.mxu0 0
      %5192 = vmatmul.mubr.bf16.gmra.mrb[0].mxu0 %v5081
      %v5193 = vpop.f32.mrb[0].mxu0
      %v5194 = vadd.f32 0.0, %v5193
      %v5195 = vpop.f32.mrb[0].mxu0
      %v5196 = vpop.f32.mrb[0].mxu0
      %v5197 = vadd.f32 0.0, %v5196
      %v5198 = vpop.f32.mrb[0].mxu0
      %5199 = vmatprep.mubr.bf16.mxu0 0
      %5200 = vmatmul.mubr.bf16.gmra.mrb[0].mxu0 %v5082
      %v5201 = vpop.f32.mrb[0].mxu0
      %v5202 = vadd.f32 0.0, %v5201
      %v5203 = vpop.f32.mrb[0].mxu0
      %v5204 = vpop.f32.mrb[0].mxu0
      %v5205 = vadd.f32 0.0, %v5204
      %v5206 = vpop.f32.mrb[0].mxu0
      %5207 = vmatprep.mubr.bf16.mxu0 0
      %5208 = vmatmul.mubr.bf16.gmra.mrb[0].mxu0 %v5083
      %v5209 = vpop.f32.mrb[0].mxu0
      %v5210 = vadd.f32 0.0, %v5209
      %v5211 = vpop.f32.mrb[0].mxu0
      %v5212 = vpop.f32.mrb[0].mxu0
      %v5213 = vadd.f32 0.0, %v5212
      %v5214 = vpop.f32.mrb[0].mxu0
      %5215 = vmatprep.mubr.bf16.mxu0 0
      %5216 = vmatmul.mubr.bf16.gmra.mrb[0].mxu0 %v5084
      %v5217 = vpop.f32.mrb[0].mxu0
      %v5218 = vadd.f32 0.0, %v5217
      %v5219 = vpop.f32.mrb[0].mxu0
      %v5220 = vpop.f32.mrb[0].mxu0
      %v5221 = vadd.f32 0.0, %v5220
      %v5222 = vpop.f32.mrb[0].mxu0
      %5223 = vmatprep.mubr.bf16.mxu0 0
      %5224 = vmatmul.mubr.bf16.gmra.mrb[0].mxu0 %v5085
      %v5225 = vpop.f32.mrb[0].mxu0
      %v5226 = vadd.f32 0.0, %v5225
      %v5227 = vpop.f32.mrb[0].mxu0
      %v5228 = vpop.f32.mrb[0].mxu0
      %v5229 = vadd.f32 0.0, %v5228
      %v5230 = vpop.f32.mrb[0].mxu0
      %5231 = vmatprep.mubr.bf16.mxu0 0
      %5232 = vmatmul.mubr.bf16.gmra.mrb[0].mxu0 %v5086
      %v5233 = vpop.f32.mrb[0].mxu0
      %v5234 = vadd.f32 0.0, %v5233
      %v5235 = vpop.f32.mrb[0].mxu0
      %v5236 = vpop.f32.mrb[0].mxu0
      %v5237 = vadd.f32 0.0, %v5236
      %v5238 = vpop.f32.mrb[0].mxu0
      %5239 = vmatprep.mubr.bf16.mxu0 0
      %5240 = vmatmul.mubr.bf16.gmra.mrb[0].mxu0 %v5087
      %v5241 = vpop.f32.mrb[0].mxu0
      %v5242 = vadd.f32 0.0, %v5241
      %v5243 = vpop.f32.mrb[0].mxu0
      %v5244 = vpop.f32.mrb[0].mxu0
      %v5245 = vadd.f32 0.0, %v5244
      %v5246 = vpop.f32.mrb[0].mxu0
      %5247 = vmatprep.mubr.bf16.mxu0 0
      %5248 = vmatmul.mubr.bf16.gmra.mrb[0].mxu0 %v5088
      %v5249 = vpop.f32.mrb[0].mxu0
      %v5250 = vadd.f32 0.0, %v5249
      %v5251 = vpop.f32.mrb[0].mxu0
      %v5252 = vpop.f32.mrb[0].mxu0
      %v5253 = vadd.f32 0.0, %v5252
      %v5254 = vpop.f32.mrb[0].mxu0
      %5255 = vmatprep.mubr.bf16.mxu0 0
      %5256 = vmatmul.mubr.bf16.gmra.mrb[0].mxu0 %v5089
      %v5257 = vpop.f32.mrb[0].mxu0
      %v5258 = vadd.f32 0.0, %v5257
      %v5259 = vpop.f32.mrb[0].mxu0
      %v5260 = vpop.f32.mrb[0].mxu0
      %v5261 = vadd.f32 0.0, %v5260
      %v5262 = vpop.f32.mrb[0].mxu0
      %5263 = vmatprep.mubr.bf16.mxu0 0
      %5264 = vmatmul.mubr.bf16.gmra.mrb[0].mxu0 %v5090
      %v5265 = vpop.f32.mrb[0].mxu0
      %v5266 = vadd.f32 0.0, %v5265
      %v5267 = vpop.f32.mrb[0].mxu0
      %v5268 = vpop.f32.mrb[0].mxu0
      %v5269 = vadd.f32 0.0, %v5268
      %v5270 = vpop.f32.mrb[0].mxu0
      %5271 = vmatprep.mubr.bf16.mxu0 0
      %5272 = vmatmul.mubr.bf16.gmra.mrb[0].mxu0 %v5091
      %v5273 = vpop.f32.mrb[0].mxu0
      %v5274 = vadd.f32 0.0, %v5273
      %v5275 = vpop.f32.mrb[0].mxu0
      %v5276 = vpop.f32.mrb[0].mxu0
      %v5277 = vadd.f32 0.0, %v5276
      %v5278 = vpop.f32.mrb[0].mxu0
      %5279 = vmatprep.mubr.bf16.mxu0 0
      %5280 = vmatmul.mubr.bf16.gmra.mrb[0].mxu0 %v5092
      %v5281 = vpop.f32.mrb[0].mxu0
      %v5282 = vadd.f32 0.0, %v5281
      %v5283 = vpop.f32.mrb[0].mxu0
      %v5284 = vpop.f32.mrb[0].mxu0
      %v5285 = vadd.f32 0.0, %v5284
      %v5286 = vpop.f32.mrb[0].mxu0
      %5287 = vmatprep.mubr.bf16.mxu0 0
      %5288 = vmatmul.mubr.bf16.gmra.mrb[0].mxu0 %v5093
      %v5289 = vpop.f32.mrb[0].mxu0
      %v5290 = vadd.f32 0.0, %v5289
      %v5291 = vpop.f32.mrb[0].mxu0
      %v5292 = vpop.f32.mrb[0].mxu0
      %v5293 = vadd.f32 0.0, %v5292
      %v5294 = vpop.f32.mrb[0].mxu0
      %5295 = vmatprep.mubr.bf16.mxu0 0
      %5296 = vmatmul.mubr.bf16.gmra.mrb[0].mxu0 %v5094
      %v5297 = vpop.f32.mrb[0].mxu0
      %v5298 = vadd.f32 0.0, %v5297
      %v5299 = vpop.f32.mrb[0].mxu0
      %v5300 = vpop.f32.mrb[0].mxu0
      %v5301 = vadd.f32 0.0, %v5300
      %v5302 = vpop.f32.mrb[0].mxu0
      %5303 = vdwg.mxu0
      %v5304 = vadd.f32 %v5014, %v5178
      %v5305 = vadd.f32 %v5015, %v5181
      %v5306 = vadd.f32 %v5016, %v5186
      %v5307 = vadd.f32 %v5017, %v5189
      %v5308 = vadd.f32 %v5018, %v5194
      %v5309 = vadd.f32 %v5019, %v5197
      %v5310 = vadd.f32 %v5020, %v5202
      %v5311 = vadd.f32 %v5021, %v5205
      %v5312 = vadd.f32 %v5022, %v5210
      %v5313 = vadd.f32 %v5023, %v5213
      %v5314 = vadd.f32 %v5024, %v5218
      %v5315 = vadd.f32 %v5025, %v5221
      %v5316 = vadd.f32 %v5026, %v5226
      %v5317 = vadd.f32 %v5027, %v5229
      %v5318 = vadd.f32 %v5028, %v5234
      %v5319 = vadd.f32 %v5029, %v5237
      %v5320 = vadd.f32 %v5030, %v5242
      %v5321 = vadd.f32 %v5031, %v5245
      %v5322 = vadd.f32 %v5032, %v5250
      %v5323 = vadd.f32 %v5033, %v5253
      %v5324 = vadd.f32 %v5034, %v5258
      %v5325 = vadd.f32 %v5035, %v5261
      %v5326 = vadd.f32 %v5036, %v5266
      %v5327 = vadd.f32 %v5037, %v5269
      %v5328 = vadd.f32 %v5038, %v5274
      %v5329 = vadd.f32 %v5039, %v5277
      %v5330 = vadd.f32 %v5040, %v5282
      %v5331 = vadd.f32 %v5041, %v5285
      %v5332 = vadd.f32 %v5042, %v5290
      %v5333 = vadd.f32 %v5043, %v5293
      %v5334 = vadd.f32 %v5044, %v5298
      %v5335 = vadd.f32 %v5045, %v5301
      %v5336 = vld [vmem:[%s5046 + $0x1] sm:$0xff]
      %v5337 = vld [vmem:[%s5046 + $0x9] sm:$0xff]
      %v5338 = vld [vmem:[%s5046 + $0x19] sm:$0xff]
      %v5339 = vld [vmem:[%s5046 + $0x21] sm:$0xff]
      %v5340 = vld [vmem:[%s5046 + $0x31] sm:$0xff]
      %v5341 = vld [vmem:[%s5046 + $0x39] sm:$0xff]
      %v5342 = vld [vmem:[%s5046 + $0x49] sm:$0xff]
      %v5343 = vld [vmem:[%s5046 + $0x51] sm:$0xff]
      %v5344 = vld [vmem:[%s5046 + $0x61] sm:$0xff]
      %v5345 = vld [vmem:[%s5046 + $0x69] sm:$0xff]
      %v5346 = vld [vmem:[%s5046 + $0x79] sm:$0xff]
      %v5347 = vld [vmem:[%s5046 + $0x81] sm:$0xff]
      %v5348 = vld [vmem:[%s5046 + $0x91] sm:$0xff]
      %v5349 = vld [vmem:[%s5046 + $0x99] sm:$0xff]
      %v5350 = vld [vmem:[%s5046 + $0xa9] sm:$0xff]
      %v5351 = vld [vmem:[%s5046 + $0xb1] sm:$0xff]
      %v5352 = vld [vmem:[%s5046 + $0xc1] sm:$0xff]
      %v5353 = vld [vmem:[%s5046 + $0xc9] sm:$0xff]
      %v5354 = vld [vmem:[%s5046 + $0xd9] sm:$0xff]
      %v5355 = vld [vmem:[%s5046 + $0xe1] sm:$0xff]
      %v5356 = vld [vmem:[%s5046 + $0xf1] sm:$0xff]
      %v5357 = vld [vmem:[%s5046 + $0xf9] sm:$0xff]
      %v5358 = vld [vmem:[%s5046 + $0x109] sm:$0xff]
      %v5359 = vld [vmem:[%s5046 + $0x111] sm:$0xff]
      %v5360 = vld [vmem:[%s5046 + $0x121] sm:$0xff]
      %v5361 = vld [vmem:[%s5046 + $0x129] sm:$0xff]
      %v5362 = vld [vmem:[%s5046 + $0x139] sm:$0xff]
      %v5363 = vld [vmem:[%s5046 + $0x141] sm:$0xff]
      %v5364 = vld [vmem:[%s5046 + $0x151] sm:$0xff]
      %v5365 = vld [vmem:[%s5046 + $0x159] sm:$0xff]
      %v5366 = vld [vmem:[%s5046 + $0x169] sm:$0xff]
      %v5367 = vld [vmem:[%s5046 + $0x171] sm:$0xff]
      %v5368 = vpack.c.bf16 %v5337, %v5336
      %v5369 = vpack.c.bf16 %v5339, %v5338
      %v5370 = vpack.c.bf16 %v5341, %v5340
      %v5371 = vpack.c.bf16 %v5343, %v5342
      %v5372 = vpack.c.bf16 %v5345, %v5344
      %v5373 = vpack.c.bf16 %v5347, %v5346
      %v5374 = vpack.c.bf16 %v5349, %v5348
      %v5375 = vpack.c.bf16 %v5351, %v5350
      %v5376 = vpack.c.bf16 %v5353, %v5352
      %v5377 = vpack.c.bf16 %v5355, %v5354
      %v5378 = vpack.c.bf16 %v5357, %v5356
      %v5379 = vpack.c.bf16 %v5359, %v5358
      %v5380 = vpack.c.bf16 %v5361, %v5360
      %v5381 = vpack.c.bf16 %v5363, %v5362
      %v5382 = vpack.c.bf16 %v5365, %v5364
      %v5383 = vpack.c.bf16 %v5367, %v5366
      %v5400 = vunpack.c.l.b16 %v3343
      %v5401 = vunpack.c.l.b16 %v3344
      %v5402 = vunpack.c.l.b16 %v3345
      %v5403 = vunpack.c.l.b16 %v3346
      %v5404 = vunpack.c.l.b16 %v3347
      %v5405 = vunpack.c.l.b16 %v3348
      %v5406 = vunpack.c.l.b16 %v3349
      %v5407 = vunpack.c.l.b16 %v3350
      %v5408 = vunpack.c.l.b16 %v3351
      %v5409 = vunpack.c.l.b16 %v3352
      %v5410 = vunpack.c.l.b16 %v3353
      %v5411 = vunpack.c.l.b16 %v3354
      %v5412 = vunpack.c.l.b16 %v3355
      %v5413 = vunpack.c.l.b16 %v3356
      %v5414 = vunpack.c.l.b16 %v3357
      %v5415 = vunpack.c.l.b16 %v3358
      %v5416 = vpack.c.b16 %v5401, %v5400
      %v5417 = vpack.c.b16 %v5403, %v5402
      %v5418 = vpack.c.b16 %v5405, %v5404
      %v5419 = vpack.c.b16 %v5407, %v5406
      %v5420 = vpack.c.b16 %v5409, %v5408
      %v5421 = vpack.c.b16 %v5411, %v5410
      %v5422 = vpack.c.b16 %v5413, %v5412
      %v5423 = vpack.c.b16 %v5415, %v5414
      %5432 = vmatprep.subr.bf16.mxu0 0
      %5433 = vmatpush1.bf16.msra.mxu0 %v5416
      %5434 = vmatprep.subr.bf16.mxu0 0
      %5435 = vmatpush1.bf16.msra.mxu0 %v5417
      %5436 = vmatprep.subr.bf16.mxu0 0
      %5437 = vmatpush1.bf16.msra.mxu0 %v5418
      %5438 = vmatprep.subr.bf16.mxu0 0
      %5439 = vmatpush1.bf16.msra.mxu0 %v5419
      %5440 = vmatprep.subr.bf16.mxu0 0
      %5441 = vmatpush1.bf16.msra.mxu0 %v5420
      %5442 = vmatprep.subr.bf16.mxu0 0
      %5443 = vmatpush1.bf16.msra.mxu0 %v5421
      %5444 = vmatprep.subr.bf16.mxu0 0
      %5445 = vmatpush1.bf16.msra.mxu0 %v5422
      %5446 = vmatprep.subr.bf16.mxu0 0
      %5447 = vmatpush1.bf16.msra.mxu0 %v5423
      %5448 = vmatprep.subr.bf16.mxu0 0
      %5449 = vmatpush1.bf16.msra.mxu0 0
      %5450 = vmatprep.subr.bf16.mxu0 0
      %5451 = vmatpush1.bf16.msra.mxu0 0
      %5452 = vmatprep.subr.bf16.mxu0 0
      %5453 = vmatpush1.bf16.msra.mxu0 0
      %5454 = vmatprep.subr.bf16.mxu0 0
      %5455 = vmatpush1.bf16.msra.mxu0 0
      %5456 = vmatprep.subr.bf16.mxu0 0
      %5457 = vmatpush1.bf16.msra.mxu0 0
      %5458 = vmatprep.subr.bf16.mxu0 0
      %5459 = vmatpush1.bf16.msra.mxu0 0
      %5460 = vmatprep.subr.bf16.mxu0 0
      %5461 = vmatpush1.bf16.msra.mxu0 0
      %5462 = vmatprep.subr.bf16.mxu0 0
      %5463 = vmatpush1.bf16.msra.mxu0 0
      %5464 = vmatprep.mubr.bf16.mxu0 0
      %5465 = vmatmul.mubr.bf16.gmra.mrb[0].mxu0 %v5368
      %v5466 = vpop.f32.mrb[0].mxu0
      %v5467 = vadd.f32 0.0, %v5466
      %v5468 = vpop.f32.mrb[0].mxu0
      %v5469 = vpop.f32.mrb[0].mxu0
      %v5470 = vadd.f32 0.0, %v5469
      %v5471 = vpop.f32.mrb[0].mxu0
      %5472 = vmatprep.mubr.bf16.mxu0 0
      %5473 = vmatmul.mubr.bf16.gmra.mrb[0].mxu0 %v5369
      %v5474 = vpop.f32.mrb[0].mxu0
      %v5475 = vadd.f32 0.0, %v5474
      %v5476 = vpop.f32.mrb[0].mxu0
      %v5477 = vpop.f32.mrb[0].mxu0
      %v5478 = vadd.f32 0.0, %v5477
      %v5479 = vpop.f32.mrb[0].mxu0
      %5480 = vmatprep.mubr.bf16.mxu0 0
      %5481 = vmatmul.mubr.bf16.gmra.mrb[0].mxu0 %v5370
      %v5482 = vpop.f32.mrb[0].mxu0
      %v5483 = vadd.f32 0.0, %v5482
      %v5484 = vpop.f32.mrb[0].mxu0
      %v5485 = vpop.f32.mrb[0].mxu0
      %v5486 = vadd.f32 0.0, %v5485
      %v5487 = vpop.f32.mrb[0].mxu0
      %5488 = vmatprep.mubr.bf16.mxu0 0
      %5489 = vmatmul.mubr.bf16.gmra.mrb[0].mxu0 %v5371
      %v5490 = vpop.f32.mrb[0].mxu0
      %v5491 = vadd.f32 0.0, %v5490
      %v5492 = vpop.f32.mrb[0].mxu0
      %v5493 = vpop.f32.mrb[0].mxu0
      %v5494 = vadd.f32 0.0, %v5493
      %v5495 = vpop.f32.mrb[0].mxu0
      %5496 = vmatprep.mubr.bf16.mxu0 0
      %5497 = vmatmul.mubr.bf16.gmra.mrb[0].mxu0 %v5372
      %v5498 = vpop.f32.mrb[0].mxu0
      %v5499 = vadd.f32 0.0, %v5498
      %v5500 = vpop.f32.mrb[0].mxu0
      %v5501 = vpop.f32.mrb[0].mxu0
      %v5502 = vadd.f32 0.0, %v5501
      %v5503 = vpop.f32.mrb[0].mxu0
      %5504 = vmatprep.mubr.bf16.mxu0 0
      %5505 = vmatmul.mubr.bf16.gmra.mrb[0].mxu0 %v5373
      %v5506 = vpop.f32.mrb[0].mxu0
      %v5507 = vadd.f32 0.0, %v5506
      %v5508 = vpop.f32.mrb[0].mxu0
      %v5509 = vpop.f32.mrb[0].mxu0
      %v5510 = vadd.f32 0.0, %v5509
      %v5511 = vpop.f32.mrb[0].mxu0
      %5512 = vmatprep.mubr.bf16.mxu0 0
      %5513 = vmatmul.mubr.bf16.gmra.mrb[0].mxu0 %v5374
      %v5514 = vpop.f32.mrb[0].mxu0
      %v5515 = vadd.f32 0.0, %v5514
      %v5516 = vpop.f32.mrb[0].mxu0
      %v5517 = vpop.f32.mrb[0].mxu0
      %v5518 = vadd.f32 0.0, %v5517
      %v5519 = vpop.f32.mrb[0].mxu0
      %5520 = vmatprep.mubr.bf16.mxu0 0
      %5521 = vmatmul.mubr.bf16.gmra.mrb[0].mxu0 %v5375
      %v5522 = vpop.f32.mrb[0].mxu0
      %v5523 = vadd.f32 0.0, %v5522
      %v5524 = vpop.f32.mrb[0].mxu0
      %v5525 = vpop.f32.mrb[0].mxu0
      %v5526 = vadd.f32 0.0, %v5525
      %v5527 = vpop.f32.mrb[0].mxu0
      %5528 = vmatprep.mubr.bf16.mxu0 0
      %5529 = vmatmul.mubr.bf16.gmra.mrb[0].mxu0 %v5376
      %v5530 = vpop.f32.mrb[0].mxu0
      %v5531 = vadd.f32 0.0, %v5530
      %v5532 = vpop.f32.mrb[0].mxu0
      %v5533 = vpop.f32.mrb[0].mxu0
      %v5534 = vadd.f32 0.0, %v5533
      %v5535 = vpop.f32.mrb[0].mxu0
      %5536 = vmatprep.mubr.bf16.mxu0 0
      %5537 = vmatmul.mubr.bf16.gmra.mrb[0].mxu0 %v5377
      %v5538 = vpop.f32.mrb[0].mxu0
      %v5539 = vadd.f32 0.0, %v5538
      %v5540 = vpop.f32.mrb[0].mxu0
      %v5541 = vpop.f32.mrb[0].mxu0
      %v5542 = vadd.f32 0.0, %v5541
      %v5543 = vpop.f32.mrb[0].mxu0
      %5544 = vmatprep.mubr.bf16.mxu0 0
      %5545 = vmatmul.mubr.bf16.gmra.mrb[0].mxu0 %v5378
      %v5546 = vpop.f32.mrb[0].mxu0
      %v5547 = vadd.f32 0.0, %v5546
      %v5548 = vpop.f32.mrb[0].mxu0
      %v5549 = vpop.f32.mrb[0].mxu0
      %v5550 = vadd.f32 0.0, %v5549
      %v5551 = vpop.f32.mrb[0].mxu0
      %5552 = vmatprep.mubr.bf16.mxu0 0
      %5553 = vmatmul.mubr.bf16.gmra.mrb[0].mxu0 %v5379
      %v5554 = vpop.f32.mrb[0].mxu0
      %v5555 = vadd.f32 0.0, %v5554
      %v5556 = vpop.f32.mrb[0].mxu0
      %v5557 = vpop.f32.mrb[0].mxu0
      %v5558 = vadd.f32 0.0, %v5557
      %v5559 = vpop.f32.mrb[0].mxu0
      %5560 = vmatprep.mubr.bf16.mxu0 0
      %5561 = vmatmul.mubr.bf16.gmra.mrb[0].mxu0 %v5380
      %v5562 = vpop.f32.mrb[0].mxu0
      %v5563 = vadd.f32 0.0, %v5562
      %v5564 = vpop.f32.mrb[0].mxu0
      %v5565 = vpop.f32.mrb[0].mxu0
      %v5566 = vadd.f32 0.0, %v5565
      %v5567 = vpop.f32.mrb[0].mxu0
      %5568 = vmatprep.mubr.bf16.mxu0 0
      %5569 = vmatmul.mubr.bf16.gmra.mrb[0].mxu0 %v5381
      %v5570 = vpop.f32.mrb[0].mxu0
      %v5571 = vadd.f32 0.0, %v5570
      %v5572 = vpop.f32.mrb[0].mxu0
      %v5573 = vpop.f32.mrb[0].mxu0
      %v5574 = vadd.f32 0.0, %v5573
      %v5575 = vpop.f32.mrb[0].mxu0
      %5576 = vmatprep.mubr.bf16.mxu0 0
      %5577 = vmatmul.mubr.bf16.gmra.mrb[0].mxu0 %v5382
      %v5578 = vpop.f32.mrb[0].mxu0
      %v5579 = vadd.f32 0.0, %v5578
      %v5580 = vpop.f32.mrb[0].mxu0
      %v5581 = vpop.f32.mrb[0].mxu0
      %v5582 = vadd.f32 0.0, %v5581
      %v5583 = vpop.f32.mrb[0].mxu0
      %5584 = vmatprep.mubr.bf16.mxu0 0
      %5585 = vmatmul.mubr.bf16.gmra.mrb[0].mxu0 %v5383
      %v5586 = vpop.f32.mrb[0].mxu0
      %v5587 = vadd.f32 0.0, %v5586
      %v5588 = vpop.f32.mrb[0].mxu0
      %v5589 = vpop.f32.mrb[0].mxu0
      %v5590 = vadd.f32 0.0, %v5589
      %v5591 = vpop.f32.mrb[0].mxu0
      %5592 = vdwg.mxu0
      %v5593 = vadd.f32 %v5304, %v5467
      %v5594 = vadd.f32 %v5305, %v5470
      %v5595 = vadd.f32 %v5306, %v5475
      %v5596 = vadd.f32 %v5307, %v5478
      %v5597 = vadd.f32 %v5308, %v5483
      %v5598 = vadd.f32 %v5309, %v5486
      %v5599 = vadd.f32 %v5310, %v5491
      %v5600 = vadd.f32 %v5311, %v5494
      %v5601 = vadd.f32 %v5312, %v5499
      %v5602 = vadd.f32 %v5313, %v5502
      %v5603 = vadd.f32 %v5314, %v5507
      %v5604 = vadd.f32 %v5315, %v5510
      %v5605 = vadd.f32 %v5316, %v5515
      %v5606 = vadd.f32 %v5317, %v5518
      %v5607 = vadd.f32 %v5318, %v5523
      %v5608 = vadd.f32 %v5319, %v5526
      %v5609 = vadd.f32 %v5320, %v5531
      %v5610 = vadd.f32 %v5321, %v5534
      %v5611 = vadd.f32 %v5322, %v5539
      %v5612 = vadd.f32 %v5323, %v5542
      %v5613 = vadd.f32 %v5324, %v5547
      %v5614 = vadd.f32 %v5325, %v5550
      %v5615 = vadd.f32 %v5326, %v5555
      %v5616 = vadd.f32 %v5327, %v5558
      %v5617 = vadd.f32 %v5328, %v5563
      %v5618 = vadd.f32 %v5329, %v5566
      %v5619 = vadd.f32 %v5330, %v5571
      %v5620 = vadd.f32 %v5331, %v5574
      %v5621 = vadd.f32 %v5332, %v5579
      %v5622 = vadd.f32 %v5333, %v5582
      %v5623 = vadd.f32 %v5334, %v5587
      %v5624 = vadd.f32 %v5335, %v5590
      %v5625 = vld [vmem:[%s5046 + $0x2] sm:$0xff]
      %v5626 = vld [vmem:[%s5046 + $0xa] sm:$0xff]
      %v5627 = vld [vmem:[%s5046 + $0x1a] sm:$0xff]
      %v5628 = vld [vmem:[%s5046 + $0x22] sm:$0xff]
      %v5629 = vld [vmem:[%s5046 + $0x32] sm:$0xff]
      %v5630 = vld [vmem:[%s5046 + $0x3a] sm:$0xff]
      %v5631 = vld [vmem:[%s5046 + $0x4a] sm:$0xff]
      %v5632 = vld [vmem:[%s5046 + $0x52] sm:$0xff]
      %v5633 = vld [vmem:[%s5046 + $0x62] sm:$0xff]
      %v5634 = vld [vmem:[%s5046 + $0x6a] sm:$0xff]
      %v5635 = vld [vmem:[%s5046 + $0x7a] sm:$0xff]
      %v5636 = vld [vmem:[%s5046 + $0x82] sm:$0xff]
      %v5637 = vld [vmem:[%s5046 + $0x92] sm:$0xff]
      %v5638 = vld [vmem:[%s5046 + $0x9a] sm:$0xff]
      %v5639 = vld [vmem:[%s5046 + $0xaa] sm:$0xff]
      %v5640 = vld [vmem:[%s5046 + $0xb2] sm:$0xff]
      %v5641 = vld [vmem:[%s5046 + $0xc2] sm:$0xff]
      %v5642 = vld [vmem:[%s5046 + $0xca] sm:$0xff]
      %v5643 = vld [vmem:[%s5046 + $0xda] sm:$0xff]
      %v5644 = vld [vmem:[%s5046 + $0xe2] sm:$0xff]
      %v5645 = vld [vmem:[%s5046 + $0xf2] sm:$0xff]
      %v5646 = vld [vmem:[%s5046 + $0xfa] sm:$0xff]
      %v5647 = vld [vmem:[%s5046 + $0x10a] sm:$0xff]
      %v5648 = vld [vmem:[%s5046 + $0x112] sm:$0xff]
      %v5649 = vld [vmem:[%s5046 + $0x122] sm:$0xff]
      %v5650 = vld [vmem:[%s5046 + $0x12a] sm:$0xff]
      %v5651 = vld [vmem:[%s5046 + $0x13a] sm:$0xff]
      %v5652 = vld [vmem:[%s5046 + $0x142] sm:$0xff]
      %v5653 = vld [vmem:[%s5046 + $0x152] sm:$0xff]
      %v5654 = vld [vmem:[%s5046 + $0x15a] sm:$0xff]
      %v5655 = vld [vmem:[%s5046 + $0x16a] sm:$0xff]
      %v5656 = vld [vmem:[%s5046 + $0x172] sm:$0xff]
      %v5657 = vpack.c.bf16 %v5626, %v5625
      %v5658 = vpack.c.bf16 %v5628, %v5627
      %v5659 = vpack.c.bf16 %v5630, %v5629
      %v5660 = vpack.c.bf16 %v5632, %v5631
      %v5661 = vpack.c.bf16 %v5634, %v5633
      %v5662 = vpack.c.bf16 %v5636, %v5635
      %v5663 = vpack.c.bf16 %v5638, %v5637
      %v5664 = vpack.c.bf16 %v5640, %v5639
      %v5665 = vpack.c.bf16 %v5642, %v5641
      %v5666 = vpack.c.bf16 %v5644, %v5643
      %v5667 = vpack.c.bf16 %v5646, %v5645
      %v5668 = vpack.c.bf16 %v5648, %v5647
      %v5669 = vpack.c.bf16 %v5650, %v5649
      %v5670 = vpack.c.bf16 %v5652, %v5651
      %v5671 = vpack.c.bf16 %v5654, %v5653
      %v5672 = vpack.c.bf16 %v5656, %v5655
      %v5689 = vunpack.c.l.b16 %v3359
      %v5690 = vunpack.c.l.b16 %v3360
      %v5691 = vunpack.c.l.b16 %v3361
      %v5692 = vunpack.c.l.b16 %v3362
      %v5693 = vunpack.c.l.b16 %v3363
      %v5694 = vunpack.c.l.b16 %v3364
      %v5695 = vunpack.c.l.b16 %v3365
      %v5696 = vunpack.c.l.b16 %v3366
      %v5697 = vunpack.c.l.b16 %v3367
      %v5698 = vunpack.c.l.b16 %v3368
      %v5699 = vunpack.c.l.b16 %v3369
      %v5700 = vunpack.c.l.b16 %v3370
      %v5701 = vunpack.c.l.b16 %v3371
      %v5702 = vunpack.c.l.b16 %v3372
      %v5703 = vunpack.c.l.b16 %v3373
      %v5704 = vunpack.c.l.b16 %v3374
      %v5705 = vpack.c.b16 %v5690, %v5689
      %v5706 = vpack.c.b16 %v5692, %v5691
      %v5707 = vpack.c.b16 %v5694, %v5693
      %v5708 = vpack.c.b16 %v5696, %v5695
      %v5709 = vpack.c.b16 %v5698, %v5697
      %v5710 = vpack.c.b16 %v5700, %v5699
      %v5711 = vpack.c.b16 %v5702, %v5701
      %v5712 = vpack.c.b16 %v5704, %v5703
      %5721 = vmatprep.subr.bf16.mxu0 0
      %5722 = vmatpush1.bf16.msra.mxu0 %v5705
      %5723 = vmatprep.subr.bf16.mxu0 0
      %5724 = vmatpush1.bf16.msra.mxu0 %v5706
      %5725 = vmatprep.subr.bf16.mxu0 0
      %5726 = vmatpush1.bf16.msra.mxu0 %v5707
      %5727 = vmatprep.subr.bf16.mxu0 0
      %5728 = vmatpush1.bf16.msra.mxu0 %v5708
      %5729 = vmatprep.subr.bf16.mxu0 0
      %5730 = vmatpush1.bf16.msra.mxu0 %v5709
      %5731 = vmatprep.subr.bf16.mxu0 0
      %5732 = vmatpush1.bf16.msra.mxu0 %v5710
      %5733 = vmatprep.subr.bf16.mxu0 0
      %5734 = vmatpush1.bf16.msra.mxu0 %v5711
      %5735 = vmatprep.subr.bf16.mxu0 0
      %5736 = vmatpush1.bf16.msra.mxu0 %v5712
      %5737 = vmatprep.subr.bf16.mxu0 0
      %5738 = vmatpush1.bf16.msra.mxu0 0
      %5739 = vmatprep.subr.bf16.mxu0 0
      %5740 = vmatpush1.bf16.msra.mxu0 0
      %5741 = vmatprep.subr.bf16.mxu0 0
      %5742 = vmatpush1.bf16.msra.mxu0 0
      %5743 = vmatprep.subr.bf16.mxu0 0
      %5744 = vmatpush1.bf16.msra.mxu0 0
      %5745 = vmatprep.subr.bf16.mxu0 0
      %5746 = vmatpush1.bf16.msra.mxu0 0
      %5747 = vmatprep.subr.bf16.mxu0 0
      %5748 = vmatpush1.bf16.msra.mxu0 0
      %5749 = vmatprep.subr.bf16.mxu0 0
      %5750 = vmatpush1.bf16.msra.mxu0 0
      %5751 = vmatprep.subr.bf16.mxu0 0
      %5752 = vmatpush1.bf16.msra.mxu0 0
      %5753 = vmatprep.mubr.bf16.mxu0 0
      %5754 = vmatmul.mubr.bf16.gmra.mrb[0].mxu0 %v5657
      %v5755 = vpop.f32.mrb[0].mxu0
      %v5756 = vadd.f32 0.0, %v5755
      %v5757 = vpop.f32.mrb[0].mxu0
      %v5758 = vpop.f32.mrb[0].mxu0
      %v5759 = vadd.f32 0.0, %v5758
      %v5760 = vpop.f32.mrb[0].mxu0
      %5761 = vmatprep.mubr.bf16.mxu0 0
      %5762 = vmatmul.mubr.bf16.gmra.mrb[0].mxu0 %v5658
      %v5763 = vpop.f32.mrb[0].mxu0
      %v5764 = vadd.f32 0.0, %v5763
      %v5765 = vpop.f32.mrb[0].mxu0
      %v5766 = vpop.f32.mrb[0].mxu0
      %v5767 = vadd.f32 0.0, %v5766
      %v5768 = vpop.f32.mrb[0].mxu0
      %5769 = vmatprep.mubr.bf16.mxu0 0
      %5770 = vmatmul.mubr.bf16.gmra.mrb[0].mxu0 %v5659
      %v5771 = vpop.f32.mrb[0].mxu0
      %v5772 = vadd.f32 0.0, %v5771
      %v5773 = vpop.f32.mrb[0].mxu0
      %v5774 = vpop.f32.mrb[0].mxu0
      %v5775 = vadd.f32 0.0, %v5774
      %v5776 = vpop.f32.mrb[0].mxu0
      %5777 = vmatprep.mubr.bf16.mxu0 0
      %5778 = vmatmul.mubr.bf16.gmra.mrb[0].mxu0 %v5660
      %v5779 = vpop.f32.mrb[0].mxu0
      %v5780 = vadd.f32 0.0, %v5779
      %v5781 = vpop.f32.mrb[0].mxu0
      %v5782 = vpop.f32.mrb[0].mxu0
      %v5783 = vadd.f32 0.0, %v5782
      %v5784 = vpop.f32.mrb[0].mxu0
      %5785 = vmatprep.mubr.bf16.mxu0 0
      %5786 = vmatmul.mubr.bf16.gmra.mrb[0].mxu0 %v5661
      %v5787 = vpop.f32.mrb[0].mxu0
      %v5788 = vadd.f32 0.0, %v5787
      %v5789 = vpop.f32.mrb[0].mxu0
      %v5790 = vpop.f32.mrb[0].mxu0
      %v5791 = vadd.f32 0.0, %v5790
      %v5792 = vpop.f32.mrb[0].mxu0
      %5793 = vmatprep.mubr.bf16.mxu0 0
      %5794 = vmatmul.mubr.bf16.gmra.mrb[0].mxu0 %v5662
      %v5795 = vpop.f32.mrb[0].mxu0
      %v5796 = vadd.f32 0.0, %v5795
      %v5797 = vpop.f32.mrb[0].mxu0
      %v5798 = vpop.f32.mrb[0].mxu0
      %v5799 = vadd.f32 0.0, %v5798
      %v5800 = vpop.f32.mrb[0].mxu0
      %5801 = vmatprep.mubr.bf16.mxu0 0
      %5802 = vmatmul.mubr.bf16.gmra.mrb[0].mxu0 %v5663
      %v5803 = vpop.f32.mrb[0].mxu0
      %v5804 = vadd.f32 0.0, %v5803
      %v5805 = vpop.f32.mrb[0].mxu0
      %v5806 = vpop.f32.mrb[0].mxu0
      %v5807 = vadd.f32 0.0, %v5806
      %v5808 = vpop.f32.mrb[0].mxu0
      %5809 = vmatprep.mubr.bf16.mxu0 0
      %5810 = vmatmul.mubr.bf16.gmra.mrb[0].mxu0 %v5664
      %v5811 = vpop.f32.mrb[0].mxu0
      %v5812 = vadd.f32 0.0, %v5811
      %v5813 = vpop.f32.mrb[0].mxu0
      %v5814 = vpop.f32.mrb[0].mxu0
      %v5815 = vadd.f32 0.0, %v5814
      %v5816 = vpop.f32.mrb[0].mxu0
      %5817 = vmatprep.mubr.bf16.mxu0 0
      %5818 = vmatmul.mubr.bf16.gmra.mrb[0].mxu0 %v5665
      %v5819 = vpop.f32.mrb[0].mxu0
      %v5820 = vadd.f32 0.0, %v5819
      %v5821 = vpop.f32.mrb[0].mxu0
      %v5822 = vpop.f32.mrb[0].mxu0
      %v5823 = vadd.f32 0.0, %v5822
      %v5824 = vpop.f32.mrb[0].mxu0
      %5825 = vmatprep.mubr.bf16.mxu0 0
      %5826 = vmatmul.mubr.bf16.gmra.mrb[0].mxu0 %v5666
      %v5827 = vpop.f32.mrb[0].mxu0
      %v5828 = vadd.f32 0.0, %v5827
      %v5829 = vpop.f32.mrb[0].mxu0
      %v5830 = vpop.f32.mrb[0].mxu0
      %v5831 = vadd.f32 0.0, %v5830
      %v5832 = vpop.f32.mrb[0].mxu0
      %5833 = vmatprep.mubr.bf16.mxu0 0
      %5834 = vmatmul.mubr.bf16.gmra.mrb[0].mxu0 %v5667
      %v5835 = vpop.f32.mrb[0].mxu0
      %v5836 = vadd.f32 0.0, %v5835
      %v5837 = vpop.f32.mrb[0].mxu0
      %v5838 = vpop.f32.mrb[0].mxu0
      %v5839 = vadd.f32 0.0, %v5838
      %v5840 = vpop.f32.mrb[0].mxu0
      %5841 = vmatprep.mubr.bf16.mxu0 0
      %5842 = vmatmul.mubr.bf16.gmra.mrb[0].mxu0 %v5668
      %v5843 = vpop.f32.mrb[0].mxu0
      %v5844 = vadd.f32 0.0, %v5843
      %v5845 = vpop.f32.mrb[0].mxu0
      %v5846 = vpop.f32.mrb[0].mxu0
      %v5847 = vadd.f32 0.0, %v5846
      %v5848 = vpop.f32.mrb[0].mxu0
      %5849 = vmatprep.mubr.bf16.mxu0 0
      %5850 = vmatmul.mubr.bf16.gmra.mrb[0].mxu0 %v5669
      %v5851 = vpop.f32.mrb[0].mxu0
      %v5852 = vadd.f32 0.0, %v5851
      %v5853 = vpop.f32.mrb[0].mxu0
      %v5854 = vpop.f32.mrb[0].mxu0
      %v5855 = vadd.f32 0.0, %v5854
      %v5856 = vpop.f32.mrb[0].mxu0
      %5857 = vmatprep.mubr.bf16.mxu0 0
      %5858 = vmatmul.mubr.bf16.gmra.mrb[0].mxu0 %v5670
      %v5859 = vpop.f32.mrb[0].mxu0
      %v5860 = vadd.f32 0.0, %v5859
      %v5861 = vpop.f32.mrb[0].mxu0
      %v5862 = vpop.f32.mrb[0].mxu0
      %v5863 = vadd.f32 0.0, %v5862
      %v5864 = vpop.f32.mrb[0].mxu0
      %5865 = vmatprep.mubr.bf16.mxu0 0
      %5866 = vmatmul.mubr.bf16.gmra.mrb[0].mxu0 %v5671
      %v5867 = vpop.f32.mrb[0].mxu0
      %v5868 = vadd.f32 0.0, %v5867
      %v5869 = vpop.f32.mrb[0].mxu0
      %v5870 = vpop.f32.mrb[0].mxu0
      %v5871 = vadd.f32 0.0, %v5870
      %v5872 = vpop.f32.mrb[0].mxu0
      %5873 = vmatprep.mubr.bf16.mxu0 0
      %5874 = vmatmul.mubr.bf16.gmra.mrb[0].mxu0 %v5672
      %v5875 = vpop.f32.mrb[0].mxu0
      %v5876 = vadd.f32 0.0, %v5875
      %v5877 = vpop.f32.mrb[0].mxu0
      %v5878 = vpop.f32.mrb[0].mxu0
      %v5879 = vadd.f32 0.0, %v5878
      %v5880 = vpop.f32.mrb[0].mxu0
      %5881 = vdwg.mxu0
      %v5882 = vadd.f32 %v5593, %v5756
      %v5883 = vadd.f32 %v5594, %v5759
      %v5884 = vadd.f32 %v5595, %v5764
      %v5885 = vadd.f32 %v5596, %v5767
      %v5886 = vadd.f32 %v5597, %v5772
      %v5887 = vadd.f32 %v5598, %v5775
      %v5888 = vadd.f32 %v5599, %v5780
      %v5889 = vadd.f32 %v5600, %v5783
      %v5890 = vadd.f32 %v5601, %v5788
      %v5891 = vadd.f32 %v5602, %v5791
      %v5892 = vadd.f32 %v5603, %v5796
      %v5893 = vadd.f32 %v5604, %v5799
      %v5894 = vadd.f32 %v5605, %v5804
      %v5895 = vadd.f32 %v5606, %v5807
      %v5896 = vadd.f32 %v5607, %v5812
      %v5897 = vadd.f32 %v5608, %v5815
      %v5898 = vadd.f32 %v5609, %v5820
      %v5899 = vadd.f32 %v5610, %v5823
      %v5900 = vadd.f32 %v5611, %v5828
      %v5901 = vadd.f32 %v5612, %v5831
      %v5902 = vadd.f32 %v5613, %v5836
      %v5903 = vadd.f32 %v5614, %v5839
      %v5904 = vadd.f32 %v5615, %v5844
      %v5905 = vadd.f32 %v5616, %v5847
      %v5906 = vadd.f32 %v5617, %v5852
      %v5907 = vadd.f32 %v5618, %v5855
      %v5908 = vadd.f32 %v5619, %v5860
      %v5909 = vadd.f32 %v5620, %v5863
      %v5910 = vadd.f32 %v5621, %v5868
      %v5911 = vadd.f32 %v5622, %v5871
      %v5912 = vadd.f32 %v5623, %v5876
      %v5913 = vadd.f32 %v5624, %v5879
      %v5915 = vlaneseq
      %v5916 = vshrl.u32 %v5915, 7
      %v5917 = vsub.s32 0, %v5916
      %v5918 = vrot.slane %v3375, %v5917
      %v5920 = vadd.f32 %v5882, %v5918
      %v5921 = vadd.f32 %v5883, %v5918
      %v5922 = vadd.f32 %v5884, %v5918
      %v5923 = vadd.f32 %v5885, %v5918
      %v5924 = vadd.f32 %v5886, %v5918
      %v5925 = vadd.f32 %v5887, %v5918
      %v5926 = vadd.f32 %v5888, %v5918
      %v5927 = vadd.f32 %v5889, %v5918
      %v5928 = vadd.f32 %v5890, %v5918
      %v5929 = vadd.f32 %v5891, %v5918
      %v5930 = vadd.f32 %v5892, %v5918
      %v5931 = vadd.f32 %v5893, %v5918
      %v5932 = vadd.f32 %v5894, %v5918
      %v5933 = vadd.f32 %v5895, %v5918
      %v5934 = vadd.f32 %v5896, %v5918
      %v5935 = vadd.f32 %v5897, %v5918
      %v5936 = vadd.f32 %v5898, %v5918
      %v5937 = vadd.f32 %v5899, %v5918
      %v5938 = vadd.f32 %v5900, %v5918
      %v5939 = vadd.f32 %v5901, %v5918
      %v5940 = vadd.f32 %v5902, %v5918
      %v5941 = vadd.f32 %v5903, %v5918
      %v5942 = vadd.f32 %v5904, %v5918
      %v5943 = vadd.f32 %v5905, %v5918
      %v5944 = vadd.f32 %v5906, %v5918
      %v5945 = vadd.f32 %v5907, %v5918
      %v5946 = vadd.f32 %v5908, %v5918
      %v5947 = vadd.f32 %v5909, %v5918
      %v5948 = vadd.f32 %v5910, %v5918
      %v5949 = vadd.f32 %v5911, %v5918
      %v5950 = vadd.f32 %v5912, %v5918
      %v5951 = vadd.f32 %v5913, %v5918
      %v5952 = vld [vmem:[%s219] sm:$0xff]
      %v5953 = vld [vmem:[%s219 + $0x8] sm:$0xff]
      %v5954 = vld [vmem:[%s219 + $0x10] sm:$0xff]
      %v5955 = vld [vmem:[%s219 + $0x18] sm:$0xff]
      %v5956 = vld [vmem:[%s219 + $0x20] sm:$0xff]
      %v5957 = vld [vmem:[%s219 + $0x28] sm:$0xff]
      %v5958 = vld [vmem:[%s219 + $0x30] sm:$0xff]
      %v5959 = vld [vmem:[%s219 + $0x38] sm:$0xff]
      %v5960 = vld [vmem:[%s219 + $0x40] sm:$0xff]
      %v5961 = vld [vmem:[%s219 + $0x48] sm:$0xff]
      %v5962 = vld [vmem:[%s219 + $0x50] sm:$0xff]
      %v5963 = vld [vmem:[%s219 + $0x58] sm:$0xff]
      %v5964 = vld [vmem:[%s219 + $0x60] sm:$0xff]
      %v5965 = vld [vmem:[%s219 + $0x68] sm:$0xff]
      %v5966 = vld [vmem:[%s219 + $0x70] sm:$0xff]
      %v5967 = vld [vmem:[%s219 + $0x78] sm:$0xff]
      %v5968 = vld [vmem:[%s219 + $0x80] sm:$0xff]
      %v5969 = vld [vmem:[%s219 + $0x88] sm:$0xff]
      %v5970 = vld [vmem:[%s219 + $0x90] sm:$0xff]
      %v5971 = vld [vmem:[%s219 + $0x98] sm:$0xff]
      %v5972 = vld [vmem:[%s219 + $0xa0] sm:$0xff]
      %v5973 = vld [vmem:[%s219 + $0xa8] sm:$0xff]
      %v5974 = vld [vmem:[%s219 + $0xb0] sm:$0xff]
      %v5975 = vld [vmem:[%s219 + $0xb8] sm:$0xff]
      %v5976 = vld [vmem:[%s219 + $0xc0] sm:$0xff]
      %v5977 = vld [vmem:[%s219 + $0xc8] sm:$0xff]
      %v5978 = vld [vmem:[%s219 + $0xd0] sm:$0xff]
      %v5979 = vld [vmem:[%s219 + $0xd8] sm:$0xff]
      %v5980 = vld [vmem:[%s219 + $0xe0] sm:$0xff]
      %v5981 = vld [vmem:[%s219 + $0xe8] sm:$0xff]
      %v5982 = vld [vmem:[%s219 + $0xf0] sm:$0xff]
      %v5983 = vld [vmem:[%s219 + $0xf8] sm:$0xff]
      %v5984 = vadd.f32 %v5920, %v5952
      %v5985 = vadd.f32 %v5921, %v5953
      %v5986 = vadd.f32 %v5922, %v5954
      %v5987 = vadd.f32 %v5923, %v5955
      %v5988 = vadd.f32 %v5924, %v5956
      %v5989 = vadd.f32 %v5925, %v5957
      %v5990 = vadd.f32 %v5926, %v5958
      %v5991 = vadd.f32 %v5927, %v5959
      %v5992 = vadd.f32 %v5928, %v5960
      %v5993 = vadd.f32 %v5929, %v5961
      %v5994 = vadd.f32 %v5930, %v5962
      %v5995 = vadd.f32 %v5931, %v5963
      %v5996 = vadd.f32 %v5932, %v5964
      %v5997 = vadd.f32 %v5933, %v5965
      %v5998 = vadd.f32 %v5934, %v5966
      %v5999 = vadd.f32 %v5935, %v5967
      %v6000 = vadd.f32 %v5936, %v5968
      %v6001 = vadd.f32 %v5937, %v5969
      %v6002 = vadd.f32 %v5938, %v5970
      %v6003 = vadd.f32 %v5939, %v5971
      %v6004 = vadd.f32 %v5940, %v5972
      %v6005 = vadd.f32 %v5941, %v5973
      %v6006 = vadd.f32 %v5942, %v5974
      %v6007 = vadd.f32 %v5943, %v5975
      %v6008 = vadd.f32 %v5944, %v5976
      %v6009 = vadd.f32 %v5945, %v5977
      %v6010 = vadd.f32 %v5946, %v5978
      %v6011 = vadd.f32 %v5947, %v5979
      %v6012 = vadd.f32 %v5948, %v5980
      %v6013 = vadd.f32 %v5949, %v5981
      %v6014 = vadd.f32 %v5950, %v5982
      %v6015 = vadd.f32 %v5951, %v5983
      %6016 = vst [vmem:[%s224] sm:$0xff] %v5984
      %6017 = vst [vmem:[%s224 + $0x8] sm:$0xff] %v5985
      %6018 = vst [vmem:[%s224 + $0x10] sm:$0xff] %v5986
      %6019 = vst [vmem:[%s224 + $0x18] sm:$0xff] %v5987
      %6020 = vst [vmem:[%s224 + $0x20] sm:$0xff] %v5988
      %6021 = vst [vmem:[%s224 + $0x28] sm:$0xff] %v5989
      %6022 = vst [vmem:[%s224 + $0x30] sm:$0xff] %v5990
      %6023 = vst [vmem:[%s224 + $0x38] sm:$0xff] %v5991
      %6024 = vst [vmem:[%s224 + $0x40] sm:$0xff] %v5992
      %6025 = vst [vmem:[%s224 + $0x48] sm:$0xff] %v5993
      %6026 = vst [vmem:[%s224 + $0x50] sm:$0xff] %v5994
      %6027 = vst [vmem:[%s224 + $0x58] sm:$0xff] %v5995
      %6028 = vst [vmem:[%s224 + $0x60] sm:$0xff] %v5996
      %6029 = vst [vmem:[%s224 + $0x68] sm:$0xff] %v5997
      %6030 = vst [vmem:[%s224 + $0x70] sm:$0xff] %v5998
      %6031 = vst [vmem:[%s224 + $0x78] sm:$0xff] %v5999
      %6032 = vst [vmem:[%s224 + $0x80] sm:$0xff] %v6000
      %6033 = vst [vmem:[%s224 + $0x88] sm:$0xff] %v6001
      %6034 = vst [vmem:[%s224 + $0x90] sm:$0xff] %v6002
      %6035 = vst [vmem:[%s224 + $0x98] sm:$0xff] %v6003
      %6036 = vst [vmem:[%s224 + $0xa0] sm:$0xff] %v6004
      %6037 = vst [vmem:[%s224 + $0xa8] sm:$0xff] %v6005
      %6038 = vst [vmem:[%s224 + $0xb0] sm:$0xff] %v6006
      %6039 = vst [vmem:[%s224 + $0xb8] sm:$0xff] %v6007
      %6040 = vst [vmem:[%s224 + $0xc0] sm:$0xff] %v6008
      %6041 = vst [vmem:[%s224 + $0xc8] sm:$0xff] %v6009
      %6042 = vst [vmem:[%s224 + $0xd0] sm:$0xff] %v6010
      %6043 = vst [vmem:[%s224 + $0xd8] sm:$0xff] %v6011
      %6044 = vst [vmem:[%s224 + $0xe0] sm:$0xff] %v6012
      %6045 = vst [vmem:[%s224 + $0xe8] sm:$0xff] %v6013
      %6046 = vst [vmem:[%s224 + $0xf0] sm:$0xff] %v6014
      %6047 = vst [vmem:[%s224 + $0xf8] sm:$0xff] %v6015
      %p6048 = scmp.lt.s32.totalorder %s16, 1
      %s6049 = scalar_select %p6048, %s16, 1
      %s6050 = smul.addr %s6049, 32
      %s6051 = smul.addr %s6050, 8
      %s6052 = scalar_lea.vmem %s5, %s6051
      // Predicated region
      $region41: #{residual_block_forward.1} parent=39 // pred_check
        %p6053 = pneg %p144
      $region42: #{residual_block_forward.1} parent=39 // pred_check_branch
        %6055 = sbr.rel (%p6053) target = $region44
      $region43: #{residual_block_forward.1} parent=39 // pred_region
        _
      $region44: #{residual_block_forward.1} parent=39 // pred_fallthru
        _
    $region40: #{residual_block_forward.1} parent=5 // pred_fallthru
      _
    %p6056 = scmp.le.s32.totalorder 2, %s11
    // Predicated region
    $region45: #{residual_block_forward.1} parent=5 // pred_check
      %p6057 = pneg %p6056
    $region46: #{residual_block_forward.1} parent=5 // pred_check_branch
      %6059 = sbr.rel (%p6057) target = $region48
    $region47: #{residual_block_forward.1} parent=5 // pred_region
      %s6060 = ssub.s32 %s11, 2
      // Predicated region
      $region49: #{residual_block_forward.1} parent=47 // pred_check
        %p6061 = pneg %p150
      $region50: #{residual_block_forward.1} parent=47 // pred_check_branch
        %6063 = sbr.rel (%p6061) target = $region52
      $region51: #{residual_block_forward.1} parent=47 // pred_region
        %p6064 = scmp.lt.s32.totalorder %s17, 1
        %s6065 = scalar_select %p6064, %s17, 1
        %s6066 = smul.addr %s6065, 32
        %s6067 = smul.addr %s6066, 8
        %s6068 = scalar_lea.vmem %s5, %s6067
      $region52: #{residual_block_forward.1} parent=47 // pred_fallthru
        _
    $region48: #{residual_block_forward.1} parent=5 // pred_fallthru
      _
  $region6: #{residual_block_forward.1} parent=0 // loop_footer
    %s15 = sadd.s32 1, %s11
  $region7: #{residual_block_forward.1} parent=0 // loop_footer_branch
    %10 = sbr.rel target = $region3
  $region8: #{residual_block_forward.1} parent=0 // loop_exit
    _

</llo_original>
